<compile_context>
chip_gen: v7x
topology: tpu7x:2x2x1
jax: 0.10.0
libtpu: 0.0.40
codegen_flags: <defaults>
</compile_context>

<pallas_src>
import functools

import jax
import jax.numpy as jnp
from jax.experimental import pallas as pl
from jax.experimental.pallas import tpu as pltpu


# ---------------------------------------------------------------------------
# Fused kernel: all layers + time loop + final FC in one invocation.
# ---------------------------------------------------------------------------
def _fused_lstm_kernel(*refs, n_layers, seq_len, batch, hidden_dim):
    """refs layout:
         inputs : x_flat, (w_ih, w_hh, b) * n_layers, fc_w, fc_b
         outputs: out (B, O)
         scratch: xg_i, xg_f, xg_g, xg_o, seq   (each (T*B, H) VMEM)
    """
    T, B, H = seq_len, batch, hidden_dim
    f32 = jnp.float32

    x_ref = refs[0]
    pos = 1
    layer_refs = []
    for _ in range(n_layers):
        layer_refs.append((refs[pos], refs[pos + 1], refs[pos + 2]))
        pos += 3
    fc_w_ref, fc_b_ref = refs[pos], refs[pos + 1]
    out_ref = refs[pos + 2]
    xg_refs = refs[pos + 3:pos + 7]      # per-gate hoisted projections
    seq_scr = refs[pos + 7]              # inter-layer activations (time-major flat)

    for layer in range(n_layers):
        w_ih_ref, w_hh_ref, b_ref = layer_refs[layer]
        is_last = layer == n_layers - 1

        # ---- hoisted input projection: M = T*B matmul per gate, done once ----
        # Row index convention of the flat sequence buffers: row = t*B + b.
        inp = x_ref[...] if layer == 0 else seq_scr[...]         # (T*B, D_in)
        for g in range(4):
            xg_refs[g][...] = (
                jnp.dot(inp, w_ih_ref[g], preferred_element_type=f32) + b_ref[g]
            )

        # Recurrent weights are loop-invariant: load once per layer.
        whh = [w_hh_ref[g] for g in range(4)]                    # 4 x (H, H)

        # ---- sequential recurrence; fully unrolled (T is small & static). ----
        h = jnp.zeros((B, H), f32)
        c = jnp.zeros((B, H), f32)
        for t in range(T):
            row = pl.ds(t * B, B)                                # static slice
            i_g = jax.nn.sigmoid(xg_refs[0][row, :] +
                                 jnp.dot(h, whh[0], preferred_element_type=f32))
            f_g = jax.nn.sigmoid(xg_refs[1][row, :] +
                                 jnp.dot(h, whh[1], preferred_element_type=f32))
            g_g = jnp.tanh(xg_refs[2][row, :] +
                           jnp.dot(h, whh[2], preferred_element_type=f32))
            o_g = jax.nn.sigmoid(xg_refs[3][row, :] +
                                 jnp.dot(h, whh[3], preferred_element_type=f32))
            c = f_g * c + i_g * g_g
            h = o_g * jnp.tanh(c)
            if not is_last:
                # Next layer's input sequence stays in VMEM; its hoisted
                # projection above already consumed the previous contents.
                seq_scr[row, :] = h

        if is_last:
            # Fused final Linear on the last timestep's hidden state.
            out_ref[...] = (
                jnp.dot(h, fc_w_ref[...], preferred_element_type=f32) + fc_b_ref[...]
            ).astype(out_ref.dtype)


# ---------------------------------------------------------------------------
# Wrapper
# ---------------------------------------------------------------------------
def lstm_forward(x_btd, params, hidden_dim):
    """x_btd: (B, T, input_dim) batch_first. Returns (B, output_dim)."""
    B, T, D = x_btd.shape
    H = hidden_dim
    layers = params["layers"]
    n_layers = len(layers)
    fc_w, fc_b = params["fc_w"], params["fc_b"]
    O = fc_w.shape[1]

    # Flatten to time-major (row = t*B + b) once in XLA so the in-kernel hoisted
    # projection is a single static 2-D matmul (tiny copy; fuses with producers).
    x_flat = jnp.transpose(x_btd.astype(jnp.float32), (1, 0, 2)).reshape(T * B, D)

    args = [x_flat]
    for (w_ih, w_hh, b) in layers:
        args += [w_ih, w_hh, b]
    args += [fc_w, fc_b]

    kernel = functools.partial(_fused_lstm_kernel, n_layers=n_layers,
                               seq_len=T, batch=B, hidden_dim=H)
    return pl.pallas_call(
        kernel,
        out_shape=jax.ShapeDtypeStruct((B, O), jnp.float32),
        scratch_shapes=[pltpu.VMEM((T * B, H), jnp.float32) for _ in range(5)],
        compiler_params=pltpu.CompilerParams(vmem_limit_bytes=32 * 1024 * 1024),
    )(*args)


# ---------------------------------------------------------------------------
# Parameter init, gate-major kernel layout (PyTorch-style U(-1/sqrt(H), 1/sqrt(H))).
#   w_ih[g]: (D_in, H)   so  x @ w_ih[g]  == x @ W_ih[gH:(g+1)H].T  (PyTorch)
#   w_hh[g]: (H, H)      so  h @ w_hh[g]  == h @ W_hh[gH:(g+1)H].T
#   b[g]   : (1, H)      == (b_ih + b_hh)[gH:(g+1)H]
# ---------------------------------------------------------------------------
def init_params(key, input_dim, hidden_dim, n_layers, output_dim):
    H = hidden_dim
    k = 1.0 / jnp.sqrt(H)
    layers = []
    for layer in range(n_layers):
        in_dim = input_dim if layer == 0 else H
        key, k1, k2, k3, k4 = jax.random.split(key, 5)
        w_ih = jax.random.uniform(k1, (4, in_dim, H), jnp.float32, -k, k)
        w_hh = jax.random.uniform(k2, (4, H, H), jnp.float32, -k, k)
        b_ih = jax.random.uniform(k3, (4, 1, H), jnp.float32, -k, k)
        b_hh = jax.random.uniform(k4, (4, 1, H), jnp.float32, -k, k)
        layers.append((w_ih, w_hh, b_ih + b_hh))
    key, k5, k6 = jax.random.split(key, 3)
    fc_w = jax.random.uniform(k5, (H, output_dim), jnp.float32, -k, k)
    fc_b = jax.random.uniform(k6, (1, output_dim), jnp.float32, -k, k)
    return {"layers": layers, "fc_w": fc_w, "fc_b": fc_b}


# ---------------------------------------------------------------------------
# Pure-JAX reference (same math, same params) to check the Pallas kernel.
# ---------------------------------------------------------------------------
def lstm_forward_ref(x_btd, params, hidden_dim):
    B, T, _ = x_btd.shape
    H = hidden_dim
    x_tm = jnp.transpose(x_btd.astype(jnp.float32), (1, 0, 2))   # (T, B, D)
    for (w_ih, w_hh, b) in params["layers"]:
        h = jnp.zeros((B, H), jnp.float32)
        c = jnp.zeros((B, H), jnp.float32)
        outs = []
        for t in range(T):
            xt = x_tm[t]
            i = jax.nn.sigmoid((xt @ w_ih[0] + b[0]) + h @ w_hh[0])
            f = jax.nn.sigmoid((xt @ w_ih[1] + b[1]) + h @ w_hh[1])
            g = jnp.tanh((xt @ w_ih[2] + b[2]) + h @ w_hh[2])
            o = jax.nn.sigmoid((xt @ w_ih[3] + b[3]) + h @ w_hh[3])
            c = f * c + i * g
            h = o * jnp.tanh(c)
            outs.append(h)
        x_tm = jnp.stack(outs, axis=0)
    return x_tm[-1] @ params["fc_w"] + params["fc_b"]


if __name__ == "__main__":
    # Small shapes implied by the module: batch=2, seq=8, input_dim=16,
    # hidden_dim=32, n_layers=2, output_dim=4.
    B, T, INPUT_DIM, HIDDEN_DIM, N_LAYERS, OUTPUT_DIM = 2, 8, 16, 32, 2, 4

    key = jax.random.PRNGKey(0)
    key, pkey, xkey = jax.random.split(key, 3)
    params = init_params(pkey, INPUT_DIM, HIDDEN_DIM, N_LAYERS, OUTPUT_DIM)
    x = jax.random.normal(xkey, (B, T, INPUT_DIM), jnp.float32)

    out = jax.block_until_ready(lstm_forward(x, params, HIDDEN_DIM))
    ref = jax.block_until_ready(lstm_forward_ref(x, params, HIDDEN_DIM))

    assert out.shape == (B, OUTPUT_DIM)
    assert jnp.allclose(out, ref, rtol=1e-4, atol=1e-4), float(jnp.max(jnp.abs(out - ref)))
    print("KERNEL_OK")
</pallas_src>

<mosaic_0001>
module attributes {stable_mosaic.version = 11 : i64} {
  func.func @_fused_lstm_kernel(%arg0: memref<16x16xf32, #tpu.memory_space<vmem>>, %arg1: memref<4x16x32xf32, #tpu.memory_space<vmem>>, %arg2: memref<4x32x32xf32, #tpu.memory_space<vmem>>, %arg3: memref<4x1x32xf32, #tpu.memory_space<vmem>>, %arg4: memref<4x32x32xf32, #tpu.memory_space<vmem>>, %arg5: memref<4x32x32xf32, #tpu.memory_space<vmem>>, %arg6: memref<4x1x32xf32, #tpu.memory_space<vmem>>, %arg7: memref<32x4xf32, #tpu.memory_space<vmem>>, %arg8: memref<1x4xf32, #tpu.memory_space<vmem>>, %arg9: memref<2x4xf32, #tpu.memory_space<vmem>>, %arg10: memref<16x32xf32, #tpu.memory_space<vmem>>, %arg11: memref<16x32xf32, #tpu.memory_space<vmem>>, %arg12: memref<16x32xf32, #tpu.memory_space<vmem>>, %arg13: memref<16x32xf32, #tpu.memory_space<vmem>>, %arg14: memref<16x32xf32, #tpu.memory_space<vmem>>) attributes {dimension_semantics = [], scalar_prefetch = 0 : i64, scratch_operands = 5 : i64, tpu.core_type = #tpu.core_type<tc>} {
    %c0 = arith.constant 0 : index
    %c0_0 = arith.constant 0 : index
    %0 = vector.load %arg0[%c0, %c0_0] : memref<16x16xf32, #tpu.memory_space<vmem>>, vector<16x16xf32>
    %c0_1 = arith.constant 0 : index
    %c0_2 = arith.constant 0 : index
    %c0_3 = arith.constant 0 : index
    %1 = vector.load %arg1[%c0_1, %c0_2, %c0_3] : memref<4x16x32xf32, #tpu.memory_space<vmem>>, vector<1x16x32xf32>
    %2 = vector.shape_cast %1 : vector<1x16x32xf32> to vector<16x32xf32>
    %cst = arith.constant dense<0.000000e+00> : vector<16x32xf32>
    %3 = tpu.matmul %0, %2, %cst {dimension_numbers = #tpu.dot_dimension_numbers<[1], [0], [0], [1], [0, 0, 1, 1], [], []>} : vector<16x16xf32>, vector<16x32xf32>, vector<16x32xf32> -> vector<16x32xf32>
    %c0_4 = arith.constant 0 : index
    %c0_5 = arith.constant 0 : index
    %c0_6 = arith.constant 0 : index
    %4 = vector.load %arg3[%c0_4, %c0_5, %c0_6] : memref<4x1x32xf32, #tpu.memory_space<vmem>>, vector<1x1x32xf32>
    %5 = vector.shape_cast %4 : vector<1x1x32xf32> to vector<1x32xf32>
    %6 = vector.broadcast %5 : vector<1x32xf32> to vector<16x32xf32>
    %7 = arith.addf %3, %6 : vector<16x32xf32>
    %c0_7 = arith.constant 0 : index
    %c0_8 = arith.constant 0 : index
    %8 = vector.load %arg10[%c0_7, %c0_8] : memref<16x32xf32, #tpu.memory_space<vmem>>, vector<16x32xf32>
    tpu.vector_store %arg10[%c0_7, %c0_8], %7 {strides = array<i32>} : memref<16x32xf32, #tpu.memory_space<vmem>>, vector<16x32xf32>,
    %c1 = arith.constant 1 : index
    %c0_9 = arith.constant 0 : index
    %c0_10 = arith.constant 0 : index
    %9 = vector.load %arg1[%c1, %c0_9, %c0_10] : memref<4x16x32xf32, #tpu.memory_space<vmem>>, vector<1x16x32xf32>
    %10 = vector.shape_cast %9 : vector<1x16x32xf32> to vector<16x32xf32>
    %cst_11 = arith.constant dense<0.000000e+00> : vector<16x32xf32>
    %11 = tpu.matmul %0, %10, %cst_11 {dimension_numbers = #tpu.dot_dimension_numbers<[1], [0], [0], [1], [0, 0, 1, 1], [], []>} : vector<16x16xf32>, vector<16x32xf32>, vector<16x32xf32> -> vector<16x32xf32>
    %c1_12 = arith.constant 1 : index
    %c0_13 = arith.constant 0 : index
    %c0_14 = arith.constant 0 : index
    %12 = vector.load %arg3[%c1_12, %c0_13, %c0_14] : memref<4x1x32xf32, #tpu.memory_space<vmem>>, vector<1x1x32xf32>
    %13 = vector.shape_cast %12 : vector<1x1x32xf32> to vector<1x32xf32>
    %14 = vector.broadcast %13 : vector<1x32xf32> to vector<16x32xf32>
    %15 = arith.addf %11, %14 : vector<16x32xf32>
    %c0_15 = arith.constant 0 : index
    %c0_16 = arith.constant 0 : index
    %16 = vector.load %arg11[%c0_15, %c0_16] : memref<16x32xf32, #tpu.memory_space<vmem>>, vector<16x32xf32>
    tpu.vector_store %arg11[%c0_15, %c0_16], %15 {strides = array<i32>} : memref<16x32xf32, #tpu.memory_space<vmem>>, vector<16x32xf32>,
    %c2 = arith.constant 2 : index
    %c0_17 = arith.constant 0 : index
    %c0_18 = arith.constant 0 : index
    %17 = vector.load %arg1[%c2, %c0_17, %c0_18] : memref<4x16x32xf32, #tpu.memory_space<vmem>>, vector<1x16x32xf32>
    %18 = vector.shape_cast %17 : vector<1x16x32xf32> to vector<16x32xf32>
    %cst_19 = arith.constant dense<0.000000e+00> : vector<16x32xf32>
    %19 = tpu.matmul %0, %18, %cst_19 {dimension_numbers = #tpu.dot_dimension_numbers<[1], [0], [0], [1], [0, 0, 1, 1], [], []>} : vector<16x16xf32>, vector<16x32xf32>, vector<16x32xf32> -> vector<16x32xf32>
    %c2_20 = arith.constant 2 : index
    %c0_21 = arith.constant 0 : index
    %c0_22 = arith.constant 0 : index
    %20 = vector.load %arg3[%c2_20, %c0_21, %c0_22] : memref<4x1x32xf32, #tpu.memory_space<vmem>>, vector<1x1x32xf32>
    %21 = vector.shape_cast %20 : vector<1x1x32xf32> to vector<1x32xf32>
    %22 = vector.broadcast %21 : vector<1x32xf32> to vector<16x32xf32>
    %23 = arith.addf %19, %22 : vector<16x32xf32>
    %c0_23 = arith.constant 0 : index
    %c0_24 = arith.constant 0 : index
    %24 = vector.load %arg12[%c0_23, %c0_24] : memref<16x32xf32, #tpu.memory_space<vmem>>, vector<16x32xf32>
    tpu.vector_store %arg12[%c0_23, %c0_24], %23 {strides = array<i32>} : memref<16x32xf32, #tpu.memory_space<vmem>>, vector<16x32xf32>,
    %c3 = arith.constant 3 : index
    %c0_25 = arith.constant 0 : index
    %c0_26 = arith.constant 0 : index
    %25 = vector.load %arg1[%c3, %c0_25, %c0_26] : memref<4x16x32xf32, #tpu.memory_space<vmem>>, vector<1x16x32xf32>
    %26 = vector.shape_cast %25 : vector<1x16x32xf32> to vector<16x32xf32>
    %cst_27 = arith.constant dense<0.000000e+00> : vector<16x32xf32>
    %27 = tpu.matmul %0, %26, %cst_27 {dimension_numbers = #tpu.dot_dimension_numbers<[1], [0], [0], [1], [0, 0, 1, 1], [], []>} : vector<16x16xf32>, vector<16x32xf32>, vector<16x32xf32> -> vector<16x32xf32>
    %c3_28 = arith.constant 3 : index
    %c0_29 = arith.constant 0 : index
    %c0_30 = arith.constant 0 : index
    %28 = vector.load %arg3[%c3_28, %c0_29, %c0_30] : memref<4x1x32xf32, #tpu.memory_space<vmem>>, vector<1x1x32xf32>
    %29 = vector.shape_cast %28 : vector<1x1x32xf32> to vector<1x32xf32>
    %30 = vector.broadcast %29 : vector<1x32xf32> to vector<16x32xf32>
    %31 = arith.addf %27, %30 : vector<16x32xf32>
    %c0_31 = arith.constant 0 : index
    %c0_32 = arith.constant 0 : index
    %32 = vector.load %arg13[%c0_31, %c0_32] : memref<16x32xf32, #tpu.memory_space<vmem>>, vector<16x32xf32>
    tpu.vector_store %arg13[%c0_31, %c0_32], %31 {strides = array<i32>} : memref<16x32xf32, #tpu.memory_space<vmem>>, vector<16x32xf32>,
    %c0_33 = arith.constant 0 : index
    %c0_34 = arith.constant 0 : index
    %c0_35 = arith.constant 0 : index
    %33 = vector.load %arg2[%c0_33, %c0_34, %c0_35] : memref<4x32x32xf32, #tpu.memory_space<vmem>>, vector<1x32x32xf32>
    %34 = vector.shape_cast %33 : vector<1x32x32xf32> to vector<32x32xf32>
    %c1_36 = arith.constant 1 : index
    %c0_37 = arith.constant 0 : index
    %c0_38 = arith.constant 0 : index
    %35 = vector.load %arg2[%c1_36, %c0_37, %c0_38] : memref<4x32x32xf32, #tpu.memory_space<vmem>>, vector<1x32x32xf32>
    %36 = vector.shape_cast %35 : vector<1x32x32xf32> to vector<32x32xf32>
    %c2_39 = arith.constant 2 : index
    %c0_40 = arith.constant 0 : index
    %c0_41 = arith.constant 0 : index
    %37 = vector.load %arg2[%c2_39, %c0_40, %c0_41] : memref<4x32x32xf32, #tpu.memory_space<vmem>>, vector<1x32x32xf32>
    %38 = vector.shape_cast %37 : vector<1x32x32xf32> to vector<32x32xf32>
    %c3_42 = arith.constant 3 : index
    %c0_43 = arith.constant 0 : index
    %c0_44 = arith.constant 0 : index
    %39 = vector.load %arg2[%c3_42, %c0_43, %c0_44] : memref<4x32x32xf32, #tpu.memory_space<vmem>>, vector<1x32x32xf32>
    %40 = vector.shape_cast %39 : vector<1x32x32xf32> to vector<32x32xf32>
    %cst_45 = arith.constant 0.000000e+00 : f32
    %41 = vector.broadcast %cst_45 : f32 to vector<2x32xf32>
    %cst_46 = arith.constant 0.000000e+00 : f32
    %42 = vector.broadcast %cst_46 : f32 to vector<2x32xf32>
    %c0_47 = arith.constant 0 : index
    %c0_48 = arith.constant 0 : index
    %43 = vector.load %arg10[%c0_47, %c0_48] : memref<16x32xf32, #tpu.memory_space<vmem>>, vector<2x32xf32>
    %cst_49 = arith.constant dense<0.000000e+00> : vector<2x32xf32>
    %44 = tpu.matmul %41, %34, %cst_49 {dimension_numbers = #tpu.dot_dimension_numbers<[1], [0], [0], [1], [0, 0, 1, 1], [], []>} : vector<2x32xf32>, vector<32x32xf32>, vector<2x32xf32> -> vector<2x32xf32>
    %45 = arith.addf %43, %44 : vector<2x32xf32>
    %46 = arith.negf %45 : vector<2x32xf32>
    %47 = math.exp %46 : vector<2x32xf32>
    %cst_50 = arith.constant 1.000000e+00 : f32
    %48 = vector.broadcast %cst_50 : f32 to vector<2x32xf32>
    %49 = arith.addf %48, %47 : vector<2x32xf32>
    %50 = arith.divf %48, %49 : vector<2x32xf32>
    %c0_51 = arith.constant 0 : index
    %c0_52 = arith.constant 0 : index
    %51 = vector.load %arg11[%c0_51, %c0_52] : memref<16x32xf32, #tpu.memory_space<vmem>>, vector<2x32xf32>
    %cst_53 = arith.constant dense<0.000000e+00> : vector<2x32xf32>
    %52 = tpu.matmul %41, %36, %cst_53 {dimension_numbers = #tpu.dot_dimension_numbers<[1], [0], [0], [1], [0, 0, 1, 1], [], []>} : vector<2x32xf32>, vector<32x32xf32>, vector<2x32xf32> -> vector<2x32xf32>
    %53 = arith.addf %51, %52 : vector<2x32xf32>
    %54 = arith.negf %53 : vector<2x32xf32>
    %55 = math.exp %54 : vector<2x32xf32>
    %cst_54 = arith.constant 1.000000e+00 : f32
    %56 = vector.broadcast %cst_54 : f32 to vector<2x32xf32>
    %57 = arith.addf %56, %55 : vector<2x32xf32>
    %58 = arith.divf %56, %57 : vector<2x32xf32>
    %c0_55 = arith.constant 0 : index
    %c0_56 = arith.constant 0 : index
    %59 = vector.load %arg12[%c0_55, %c0_56] : memref<16x32xf32, #tpu.memory_space<vmem>>, vector<2x32xf32>
    %cst_57 = arith.constant dense<0.000000e+00> : vector<2x32xf32>
    %60 = tpu.matmul %41, %38, %cst_57 {dimension_numbers = #tpu.dot_dimension_numbers<[1], [0], [0], [1], [0, 0, 1, 1], [], []>} : vector<2x32xf32>, vector<32x32xf32>, vector<2x32xf32> -> vector<2x32xf32>
    %61 = arith.addf %59, %60 : vector<2x32xf32>
    %62 = math.tanh %61 : vector<2x32xf32>
    %c0_58 = arith.constant 0 : index
    %c0_59 = arith.constant 0 : index
    %63 = vector.load %arg13[%c0_58, %c0_59] : memref<16x32xf32, #tpu.memory_space<vmem>>, vector<2x32xf32>
    %cst_60 = arith.constant dense<0.000000e+00> : vector<2x32xf32>
    %64 = tpu.matmul %41, %40, %cst_60 {dimension_numbers = #tpu.dot_dimension_numbers<[1], [0], [0], [1], [0, 0, 1, 1], [], []>} : vector<2x32xf32>, vector<32x32xf32>, vector<2x32xf32> -> vector<2x32xf32>
    %65 = arith.addf %63, %64 : vector<2x32xf32>
    %66 = arith.negf %65 : vector<2x32xf32>
    %67 = math.exp %66 : vector<2x32xf32>
    %cst_61 = arith.constant 1.000000e+00 : f32
    %68 = vector.broadcast %cst_61 : f32 to vector<2x32xf32>
    %69 = arith.addf %68, %67 : vector<2x32xf32>
    %70 = arith.divf %68, %69 : vector<2x32xf32>
    %71 = arith.mulf %58, %42 : vector<2x32xf32>
    %72 = arith.mulf %50, %62 : vector<2x32xf32>
    %73 = arith.addf %71, %72 : vector<2x32xf32>
    %74 = math.tanh %73 : vector<2x32xf32>
    %75 = arith.mulf %70, %74 : vector<2x32xf32>
    %c0_62 = arith.constant 0 : index
    %c0_63 = arith.constant 0 : index
    %76 = vector.load %arg14[%c0_62, %c0_63] : memref<16x32xf32, #tpu.memory_space<vmem>>, vector<2x32xf32>
    tpu.vector_store %arg14[%c0_62, %c0_63], %75 {strides = array<i32>} : memref<16x32xf32, #tpu.memory_space<vmem>>, vector<2x32xf32>,
    %c2_64 = arith.constant 2 : index
    %c0_65 = arith.constant 0 : index
    %77 = vector.load %arg10[%c2_64, %c0_65] : memref<16x32xf32, #tpu.memory_space<vmem>>, vector<2x32xf32>
    %cst_66 = arith.constant dense<0.000000e+00> : vector<2x32xf32>
    %78 = tpu.matmul %75, %34, %cst_66 {dimension_numbers = #tpu.dot_dimension_numbers<[1], [0], [0], [1], [0, 0, 1, 1], [], []>} : vector<2x32xf32>, vector<32x32xf32>, vector<2x32xf32> -> vector<2x32xf32>
    %79 = arith.addf %77, %78 : vector<2x32xf32>
    %80 = arith.negf %79 : vector<2x32xf32>
    %81 = math.exp %80 : vector<2x32xf32>
    %cst_67 = arith.constant 1.000000e+00 : f32
    %82 = vector.broadcast %cst_67 : f32 to vector<2x32xf32>
    %83 = arith.addf %82, %81 : vector<2x32xf32>
    %84 = arith.divf %82, %83 : vector<2x32xf32>
    %c2_68 = arith.constant 2 : index
    %c0_69 = arith.constant 0 : index
    %85 = vector.load %arg11[%c2_68, %c0_69] : memref<16x32xf32, #tpu.memory_space<vmem>>, vector<2x32xf32>
    %cst_70 = arith.constant dense<0.000000e+00> : vector<2x32xf32>
    %86 = tpu.matmul %75, %36, %cst_70 {dimension_numbers = #tpu.dot_dimension_numbers<[1], [0], [0], [1], [0, 0, 1, 1], [], []>} : vector<2x32xf32>, vector<32x32xf32>, vector<2x32xf32> -> vector<2x32xf32>
    %87 = arith.addf %85, %86 : vector<2x32xf32>
    %88 = arith.negf %87 : vector<2x32xf32>
    %89 = math.exp %88 : vector<2x32xf32>
    %cst_71 = arith.constant 1.000000e+00 : f32
    %90 = vector.broadcast %cst_71 : f32 to vector<2x32xf32>
    %91 = arith.addf %90, %89 : vector<2x32xf32>
    %92 = arith.divf %90, %91 : vector<2x32xf32>
    %c2_72 = arith.constant 2 : index
    %c0_73 = arith.constant 0 : index
    %93 = vector.load %arg12[%c2_72, %c0_73] : memref<16x32xf32, #tpu.memory_space<vmem>>, vector<2x32xf32>
    %cst_74 = arith.constant dense<0.000000e+00> : vector<2x32xf32>
    %94 = tpu.matmul %75, %38, %cst_74 {dimension_numbers = #tpu.dot_dimension_numbers<[1], [0], [0], [1], [0, 0, 1, 1], [], []>} : vector<2x32xf32>, vector<32x32xf32>, vector<2x32xf32> -> vector<2x32xf32>
    %95 = arith.addf %93, %94 : vector<2x32xf32>
    %96 = math.tanh %95 : vector<2x32xf32>
    %c2_75 = arith.constant 2 : index
    %c0_76 = arith.constant 0 : index
    %97 = vector.load %arg13[%c2_75, %c0_76] : memref<16x32xf32, #tpu.memory_space<vmem>>, vector<2x32xf32>
    %cst_77 = arith.constant dense<0.000000e+00> : vector<2x32xf32>
    %98 = tpu.matmul %75, %40, %cst_77 {dimension_numbers = #tpu.dot_dimension_numbers<[1], [0], [0], [1], [0, 0, 1, 1], [], []>} : vector<2x32xf32>, vector<32x32xf32>, vector<2x32xf32> -> vector<2x32xf32>
    %99 = arith.addf %97, %98 : vector<2x32xf32>
    %100 = arith.negf %99 : vector<2x32xf32>
    %101 = math.exp %100 : vector<2x32xf32>
    %cst_78 = arith.constant 1.000000e+00 : f32
    %102 = vector.broadcast %cst_78 : f32 to vector<2x32xf32>
    %103 = arith.addf %102, %101 : vector<2x32xf32>
    %104 = arith.divf %102, %103 : vector<2x32xf32>
    %105 = arith.mulf %92, %73 : vector<2x32xf32>
    %106 = arith.mulf %84, %96 : vector<2x32xf32>
    %107 = arith.addf %105, %106 : vector<2x32xf32>
    %108 = math.tanh %107 : vector<2x32xf32>
    %109 = arith.mulf %104, %108 : vector<2x32xf32>
    %c2_79 = arith.constant 2 : index
    %c0_80 = arith.constant 0 : index
    %110 = vector.load %arg14[%c2_79, %c0_80] : memref<16x32xf32, #tpu.memory_space<vmem>>, vector<2x32xf32>
    tpu.vector_store %arg14[%c2_79, %c0_80], %109 {strides = array<i32>} : memref<16x32xf32, #tpu.memory_space<vmem>>, vector<2x32xf32>,
    %c4 = arith.constant 4 : index
    %c0_81 = arith.constant 0 : index
    %111 = vector.load %arg10[%c4, %c0_81] : memref<16x32xf32, #tpu.memory_space<vmem>>, vector<2x32xf32>
    %cst_82 = arith.constant dense<0.000000e+00> : vector<2x32xf32>
    %112 = tpu.matmul %109, %34, %cst_82 {dimension_numbers = #tpu.dot_dimension_numbers<[1], [0], [0], [1], [0, 0, 1, 1], [], []>} : vector<2x32xf32>, vector<32x32xf32>, vector<2x32xf32> -> vector<2x32xf32>
    %113 = arith.addf %111, %112 : vector<2x32xf32>
    %114 = arith.negf %113 : vector<2x32xf32>
    %115 = math.exp %114 : vector<2x32xf32>
    %cst_83 = arith.constant 1.000000e+00 : f32
    %116 = vector.broadcast %cst_83 : f32 to vector<2x32xf32>
    %117 = arith.addf %116, %115 : vector<2x32xf32>
    %118 = arith.divf %116, %117 : vector<2x32xf32>
    %c4_84 = arith.constant 4 : index
    %c0_85 = arith.constant 0 : index
    %119 = vector.load %arg11[%c4_84, %c0_85] : memref<16x32xf32, #tpu.memory_space<vmem>>, vector<2x32xf32>
    %cst_86 = arith.constant dense<0.000000e+00> : vector<2x32xf32>
    %120 = tpu.matmul %109, %36, %cst_86 {dimension_numbers = #tpu.dot_dimension_numbers<[1], [0], [0], [1], [0, 0, 1, 1], [], []>} : vector<2x32xf32>, vector<32x32xf32>, vector<2x32xf32> -> vector<2x32xf32>
    %121 = arith.addf %119, %120 : vector<2x32xf32>
    %122 = arith.negf %121 : vector<2x32xf32>
    %123 = math.exp %122 : vector<2x32xf32>
    %cst_87 = arith.constant 1.000000e+00 : f32
    %124 = vector.broadcast %cst_87 : f32 to vector<2x32xf32>
    %125 = arith.addf %124, %123 : vector<2x32xf32>
    %126 = arith.divf %124, %125 : vector<2x32xf32>
    %c4_88 = arith.constant 4 : index
    %c0_89 = arith.constant 0 : index
    %127 = vector.load %arg12[%c4_88, %c0_89] : memref<16x32xf32, #tpu.memory_space<vmem>>, vector<2x32xf32>
    %cst_90 = arith.constant dense<0.000000e+00> : vector<2x32xf32>
    %128 = tpu.matmul %109, %38, %cst_90 {dimension_numbers = #tpu.dot_dimension_numbers<[1], [0], [0], [1], [0, 0, 1, 1], [], []>} : vector<2x32xf32>, vector<32x32xf32>, vector<2x32xf32> -> vector<2x32xf32>
    %129 = arith.addf %127, %128 : vector<2x32xf32>
    %130 = math.tanh %129 : vector<2x32xf32>
    %c4_91 = arith.constant 4 : index
    %c0_92 = arith.constant 0 : index
    %131 = vector.load %arg13[%c4_91, %c0_92] : memref<16x32xf32, #tpu.memory_space<vmem>>, vector<2x32xf32>
    %cst_93 = arith.constant dense<0.000000e+00> : vector<2x32xf32>
    %132 = tpu.matmul %109, %40, %cst_93 {dimension_numbers = #tpu.dot_dimension_numbers<[1], [0], [0], [1], [0, 0, 1, 1], [], []>} : vector<2x32xf32>, vector<32x32xf32>, vector<2x32xf32> -> vector<2x32xf32>
    %133 = arith.addf %131, %132 : vector<2x32xf32>
    %134 = arith.negf %133 : vector<2x32xf32>
    %135 = math.exp %134 : vector<2x32xf32>
    %cst_94 = arith.constant 1.000000e+00 : f32
    %136 = vector.broadcast %cst_94 : f32 to vector<2x32xf32>
    %137 = arith.addf %136, %135 : vector<2x32xf32>
    %138 = arith.divf %136, %137 : vector<2x32xf32>
    %139 = arith.mulf %126, %107 : vector<2x32xf32>
    %140 = arith.mulf %118, %130 : vector<2x32xf32>
    %141 = arith.addf %139, %140 : vector<2x32xf32>
    %142 = math.tanh %141 : vector<2x32xf32>
    %143 = arith.mulf %138, %142 : vector<2x32xf32>
    %c4_95 = arith.constant 4 : index
    %c0_96 = arith.constant 0 : index
    %144 = vector.load %arg14[%c4_95, %c0_96] : memref<16x32xf32, #tpu.memory_space<vmem>>, vector<2x32xf32>
    tpu.vector_store %arg14[%c4_95, %c0_96], %143 {strides = array<i32>} : memref<16x32xf32, #tpu.memory_space<vmem>>, vector<2x32xf32>,
    %c6 = arith.constant 6 : index
    %c0_97 = arith.constant 0 : index
    %145 = vector.load %arg10[%c6, %c0_97] : memref<16x32xf32, #tpu.memory_space<vmem>>, vector<2x32xf32>
    %cst_98 = arith.constant dense<0.000000e+00> : vector<2x32xf32>
    %146 = tpu.matmul %143, %34, %cst_98 {dimension_numbers = #tpu.dot_dimension_numbers<[1], [0], [0], [1], [0, 0, 1, 1], [], []>} : vector<2x32xf32>, vector<32x32xf32>, vector<2x32xf32> -> vector<2x32xf32>
    %147 = arith.addf %145, %146 : vector<2x32xf32>
    %148 = arith.negf %147 : vector<2x32xf32>
    %149 = math.exp %148 : vector<2x32xf32>
    %cst_99 = arith.constant 1.000000e+00 : f32
    %150 = vector.broadcast %cst_99 : f32 to vector<2x32xf32>
    %151 = arith.addf %150, %149 : vector<2x32xf32>
    %152 = arith.divf %150, %151 : vector<2x32xf32>
    %c6_100 = arith.constant 6 : index
    %c0_101 = arith.constant 0 : index
    %153 = vector.load %arg11[%c6_100, %c0_101] : memref<16x32xf32, #tpu.memory_space<vmem>>, vector<2x32xf32>
    %cst_102 = arith.constant dense<0.000000e+00> : vector<2x32xf32>
    %154 = tpu.matmul %143, %36, %cst_102 {dimension_numbers = #tpu.dot_dimension_numbers<[1], [0], [0], [1], [0, 0, 1, 1], [], []>} : vector<2x32xf32>, vector<32x32xf32>, vector<2x32xf32> -> vector<2x32xf32>
    %155 = arith.addf %153, %154 : vector<2x32xf32>
    %156 = arith.negf %155 : vector<2x32xf32>
    %157 = math.exp %156 : vector<2x32xf32>
    %cst_103 = arith.constant 1.000000e+00 : f32
    %158 = vector.broadcast %cst_103 : f32 to vector<2x32xf32>
    %159 = arith.addf %158, %157 : vector<2x32xf32>
    %160 = arith.divf %158, %159 : vector<2x32xf32>
    %c6_104 = arith.constant 6 : index
    %c0_105 = arith.constant 0 : index
    %161 = vector.load %arg12[%c6_104, %c0_105] : memref<16x32xf32, #tpu.memory_space<vmem>>, vector<2x32xf32>
    %cst_106 = arith.constant dense<0.000000e+00> : vector<2x32xf32>
    %162 = tpu.matmul %143, %38, %cst_106 {dimension_numbers = #tpu.dot_dimension_numbers<[1], [0], [0], [1], [0, 0, 1, 1], [], []>} : vector<2x32xf32>, vector<32x32xf32>, vector<2x32xf32> -> vector<2x32xf32>
    %163 = arith.addf %161, %162 : vector<2x32xf32>
    %164 = math.tanh %163 : vector<2x32xf32>
    %c6_107 = arith.constant 6 : index
    %c0_108 = arith.constant 0 : index
    %165 = vector.load %arg13[%c6_107, %c0_108] : memref<16x32xf32, #tpu.memory_space<vmem>>, vector<2x32xf32>
    %cst_109 = arith.constant dense<0.000000e+00> : vector<2x32xf32>
    %166 = tpu.matmul %143, %40, %cst_109 {dimension_numbers = #tpu.dot_dimension_numbers<[1], [0], [0], [1], [0, 0, 1, 1], [], []>} : vector<2x32xf32>, vector<32x32xf32>, vector<2x32xf32> -> vector<2x32xf32>
    %167 = arith.addf %165, %166 : vector<2x32xf32>
    %168 = arith.negf %167 : vector<2x32xf32>
    %169 = math.exp %168 : vector<2x32xf32>
    %cst_110 = arith.constant 1.000000e+00 : f32
    %170 = vector.broadcast %cst_110 : f32 to vector<2x32xf32>
    %171 = arith.addf %170, %169 : vector<2x32xf32>
    %172 = arith.divf %170, %171 : vector<2x32xf32>
    %173 = arith.mulf %160, %141 : vector<2x32xf32>
    %174 = arith.mulf %152, %164 : vector<2x32xf32>
    %175 = arith.addf %173, %174 : vector<2x32xf32>
    %176 = math.tanh %175 : vector<2x32xf32>
    %177 = arith.mulf %172, %176 : vector<2x32xf32>
    %c6_111 = arith.constant 6 : index
    %c0_112 = arith.constant 0 : index
    %178 = vector.load %arg14[%c6_111, %c0_112] : memref<16x32xf32, #tpu.memory_space<vmem>>, vector<2x32xf32>
    tpu.vector_store %arg14[%c6_111, %c0_112], %177 {strides = array<i32>} : memref<16x32xf32, #tpu.memory_space<vmem>>, vector<2x32xf32>,
    %c8 = arith.constant 8 : index
    %c0_113 = arith.constant 0 : index
    %179 = vector.load %arg10[%c8, %c0_113] : memref<16x32xf32, #tpu.memory_space<vmem>>, vector<2x32xf32>
    %cst_114 = arith.constant dense<0.000000e+00> : vector<2x32xf32>
    %180 = tpu.matmul %177, %34, %cst_114 {dimension_numbers = #tpu.dot_dimension_numbers<[1], [0], [0], [1], [0, 0, 1, 1], [], []>} : vector<2x32xf32>, vector<32x32xf32>, vector<2x32xf32> -> vector<2x32xf32>
    %181 = arith.addf %179, %180 : vector<2x32xf32>
    %182 = arith.negf %181 : vector<2x32xf32>
    %183 = math.exp %182 : vector<2x32xf32>
    %cst_115 = arith.constant 1.000000e+00 : f32
    %184 = vector.broadcast %cst_115 : f32 to vector<2x32xf32>
    %185 = arith.addf %184, %183 : vector<2x32xf32>
    %186 = arith.divf %184, %185 : vector<2x32xf32>
    %c8_116 = arith.constant 8 : index
    %c0_117 = arith.constant 0 : index
    %187 = vector.load %arg11[%c8_116, %c0_117] : memref<16x32xf32, #tpu.memory_space<vmem>>, vector<2x32xf32>
    %cst_118 = arith.constant dense<0.000000e+00> : vector<2x32xf32>
    %188 = tpu.matmul %177, %36, %cst_118 {dimension_numbers = #tpu.dot_dimension_numbers<[1], [0], [0], [1], [0, 0, 1, 1], [], []>} : vector<2x32xf32>, vector<32x32xf32>, vector<2x32xf32> -> vector<2x32xf32>
    %189 = arith.addf %187, %188 : vector<2x32xf32>
    %190 = arith.negf %189 : vector<2x32xf32>
    %191 = math.exp %190 : vector<2x32xf32>
    %cst_119 = arith.constant 1.000000e+00 : f32
    %192 = vector.broadcast %cst_119 : f32 to vector<2x32xf32>
    %193 = arith.addf %192, %191 : vector<2x32xf32>
    %194 = arith.divf %192, %193 : vector<2x32xf32>
    %c8_120 = arith.constant 8 : index
    %c0_121 = arith.constant 0 : index
    %195 = vector.load %arg12[%c8_120, %c0_121] : memref<16x32xf32, #tpu.memory_space<vmem>>, vector<2x32xf32>
    %cst_122 = arith.constant dense<0.000000e+00> : vector<2x32xf32>
    %196 = tpu.matmul %177, %38, %cst_122 {dimension_numbers = #tpu.dot_dimension_numbers<[1], [0], [0], [1], [0, 0, 1, 1], [], []>} : vector<2x32xf32>, vector<32x32xf32>, vector<2x32xf32> -> vector<2x32xf32>
    %197 = arith.addf %195, %196 : vector<2x32xf32>
    %198 = math.tanh %197 : vector<2x32xf32>
    %c8_123 = arith.constant 8 : index
    %c0_124 = arith.constant 0 : index
    %199 = vector.load %arg13[%c8_123, %c0_124] : memref<16x32xf32, #tpu.memory_space<vmem>>, vector<2x32xf32>
    %cst_125 = arith.constant dense<0.000000e+00> : vector<2x32xf32>
    %200 = tpu.matmul %177, %40, %cst_125 {dimension_numbers = #tpu.dot_dimension_numbers<[1], [0], [0], [1], [0, 0, 1, 1], [], []>} : vector<2x32xf32>, vector<32x32xf32>, vector<2x32xf32> -> vector<2x32xf32>
    %201 = arith.addf %199, %200 : vector<2x32xf32>
    %202 = arith.negf %201 : vector<2x32xf32>
    %203 = math.exp %202 : vector<2x32xf32>
    %cst_126 = arith.constant 1.000000e+00 : f32
    %204 = vector.broadcast %cst_126 : f32 to vector<2x32xf32>
    %205 = arith.addf %204, %203 : vector<2x32xf32>
    %206 = arith.divf %204, %205 : vector<2x32xf32>
    %207 = arith.mulf %194, %175 : vector<2x32xf32>
    %208 = arith.mulf %186, %198 : vector<2x32xf32>
    %209 = arith.addf %207, %208 : vector<2x32xf32>
    %210 = math.tanh %209 : vector<2x32xf32>
    %211 = arith.mulf %206, %210 : vector<2x32xf32>
    %c8_127 = arith.constant 8 : index
    %c0_128 = arith.constant 0 : index
    %212 = vector.load %arg14[%c8_127, %c0_128] : memref<16x32xf32, #tpu.memory_space<vmem>>, vector<2x32xf32>
    tpu.vector_store %arg14[%c8_127, %c0_128], %211 {strides = array<i32>} : memref<16x32xf32, #tpu.memory_space<vmem>>, vector<2x32xf32>,
    %c10 = arith.constant 10 : index
    %c0_129 = arith.constant 0 : index
    %213 = vector.load %arg10[%c10, %c0_129] : memref<16x32xf32, #tpu.memory_space<vmem>>, vector<2x32xf32>
    %cst_130 = arith.constant dense<0.000000e+00> : vector<2x32xf32>
    %214 = tpu.matmul %211, %34, %cst_130 {dimension_numbers = #tpu.dot_dimension_numbers<[1], [0], [0], [1], [0, 0, 1, 1], [], []>} : vector<2x32xf32>, vector<32x32xf32>, vector<2x32xf32> -> vector<2x32xf32>
    %215 = arith.addf %213, %214 : vector<2x32xf32>
    %216 = arith.negf %215 : vector<2x32xf32>
    %217 = math.exp %216 : vector<2x32xf32>
    %cst_131 = arith.constant 1.000000e+00 : f32
    %218 = vector.broadcast %cst_131 : f32 to vector<2x32xf32>
    %219 = arith.addf %218, %217 : vector<2x32xf32>
    %220 = arith.divf %218, %219 : vector<2x32xf32>
    %c10_132 = arith.constant 10 : index
    %c0_133 = arith.constant 0 : index
    %221 = vector.load %arg11[%c10_132, %c0_133] : memref<16x32xf32, #tpu.memory_space<vmem>>, vector<2x32xf32>
    %cst_134 = arith.constant dense<0.000000e+00> : vector<2x32xf32>
    %222 = tpu.matmul %211, %36, %cst_134 {dimension_numbers = #tpu.dot_dimension_numbers<[1], [0], [0], [1], [0, 0, 1, 1], [], []>} : vector<2x32xf32>, vector<32x32xf32>, vector<2x32xf32> -> vector<2x32xf32>
    %223 = arith.addf %221, %222 : vector<2x32xf32>
    %224 = arith.negf %223 : vector<2x32xf32>
    %225 = math.exp %224 : vector<2x32xf32>
    %cst_135 = arith.constant 1.000000e+00 : f32
    %226 = vector.broadcast %cst_135 : f32 to vector<2x32xf32>
    %227 = arith.addf %226, %225 : vector<2x32xf32>
    %228 = arith.divf %226, %227 : vector<2x32xf32>
    %c10_136 = arith.constant 10 : index
    %c0_137 = arith.constant 0 : index
    %229 = vector.load %arg12[%c10_136, %c0_137] : memref<16x32xf32, #tpu.memory_space<vmem>>, vector<2x32xf32>
    %cst_138 = arith.constant dense<0.000000e+00> : vector<2x32xf32>
    %230 = tpu.matmul %211, %38, %cst_138 {dimension_numbers = #tpu.dot_dimension_numbers<[1], [0], [0], [1], [0, 0, 1, 1], [], []>} : vector<2x32xf32>, vector<32x32xf32>, vector<2x32xf32> -> vector<2x32xf32>
    %231 = arith.addf %229, %230 : vector<2x32xf32>
    %232 = math.tanh %231 : vector<2x32xf32>
    %c10_139 = arith.constant 10 : index
    %c0_140 = arith.constant 0 : index
    %233 = vector.load %arg13[%c10_139, %c0_140] : memref<16x32xf32, #tpu.memory_space<vmem>>, vector<2x32xf32>
    %cst_141 = arith.constant dense<0.000000e+00> : vector<2x32xf32>
    %234 = tpu.matmul %211, %40, %cst_141 {dimension_numbers = #tpu.dot_dimension_numbers<[1], [0], [0], [1], [0, 0, 1, 1], [], []>} : vector<2x32xf32>, vector<32x32xf32>, vector<2x32xf32> -> vector<2x32xf32>
    %235 = arith.addf %233, %234 : vector<2x32xf32>
    %236 = arith.negf %235 : vector<2x32xf32>
    %237 = math.exp %236 : vector<2x32xf32>
    %cst_142 = arith.constant 1.000000e+00 : f32
    %238 = vector.broadcast %cst_142 : f32 to vector<2x32xf32>
    %239 = arith.addf %238, %237 : vector<2x32xf32>
    %240 = arith.divf %238, %239 : vector<2x32xf32>
    %241 = arith.mulf %228, %209 : vector<2x32xf32>
    %242 = arith.mulf %220, %232 : vector<2x32xf32>
    %243 = arith.addf %241, %242 : vector<2x32xf32>
    %244 = math.tanh %243 : vector<2x32xf32>
    %245 = arith.mulf %240, %244 : vector<2x32xf32>
    %c10_143 = arith.constant 10 : index
    %c0_144 = arith.constant 0 : index
    %246 = vector.load %arg14[%c10_143, %c0_144] : memref<16x32xf32, #tpu.memory_space<vmem>>, vector<2x32xf32>
    tpu.vector_store %arg14[%c10_143, %c0_144], %245 {strides = array<i32>} : memref<16x32xf32, #tpu.memory_space<vmem>>, vector<2x32xf32>,
    %c12 = arith.constant 12 : index
    %c0_145 = arith.constant 0 : index
    %247 = vector.load %arg10[%c12, %c0_145] : memref<16x32xf32, #tpu.memory_space<vmem>>, vector<2x32xf32>
    %cst_146 = arith.constant dense<0.000000e+00> : vector<2x32xf32>
    %248 = tpu.matmul %245, %34, %cst_146 {dimension_numbers = #tpu.dot_dimension_numbers<[1], [0], [0], [1], [0, 0, 1, 1], [], []>} : vector<2x32xf32>, vector<32x32xf32>, vector<2x32xf32> -> vector<2x32xf32>
    %249 = arith.addf %247, %248 : vector<2x32xf32>
    %250 = arith.negf %249 : vector<2x32xf32>
    %251 = math.exp %250 : vector<2x32xf32>
    %cst_147 = arith.constant 1.000000e+00 : f32
    %252 = vector.broadcast %cst_147 : f32 to vector<2x32xf32>
    %253 = arith.addf %252, %251 : vector<2x32xf32>
    %254 = arith.divf %252, %253 : vector<2x32xf32>
    %c12_148 = arith.constant 12 : index
    %c0_149 = arith.constant 0 : index
    %255 = vector.load %arg11[%c12_148, %c0_149] : memref<16x32xf32, #tpu.memory_space<vmem>>, vector<2x32xf32>
    %cst_150 = arith.constant dense<0.000000e+00> : vector<2x32xf32>
    %256 = tpu.matmul %245, %36, %cst_150 {dimension_numbers = #tpu.dot_dimension_numbers<[1], [0], [0], [1], [0, 0, 1, 1], [], []>} : vector<2x32xf32>, vector<32x32xf32>, vector<2x32xf32> -> vector<2x32xf32>
    %257 = arith.addf %255, %256 : vector<2x32xf32>
    %258 = arith.negf %257 : vector<2x32xf32>
    %259 = math.exp %258 : vector<2x32xf32>
    %cst_151 = arith.constant 1.000000e+00 : f32
    %260 = vector.broadcast %cst_151 : f32 to vector<2x32xf32>
    %261 = arith.addf %260, %259 : vector<2x32xf32>
    %262 = arith.divf %260, %261 : vector<2x32xf32>
    %c12_152 = arith.constant 12 : index
    %c0_153 = arith.constant 0 : index
    %263 = vector.load %arg12[%c12_152, %c0_153] : memref<16x32xf32, #tpu.memory_space<vmem>>, vector<2x32xf32>
    %cst_154 = arith.constant dense<0.000000e+00> : vector<2x32xf32>
    %264 = tpu.matmul %245, %38, %cst_154 {dimension_numbers = #tpu.dot_dimension_numbers<[1], [0], [0], [1], [0, 0, 1, 1], [], []>} : vector<2x32xf32>, vector<32x32xf32>, vector<2x32xf32> -> vector<2x32xf32>
    %265 = arith.addf %263, %264 : vector<2x32xf32>
    %266 = math.tanh %265 : vector<2x32xf32>
    %c12_155 = arith.constant 12 : index
    %c0_156 = arith.constant 0 : index
    %267 = vector.load %arg13[%c12_155, %c0_156] : memref<16x32xf32, #tpu.memory_space<vmem>>, vector<2x32xf32>
    %cst_157 = arith.constant dense<0.000000e+00> : vector<2x32xf32>
    %268 = tpu.matmul %245, %40, %cst_157 {dimension_numbers = #tpu.dot_dimension_numbers<[1], [0], [0], [1], [0, 0, 1, 1], [], []>} : vector<2x32xf32>, vector<32x32xf32>, vector<2x32xf32> -> vector<2x32xf32>
    %269 = arith.addf %267, %268 : vector<2x32xf32>
    %270 = arith.negf %269 : vector<2x32xf32>
    %271 = math.exp %270 : vector<2x32xf32>
    %cst_158 = arith.constant 1.000000e+00 : f32
    %272 = vector.broadcast %cst_158 : f32 to vector<2x32xf32>
    %273 = arith.addf %272, %271 : vector<2x32xf32>
    %274 = arith.divf %272, %273 : vector<2x32xf32>
    %275 = arith.mulf %262, %243 : vector<2x32xf32>
    %276 = arith.mulf %254, %266 : vector<2x32xf32>
    %277 = arith.addf %275, %276 : vector<2x32xf32>
    %278 = math.tanh %277 : vector<2x32xf32>
    %279 = arith.mulf %274, %278 : vector<2x32xf32>
    %c12_159 = arith.constant 12 : index
    %c0_160 = arith.constant 0 : index
    %280 = vector.load %arg14[%c12_159, %c0_160] : memref<16x32xf32, #tpu.memory_space<vmem>>, vector<2x32xf32>
    tpu.vector_store %arg14[%c12_159, %c0_160], %279 {strides = array<i32>} : memref<16x32xf32, #tpu.memory_space<vmem>>, vector<2x32xf32>,
    %c14 = arith.constant 14 : index
    %c0_161 = arith.constant 0 : index
    %281 = vector.load %arg10[%c14, %c0_161] : memref<16x32xf32, #tpu.memory_space<vmem>>, vector<2x32xf32>
    %cst_162 = arith.constant dense<0.000000e+00> : vector<2x32xf32>
    %282 = tpu.matmul %279, %34, %cst_162 {dimension_numbers = #tpu.dot_dimension_numbers<[1], [0], [0], [1], [0, 0, 1, 1], [], []>} : vector<2x32xf32>, vector<32x32xf32>, vector<2x32xf32> -> vector<2x32xf32>
    %283 = arith.addf %281, %282 : vector<2x32xf32>
    %284 = arith.negf %283 : vector<2x32xf32>
    %285 = math.exp %284 : vector<2x32xf32>
    %cst_163 = arith.constant 1.000000e+00 : f32
    %286 = vector.broadcast %cst_163 : f32 to vector<2x32xf32>
    %287 = arith.addf %286, %285 : vector<2x32xf32>
    %288 = arith.divf %286, %287 : vector<2x32xf32>
    %c14_164 = arith.constant 14 : index
    %c0_165 = arith.constant 0 : index
    %289 = vector.load %arg11[%c14_164, %c0_165] : memref<16x32xf32, #tpu.memory_space<vmem>>, vector<2x32xf32>
    %cst_166 = arith.constant dense<0.000000e+00> : vector<2x32xf32>
    %290 = tpu.matmul %279, %36, %cst_166 {dimension_numbers = #tpu.dot_dimension_numbers<[1], [0], [0], [1], [0, 0, 1, 1], [], []>} : vector<2x32xf32>, vector<32x32xf32>, vector<2x32xf32> -> vector<2x32xf32>
    %291 = arith.addf %289, %290 : vector<2x32xf32>
    %292 = arith.negf %291 : vector<2x32xf32>
    %293 = math.exp %292 : vector<2x32xf32>
    %cst_167 = arith.constant 1.000000e+00 : f32
    %294 = vector.broadcast %cst_167 : f32 to vector<2x32xf32>
    %295 = arith.addf %294, %293 : vector<2x32xf32>
    %296 = arith.divf %294, %295 : vector<2x32xf32>
    %c14_168 = arith.constant 14 : index
    %c0_169 = arith.constant 0 : index
    %297 = vector.load %arg12[%c14_168, %c0_169] : memref<16x32xf32, #tpu.memory_space<vmem>>, vector<2x32xf32>
    %cst_170 = arith.constant dense<0.000000e+00> : vector<2x32xf32>
    %298 = tpu.matmul %279, %38, %cst_170 {dimension_numbers = #tpu.dot_dimension_numbers<[1], [0], [0], [1], [0, 0, 1, 1], [], []>} : vector<2x32xf32>, vector<32x32xf32>, vector<2x32xf32> -> vector<2x32xf32>
    %299 = arith.addf %297, %298 : vector<2x32xf32>
    %300 = math.tanh %299 : vector<2x32xf32>
    %c14_171 = arith.constant 14 : index
    %c0_172 = arith.constant 0 : index
    %301 = vector.load %arg13[%c14_171, %c0_172] : memref<16x32xf32, #tpu.memory_space<vmem>>, vector<2x32xf32>
    %cst_173 = arith.constant dense<0.000000e+00> : vector<2x32xf32>
    %302 = tpu.matmul %279, %40, %cst_173 {dimension_numbers = #tpu.dot_dimension_numbers<[1], [0], [0], [1], [0, 0, 1, 1], [], []>} : vector<2x32xf32>, vector<32x32xf32>, vector<2x32xf32> -> vector<2x32xf32>
    %303 = arith.addf %301, %302 : vector<2x32xf32>
    %304 = arith.negf %303 : vector<2x32xf32>
    %305 = math.exp %304 : vector<2x32xf32>
    %cst_174 = arith.constant 1.000000e+00 : f32
    %306 = vector.broadcast %cst_174 : f32 to vector<2x32xf32>
    %307 = arith.addf %306, %305 : vector<2x32xf32>
    %308 = arith.divf %306, %307 : vector<2x32xf32>
    %309 = arith.mulf %296, %277 : vector<2x32xf32>
    %310 = arith.mulf %288, %300 : vector<2x32xf32>
    %311 = arith.addf %309, %310 : vector<2x32xf32>
    %312 = math.tanh %311 : vector<2x32xf32>
    %313 = arith.mulf %308, %312 : vector<2x32xf32>
    %c14_175 = arith.constant 14 : index
    %c0_176 = arith.constant 0 : index
    %314 = vector.load %arg14[%c14_175, %c0_176] : memref<16x32xf32, #tpu.memory_space<vmem>>, vector<2x32xf32>
    tpu.vector_store %arg14[%c14_175, %c0_176], %313 {strides = array<i32>} : memref<16x32xf32, #tpu.memory_space<vmem>>, vector<2x32xf32>,
    %c0_177 = arith.constant 0 : index
    %c0_178 = arith.constant 0 : index
    %315 = vector.load %arg14[%c0_177, %c0_178] : memref<16x32xf32, #tpu.memory_space<vmem>>, vector<16x32xf32>
    %c0_179 = arith.constant 0 : index
    %c0_180 = arith.constant 0 : index
    %c0_181 = arith.constant 0 : index
    %316 = vector.load %arg4[%c0_179, %c0_180, %c0_181] : memref<4x32x32xf32, #tpu.memory_space<vmem>>, vector<1x32x32xf32>
    %317 = vector.shape_cast %316 : vector<1x32x32xf32> to vector<32x32xf32>
    %cst_182 = arith.constant dense<0.000000e+00> : vector<16x32xf32>
    %318 = tpu.matmul %315, %317, %cst_182 {dimension_numbers = #tpu.dot_dimension_numbers<[1], [0], [0], [1], [0, 0, 1, 1], [], []>} : vector<16x32xf32>, vector<32x32xf32>, vector<16x32xf32> -> vector<16x32xf32>
    %c0_183 = arith.constant 0 : index
    %c0_184 = arith.constant 0 : index
    %c0_185 = arith.constant 0 : index
    %319 = vector.load %arg6[%c0_183, %c0_184, %c0_185] : memref<4x1x32xf32, #tpu.memory_space<vmem>>, vector<1x1x32xf32>
    %320 = vector.shape_cast %319 : vector<1x1x32xf32> to vector<1x32xf32>
    %321 = vector.broadcast %320 : vector<1x32xf32> to vector<16x32xf32>
    %322 = arith.addf %318, %321 : vector<16x32xf32>
    %c0_186 = arith.constant 0 : index
    %c0_187 = arith.constant 0 : index
    %323 = vector.load %arg10[%c0_186, %c0_187] : memref<16x32xf32, #tpu.memory_space<vmem>>, vector<16x32xf32>
    tpu.vector_store %arg10[%c0_186, %c0_187], %322 {strides = array<i32>} : memref<16x32xf32, #tpu.memory_space<vmem>>, vector<16x32xf32>,
    %c1_188 = arith.constant 1 : index
    %c0_189 = arith.constant 0 : index
    %c0_190 = arith.constant 0 : index
    %324 = vector.load %arg4[%c1_188, %c0_189, %c0_190] : memref<4x32x32xf32, #tpu.memory_space<vmem>>, vector<1x32x32xf32>
    %325 = vector.shape_cast %324 : vector<1x32x32xf32> to vector<32x32xf32>
    %cst_191 = arith.constant dense<0.000000e+00> : vector<16x32xf32>
    %326 = tpu.matmul %315, %325, %cst_191 {dimension_numbers = #tpu.dot_dimension_numbers<[1], [0], [0], [1], [0, 0, 1, 1], [], []>} : vector<16x32xf32>, vector<32x32xf32>, vector<16x32xf32> -> vector<16x32xf32>
    %c1_192 = arith.constant 1 : index
    %c0_193 = arith.constant 0 : index
    %c0_194 = arith.constant 0 : index
    %327 = vector.load %arg6[%c1_192, %c0_193, %c0_194] : memref<4x1x32xf32, #tpu.memory_space<vmem>>, vector<1x1x32xf32>
    %328 = vector.shape_cast %327 : vector<1x1x32xf32> to vector<1x32xf32>
    %329 = vector.broadcast %328 : vector<1x32xf32> to vector<16x32xf32>
    %330 = arith.addf %326, %329 : vector<16x32xf32>
    %c0_195 = arith.constant 0 : index
    %c0_196 = arith.constant 0 : index
    %331 = vector.load %arg11[%c0_195, %c0_196] : memref<16x32xf32, #tpu.memory_space<vmem>>, vector<16x32xf32>
    tpu.vector_store %arg11[%c0_195, %c0_196], %330 {strides = array<i32>} : memref<16x32xf32, #tpu.memory_space<vmem>>, vector<16x32xf32>,
    %c2_197 = arith.constant 2 : index
    %c0_198 = arith.constant 0 : index
    %c0_199 = arith.constant 0 : index
    %332 = vector.load %arg4[%c2_197, %c0_198, %c0_199] : memref<4x32x32xf32, #tpu.memory_space<vmem>>, vector<1x32x32xf32>
    %333 = vector.shape_cast %332 : vector<1x32x32xf32> to vector<32x32xf32>
    %cst_200 = arith.constant dense<0.000000e+00> : vector<16x32xf32>
    %334 = tpu.matmul %315, %333, %cst_200 {dimension_numbers = #tpu.dot_dimension_numbers<[1], [0], [0], [1], [0, 0, 1, 1], [], []>} : vector<16x32xf32>, vector<32x32xf32>, vector<16x32xf32> -> vector<16x32xf32>
    %c2_201 = arith.constant 2 : index
    %c0_202 = arith.constant 0 : index
    %c0_203 = arith.constant 0 : index
    %335 = vector.load %arg6[%c2_201, %c0_202, %c0_203] : memref<4x1x32xf32, #tpu.memory_space<vmem>>, vector<1x1x32xf32>
    %336 = vector.shape_cast %335 : vector<1x1x32xf32> to vector<1x32xf32>
    %337 = vector.broadcast %336 : vector<1x32xf32> to vector<16x32xf32>
    %338 = arith.addf %334, %337 : vector<16x32xf32>
    %c0_204 = arith.constant 0 : index
    %c0_205 = arith.constant 0 : index
    %339 = vector.load %arg12[%c0_204, %c0_205] : memref<16x32xf32, #tpu.memory_space<vmem>>, vector<16x32xf32>
    tpu.vector_store %arg12[%c0_204, %c0_205], %338 {strides = array<i32>} : memref<16x32xf32, #tpu.memory_space<vmem>>, vector<16x32xf32>,
    %c3_206 = arith.constant 3 : index
    %c0_207 = arith.constant 0 : index
    %c0_208 = arith.constant 0 : index
    %340 = vector.load %arg4[%c3_206, %c0_207, %c0_208] : memref<4x32x32xf32, #tpu.memory_space<vmem>>, vector<1x32x32xf32>
    %341 = vector.shape_cast %340 : vector<1x32x32xf32> to vector<32x32xf32>
    %cst_209 = arith.constant dense<0.000000e+00> : vector<16x32xf32>
    %342 = tpu.matmul %315, %341, %cst_209 {dimension_numbers = #tpu.dot_dimension_numbers<[1], [0], [0], [1], [0, 0, 1, 1], [], []>} : vector<16x32xf32>, vector<32x32xf32>, vector<16x32xf32> -> vector<16x32xf32>
    %c3_210 = arith.constant 3 : index
    %c0_211 = arith.constant 0 : index
    %c0_212 = arith.constant 0 : index
    %343 = vector.load %arg6[%c3_210, %c0_211, %c0_212] : memref<4x1x32xf32, #tpu.memory_space<vmem>>, vector<1x1x32xf32>
    %344 = vector.shape_cast %343 : vector<1x1x32xf32> to vector<1x32xf32>
    %345 = vector.broadcast %344 : vector<1x32xf32> to vector<16x32xf32>
    %346 = arith.addf %342, %345 : vector<16x32xf32>
    %c0_213 = arith.constant 0 : index
    %c0_214 = arith.constant 0 : index
    %347 = vector.load %arg13[%c0_213, %c0_214] : memref<16x32xf32, #tpu.memory_space<vmem>>, vector<16x32xf32>
    tpu.vector_store %arg13[%c0_213, %c0_214], %346 {strides = array<i32>} : memref<16x32xf32, #tpu.memory_space<vmem>>, vector<16x32xf32>,
    %c0_215 = arith.constant 0 : index
    %c0_216 = arith.constant 0 : index
    %c0_217 = arith.constant 0 : index
    %348 = vector.load %arg5[%c0_215, %c0_216, %c0_217] : memref<4x32x32xf32, #tpu.memory_space<vmem>>, vector<1x32x32xf32>
    %349 = vector.shape_cast %348 : vector<1x32x32xf32> to vector<32x32xf32>
    %c1_218 = arith.constant 1 : index
    %c0_219 = arith.constant 0 : index
    %c0_220 = arith.constant 0 : index
    %350 = vector.load %arg5[%c1_218, %c0_219, %c0_220] : memref<4x32x32xf32, #tpu.memory_space<vmem>>, vector<1x32x32xf32>
    %351 = vector.shape_cast %350 : vector<1x32x32xf32> to vector<32x32xf32>
    %c2_221 = arith.constant 2 : index
    %c0_222 = arith.constant 0 : index
    %c0_223 = arith.constant 0 : index
    %352 = vector.load %arg5[%c2_221, %c0_222, %c0_223] : memref<4x32x32xf32, #tpu.memory_space<vmem>>, vector<1x32x32xf32>
    %353 = vector.shape_cast %352 : vector<1x32x32xf32> to vector<32x32xf32>
    %c3_224 = arith.constant 3 : index
    %c0_225 = arith.constant 0 : index
    %c0_226 = arith.constant 0 : index
    %354 = vector.load %arg5[%c3_224, %c0_225, %c0_226] : memref<4x32x32xf32, #tpu.memory_space<vmem>>, vector<1x32x32xf32>
    %355 = vector.shape_cast %354 : vector<1x32x32xf32> to vector<32x32xf32>
    %cst_227 = arith.constant 0.000000e+00 : f32
    %356 = vector.broadcast %cst_227 : f32 to vector<2x32xf32>
    %cst_228 = arith.constant 0.000000e+00 : f32
    %357 = vector.broadcast %cst_228 : f32 to vector<2x32xf32>
    %c0_229 = arith.constant 0 : index
    %c0_230 = arith.constant 0 : index
    %358 = vector.load %arg10[%c0_229, %c0_230] : memref<16x32xf32, #tpu.memory_space<vmem>>, vector<2x32xf32>
    %cst_231 = arith.constant dense<0.000000e+00> : vector<2x32xf32>
    %359 = tpu.matmul %356, %349, %cst_231 {dimension_numbers = #tpu.dot_dimension_numbers<[1], [0], [0], [1], [0, 0, 1, 1], [], []>} : vector<2x32xf32>, vector<32x32xf32>, vector<2x32xf32> -> vector<2x32xf32>
    %360 = arith.addf %358, %359 : vector<2x32xf32>
    %361 = arith.negf %360 : vector<2x32xf32>
    %362 = math.exp %361 : vector<2x32xf32>
    %cst_232 = arith.constant 1.000000e+00 : f32
    %363 = vector.broadcast %cst_232 : f32 to vector<2x32xf32>
    %364 = arith.addf %363, %362 : vector<2x32xf32>
    %365 = arith.divf %363, %364 : vector<2x32xf32>
    %c0_233 = arith.constant 0 : index
    %c0_234 = arith.constant 0 : index
    %366 = vector.load %arg11[%c0_233, %c0_234] : memref<16x32xf32, #tpu.memory_space<vmem>>, vector<2x32xf32>
    %cst_235 = arith.constant dense<0.000000e+00> : vector<2x32xf32>
    %367 = tpu.matmul %356, %351, %cst_235 {dimension_numbers = #tpu.dot_dimension_numbers<[1], [0], [0], [1], [0, 0, 1, 1], [], []>} : vector<2x32xf32>, vector<32x32xf32>, vector<2x32xf32> -> vector<2x32xf32>
    %368 = arith.addf %366, %367 : vector<2x32xf32>
    %369 = arith.negf %368 : vector<2x32xf32>
    %370 = math.exp %369 : vector<2x32xf32>
    %cst_236 = arith.constant 1.000000e+00 : f32
    %371 = vector.broadcast %cst_236 : f32 to vector<2x32xf32>
    %372 = arith.addf %371, %370 : vector<2x32xf32>
    %373 = arith.divf %371, %372 : vector<2x32xf32>
    %c0_237 = arith.constant 0 : index
    %c0_238 = arith.constant 0 : index
    %374 = vector.load %arg12[%c0_237, %c0_238] : memref<16x32xf32, #tpu.memory_space<vmem>>, vector<2x32xf32>
    %cst_239 = arith.constant dense<0.000000e+00> : vector<2x32xf32>
    %375 = tpu.matmul %356, %353, %cst_239 {dimension_numbers = #tpu.dot_dimension_numbers<[1], [0], [0], [1], [0, 0, 1, 1], [], []>} : vector<2x32xf32>, vector<32x32xf32>, vector<2x32xf32> -> vector<2x32xf32>
    %376 = arith.addf %374, %375 : vector<2x32xf32>
    %377 = math.tanh %376 : vector<2x32xf32>
    %c0_240 = arith.constant 0 : index
    %c0_241 = arith.constant 0 : index
    %378 = vector.load %arg13[%c0_240, %c0_241] : memref<16x32xf32, #tpu.memory_space<vmem>>, vector<2x32xf32>
    %cst_242 = arith.constant dense<0.000000e+00> : vector<2x32xf32>
    %379 = tpu.matmul %356, %355, %cst_242 {dimension_numbers = #tpu.dot_dimension_numbers<[1], [0], [0], [1], [0, 0, 1, 1], [], []>} : vector<2x32xf32>, vector<32x32xf32>, vector<2x32xf32> -> vector<2x32xf32>
    %380 = arith.addf %378, %379 : vector<2x32xf32>
    %381 = arith.negf %380 : vector<2x32xf32>
    %382 = math.exp %381 : vector<2x32xf32>
    %cst_243 = arith.constant 1.000000e+00 : f32
    %383 = vector.broadcast %cst_243 : f32 to vector<2x32xf32>
    %384 = arith.addf %383, %382 : vector<2x32xf32>
    %385 = arith.divf %383, %384 : vector<2x32xf32>
    %386 = arith.mulf %373, %357 : vector<2x32xf32>
    %387 = arith.mulf %365, %377 : vector<2x32xf32>
    %388 = arith.addf %386, %387 : vector<2x32xf32>
    %389 = math.tanh %388 : vector<2x32xf32>
    %390 = arith.mulf %385, %389 : vector<2x32xf32>
    %c2_244 = arith.constant 2 : index
    %c0_245 = arith.constant 0 : index
    %391 = vector.load %arg10[%c2_244, %c0_245] : memref<16x32xf32, #tpu.memory_space<vmem>>, vector<2x32xf32>
    %cst_246 = arith.constant dense<0.000000e+00> : vector<2x32xf32>
    %392 = tpu.matmul %390, %349, %cst_246 {dimension_numbers = #tpu.dot_dimension_numbers<[1], [0], [0], [1], [0, 0, 1, 1], [], []>} : vector<2x32xf32>, vector<32x32xf32>, vector<2x32xf32> -> vector<2x32xf32>
    %393 = arith.addf %391, %392 : vector<2x32xf32>
    %394 = arith.negf %393 : vector<2x32xf32>
    %395 = math.exp %394 : vector<2x32xf32>
    %cst_247 = arith.constant 1.000000e+00 : f32
    %396 = vector.broadcast %cst_247 : f32 to vector<2x32xf32>
    %397 = arith.addf %396, %395 : vector<2x32xf32>
    %398 = arith.divf %396, %397 : vector<2x32xf32>
    %c2_248 = arith.constant 2 : index
    %c0_249 = arith.constant 0 : index
    %399 = vector.load %arg11[%c2_248, %c0_249] : memref<16x32xf32, #tpu.memory_space<vmem>>, vector<2x32xf32>
    %cst_250 = arith.constant dense<0.000000e+00> : vector<2x32xf32>
    %400 = tpu.matmul %390, %351, %cst_250 {dimension_numbers = #tpu.dot_dimension_numbers<[1], [0], [0], [1], [0, 0, 1, 1], [], []>} : vector<2x32xf32>, vector<32x32xf32>, vector<2x32xf32> -> vector<2x32xf32>
    %401 = arith.addf %399, %400 : vector<2x32xf32>
    %402 = arith.negf %401 : vector<2x32xf32>
    %403 = math.exp %402 : vector<2x32xf32>
    %cst_251 = arith.constant 1.000000e+00 : f32
    %404 = vector.broadcast %cst_251 : f32 to vector<2x32xf32>
    %405 = arith.addf %404, %403 : vector<2x32xf32>
    %406 = arith.divf %404, %405 : vector<2x32xf32>
    %c2_252 = arith.constant 2 : index
    %c0_253 = arith.constant 0 : index
    %407 = vector.load %arg12[%c2_252, %c0_253] : memref<16x32xf32, #tpu.memory_space<vmem>>, vector<2x32xf32>
    %cst_254 = arith.constant dense<0.000000e+00> : vector<2x32xf32>
    %408 = tpu.matmul %390, %353, %cst_254 {dimension_numbers = #tpu.dot_dimension_numbers<[1], [0], [0], [1], [0, 0, 1, 1], [], []>} : vector<2x32xf32>, vector<32x32xf32>, vector<2x32xf32> -> vector<2x32xf32>
    %409 = arith.addf %407, %408 : vector<2x32xf32>
    %410 = math.tanh %409 : vector<2x32xf32>
    %c2_255 = arith.constant 2 : index
    %c0_256 = arith.constant 0 : index
    %411 = vector.load %arg13[%c2_255, %c0_256] : memref<16x32xf32, #tpu.memory_space<vmem>>, vector<2x32xf32>
    %cst_257 = arith.constant dense<0.000000e+00> : vector<2x32xf32>
    %412 = tpu.matmul %390, %355, %cst_257 {dimension_numbers = #tpu.dot_dimension_numbers<[1], [0], [0], [1], [0, 0, 1, 1], [], []>} : vector<2x32xf32>, vector<32x32xf32>, vector<2x32xf32> -> vector<2x32xf32>
    %413 = arith.addf %411, %412 : vector<2x32xf32>
    %414 = arith.negf %413 : vector<2x32xf32>
    %415 = math.exp %414 : vector<2x32xf32>
    %cst_258 = arith.constant 1.000000e+00 : f32
    %416 = vector.broadcast %cst_258 : f32 to vector<2x32xf32>
    %417 = arith.addf %416, %415 : vector<2x32xf32>
    %418 = arith.divf %416, %417 : vector<2x32xf32>
    %419 = arith.mulf %406, %388 : vector<2x32xf32>
    %420 = arith.mulf %398, %410 : vector<2x32xf32>
    %421 = arith.addf %419, %420 : vector<2x32xf32>
    %422 = math.tanh %421 : vector<2x32xf32>
    %423 = arith.mulf %418, %422 : vector<2x32xf32>
    %c4_259 = arith.constant 4 : index
    %c0_260 = arith.constant 0 : index
    %424 = vector.load %arg10[%c4_259, %c0_260] : memref<16x32xf32, #tpu.memory_space<vmem>>, vector<2x32xf32>
    %cst_261 = arith.constant dense<0.000000e+00> : vector<2x32xf32>
    %425 = tpu.matmul %423, %349, %cst_261 {dimension_numbers = #tpu.dot_dimension_numbers<[1], [0], [0], [1], [0, 0, 1, 1], [], []>} : vector<2x32xf32>, vector<32x32xf32>, vector<2x32xf32> -> vector<2x32xf32>
    %426 = arith.addf %424, %425 : vector<2x32xf32>
    %427 = arith.negf %426 : vector<2x32xf32>
    %428 = math.exp %427 : vector<2x32xf32>
    %cst_262 = arith.constant 1.000000e+00 : f32
    %429 = vector.broadcast %cst_262 : f32 to vector<2x32xf32>
    %430 = arith.addf %429, %428 : vector<2x32xf32>
    %431 = arith.divf %429, %430 : vector<2x32xf32>
    %c4_263 = arith.constant 4 : index
    %c0_264 = arith.constant 0 : index
    %432 = vector.load %arg11[%c4_263, %c0_264] : memref<16x32xf32, #tpu.memory_space<vmem>>, vector<2x32xf32>
    %cst_265 = arith.constant dense<0.000000e+00> : vector<2x32xf32>
    %433 = tpu.matmul %423, %351, %cst_265 {dimension_numbers = #tpu.dot_dimension_numbers<[1], [0], [0], [1], [0, 0, 1, 1], [], []>} : vector<2x32xf32>, vector<32x32xf32>, vector<2x32xf32> -> vector<2x32xf32>
    %434 = arith.addf %432, %433 : vector<2x32xf32>
    %435 = arith.negf %434 : vector<2x32xf32>
    %436 = math.exp %435 : vector<2x32xf32>
    %cst_266 = arith.constant 1.000000e+00 : f32
    %437 = vector.broadcast %cst_266 : f32 to vector<2x32xf32>
    %438 = arith.addf %437, %436 : vector<2x32xf32>
    %439 = arith.divf %437, %438 : vector<2x32xf32>
    %c4_267 = arith.constant 4 : index
    %c0_268 = arith.constant 0 : index
    %440 = vector.load %arg12[%c4_267, %c0_268] : memref<16x32xf32, #tpu.memory_space<vmem>>, vector<2x32xf32>
    %cst_269 = arith.constant dense<0.000000e+00> : vector<2x32xf32>
    %441 = tpu.matmul %423, %353, %cst_269 {dimension_numbers = #tpu.dot_dimension_numbers<[1], [0], [0], [1], [0, 0, 1, 1], [], []>} : vector<2x32xf32>, vector<32x32xf32>, vector<2x32xf32> -> vector<2x32xf32>
    %442 = arith.addf %440, %441 : vector<2x32xf32>
    %443 = math.tanh %442 : vector<2x32xf32>
    %c4_270 = arith.constant 4 : index
    %c0_271 = arith.constant 0 : index
    %444 = vector.load %arg13[%c4_270, %c0_271] : memref<16x32xf32, #tpu.memory_space<vmem>>, vector<2x32xf32>
    %cst_272 = arith.constant dense<0.000000e+00> : vector<2x32xf32>
    %445 = tpu.matmul %423, %355, %cst_272 {dimension_numbers = #tpu.dot_dimension_numbers<[1], [0], [0], [1], [0, 0, 1, 1], [], []>} : vector<2x32xf32>, vector<32x32xf32>, vector<2x32xf32> -> vector<2x32xf32>
    %446 = arith.addf %444, %445 : vector<2x32xf32>
    %447 = arith.negf %446 : vector<2x32xf32>
    %448 = math.exp %447 : vector<2x32xf32>
    %cst_273 = arith.constant 1.000000e+00 : f32
    %449 = vector.broadcast %cst_273 : f32 to vector<2x32xf32>
    %450 = arith.addf %449, %448 : vector<2x32xf32>
    %451 = arith.divf %449, %450 : vector<2x32xf32>
    %452 = arith.mulf %439, %421 : vector<2x32xf32>
    %453 = arith.mulf %431, %443 : vector<2x32xf32>
    %454 = arith.addf %452, %453 : vector<2x32xf32>
    %455 = math.tanh %454 : vector<2x32xf32>
    %456 = arith.mulf %451, %455 : vector<2x32xf32>
    %c6_274 = arith.constant 6 : index
    %c0_275 = arith.constant 0 : index
    %457 = vector.load %arg10[%c6_274, %c0_275] : memref<16x32xf32, #tpu.memory_space<vmem>>, vector<2x32xf32>
    %cst_276 = arith.constant dense<0.000000e+00> : vector<2x32xf32>
    %458 = tpu.matmul %456, %349, %cst_276 {dimension_numbers = #tpu.dot_dimension_numbers<[1], [0], [0], [1], [0, 0, 1, 1], [], []>} : vector<2x32xf32>, vector<32x32xf32>, vector<2x32xf32> -> vector<2x32xf32>
    %459 = arith.addf %457, %458 : vector<2x32xf32>
    %460 = arith.negf %459 : vector<2x32xf32>
    %461 = math.exp %460 : vector<2x32xf32>
    %cst_277 = arith.constant 1.000000e+00 : f32
    %462 = vector.broadcast %cst_277 : f32 to vector<2x32xf32>
    %463 = arith.addf %462, %461 : vector<2x32xf32>
    %464 = arith.divf %462, %463 : vector<2x32xf32>
    %c6_278 = arith.constant 6 : index
    %c0_279 = arith.constant 0 : index
    %465 = vector.load %arg11[%c6_278, %c0_279] : memref<16x32xf32, #tpu.memory_space<vmem>>, vector<2x32xf32>
    %cst_280 = arith.constant dense<0.000000e+00> : vector<2x32xf32>
    %466 = tpu.matmul %456, %351, %cst_280 {dimension_numbers = #tpu.dot_dimension_numbers<[1], [0], [0], [1], [0, 0, 1, 1], [], []>} : vector<2x32xf32>, vector<32x32xf32>, vector<2x32xf32> -> vector<2x32xf32>
    %467 = arith.addf %465, %466 : vector<2x32xf32>
    %468 = arith.negf %467 : vector<2x32xf32>
    %469 = math.exp %468 : vector<2x32xf32>
    %cst_281 = arith.constant 1.000000e+00 : f32
    %470 = vector.broadcast %cst_281 : f32 to vector<2x32xf32>
    %471 = arith.addf %470, %469 : vector<2x32xf32>
    %472 = arith.divf %470, %471 : vector<2x32xf32>
    %c6_282 = arith.constant 6 : index
    %c0_283 = arith.constant 0 : index
    %473 = vector.load %arg12[%c6_282, %c0_283] : memref<16x32xf32, #tpu.memory_space<vmem>>, vector<2x32xf32>
    %cst_284 = arith.constant dense<0.000000e+00> : vector<2x32xf32>
    %474 = tpu.matmul %456, %353, %cst_284 {dimension_numbers = #tpu.dot_dimension_numbers<[1], [0], [0], [1], [0, 0, 1, 1], [], []>} : vector<2x32xf32>, vector<32x32xf32>, vector<2x32xf32> -> vector<2x32xf32>
    %475 = arith.addf %473, %474 : vector<2x32xf32>
    %476 = math.tanh %475 : vector<2x32xf32>
    %c6_285 = arith.constant 6 : index
    %c0_286 = arith.constant 0 : index
    %477 = vector.load %arg13[%c6_285, %c0_286] : memref<16x32xf32, #tpu.memory_space<vmem>>, vector<2x32xf32>
    %cst_287 = arith.constant dense<0.000000e+00> : vector<2x32xf32>
    %478 = tpu.matmul %456, %355, %cst_287 {dimension_numbers = #tpu.dot_dimension_numbers<[1], [0], [0], [1], [0, 0, 1, 1], [], []>} : vector<2x32xf32>, vector<32x32xf32>, vector<2x32xf32> -> vector<2x32xf32>
    %479 = arith.addf %477, %478 : vector<2x32xf32>
    %480 = arith.negf %479 : vector<2x32xf32>
    %481 = math.exp %480 : vector<2x32xf32>
    %cst_288 = arith.constant 1.000000e+00 : f32
    %482 = vector.broadcast %cst_288 : f32 to vector<2x32xf32>
    %483 = arith.addf %482, %481 : vector<2x32xf32>
    %484 = arith.divf %482, %483 : vector<2x32xf32>
    %485 = arith.mulf %472, %454 : vector<2x32xf32>
    %486 = arith.mulf %464, %476 : vector<2x32xf32>
    %487 = arith.addf %485, %486 : vector<2x32xf32>
    %488 = math.tanh %487 : vector<2x32xf32>
    %489 = arith.mulf %484, %488 : vector<2x32xf32>
    %c8_289 = arith.constant 8 : index
    %c0_290 = arith.constant 0 : index
    %490 = vector.load %arg10[%c8_289, %c0_290] : memref<16x32xf32, #tpu.memory_space<vmem>>, vector<2x32xf32>
    %cst_291 = arith.constant dense<0.000000e+00> : vector<2x32xf32>
    %491 = tpu.matmul %489, %349, %cst_291 {dimension_numbers = #tpu.dot_dimension_numbers<[1], [0], [0], [1], [0, 0, 1, 1], [], []>} : vector<2x32xf32>, vector<32x32xf32>, vector<2x32xf32> -> vector<2x32xf32>
    %492 = arith.addf %490, %491 : vector<2x32xf32>
    %493 = arith.negf %492 : vector<2x32xf32>
    %494 = math.exp %493 : vector<2x32xf32>
    %cst_292 = arith.constant 1.000000e+00 : f32
    %495 = vector.broadcast %cst_292 : f32 to vector<2x32xf32>
    %496 = arith.addf %495, %494 : vector<2x32xf32>
    %497 = arith.divf %495, %496 : vector<2x32xf32>
    %c8_293 = arith.constant 8 : index
    %c0_294 = arith.constant 0 : index
    %498 = vector.load %arg11[%c8_293, %c0_294] : memref<16x32xf32, #tpu.memory_space<vmem>>, vector<2x32xf32>
    %cst_295 = arith.constant dense<0.000000e+00> : vector<2x32xf32>
    %499 = tpu.matmul %489, %351, %cst_295 {dimension_numbers = #tpu.dot_dimension_numbers<[1], [0], [0], [1], [0, 0, 1, 1], [], []>} : vector<2x32xf32>, vector<32x32xf32>, vector<2x32xf32> -> vector<2x32xf32>
    %500 = arith.addf %498, %499 : vector<2x32xf32>
    %501 = arith.negf %500 : vector<2x32xf32>
    %502 = math.exp %501 : vector<2x32xf32>
    %cst_296 = arith.constant 1.000000e+00 : f32
    %503 = vector.broadcast %cst_296 : f32 to vector<2x32xf32>
    %504 = arith.addf %503, %502 : vector<2x32xf32>
    %505 = arith.divf %503, %504 : vector<2x32xf32>
    %c8_297 = arith.constant 8 : index
    %c0_298 = arith.constant 0 : index
    %506 = vector.load %arg12[%c8_297, %c0_298] : memref<16x32xf32, #tpu.memory_space<vmem>>, vector<2x32xf32>
    %cst_299 = arith.constant dense<0.000000e+00> : vector<2x32xf32>
    %507 = tpu.matmul %489, %353, %cst_299 {dimension_numbers = #tpu.dot_dimension_numbers<[1], [0], [0], [1], [0, 0, 1, 1], [], []>} : vector<2x32xf32>, vector<32x32xf32>, vector<2x32xf32> -> vector<2x32xf32>
    %508 = arith.addf %506, %507 : vector<2x32xf32>
    %509 = math.tanh %508 : vector<2x32xf32>
    %c8_300 = arith.constant 8 : index
    %c0_301 = arith.constant 0 : index
    %510 = vector.load %arg13[%c8_300, %c0_301] : memref<16x32xf32, #tpu.memory_space<vmem>>, vector<2x32xf32>
    %cst_302 = arith.constant dense<0.000000e+00> : vector<2x32xf32>
    %511 = tpu.matmul %489, %355, %cst_302 {dimension_numbers = #tpu.dot_dimension_numbers<[1], [0], [0], [1], [0, 0, 1, 1], [], []>} : vector<2x32xf32>, vector<32x32xf32>, vector<2x32xf32> -> vector<2x32xf32>
    %512 = arith.addf %510, %511 : vector<2x32xf32>
    %513 = arith.negf %512 : vector<2x32xf32>
    %514 = math.exp %513 : vector<2x32xf32>
    %cst_303 = arith.constant 1.000000e+00 : f32
    %515 = vector.broadcast %cst_303 : f32 to vector<2x32xf32>
    %516 = arith.addf %515, %514 : vector<2x32xf32>
    %517 = arith.divf %515, %516 : vector<2x32xf32>
    %518 = arith.mulf %505, %487 : vector<2x32xf32>
    %519 = arith.mulf %497, %509 : vector<2x32xf32>
    %520 = arith.addf %518, %519 : vector<2x32xf32>
    %521 = math.tanh %520 : vector<2x32xf32>
    %522 = arith.mulf %517, %521 : vector<2x32xf32>
    %c10_304 = arith.constant 10 : index
    %c0_305 = arith.constant 0 : index
    %523 = vector.load %arg10[%c10_304, %c0_305] : memref<16x32xf32, #tpu.memory_space<vmem>>, vector<2x32xf32>
    %cst_306 = arith.constant dense<0.000000e+00> : vector<2x32xf32>
    %524 = tpu.matmul %522, %349, %cst_306 {dimension_numbers = #tpu.dot_dimension_numbers<[1], [0], [0], [1], [0, 0, 1, 1], [], []>} : vector<2x32xf32>, vector<32x32xf32>, vector<2x32xf32> -> vector<2x32xf32>
    %525 = arith.addf %523, %524 : vector<2x32xf32>
    %526 = arith.negf %525 : vector<2x32xf32>
    %527 = math.exp %526 : vector<2x32xf32>
    %cst_307 = arith.constant 1.000000e+00 : f32
    %528 = vector.broadcast %cst_307 : f32 to vector<2x32xf32>
    %529 = arith.addf %528, %527 : vector<2x32xf32>
    %530 = arith.divf %528, %529 : vector<2x32xf32>
    %c10_308 = arith.constant 10 : index
    %c0_309 = arith.constant 0 : index
    %531 = vector.load %arg11[%c10_308, %c0_309] : memref<16x32xf32, #tpu.memory_space<vmem>>, vector<2x32xf32>
    %cst_310 = arith.constant dense<0.000000e+00> : vector<2x32xf32>
    %532 = tpu.matmul %522, %351, %cst_310 {dimension_numbers = #tpu.dot_dimension_numbers<[1], [0], [0], [1], [0, 0, 1, 1], [], []>} : vector<2x32xf32>, vector<32x32xf32>, vector<2x32xf32> -> vector<2x32xf32>
    %533 = arith.addf %531, %532 : vector<2x32xf32>
    %534 = arith.negf %533 : vector<2x32xf32>
    %535 = math.exp %534 : vector<2x32xf32>
    %cst_311 = arith.constant 1.000000e+00 : f32
    %536 = vector.broadcast %cst_311 : f32 to vector<2x32xf32>
    %537 = arith.addf %536, %535 : vector<2x32xf32>
    %538 = arith.divf %536, %537 : vector<2x32xf32>
    %c10_312 = arith.constant 10 : index
    %c0_313 = arith.constant 0 : index
    %539 = vector.load %arg12[%c10_312, %c0_313] : memref<16x32xf32, #tpu.memory_space<vmem>>, vector<2x32xf32>
    %cst_314 = arith.constant dense<0.000000e+00> : vector<2x32xf32>
    %540 = tpu.matmul %522, %353, %cst_314 {dimension_numbers = #tpu.dot_dimension_numbers<[1], [0], [0], [1], [0, 0, 1, 1], [], []>} : vector<2x32xf32>, vector<32x32xf32>, vector<2x32xf32> -> vector<2x32xf32>
    %541 = arith.addf %539, %540 : vector<2x32xf32>
    %542 = math.tanh %541 : vector<2x32xf32>
    %c10_315 = arith.constant 10 : index
    %c0_316 = arith.constant 0 : index
    %543 = vector.load %arg13[%c10_315, %c0_316] : memref<16x32xf32, #tpu.memory_space<vmem>>, vector<2x32xf32>
    %cst_317 = arith.constant dense<0.000000e+00> : vector<2x32xf32>
    %544 = tpu.matmul %522, %355, %cst_317 {dimension_numbers = #tpu.dot_dimension_numbers<[1], [0], [0], [1], [0, 0, 1, 1], [], []>} : vector<2x32xf32>, vector<32x32xf32>, vector<2x32xf32> -> vector<2x32xf32>
    %545 = arith.addf %543, %544 : vector<2x32xf32>
    %546 = arith.negf %545 : vector<2x32xf32>
    %547 = math.exp %546 : vector<2x32xf32>
    %cst_318 = arith.constant 1.000000e+00 : f32
    %548 = vector.broadcast %cst_318 : f32 to vector<2x32xf32>
    %549 = arith.addf %548, %547 : vector<2x32xf32>
    %550 = arith.divf %548, %549 : vector<2x32xf32>
    %551 = arith.mulf %538, %520 : vector<2x32xf32>
    %552 = arith.mulf %530, %542 : vector<2x32xf32>
    %553 = arith.addf %551, %552 : vector<2x32xf32>
    %554 = math.tanh %553 : vector<2x32xf32>
    %555 = arith.mulf %550, %554 : vector<2x32xf32>
    %c12_319 = arith.constant 12 : index
    %c0_320 = arith.constant 0 : index
    %556 = vector.load %arg10[%c12_319, %c0_320] : memref<16x32xf32, #tpu.memory_space<vmem>>, vector<2x32xf32>
    %cst_321 = arith.constant dense<0.000000e+00> : vector<2x32xf32>
    %557 = tpu.matmul %555, %349, %cst_321 {dimension_numbers = #tpu.dot_dimension_numbers<[1], [0], [0], [1], [0, 0, 1, 1], [], []>} : vector<2x32xf32>, vector<32x32xf32>, vector<2x32xf32> -> vector<2x32xf32>
    %558 = arith.addf %556, %557 : vector<2x32xf32>
    %559 = arith.negf %558 : vector<2x32xf32>
    %560 = math.exp %559 : vector<2x32xf32>
    %cst_322 = arith.constant 1.000000e+00 : f32
    %561 = vector.broadcast %cst_322 : f32 to vector<2x32xf32>
    %562 = arith.addf %561, %560 : vector<2x32xf32>
    %563 = arith.divf %561, %562 : vector<2x32xf32>
    %c12_323 = arith.constant 12 : index
    %c0_324 = arith.constant 0 : index
    %564 = vector.load %arg11[%c12_323, %c0_324] : memref<16x32xf32, #tpu.memory_space<vmem>>, vector<2x32xf32>
    %cst_325 = arith.constant dense<0.000000e+00> : vector<2x32xf32>
    %565 = tpu.matmul %555, %351, %cst_325 {dimension_numbers = #tpu.dot_dimension_numbers<[1], [0], [0], [1], [0, 0, 1, 1], [], []>} : vector<2x32xf32>, vector<32x32xf32>, vector<2x32xf32> -> vector<2x32xf32>
    %566 = arith.addf %564, %565 : vector<2x32xf32>
    %567 = arith.negf %566 : vector<2x32xf32>
    %568 = math.exp %567 : vector<2x32xf32>
    %cst_326 = arith.constant 1.000000e+00 : f32
    %569 = vector.broadcast %cst_326 : f32 to vector<2x32xf32>
    %570 = arith.addf %569, %568 : vector<2x32xf32>
    %571 = arith.divf %569, %570 : vector<2x32xf32>
    %c12_327 = arith.constant 12 : index
    %c0_328 = arith.constant 0 : index
    %572 = vector.load %arg12[%c12_327, %c0_328] : memref<16x32xf32, #tpu.memory_space<vmem>>, vector<2x32xf32>
    %cst_329 = arith.constant dense<0.000000e+00> : vector<2x32xf32>
    %573 = tpu.matmul %555, %353, %cst_329 {dimension_numbers = #tpu.dot_dimension_numbers<[1], [0], [0], [1], [0, 0, 1, 1], [], []>} : vector<2x32xf32>, vector<32x32xf32>, vector<2x32xf32> -> vector<2x32xf32>
    %574 = arith.addf %572, %573 : vector<2x32xf32>
    %575 = math.tanh %574 : vector<2x32xf32>
    %c12_330 = arith.constant 12 : index
    %c0_331 = arith.constant 0 : index
    %576 = vector.load %arg13[%c12_330, %c0_331] : memref<16x32xf32, #tpu.memory_space<vmem>>, vector<2x32xf32>
    %cst_332 = arith.constant dense<0.000000e+00> : vector<2x32xf32>
    %577 = tpu.matmul %555, %355, %cst_332 {dimension_numbers = #tpu.dot_dimension_numbers<[1], [0], [0], [1], [0, 0, 1, 1], [], []>} : vector<2x32xf32>, vector<32x32xf32>, vector<2x32xf32> -> vector<2x32xf32>
    %578 = arith.addf %576, %577 : vector<2x32xf32>
    %579 = arith.negf %578 : vector<2x32xf32>
    %580 = math.exp %579 : vector<2x32xf32>
    %cst_333 = arith.constant 1.000000e+00 : f32
    %581 = vector.broadcast %cst_333 : f32 to vector<2x32xf32>
    %582 = arith.addf %581, %580 : vector<2x32xf32>
    %583 = arith.divf %581, %582 : vector<2x32xf32>
    %584 = arith.mulf %571, %553 : vector<2x32xf32>
    %585 = arith.mulf %563, %575 : vector<2x32xf32>
    %586 = arith.addf %584, %585 : vector<2x32xf32>
    %587 = math.tanh %586 : vector<2x32xf32>
    %588 = arith.mulf %583, %587 : vector<2x32xf32>
    %c14_334 = arith.constant 14 : index
    %c0_335 = arith.constant 0 : index
    %589 = vector.load %arg10[%c14_334, %c0_335] : memref<16x32xf32, #tpu.memory_space<vmem>>, vector<2x32xf32>
    %cst_336 = arith.constant dense<0.000000e+00> : vector<2x32xf32>
    %590 = tpu.matmul %588, %349, %cst_336 {dimension_numbers = #tpu.dot_dimension_numbers<[1], [0], [0], [1], [0, 0, 1, 1], [], []>} : vector<2x32xf32>, vector<32x32xf32>, vector<2x32xf32> -> vector<2x32xf32>
    %591 = arith.addf %589, %590 : vector<2x32xf32>
    %592 = arith.negf %591 : vector<2x32xf32>
    %593 = math.exp %592 : vector<2x32xf32>
    %cst_337 = arith.constant 1.000000e+00 : f32
    %594 = vector.broadcast %cst_337 : f32 to vector<2x32xf32>
    %595 = arith.addf %594, %593 : vector<2x32xf32>
    %596 = arith.divf %594, %595 : vector<2x32xf32>
    %c14_338 = arith.constant 14 : index
    %c0_339 = arith.constant 0 : index
    %597 = vector.load %arg11[%c14_338, %c0_339] : memref<16x32xf32, #tpu.memory_space<vmem>>, vector<2x32xf32>
    %cst_340 = arith.constant dense<0.000000e+00> : vector<2x32xf32>
    %598 = tpu.matmul %588, %351, %cst_340 {dimension_numbers = #tpu.dot_dimension_numbers<[1], [0], [0], [1], [0, 0, 1, 1], [], []>} : vector<2x32xf32>, vector<32x32xf32>, vector<2x32xf32> -> vector<2x32xf32>
    %599 = arith.addf %597, %598 : vector<2x32xf32>
    %600 = arith.negf %599 : vector<2x32xf32>
    %601 = math.exp %600 : vector<2x32xf32>
    %cst_341 = arith.constant 1.000000e+00 : f32
    %602 = vector.broadcast %cst_341 : f32 to vector<2x32xf32>
    %603 = arith.addf %602, %601 : vector<2x32xf32>
    %604 = arith.divf %602, %603 : vector<2x32xf32>
    %c14_342 = arith.constant 14 : index
    %c0_343 = arith.constant 0 : index
    %605 = vector.load %arg12[%c14_342, %c0_343] : memref<16x32xf32, #tpu.memory_space<vmem>>, vector<2x32xf32>
    %cst_344 = arith.constant dense<0.000000e+00> : vector<2x32xf32>
    %606 = tpu.matmul %588, %353, %cst_344 {dimension_numbers = #tpu.dot_dimension_numbers<[1], [0], [0], [1], [0, 0, 1, 1], [], []>} : vector<2x32xf32>, vector<32x32xf32>, vector<2x32xf32> -> vector<2x32xf32>
    %607 = arith.addf %605, %606 : vector<2x32xf32>
    %608 = math.tanh %607 : vector<2x32xf32>
    %c14_345 = arith.constant 14 : index
    %c0_346 = arith.constant 0 : index
    %609 = vector.load %arg13[%c14_345, %c0_346] : memref<16x32xf32, #tpu.memory_space<vmem>>, vector<2x32xf32>
    %cst_347 = arith.constant dense<0.000000e+00> : vector<2x32xf32>
    %610 = tpu.matmul %588, %355, %cst_347 {dimension_numbers = #tpu.dot_dimension_numbers<[1], [0], [0], [1], [0, 0, 1, 1], [], []>} : vector<2x32xf32>, vector<32x32xf32>, vector<2x32xf32> -> vector<2x32xf32>
    %611 = arith.addf %609, %610 : vector<2x32xf32>
    %612 = arith.negf %611 : vector<2x32xf32>
    %613 = math.exp %612 : vector<2x32xf32>
    %cst_348 = arith.constant 1.000000e+00 : f32
    %614 = vector.broadcast %cst_348 : f32 to vector<2x32xf32>
    %615 = arith.addf %614, %613 : vector<2x32xf32>
    %616 = arith.divf %614, %615 : vector<2x32xf32>
    %617 = arith.mulf %604, %586 : vector<2x32xf32>
    %618 = arith.mulf %596, %608 : vector<2x32xf32>
    %619 = arith.addf %617, %618 : vector<2x32xf32>
    %620 = math.tanh %619 : vector<2x32xf32>
    %621 = arith.mulf %616, %620 : vector<2x32xf32>
    %c0_349 = arith.constant 0 : index
    %c0_350 = arith.constant 0 : index
    %622 = vector.load %arg7[%c0_349, %c0_350] : memref<32x4xf32, #tpu.memory_space<vmem>>, vector<32x4xf32>
    %cst_351 = arith.constant dense<0.000000e+00> : vector<2x4xf32>
    %623 = tpu.matmul %621, %622, %cst_351 {dimension_numbers = #tpu.dot_dimension_numbers<[1], [0], [0], [1], [0, 0, 1, 1], [], []>} : vector<2x32xf32>, vector<32x4xf32>, vector<2x4xf32> -> vector<2x4xf32>
    %c0_352 = arith.constant 0 : index
    %c0_353 = arith.constant 0 : index
    %624 = vector.load %arg8[%c0_352, %c0_353] : memref<1x4xf32, #tpu.memory_space<vmem>>, vector<1x4xf32>
    %625 = vector.broadcast %624 : vector<1x4xf32> to vector<2x4xf32>
    %626 = arith.addf %623, %625 : vector<2x4xf32>
    %c0_354 = arith.constant 0 : index
    %c0_355 = arith.constant 0 : index
    %627 = vector.load %arg9[%c0_354, %c0_355] : memref<2x4xf32, #tpu.memory_space<vmem>>, vector<2x4xf32>
    tpu.vector_store %arg9[%c0_354, %c0_355], %626 {strides = array<i32>} : memref<2x4xf32, #tpu.memory_space<vmem>>, vector<2x4xf32>,
    return
  }
}

</mosaic_0001>

<llo_original>
// kernel: tpu_custom_call.1
$region0: #{tpu_custom_call.1}
  #allocation0 [shape = 'u32[]', space=smem, size = 0x4, offset = 0x4, fixed_abs, tag = 'smem constant byte address 0x4 - core index']
  #allocation1 [shape = 'u32[144,128]{1,0:T(1,128)}', space=vmem, size = 0x12000, scoped, tag = 'internal scratch']
  #allocation2 [shape = 'f32[16,32]{1,0:T(8,128)}', space=vmem, size = 0x2000, scoped, tag = 'scratch operand']
  #allocation3 [shape = 'f32[16,32]{1,0:T(8,128)}', space=vmem, size = 0x2000, scoped, tag = 'scratch operand']
  #allocation4 [shape = 'f32[16,32]{1,0:T(8,128)}', space=vmem, size = 0x2000, scoped, tag = 'scratch operand']
  #allocation5 [shape = 'f32[16,32]{1,0:T(8,128)}', space=vmem, size = 0x2000, scoped, tag = 'scratch operand']
  #allocation6 [shape = 'f32[16,32]{1,0:T(8,128)}', space=vmem, size = 0x2000, scoped, tag = 'scratch operand']
  %s0 = inlined_call_operand.vmem [shape: f32[16,16], index: 0, kind: input, shape index: {}]
  %s1 = inlined_call_operand.hbm [shape: f32[4,16,32], index: 1, kind: input, shape index: {}]
  %s2 = inlined_call_operand.hbm [shape: f32[4,32,32], index: 2, kind: input, shape index: {}]
  %s3 = inlined_call_operand.vmem [shape: f32[4,1,32], index: 3, kind: input, shape index: {}]
  %s4 = inlined_call_operand.hbm [shape: f32[4,32,32], index: 4, kind: input, shape index: {}]
  %s5 = inlined_call_operand.hbm [shape: f32[4,32,32], index: 5, kind: input, shape index: {}]
  %s6 = inlined_call_operand.vmem [shape: f32[4,1,32], index: 6, kind: input, shape index: {}]
  %s7 = inlined_call_operand.vmem [shape: f32[32,4], index: 7, kind: input, shape index: {}]
  %s8 = inlined_call_operand.vmem [shape: f32[1,4], index: 8, kind: input, shape index: {}]
  %s9 = inlined_call_operand.hbm [shape: f32[2,4], index: 9, kind: output, shape index: {}]
  %s10 = sld [smem:[#allocation0]]
  $region62: #{tpu_custom_call.1} parent=0
    _
  %s12 = ssub.s32 1, %s10
  %s13 = scalar_select 0, %s12, %s10
  $region1: #{tpu_custom_call.1} parent=0
    #allocation7 [shape = 'u8[32768]{0}', space=vmem, size = 0x8000, scoped, tag = 'input window, operand 1, single buffered']
    #allocation8 [shape = 's32[1]{0}', space=sflag, size = 0x4, scoped, tag = 'scoped memory for tpu_custom_call.1']
    #allocation9 [shape = 's32[1]{0}', space=sflag, size = 0x4, scoped, tag = 'scoped memory for tpu_custom_call.1']
    #allocation10 [shape = 'u8[65536]{0}', space=vmem, size = 0x10000, scoped, tag = 'input window, operand 2, single buffered']
    #allocation11 [shape = 's32[1]{0}', space=sflag, size = 0x4, scoped, tag = 'scoped memory for tpu_custom_call.1']
    #allocation12 [shape = 'u8[65536]{0}', space=vmem, size = 0x10000, scoped, tag = 'input window, operand 4, single buffered']
    #allocation13 [shape = 'u8[65536]{0}', space=vmem, size = 0x10000, scoped, tag = 'input window, operand 5, single buffered']
    #allocation14 [shape = 's32[1]{0}', space=sflag, size = 0x4, scoped, tag = 'scoped memory for tpu_custom_call.1']
    #allocation15 [shape = 'u8[1024]{0}', space=vmem, size = 0x400, scoped, tag = 'output window, operand 0, single buffered']
    %14 = vsyncpa [#allocation8], 0
    %15 = vsyncpa [#allocation11], 0
    %16 = vsyncpa [#allocation14], 0
    %17 = vsyncpa [#allocation9], 0
    // Predicated region
    $region2: #{tpu_custom_call.1} parent=1 // pred_check
      _
    $region3: #{tpu_custom_call.1} parent=1 // pred_check_branch
      %19 = sbr.rel (0) target = $region5
    $region4: #{tpu_custom_call.1} parent=1 // pred_region
      _
    $region5: #{tpu_custom_call.1} parent=1 // pred_fallthru
      _
    // Predicated region
    $region6: #{tpu_custom_call.1} parent=1 // pred_check
      _
    $region7: #{tpu_custom_call.1} parent=1 // pred_check_branch
      %21 = sbr.rel (0) target = $region9
    $region8: #{tpu_custom_call.1} parent=1 // pred_region
      %s23 = ssub.s32 1024, 1024
      %24 = vsyncadd [#allocation8], %s23
      %s25 = sshll.u32 [#allocation7], 4
      %s26 = int_to_ptr.vmem [resolvable:$true] %s25
      %31 = dma.hbm_to_vmem [thread:$0]  %s1, 1024, %s26, [#allocation8], 128, 128, 8
    $region9: #{tpu_custom_call.1} parent=1 // pred_fallthru
      _
    // Predicated region
    $region10: #{tpu_custom_call.1} parent=1 // pred_check
      _
    $region11: #{tpu_custom_call.1} parent=1 // pred_check_branch
      %33 = sbr.rel (0) target = $region13
    $region12: #{tpu_custom_call.1} parent=1 // pred_region
      %s35 = ssub.s32 2048, 2048
      %36 = vsyncadd [#allocation11], %s35
      %s37 = sshll.u32 [#allocation10], 4
      %s38 = int_to_ptr.vmem [resolvable:$true] %s37
      %43 = dma.hbm_to_vmem [thread:$0]  %s2, 2048, %s38, [#allocation11], 128, 128, 8
    $region13: #{tpu_custom_call.1} parent=1 // pred_fallthru
      _
    // Predicated region
    $region14: #{tpu_custom_call.1} parent=1 // pred_check
      _
    $region15: #{tpu_custom_call.1} parent=1 // pred_check_branch
      %45 = sbr.rel (0) target = $region17
    $region16: #{tpu_custom_call.1} parent=1 // pred_region
      _
    $region17: #{tpu_custom_call.1} parent=1 // pred_fallthru
      _
    // Predicated region
    $region18: #{tpu_custom_call.1} parent=1 // pred_check
      _
    $region19: #{tpu_custom_call.1} parent=1 // pred_check_branch
      %47 = sbr.rel (0) target = $region21
    $region20: #{tpu_custom_call.1} parent=1 // pred_region
      %s49 = ssub.s32 2048, 2048
      %50 = vsyncadd [#allocation11], %s49
      %s51 = sshll.u32 [#allocation12], 4
      %s52 = int_to_ptr.vmem [resolvable:$true] %s51
      %57 = dma.hbm_to_vmem [thread:$0]  %s4, 2048, %s52, [#allocation11], 128, 128, 8
    $region21: #{tpu_custom_call.1} parent=1 // pred_fallthru
      _
    // Predicated region
    $region22: #{tpu_custom_call.1} parent=1 // pred_check
      _
    $region23: #{tpu_custom_call.1} parent=1 // pred_check_branch
      %59 = sbr.rel (0) target = $region25
    $region24: #{tpu_custom_call.1} parent=1 // pred_region
      %s61 = ssub.s32 2048, 2048
      %62 = vsyncadd [#allocation14], %s61
      %s63 = sshll.u32 [#allocation13], 4
      %s64 = int_to_ptr.vmem [resolvable:$true] %s63
      %69 = dma.hbm_to_vmem [thread:$0]  %s5, 2048, %s64, [#allocation14], 128, 128, 8
    $region25: #{tpu_custom_call.1} parent=1 // pred_fallthru
      _
    // Predicated region
    $region26: #{tpu_custom_call.1} parent=1 // pred_check
      _
    $region27: #{tpu_custom_call.1} parent=1 // pred_check_branch
      %71 = sbr.rel (0) target = $region29
    $region28: #{tpu_custom_call.1} parent=1 // pred_region
      _
    $region29: #{tpu_custom_call.1} parent=1 // pred_fallthru
      _
    // Predicated region
    $region30: #{tpu_custom_call.1} parent=1 // pred_check
      _
    $region31: #{tpu_custom_call.1} parent=1 // pred_check_branch
      %73 = sbr.rel (0) target = $region33
    $region32: #{tpu_custom_call.1} parent=1 // pred_region
      _
    $region33: #{tpu_custom_call.1} parent=1 // pred_fallthru
      _
    // Predicated region
    $region34: #{tpu_custom_call.1} parent=1 // pred_check
      _
    $region35: #{tpu_custom_call.1} parent=1 // pred_check_branch
      %75 = sbr.rel (0) target = $region37
    $region36: #{tpu_custom_call.1} parent=1 // pred_region
      _
    $region37: #{tpu_custom_call.1} parent=1 // pred_fallthru
      _
    // Predicated region
    $region38: #{tpu_custom_call.1} parent=1 // pred_check
      _
    $region39: #{tpu_custom_call.1} parent=1 // pred_check_branch
      %77 = sbr.rel (0) target = $region41
    $region40: #{tpu_custom_call.1} parent=1 // pred_region
      %78 = dma.done [#allocation8], 1024
    $region41: #{tpu_custom_call.1} parent=1 // pred_fallthru
      _
    // Predicated region
    $region42: #{tpu_custom_call.1} parent=1 // pred_check
      _
    $region43: #{tpu_custom_call.1} parent=1 // pred_check_branch
      %80 = sbr.rel (0) target = $region45
    $region44: #{tpu_custom_call.1} parent=1 // pred_region
      %81 = dma.done [#allocation11], 2048
    $region45: #{tpu_custom_call.1} parent=1 // pred_fallthru
      _
    // Predicated region
    $region46: #{tpu_custom_call.1} parent=1 // pred_check
      _
    $region47: #{tpu_custom_call.1} parent=1 // pred_check_branch
      %83 = sbr.rel (0) target = $region49
    $region48: #{tpu_custom_call.1} parent=1 // pred_region
      %84 = dma.done [#allocation11], 2048
    $region49: #{tpu_custom_call.1} parent=1 // pred_fallthru
      _
    // Predicated region
    $region50: #{tpu_custom_call.1} parent=1 // pred_check
      _
    $region51: #{tpu_custom_call.1} parent=1 // pred_check_branch
      %86 = sbr.rel (0) target = $region53
    $region52: #{tpu_custom_call.1} parent=1 // pred_region
      %87 = dma.done [#allocation14], 2048
    $region53: #{tpu_custom_call.1} parent=1 // pred_fallthru
      _
    %v88 = vld [vmem:[%s0] sm:$0xff]
    %v89 = vld [vmem:[%s0 + $0x8] sm:$0xff]
    %v90 = vld [vmem:[#allocation7] sm:$0xff]
    %v91 = vld [vmem:[#allocation7 + $0x8] sm:$0xff]
    %v92 = vld [vmem:[%s3] sm:$0x1]
    %v94 = vlaneseq
    %v95 = vshrl.u32 %v94, 7
    %v96 = vsub.s32 0, %v95
    %v97 = vrot.slane %v92, %v96
    %vm99 = vcmask 130048
    %v101 = vsel %vm99, %v88, 0
    %v104 = vsel %vm99, %v89, 0
    %106 = vmatprep.subr.mxu0 0.0
    %107 = vmatpush1.msra.mxu0 %v90
    %108 = vmatprep.subr.mxu0 0.0
    %109 = vmatpush1.msra.mxu0 %v91
    %110 = vmatprep.subr.mxu0 0.0
    %111 = vmatpush1.msra.mxu0 0.0
    %112 = vmatprep.subr.mxu0 0.0
    %113 = vmatpush1.msra.mxu0 0.0
    %114 = vmatprep.subr.mxu0 0.0
    %115 = vmatpush1.msra.mxu0 0.0
    %116 = vmatprep.subr.mxu0 0.0
    %117 = vmatpush1.msra.mxu0 0.0
    %118 = vmatprep.subr.mxu0 0.0
    %119 = vmatpush1.msra.mxu0 0.0
    %120 = vmatprep.subr.mxu0 0.0
    %121 = vmatpush1.msra.mxu0 0.0
    %122 = vmatprep.subr.mxu0 0.0
    %123 = vmatpush1.msra.mxu0 0.0
    %124 = vmatprep.subr.mxu0 0.0
    %125 = vmatpush1.msra.mxu0 0.0
    %126 = vmatprep.subr.mxu0 0.0
    %127 = vmatpush1.msra.mxu0 0.0
    %128 = vmatprep.subr.mxu0 0.0
    %129 = vmatpush1.msra.mxu0 0.0
    %130 = vmatprep.subr.mxu0 0.0
    %131 = vmatpush1.msra.mxu0 0.0
    %132 = vmatprep.subr.mxu0 0.0
    %133 = vmatpush1.msra.mxu0 0.0
    %134 = vmatprep.subr.mxu0 0.0
    %135 = vmatpush1.msra.mxu0 0.0
    %136 = vmatprep.subr.mxu0 0.0
    %137 = vmatpush1.msra.mxu0 0.0
    %138 = vmatprep.subr.mxu0 0.0
    %139 = vmatpush1.msra.mxu0 0.0
    %140 = vmatprep.subr.mxu0 0.0
    %141 = vmatpush1.msra.mxu0 0.0
    %142 = vmatprep.subr.mxu0 0.0
    %143 = vmatpush1.msra.mxu0 0.0
    %144 = vmatprep.subr.mxu0 0.0
    %145 = vmatpush1.msra.mxu0 0.0
    %146 = vmatprep.subr.mxu0 0.0
    %147 = vmatpush1.msra.mxu0 0.0
    %148 = vmatprep.subr.mxu0 0.0
    %149 = vmatpush1.msra.mxu0 0.0
    %150 = vmatprep.subr.mxu0 0.0
    %151 = vmatpush1.msra.mxu0 0.0
    %152 = vmatprep.subr.mxu0 0.0
    %153 = vmatpush1.msra.mxu0 0.0
    %154 = vmatprep.subr.mxu0 0.0
    %155 = vmatpush1.msra.mxu0 0.0
    %156 = vmatprep.subr.mxu0 0.0
    %157 = vmatpush1.msra.mxu0 0.0
    %158 = vmatprep.subr.mxu0 0.0
    %159 = vmatpush1.msra.mxu0 0.0
    %160 = vmatprep.subr.mxu0 0.0
    %161 = vmatpush1.msra.mxu0 0.0
    %162 = vmatprep.subr.mxu0 0.0
    %163 = vmatpush1.msra.mxu0 0.0
    %164 = vmatprep.subr.mxu0 0.0
    %165 = vmatpush1.msra.mxu0 0.0
    %166 = vmatprep.subr.mxu0 0.0
    %167 = vmatpush1.msra.mxu0 0.0
    %168 = vmatprep.subr.mxu0 0.0
    %169 = vmatpush1.msra.mxu0 0.0
    %170 = vmatprep.mubr.f32.mxu0 0.0
    %171 = vmatmul.mubr.f32.gmra.mrb[0].mxu0 %v101
    %v172 = vpop.f32.mrb[0].mxu0
    %v173 = vadd.f32 %v97, %v172
    %v174 = vpop.f32.mrb[0].mxu0
    %175 = vmatprep.mubr.f32.mxu0 0.0
    %176 = vmatmul.mubr.f32.gmra.mrb[0].mxu0 %v104
    %v177 = vpop.f32.mrb[0].mxu0
    %v178 = vadd.f32 %v97, %v177
    %v179 = vpop.f32.mrb[0].mxu0
    %180 = vdwg.mxu0
    %vm181 = vcmask 261120
    %182 = vst.msk [vmem:[#allocation2] sm:$0xff] %vm181, %v173
    %183 = vst.msk [vmem:[#allocation2 + $0x8] sm:$0xff] %vm181, %v178
    %s184 = scalar_lea.vmem [#allocation7], 16
    %v185 = vld [vmem:[%s184] sm:$0xff]
    %v186 = vld [vmem:[%s184 + $0x8] sm:$0xff]
    %s187 = scalar_lea.vmem %s3, 1
    %v188 = vld [vmem:[%s187] sm:$0x1]
    %v190 = vlaneseq
    %v191 = vshrl.u32 %v190, 7
    %v192 = vsub.s32 0, %v191
    %v193 = vrot.slane %v188, %v192
    %195 = vmatprep.subr.mxu0 0.0
    %196 = vmatpush1.msra.mxu0 %v185
    %197 = vmatprep.subr.mxu0 0.0
    %198 = vmatpush1.msra.mxu0 %v186
    %199 = vmatprep.subr.mxu0 0.0
    %200 = vmatpush1.msra.mxu0 0.0
    %201 = vmatprep.subr.mxu0 0.0
    %202 = vmatpush1.msra.mxu0 0.0
    %203 = vmatprep.subr.mxu0 0.0
    %204 = vmatpush1.msra.mxu0 0.0
    %205 = vmatprep.subr.mxu0 0.0
    %206 = vmatpush1.msra.mxu0 0.0
    %207 = vmatprep.subr.mxu0 0.0
    %208 = vmatpush1.msra.mxu0 0.0
    %209 = vmatprep.subr.mxu0 0.0
    %210 = vmatpush1.msra.mxu0 0.0
    %211 = vmatprep.subr.mxu0 0.0
    %212 = vmatpush1.msra.mxu0 0.0
    %213 = vmatprep.subr.mxu0 0.0
    %214 = vmatpush1.msra.mxu0 0.0
    %215 = vmatprep.subr.mxu0 0.0
    %216 = vmatpush1.msra.mxu0 0.0
    %217 = vmatprep.subr.mxu0 0.0
    %218 = vmatpush1.msra.mxu0 0.0
    %219 = vmatprep.subr.mxu0 0.0
    %220 = vmatpush1.msra.mxu0 0.0
    %221 = vmatprep.subr.mxu0 0.0
    %222 = vmatpush1.msra.mxu0 0.0
    %223 = vmatprep.subr.mxu0 0.0
    %224 = vmatpush1.msra.mxu0 0.0
    %225 = vmatprep.subr.mxu0 0.0
    %226 = vmatpush1.msra.mxu0 0.0
    %227 = vmatprep.subr.mxu0 0.0
    %228 = vmatpush1.msra.mxu0 0.0
    %229 = vmatprep.subr.mxu0 0.0
    %230 = vmatpush1.msra.mxu0 0.0
    %231 = vmatprep.subr.mxu0 0.0
    %232 = vmatpush1.msra.mxu0 0.0
    %233 = vmatprep.subr.mxu0 0.0
    %234 = vmatpush1.msra.mxu0 0.0
    %235 = vmatprep.subr.mxu0 0.0
    %236 = vmatpush1.msra.mxu0 0.0
    %237 = vmatprep.subr.mxu0 0.0
    %238 = vmatpush1.msra.mxu0 0.0
    %239 = vmatprep.subr.mxu0 0.0
    %240 = vmatpush1.msra.mxu0 0.0
    %241 = vmatprep.subr.mxu0 0.0
    %242 = vmatpush1.msra.mxu0 0.0
    %243 = vmatprep.subr.mxu0 0.0
    %244 = vmatpush1.msra.mxu0 0.0
    %245 = vmatprep.subr.mxu0 0.0
    %246 = vmatpush1.msra.mxu0 0.0
    %247 = vmatprep.subr.mxu0 0.0
    %248 = vmatpush1.msra.mxu0 0.0
    %249 = vmatprep.subr.mxu0 0.0
    %250 = vmatpush1.msra.mxu0 0.0
    %251 = vmatprep.subr.mxu0 0.0
    %252 = vmatpush1.msra.mxu0 0.0
    %253 = vmatprep.subr.mxu0 0.0
    %254 = vmatpush1.msra.mxu0 0.0
    %255 = vmatprep.subr.mxu0 0.0
    %256 = vmatpush1.msra.mxu0 0.0
    %257 = vmatprep.subr.mxu0 0.0
    %258 = vmatpush1.msra.mxu0 0.0
    %259 = vmatprep.mubr.f32.mxu0 0.0
    %260 = vmatmul.mubr.f32.gmra.mrb[0].mxu0 %v101
    %v261 = vpop.f32.mrb[0].mxu0
    %v262 = vadd.f32 %v193, %v261
    %v263 = vpop.f32.mrb[0].mxu0
    %264 = vmatprep.mubr.f32.mxu0 0.0
    %265 = vmatmul.mubr.f32.gmra.mrb[0].mxu0 %v104
    %v266 = vpop.f32.mrb[0].mxu0
    %v267 = vadd.f32 %v193, %v266
    %v268 = vpop.f32.mrb[0].mxu0
    %269 = vdwg.mxu0
    %270 = vst.msk [vmem:[#allocation3] sm:$0xff] %vm181, %v262
    %271 = vst.msk [vmem:[#allocation3 + $0x8] sm:$0xff] %vm181, %v267
    %s272 = scalar_lea.vmem [#allocation7], 32
    %v273 = vld [vmem:[%s272] sm:$0xff]
    %v274 = vld [vmem:[%s272 + $0x8] sm:$0xff]
    %s275 = scalar_lea.vmem %s3, 2
    %v276 = vld [vmem:[%s275] sm:$0x1]
    %v278 = vlaneseq
    %v279 = vshrl.u32 %v278, 7
    %v280 = vsub.s32 0, %v279
    %v281 = vrot.slane %v276, %v280
    %283 = vmatprep.subr.mxu0 0.0
    %284 = vmatpush1.msra.mxu0 %v273
    %285 = vmatprep.subr.mxu0 0.0
    %286 = vmatpush1.msra.mxu0 %v274
    %287 = vmatprep.subr.mxu0 0.0
    %288 = vmatpush1.msra.mxu0 0.0
    %289 = vmatprep.subr.mxu0 0.0
    %290 = vmatpush1.msra.mxu0 0.0
    %291 = vmatprep.subr.mxu0 0.0
    %292 = vmatpush1.msra.mxu0 0.0
    %293 = vmatprep.subr.mxu0 0.0
    %294 = vmatpush1.msra.mxu0 0.0
    %295 = vmatprep.subr.mxu0 0.0
    %296 = vmatpush1.msra.mxu0 0.0
    %297 = vmatprep.subr.mxu0 0.0
    %298 = vmatpush1.msra.mxu0 0.0
    %299 = vmatprep.subr.mxu0 0.0
    %300 = vmatpush1.msra.mxu0 0.0
    %301 = vmatprep.subr.mxu0 0.0
    %302 = vmatpush1.msra.mxu0 0.0
    %303 = vmatprep.subr.mxu0 0.0
    %304 = vmatpush1.msra.mxu0 0.0
    %305 = vmatprep.subr.mxu0 0.0
    %306 = vmatpush1.msra.mxu0 0.0
    %307 = vmatprep.subr.mxu0 0.0
    %308 = vmatpush1.msra.mxu0 0.0
    %309 = vmatprep.subr.mxu0 0.0
    %310 = vmatpush1.msra.mxu0 0.0
    %311 = vmatprep.subr.mxu0 0.0
    %312 = vmatpush1.msra.mxu0 0.0
    %313 = vmatprep.subr.mxu0 0.0
    %314 = vmatpush1.msra.mxu0 0.0
    %315 = vmatprep.subr.mxu0 0.0
    %316 = vmatpush1.msra.mxu0 0.0
    %317 = vmatprep.subr.mxu0 0.0
    %318 = vmatpush1.msra.mxu0 0.0
    %319 = vmatprep.subr.mxu0 0.0
    %320 = vmatpush1.msra.mxu0 0.0
    %321 = vmatprep.subr.mxu0 0.0
    %322 = vmatpush1.msra.mxu0 0.0
    %323 = vmatprep.subr.mxu0 0.0
    %324 = vmatpush1.msra.mxu0 0.0
    %325 = vmatprep.subr.mxu0 0.0
    %326 = vmatpush1.msra.mxu0 0.0
    %327 = vmatprep.subr.mxu0 0.0
    %328 = vmatpush1.msra.mxu0 0.0
    %329 = vmatprep.subr.mxu0 0.0
    %330 = vmatpush1.msra.mxu0 0.0
    %331 = vmatprep.subr.mxu0 0.0
    %332 = vmatpush1.msra.mxu0 0.0
    %333 = vmatprep.subr.mxu0 0.0
    %334 = vmatpush1.msra.mxu0 0.0
    %335 = vmatprep.subr.mxu0 0.0
    %336 = vmatpush1.msra.mxu0 0.0
    %337 = vmatprep.subr.mxu0 0.0
    %338 = vmatpush1.msra.mxu0 0.0
    %339 = vmatprep.subr.mxu0 0.0
    %340 = vmatpush1.msra.mxu0 0.0
    %341 = vmatprep.subr.mxu0 0.0
    %342 = vmatpush1.msra.mxu0 0.0
    %343 = vmatprep.subr.mxu0 0.0
    %344 = vmatpush1.msra.mxu0 0.0
    %345 = vmatprep.subr.mxu0 0.0
    %346 = vmatpush1.msra.mxu0 0.0
    %347 = vmatprep.mubr.f32.mxu0 0.0
    %348 = vmatmul.mubr.f32.gmra.mrb[0].mxu0 %v101
    %v349 = vpop.f32.mrb[0].mxu0
    %v350 = vadd.f32 %v281, %v349
    %v351 = vpop.f32.mrb[0].mxu0
    %352 = vmatprep.mubr.f32.mxu0 0.0
    %353 = vmatmul.mubr.f32.gmra.mrb[0].mxu0 %v104
    %v354 = vpop.f32.mrb[0].mxu0
    %v355 = vadd.f32 %v281, %v354
    %v356 = vpop.f32.mrb[0].mxu0
    %357 = vdwg.mxu0
    %358 = vst.msk [vmem:[#allocation4] sm:$0xff] %vm181, %v350
    %359 = vst.msk [vmem:[#allocation4 + $0x8] sm:$0xff] %vm181, %v355
    %s360 = scalar_lea.vmem [#allocation7], 48
    %v361 = vld [vmem:[%s360] sm:$0xff]
    %v362 = vld [vmem:[%s360 + $0x8] sm:$0xff]
    %s363 = scalar_lea.vmem %s3, 3
    %v364 = vld [vmem:[%s363] sm:$0x1]
    %v366 = vlaneseq
    %v367 = vshrl.u32 %v366, 7
    %v368 = vsub.s32 0, %v367
    %v369 = vrot.slane %v364, %v368
    %371 = vmatprep.subr.mxu0 0.0
    %372 = vmatpush1.msra.mxu0 %v361
    %373 = vmatprep.subr.mxu0 0.0
    %374 = vmatpush1.msra.mxu0 %v362
    %375 = vmatprep.subr.mxu0 0.0
    %376 = vmatpush1.msra.mxu0 0.0
    %377 = vmatprep.subr.mxu0 0.0
    %378 = vmatpush1.msra.mxu0 0.0
    %379 = vmatprep.subr.mxu0 0.0
    %380 = vmatpush1.msra.mxu0 0.0
    %381 = vmatprep.subr.mxu0 0.0
    %382 = vmatpush1.msra.mxu0 0.0
    %383 = vmatprep.subr.mxu0 0.0
    %384 = vmatpush1.msra.mxu0 0.0
    %385 = vmatprep.subr.mxu0 0.0
    %386 = vmatpush1.msra.mxu0 0.0
    %387 = vmatprep.subr.mxu0 0.0
    %388 = vmatpush1.msra.mxu0 0.0
    %389 = vmatprep.subr.mxu0 0.0
    %390 = vmatpush1.msra.mxu0 0.0
    %391 = vmatprep.subr.mxu0 0.0
    %392 = vmatpush1.msra.mxu0 0.0
    %393 = vmatprep.subr.mxu0 0.0
    %394 = vmatpush1.msra.mxu0 0.0
    %395 = vmatprep.subr.mxu0 0.0
    %396 = vmatpush1.msra.mxu0 0.0
    %397 = vmatprep.subr.mxu0 0.0
    %398 = vmatpush1.msra.mxu0 0.0
    %399 = vmatprep.subr.mxu0 0.0
    %400 = vmatpush1.msra.mxu0 0.0
    %401 = vmatprep.subr.mxu0 0.0
    %402 = vmatpush1.msra.mxu0 0.0
    %403 = vmatprep.subr.mxu0 0.0
    %404 = vmatpush1.msra.mxu0 0.0
    %405 = vmatprep.subr.mxu0 0.0
    %406 = vmatpush1.msra.mxu0 0.0
    %407 = vmatprep.subr.mxu0 0.0
    %408 = vmatpush1.msra.mxu0 0.0
    %409 = vmatprep.subr.mxu0 0.0
    %410 = vmatpush1.msra.mxu0 0.0
    %411 = vmatprep.subr.mxu0 0.0
    %412 = vmatpush1.msra.mxu0 0.0
    %413 = vmatprep.subr.mxu0 0.0
    %414 = vmatpush1.msra.mxu0 0.0
    %415 = vmatprep.subr.mxu0 0.0
    %416 = vmatpush1.msra.mxu0 0.0
    %417 = vmatprep.subr.mxu0 0.0
    %418 = vmatpush1.msra.mxu0 0.0
    %419 = vmatprep.subr.mxu0 0.0
    %420 = vmatpush1.msra.mxu0 0.0
    %421 = vmatprep.subr.mxu0 0.0
    %422 = vmatpush1.msra.mxu0 0.0
    %423 = vmatprep.subr.mxu0 0.0
    %424 = vmatpush1.msra.mxu0 0.0
    %425 = vmatprep.subr.mxu0 0.0
    %426 = vmatpush1.msra.mxu0 0.0
    %427 = vmatprep.subr.mxu0 0.0
    %428 = vmatpush1.msra.mxu0 0.0
    %429 = vmatprep.subr.mxu0 0.0
    %430 = vmatpush1.msra.mxu0 0.0
    %431 = vmatprep.subr.mxu0 0.0
    %432 = vmatpush1.msra.mxu0 0.0
    %433 = vmatprep.subr.mxu0 0.0
    %434 = vmatpush1.msra.mxu0 0.0
    %435 = vmatprep.mubr.f32.mxu0 0.0
    %436 = vmatmul.mubr.f32.gmra.mrb[0].mxu0 %v101
    %v437 = vpop.f32.mrb[0].mxu0
    %v438 = vadd.f32 %v369, %v437
    %v439 = vpop.f32.mrb[0].mxu0
    %440 = vmatprep.mubr.f32.mxu0 0.0
    %441 = vmatmul.mubr.f32.gmra.mrb[0].mxu0 %v104
    %v442 = vpop.f32.mrb[0].mxu0
    %v443 = vadd.f32 %v369, %v442
    %v444 = vpop.f32.mrb[0].mxu0
    %445 = vdwg.mxu0
    %446 = vst.msk [vmem:[#allocation5] sm:$0xff] %vm181, %v438
    %447 = vst.msk [vmem:[#allocation5 + $0x8] sm:$0xff] %vm181, %v443
    %v448 = vld [vmem:[#allocation10] sm:$0xff]
    %v449 = vld [vmem:[#allocation10 + $0x8] sm:$0xff]
    %v450 = vld [vmem:[#allocation10 + $0x10] sm:$0xff]
    %v451 = vld [vmem:[#allocation10 + $0x18] sm:$0xff]
    %s452 = scalar_lea.vmem [#allocation10], 32
    %v453 = vld [vmem:[%s452] sm:$0xff]
    %v454 = vld [vmem:[%s452 + $0x8] sm:$0xff]
    %v455 = vld [vmem:[%s452 + $0x10] sm:$0xff]
    %v456 = vld [vmem:[%s452 + $0x18] sm:$0xff]
    %s457 = scalar_lea.vmem [#allocation10], 64
    %v458 = vld [vmem:[%s457] sm:$0xff]
    %v459 = vld [vmem:[%s457 + $0x8] sm:$0xff]
    %v460 = vld [vmem:[%s457 + $0x10] sm:$0xff]
    %v461 = vld [vmem:[%s457 + $0x18] sm:$0xff]
    %s462 = scalar_lea.vmem [#allocation10], 96
    %v463 = vld [vmem:[%s462] sm:$0xff]
    %v464 = vld [vmem:[%s462 + $0x8] sm:$0xff]
    %v465 = vld [vmem:[%s462 + $0x10] sm:$0xff]
    %v466 = vld [vmem:[%s462 + $0x18] sm:$0xff]
    %v467 = vld [vmem:[#allocation2] sm:$0x3]
    %v469 = vsel %vm181, 0.0, 0
    %471 = vmatprep.subr.mxu0 0.0
    %472 = vmatpush1.msra.mxu0 %v448
    %473 = vmatprep.subr.mxu0 0.0
    %474 = vmatpush1.msra.mxu0 %v449
    %475 = vmatprep.subr.mxu0 0.0
    %476 = vmatpush1.msra.mxu0 %v450
    %477 = vmatprep.subr.mxu0 0.0
    %478 = vmatpush1.msra.mxu0 %v451
    %479 = vmatprep.subr.mxu0 0.0
    %480 = vmatpush1.msra.mxu0 0.0
    %481 = vmatprep.subr.mxu0 0.0
    %482 = vmatpush1.msra.mxu0 0.0
    %483 = vmatprep.subr.mxu0 0.0
    %484 = vmatpush1.msra.mxu0 0.0
    %485 = vmatprep.subr.mxu0 0.0
    %486 = vmatpush1.msra.mxu0 0.0
    %487 = vmatprep.subr.mxu0 0.0
    %488 = vmatpush1.msra.mxu0 0.0
    %489 = vmatprep.subr.mxu0 0.0
    %490 = vmatpush1.msra.mxu0 0.0
    %491 = vmatprep.subr.mxu0 0.0
    %492 = vmatpush1.msra.mxu0 0.0
    %493 = vmatprep.subr.mxu0 0.0
    %494 = vmatpush1.msra.mxu0 0.0
    %495 = vmatprep.subr.mxu0 0.0
    %496 = vmatpush1.msra.mxu0 0.0
    %497 = vmatprep.subr.mxu0 0.0
    %498 = vmatpush1.msra.mxu0 0.0
    %499 = vmatprep.subr.mxu0 0.0
    %500 = vmatpush1.msra.mxu0 0.0
    %501 = vmatprep.subr.mxu0 0.0
    %502 = vmatpush1.msra.mxu0 0.0
    %503 = vmatprep.subr.mxu0 0.0
    %504 = vmatpush1.msra.mxu0 0.0
    %505 = vmatprep.subr.mxu0 0.0
    %506 = vmatpush1.msra.mxu0 0.0
    %507 = vmatprep.subr.mxu0 0.0
    %508 = vmatpush1.msra.mxu0 0.0
    %509 = vmatprep.subr.mxu0 0.0
    %510 = vmatpush1.msra.mxu0 0.0
    %511 = vmatprep.subr.mxu0 0.0
    %512 = vmatpush1.msra.mxu0 0.0
    %513 = vmatprep.subr.mxu0 0.0
    %514 = vmatpush1.msra.mxu0 0.0
    %515 = vmatprep.subr.mxu0 0.0
    %516 = vmatpush1.msra.mxu0 0.0
    %517 = vmatprep.subr.mxu0 0.0
    %518 = vmatpush1.msra.mxu0 0.0
    %519 = vmatprep.subr.mxu0 0.0
    %520 = vmatpush1.msra.mxu0 0.0
    %521 = vmatprep.subr.mxu0 0.0
    %522 = vmatpush1.msra.mxu0 0.0
    %523 = vmatprep.subr.mxu0 0.0
    %524 = vmatpush1.msra.mxu0 0.0
    %525 = vmatprep.subr.mxu0 0.0
    %526 = vmatpush1.msra.mxu0 0.0
    %527 = vmatprep.subr.mxu0 0.0
    %528 = vmatpush1.msra.mxu0 0.0
    %529 = vmatprep.subr.mxu0 0.0
    %530 = vmatpush1.msra.mxu0 0.0
    %531 = vmatprep.subr.mxu0 0.0
    %532 = vmatpush1.msra.mxu0 0.0
    %533 = vmatprep.subr.mxu0 0.0
    %534 = vmatpush1.msra.mxu0 0.0
    %535 = vmatprep.mubr.f32.mxu0 0.0
    %536 = vmatmul.mubr.f32.gmra.mrb[0].mxu0 %v469
    %v537 = vpop.f32.mrb[0].mxu0
    %v538 = vadd.f32 0.0, %v537
    %v539 = vpop.f32.mrb[0].mxu0
    %540 = vdwg.mxu0
    %v541 = vadd.f32 %v467, %v538
    %v542 = vxor.u32 %v541, 2147483648
    %v543 = vmul.f32 %v542, 1.442695
    %v544 = vpow.pop %v543
    %v545 = vadd.f32 %v544, 1.0
    %v546 = vrcp.pop %v545
    %v547 = vmul.f32 1.0, %v546
    %v548 = vld [vmem:[#allocation3] sm:$0x3]
    %549 = vmatprep.subr.mxu0 0.0
    %550 = vmatpush1.msra.mxu0 %v453
    %551 = vmatprep.subr.mxu0 0.0
    %552 = vmatpush1.msra.mxu0 %v454
    %553 = vmatprep.subr.mxu0 0.0
    %554 = vmatpush1.msra.mxu0 %v455
    %555 = vmatprep.subr.mxu0 0.0
    %556 = vmatpush1.msra.mxu0 %v456
    %557 = vmatprep.subr.mxu0 0.0
    %558 = vmatpush1.msra.mxu0 0.0
    %559 = vmatprep.subr.mxu0 0.0
    %560 = vmatpush1.msra.mxu0 0.0
    %561 = vmatprep.subr.mxu0 0.0
    %562 = vmatpush1.msra.mxu0 0.0
    %563 = vmatprep.subr.mxu0 0.0
    %564 = vmatpush1.msra.mxu0 0.0
    %565 = vmatprep.subr.mxu0 0.0
    %566 = vmatpush1.msra.mxu0 0.0
    %567 = vmatprep.subr.mxu0 0.0
    %568 = vmatpush1.msra.mxu0 0.0
    %569 = vmatprep.subr.mxu0 0.0
    %570 = vmatpush1.msra.mxu0 0.0
    %571 = vmatprep.subr.mxu0 0.0
    %572 = vmatpush1.msra.mxu0 0.0
    %573 = vmatprep.subr.mxu0 0.0
    %574 = vmatpush1.msra.mxu0 0.0
    %575 = vmatprep.subr.mxu0 0.0
    %576 = vmatpush1.msra.mxu0 0.0
    %577 = vmatprep.subr.mxu0 0.0
    %578 = vmatpush1.msra.mxu0 0.0
    %579 = vmatprep.subr.mxu0 0.0
    %580 = vmatpush1.msra.mxu0 0.0
    %581 = vmatprep.subr.mxu0 0.0
    %582 = vmatpush1.msra.mxu0 0.0
    %583 = vmatprep.subr.mxu0 0.0
    %584 = vmatpush1.msra.mxu0 0.0
    %585 = vmatprep.subr.mxu0 0.0
    %586 = vmatpush1.msra.mxu0 0.0
    %587 = vmatprep.subr.mxu0 0.0
    %588 = vmatpush1.msra.mxu0 0.0
    %589 = vmatprep.subr.mxu0 0.0
    %590 = vmatpush1.msra.mxu0 0.0
    %591 = vmatprep.subr.mxu0 0.0
    %592 = vmatpush1.msra.mxu0 0.0
    %593 = vmatprep.subr.mxu0 0.0
    %594 = vmatpush1.msra.mxu0 0.0
    %595 = vmatprep.subr.mxu0 0.0
    %596 = vmatpush1.msra.mxu0 0.0
    %597 = vmatprep.subr.mxu0 0.0
    %598 = vmatpush1.msra.mxu0 0.0
    %599 = vmatprep.subr.mxu0 0.0
    %600 = vmatpush1.msra.mxu0 0.0
    %601 = vmatprep.subr.mxu0 0.0
    %602 = vmatpush1.msra.mxu0 0.0
    %603 = vmatprep.subr.mxu0 0.0
    %604 = vmatpush1.msra.mxu0 0.0
    %605 = vmatprep.subr.mxu0 0.0
    %606 = vmatpush1.msra.mxu0 0.0
    %607 = vmatprep.subr.mxu0 0.0
    %608 = vmatpush1.msra.mxu0 0.0
    %609 = vmatprep.subr.mxu0 0.0
    %610 = vmatpush1.msra.mxu0 0.0
    %611 = vmatprep.subr.mxu0 0.0
    %612 = vmatpush1.msra.mxu0 0.0
    %613 = vmatprep.mubr.f32.mxu0 0.0
    %614 = vmatmul.mubr.f32.gmra.mrb[0].mxu0 %v469
    %v615 = vpop.f32.mrb[0].mxu0
    %v616 = vadd.f32 0.0, %v615
    %v617 = vpop.f32.mrb[0].mxu0
    %618 = vdwg.mxu0
    %v619 = vadd.f32 %v548, %v616
    %v620 = vxor.u32 %v619, 2147483648
    %v621 = vmul.f32 %v620, 1.442695
    %v622 = vpow.pop %v621
    %v623 = vadd.f32 %v622, 1.0
    %v624 = vrcp.pop %v623
    %v625 = vmul.f32 1.0, %v624
    %v626 = vld [vmem:[#allocation4] sm:$0x3]
    %627 = vmatprep.subr.mxu0 0.0
    %628 = vmatpush1.msra.mxu0 %v458
    %629 = vmatprep.subr.mxu0 0.0
    %630 = vmatpush1.msra.mxu0 %v459
    %631 = vmatprep.subr.mxu0 0.0
    %632 = vmatpush1.msra.mxu0 %v460
    %633 = vmatprep.subr.mxu0 0.0
    %634 = vmatpush1.msra.mxu0 %v461
    %635 = vmatprep.subr.mxu0 0.0
    %636 = vmatpush1.msra.mxu0 0.0
    %637 = vmatprep.subr.mxu0 0.0
    %638 = vmatpush1.msra.mxu0 0.0
    %639 = vmatprep.subr.mxu0 0.0
    %640 = vmatpush1.msra.mxu0 0.0
    %641 = vmatprep.subr.mxu0 0.0
    %642 = vmatpush1.msra.mxu0 0.0
    %643 = vmatprep.subr.mxu0 0.0
    %644 = vmatpush1.msra.mxu0 0.0
    %645 = vmatprep.subr.mxu0 0.0
    %646 = vmatpush1.msra.mxu0 0.0
    %647 = vmatprep.subr.mxu0 0.0
    %648 = vmatpush1.msra.mxu0 0.0
    %649 = vmatprep.subr.mxu0 0.0
    %650 = vmatpush1.msra.mxu0 0.0
    %651 = vmatprep.subr.mxu0 0.0
    %652 = vmatpush1.msra.mxu0 0.0
    %653 = vmatprep.subr.mxu0 0.0
    %654 = vmatpush1.msra.mxu0 0.0
    %655 = vmatprep.subr.mxu0 0.0
    %656 = vmatpush1.msra.mxu0 0.0
    %657 = vmatprep.subr.mxu0 0.0
    %658 = vmatpush1.msra.mxu0 0.0
    %659 = vmatprep.subr.mxu0 0.0
    %660 = vmatpush1.msra.mxu0 0.0
    %661 = vmatprep.subr.mxu0 0.0
    %662 = vmatpush1.msra.mxu0 0.0
    %663 = vmatprep.subr.mxu0 0.0
    %664 = vmatpush1.msra.mxu0 0.0
    %665 = vmatprep.subr.mxu0 0.0
    %666 = vmatpush1.msra.mxu0 0.0
    %667 = vmatprep.subr.mxu0 0.0
    %668 = vmatpush1.msra.mxu0 0.0
    %669 = vmatprep.subr.mxu0 0.0
    %670 = vmatpush1.msra.mxu0 0.0
    %671 = vmatprep.subr.mxu0 0.0
    %672 = vmatpush1.msra.mxu0 0.0
    %673 = vmatprep.subr.mxu0 0.0
    %674 = vmatpush1.msra.mxu0 0.0
    %675 = vmatprep.subr.mxu0 0.0
    %676 = vmatpush1.msra.mxu0 0.0
    %677 = vmatprep.subr.mxu0 0.0
    %678 = vmatpush1.msra.mxu0 0.0
    %679 = vmatprep.subr.mxu0 0.0
    %680 = vmatpush1.msra.mxu0 0.0
    %681 = vmatprep.subr.mxu0 0.0
    %682 = vmatpush1.msra.mxu0 0.0
    %683 = vmatprep.subr.mxu0 0.0
    %684 = vmatpush1.msra.mxu0 0.0
    %685 = vmatprep.subr.mxu0 0.0
    %686 = vmatpush1.msra.mxu0 0.0
    %687 = vmatprep.subr.mxu0 0.0
    %688 = vmatpush1.msra.mxu0 0.0
    %689 = vmatprep.subr.mxu0 0.0
    %690 = vmatpush1.msra.mxu0 0.0
    %691 = vmatprep.mubr.f32.mxu0 0.0
    %692 = vmatmul.mubr.f32.gmra.mrb[0].mxu0 %v469
    %v693 = vpop.f32.mrb[0].mxu0
    %v694 = vadd.f32 0.0, %v693
    %v695 = vpop.f32.mrb[0].mxu0
    %696 = vdwg.mxu0
    %v697 = vadd.f32 %v626, %v694
    %v698 = vtanh.pop %v697
    %v699 = vld [vmem:[#allocation5] sm:$0x3]
    %700 = vmatprep.subr.mxu0 0.0
    %701 = vmatpush1.msra.mxu0 %v463
    %702 = vmatprep.subr.mxu0 0.0
    %703 = vmatpush1.msra.mxu0 %v464
    %704 = vmatprep.subr.mxu0 0.0
    %705 = vmatpush1.msra.mxu0 %v465
    %706 = vmatprep.subr.mxu0 0.0
    %707 = vmatpush1.msra.mxu0 %v466
    %708 = vmatprep.subr.mxu0 0.0
    %709 = vmatpush1.msra.mxu0 0.0
    %710 = vmatprep.subr.mxu0 0.0
    %711 = vmatpush1.msra.mxu0 0.0
    %712 = vmatprep.subr.mxu0 0.0
    %713 = vmatpush1.msra.mxu0 0.0
    %714 = vmatprep.subr.mxu0 0.0
    %715 = vmatpush1.msra.mxu0 0.0
    %716 = vmatprep.subr.mxu0 0.0
    %717 = vmatpush1.msra.mxu0 0.0
    %718 = vmatprep.subr.mxu0 0.0
    %719 = vmatpush1.msra.mxu0 0.0
    %720 = vmatprep.subr.mxu0 0.0
    %721 = vmatpush1.msra.mxu0 0.0
    %722 = vmatprep.subr.mxu0 0.0
    %723 = vmatpush1.msra.mxu0 0.0
    %724 = vmatprep.subr.mxu0 0.0
    %725 = vmatpush1.msra.mxu0 0.0
    %726 = vmatprep.subr.mxu0 0.0
    %727 = vmatpush1.msra.mxu0 0.0
    %728 = vmatprep.subr.mxu0 0.0
    %729 = vmatpush1.msra.mxu0 0.0
    %730 = vmatprep.subr.mxu0 0.0
    %731 = vmatpush1.msra.mxu0 0.0
    %732 = vmatprep.subr.mxu0 0.0
    %733 = vmatpush1.msra.mxu0 0.0
    %734 = vmatprep.subr.mxu0 0.0
    %735 = vmatpush1.msra.mxu0 0.0
    %736 = vmatprep.subr.mxu0 0.0
    %737 = vmatpush1.msra.mxu0 0.0
    %738 = vmatprep.subr.mxu0 0.0
    %739 = vmatpush1.msra.mxu0 0.0
    %740 = vmatprep.subr.mxu0 0.0
    %741 = vmatpush1.msra.mxu0 0.0
    %742 = vmatprep.subr.mxu0 0.0
    %743 = vmatpush1.msra.mxu0 0.0
    %744 = vmatprep.subr.mxu0 0.0
    %745 = vmatpush1.msra.mxu0 0.0
    %746 = vmatprep.subr.mxu0 0.0
    %747 = vmatpush1.msra.mxu0 0.0
    %748 = vmatprep.subr.mxu0 0.0
    %749 = vmatpush1.msra.mxu0 0.0
    %750 = vmatprep.subr.mxu0 0.0
    %751 = vmatpush1.msra.mxu0 0.0
    %752 = vmatprep.subr.mxu0 0.0
    %753 = vmatpush1.msra.mxu0 0.0
    %754 = vmatprep.subr.mxu0 0.0
    %755 = vmatpush1.msra.mxu0 0.0
    %756 = vmatprep.subr.mxu0 0.0
    %757 = vmatpush1.msra.mxu0 0.0
    %758 = vmatprep.subr.mxu0 0.0
    %759 = vmatpush1.msra.mxu0 0.0
    %760 = vmatprep.subr.mxu0 0.0
    %761 = vmatpush1.msra.mxu0 0.0
    %762 = vmatprep.subr.mxu0 0.0
    %763 = vmatpush1.msra.mxu0 0.0
    %764 = vmatprep.mubr.f32.mxu0 0.0
    %765 = vmatmul.mubr.f32.gmra.mrb[0].mxu0 %v469
    %v766 = vpop.f32.mrb[0].mxu0
    %v767 = vadd.f32 0.0, %v766
    %v768 = vpop.f32.mrb[0].mxu0
    %769 = vdwg.mxu0
    %v770 = vadd.f32 %v699, %v767
    %v771 = vxor.u32 %v770, 2147483648
    %v772 = vmul.f32 %v771, 1.442695
    %v773 = vpow.pop %v772
    %v774 = vadd.f32 %v773, 1.0
    %v775 = vrcp.pop %v774
    %v776 = vmul.f32 1.0, %v775
    %v777 = vmul.f32 %v625, 0.0
    %v778 = vmul.f32 %v547, %v698
    %v779 = vadd.f32 %v777, %v778
    %v780 = vtanh.pop %v779
    %v781 = vmul.f32 %v776, %v780
    %vm782 = vcmask 254976
    %783 = vst.msk [vmem:[#allocation6] sm:$0x3] %vm782, %v781
    %v784 = vld [vmem:[#allocation2 + $0x2] sm:$0x3]
    %v786 = vsel %vm181, %v781, 0
    %788 = vmatprep.subr.mxu0 0.0
    %789 = vmatpush1.msra.mxu0 %v448
    %790 = vmatprep.subr.mxu0 0.0
    %791 = vmatpush1.msra.mxu0 %v449
    %792 = vmatprep.subr.mxu0 0.0
    %793 = vmatpush1.msra.mxu0 %v450
    %794 = vmatprep.subr.mxu0 0.0
    %795 = vmatpush1.msra.mxu0 %v451
    %796 = vmatprep.subr.mxu0 0.0
    %797 = vmatpush1.msra.mxu0 0.0
    %798 = vmatprep.subr.mxu0 0.0
    %799 = vmatpush1.msra.mxu0 0.0
    %800 = vmatprep.subr.mxu0 0.0
    %801 = vmatpush1.msra.mxu0 0.0
    %802 = vmatprep.subr.mxu0 0.0
    %803 = vmatpush1.msra.mxu0 0.0
    %804 = vmatprep.subr.mxu0 0.0
    %805 = vmatpush1.msra.mxu0 0.0
    %806 = vmatprep.subr.mxu0 0.0
    %807 = vmatpush1.msra.mxu0 0.0
    %808 = vmatprep.subr.mxu0 0.0
    %809 = vmatpush1.msra.mxu0 0.0
    %810 = vmatprep.subr.mxu0 0.0
    %811 = vmatpush1.msra.mxu0 0.0
    %812 = vmatprep.subr.mxu0 0.0
    %813 = vmatpush1.msra.mxu0 0.0
    %814 = vmatprep.subr.mxu0 0.0
    %815 = vmatpush1.msra.mxu0 0.0
    %816 = vmatprep.subr.mxu0 0.0
    %817 = vmatpush1.msra.mxu0 0.0
    %818 = vmatprep.subr.mxu0 0.0
    %819 = vmatpush1.msra.mxu0 0.0
    %820 = vmatprep.subr.mxu0 0.0
    %821 = vmatpush1.msra.mxu0 0.0
    %822 = vmatprep.subr.mxu0 0.0
    %823 = vmatpush1.msra.mxu0 0.0
    %824 = vmatprep.subr.mxu0 0.0
    %825 = vmatpush1.msra.mxu0 0.0
    %826 = vmatprep.subr.mxu0 0.0
    %827 = vmatpush1.msra.mxu0 0.0
    %828 = vmatprep.subr.mxu0 0.0
    %829 = vmatpush1.msra.mxu0 0.0
    %830 = vmatprep.subr.mxu0 0.0
    %831 = vmatpush1.msra.mxu0 0.0
    %832 = vmatprep.subr.mxu0 0.0
    %833 = vmatpush1.msra.mxu0 0.0
    %834 = vmatprep.subr.mxu0 0.0
    %835 = vmatpush1.msra.mxu0 0.0
    %836 = vmatprep.subr.mxu0 0.0
    %837 = vmatpush1.msra.mxu0 0.0
    %838 = vmatprep.subr.mxu0 0.0
    %839 = vmatpush1.msra.mxu0 0.0
    %840 = vmatprep.subr.mxu0 0.0
    %841 = vmatpush1.msra.mxu0 0.0
    %842 = vmatprep.subr.mxu0 0.0
    %843 = vmatpush1.msra.mxu0 0.0
    %844 = vmatprep.subr.mxu0 0.0
    %845 = vmatpush1.msra.mxu0 0.0
    %846 = vmatprep.subr.mxu0 0.0
    %847 = vmatpush1.msra.mxu0 0.0
    %848 = vmatprep.subr.mxu0 0.0
    %849 = vmatpush1.msra.mxu0 0.0
    %850 = vmatprep.subr.mxu0 0.0
    %851 = vmatpush1.msra.mxu0 0.0
    %852 = vmatprep.mubr.f32.mxu0 0.0
    %853 = vmatmul.mubr.f32.gmra.mrb[0].mxu0 %v786
    %v854 = vpop.f32.mrb[0].mxu0
    %v855 = vadd.f32 0.0, %v854
    %v856 = vpop.f32.mrb[0].mxu0
    %857 = vdwg.mxu0
    %v858 = vadd.f32 %v784, %v855
    %v859 = vxor.u32 %v858, 2147483648
    %v860 = vmul.f32 %v859, 1.442695
    %v861 = vpow.pop %v860
    %v862 = vadd.f32 %v861, 1.0
    %v863 = vrcp.pop %v862
    %v864 = vmul.f32 1.0, %v863
    %v865 = vld [vmem:[#allocation3 + $0x2] sm:$0x3]
    %866 = vmatprep.subr.mxu0 0.0
    %867 = vmatpush1.msra.mxu0 %v453
    %868 = vmatprep.subr.mxu0 0.0
    %869 = vmatpush1.msra.mxu0 %v454
    %870 = vmatprep.subr.mxu0 0.0
    %871 = vmatpush1.msra.mxu0 %v455
    %872 = vmatprep.subr.mxu0 0.0
    %873 = vmatpush1.msra.mxu0 %v456
    %874 = vmatprep.subr.mxu0 0.0
    %875 = vmatpush1.msra.mxu0 0.0
    %876 = vmatprep.subr.mxu0 0.0
    %877 = vmatpush1.msra.mxu0 0.0
    %878 = vmatprep.subr.mxu0 0.0
    %879 = vmatpush1.msra.mxu0 0.0
    %880 = vmatprep.subr.mxu0 0.0
    %881 = vmatpush1.msra.mxu0 0.0
    %882 = vmatprep.subr.mxu0 0.0
    %883 = vmatpush1.msra.mxu0 0.0
    %884 = vmatprep.subr.mxu0 0.0
    %885 = vmatpush1.msra.mxu0 0.0
    %886 = vmatprep.subr.mxu0 0.0
    %887 = vmatpush1.msra.mxu0 0.0
    %888 = vmatprep.subr.mxu0 0.0
    %889 = vmatpush1.msra.mxu0 0.0
    %890 = vmatprep.subr.mxu0 0.0
    %891 = vmatpush1.msra.mxu0 0.0
    %892 = vmatprep.subr.mxu0 0.0
    %893 = vmatpush1.msra.mxu0 0.0
    %894 = vmatprep.subr.mxu0 0.0
    %895 = vmatpush1.msra.mxu0 0.0
    %896 = vmatprep.subr.mxu0 0.0
    %897 = vmatpush1.msra.mxu0 0.0
    %898 = vmatprep.subr.mxu0 0.0
    %899 = vmatpush1.msra.mxu0 0.0
    %900 = vmatprep.subr.mxu0 0.0
    %901 = vmatpush1.msra.mxu0 0.0
    %902 = vmatprep.subr.mxu0 0.0
    %903 = vmatpush1.msra.mxu0 0.0
    %904 = vmatprep.subr.mxu0 0.0
    %905 = vmatpush1.msra.mxu0 0.0
    %906 = vmatprep.subr.mxu0 0.0
    %907 = vmatpush1.msra.mxu0 0.0
    %908 = vmatprep.subr.mxu0 0.0
    %909 = vmatpush1.msra.mxu0 0.0
    %910 = vmatprep.subr.mxu0 0.0
    %911 = vmatpush1.msra.mxu0 0.0
    %912 = vmatprep.subr.mxu0 0.0
    %913 = vmatpush1.msra.mxu0 0.0
    %914 = vmatprep.subr.mxu0 0.0
    %915 = vmatpush1.msra.mxu0 0.0
    %916 = vmatprep.subr.mxu0 0.0
    %917 = vmatpush1.msra.mxu0 0.0
    %918 = vmatprep.subr.mxu0 0.0
    %919 = vmatpush1.msra.mxu0 0.0
    %920 = vmatprep.subr.mxu0 0.0
    %921 = vmatpush1.msra.mxu0 0.0
    %922 = vmatprep.subr.mxu0 0.0
    %923 = vmatpush1.msra.mxu0 0.0
    %924 = vmatprep.subr.mxu0 0.0
    %925 = vmatpush1.msra.mxu0 0.0
    %926 = vmatprep.subr.mxu0 0.0
    %927 = vmatpush1.msra.mxu0 0.0
    %928 = vmatprep.subr.mxu0 0.0
    %929 = vmatpush1.msra.mxu0 0.0
    %930 = vmatprep.mubr.f32.mxu0 0.0
    %931 = vmatmul.mubr.f32.gmra.mrb[0].mxu0 %v786
    %v932 = vpop.f32.mrb[0].mxu0
    %v933 = vadd.f32 0.0, %v932
    %v934 = vpop.f32.mrb[0].mxu0
    %935 = vdwg.mxu0
    %v936 = vadd.f32 %v865, %v933
    %v937 = vxor.u32 %v936, 2147483648
    %v938 = vmul.f32 %v937, 1.442695
    %v939 = vpow.pop %v938
    %v940 = vadd.f32 %v939, 1.0
    %v941 = vrcp.pop %v940
    %v942 = vmul.f32 1.0, %v941
    %v943 = vld [vmem:[#allocation4 + $0x2] sm:$0x3]
    %944 = vmatprep.subr.mxu0 0.0
    %945 = vmatpush1.msra.mxu0 %v458
    %946 = vmatprep.subr.mxu0 0.0
    %947 = vmatpush1.msra.mxu0 %v459
    %948 = vmatprep.subr.mxu0 0.0
    %949 = vmatpush1.msra.mxu0 %v460
    %950 = vmatprep.subr.mxu0 0.0
    %951 = vmatpush1.msra.mxu0 %v461
    %952 = vmatprep.subr.mxu0 0.0
    %953 = vmatpush1.msra.mxu0 0.0
    %954 = vmatprep.subr.mxu0 0.0
    %955 = vmatpush1.msra.mxu0 0.0
    %956 = vmatprep.subr.mxu0 0.0
    %957 = vmatpush1.msra.mxu0 0.0
    %958 = vmatprep.subr.mxu0 0.0
    %959 = vmatpush1.msra.mxu0 0.0
    %960 = vmatprep.subr.mxu0 0.0
    %961 = vmatpush1.msra.mxu0 0.0
    %962 = vmatprep.subr.mxu0 0.0
    %963 = vmatpush1.msra.mxu0 0.0
    %964 = vmatprep.subr.mxu0 0.0
    %965 = vmatpush1.msra.mxu0 0.0
    %966 = vmatprep.subr.mxu0 0.0
    %967 = vmatpush1.msra.mxu0 0.0
    %968 = vmatprep.subr.mxu0 0.0
    %969 = vmatpush1.msra.mxu0 0.0
    %970 = vmatprep.subr.mxu0 0.0
    %971 = vmatpush1.msra.mxu0 0.0
    %972 = vmatprep.subr.mxu0 0.0
    %973 = vmatpush1.msra.mxu0 0.0
    %974 = vmatprep.subr.mxu0 0.0
    %975 = vmatpush1.msra.mxu0 0.0
    %976 = vmatprep.subr.mxu0 0.0
    %977 = vmatpush1.msra.mxu0 0.0
    %978 = vmatprep.subr.mxu0 0.0
    %979 = vmatpush1.msra.mxu0 0.0
    %980 = vmatprep.subr.mxu0 0.0
    %981 = vmatpush1.msra.mxu0 0.0
    %982 = vmatprep.subr.mxu0 0.0
    %983 = vmatpush1.msra.mxu0 0.0
    %984 = vmatprep.subr.mxu0 0.0
    %985 = vmatpush1.msra.mxu0 0.0
    %986 = vmatprep.subr.mxu0 0.0
    %987 = vmatpush1.msra.mxu0 0.0
    %988 = vmatprep.subr.mxu0 0.0
    %989 = vmatpush1.msra.mxu0 0.0
    %990 = vmatprep.subr.mxu0 0.0
    %991 = vmatpush1.msra.mxu0 0.0
    %992 = vmatprep.subr.mxu0 0.0
    %993 = vmatpush1.msra.mxu0 0.0
    %994 = vmatprep.subr.mxu0 0.0
    %995 = vmatpush1.msra.mxu0 0.0
    %996 = vmatprep.subr.mxu0 0.0
    %997 = vmatpush1.msra.mxu0 0.0
    %998 = vmatprep.subr.mxu0 0.0
    %999 = vmatpush1.msra.mxu0 0.0
    %1000 = vmatprep.subr.mxu0 0.0
    %1001 = vmatpush1.msra.mxu0 0.0
    %1002 = vmatprep.subr.mxu0 0.0
    %1003 = vmatpush1.msra.mxu0 0.0
    %1004 = vmatprep.subr.mxu0 0.0
    %1005 = vmatpush1.msra.mxu0 0.0
    %1006 = vmatprep.subr.mxu0 0.0
    %1007 = vmatpush1.msra.mxu0 0.0
    %1008 = vmatprep.mubr.f32.mxu0 0.0
    %1009 = vmatmul.mubr.f32.gmra.mrb[0].mxu0 %v786
    %v1010 = vpop.f32.mrb[0].mxu0
    %v1011 = vadd.f32 0.0, %v1010
    %v1012 = vpop.f32.mrb[0].mxu0
    %1013 = vdwg.mxu0
    %v1014 = vadd.f32 %v943, %v1011
    %v1015 = vtanh.pop %v1014
    %v1016 = vld [vmem:[#allocation5 + $0x2] sm:$0x3]
    %1017 = vmatprep.subr.mxu0 0.0
    %1018 = vmatpush1.msra.mxu0 %v463
    %1019 = vmatprep.subr.mxu0 0.0
    %1020 = vmatpush1.msra.mxu0 %v464
    %1021 = vmatprep.subr.mxu0 0.0
    %1022 = vmatpush1.msra.mxu0 %v465
    %1023 = vmatprep.subr.mxu0 0.0
    %1024 = vmatpush1.msra.mxu0 %v466
    %1025 = vmatprep.subr.mxu0 0.0
    %1026 = vmatpush1.msra.mxu0 0.0
    %1027 = vmatprep.subr.mxu0 0.0
    %1028 = vmatpush1.msra.mxu0 0.0
    %1029 = vmatprep.subr.mxu0 0.0
    %1030 = vmatpush1.msra.mxu0 0.0
    %1031 = vmatprep.subr.mxu0 0.0
    %1032 = vmatpush1.msra.mxu0 0.0
    %1033 = vmatprep.subr.mxu0 0.0
    %1034 = vmatpush1.msra.mxu0 0.0
    %1035 = vmatprep.subr.mxu0 0.0
    %1036 = vmatpush1.msra.mxu0 0.0
    %1037 = vmatprep.subr.mxu0 0.0
    %1038 = vmatpush1.msra.mxu0 0.0
    %1039 = vmatprep.subr.mxu0 0.0
    %1040 = vmatpush1.msra.mxu0 0.0
    %1041 = vmatprep.subr.mxu0 0.0
    %1042 = vmatpush1.msra.mxu0 0.0
    %1043 = vmatprep.subr.mxu0 0.0
    %1044 = vmatpush1.msra.mxu0 0.0
    %1045 = vmatprep.subr.mxu0 0.0
    %1046 = vmatpush1.msra.mxu0 0.0
    %1047 = vmatprep.subr.mxu0 0.0
    %1048 = vmatpush1.msra.mxu0 0.0
    %1049 = vmatprep.subr.mxu0 0.0
    %1050 = vmatpush1.msra.mxu0 0.0
    %1051 = vmatprep.subr.mxu0 0.0
    %1052 = vmatpush1.msra.mxu0 0.0
    %1053 = vmatprep.subr.mxu0 0.0
    %1054 = vmatpush1.msra.mxu0 0.0
    %1055 = vmatprep.subr.mxu0 0.0
    %1056 = vmatpush1.msra.mxu0 0.0
    %1057 = vmatprep.subr.mxu0 0.0
    %1058 = vmatpush1.msra.mxu0 0.0
    %1059 = vmatprep.subr.mxu0 0.0
    %1060 = vmatpush1.msra.mxu0 0.0
    %1061 = vmatprep.subr.mxu0 0.0
    %1062 = vmatpush1.msra.mxu0 0.0
    %1063 = vmatprep.subr.mxu0 0.0
    %1064 = vmatpush1.msra.mxu0 0.0
    %1065 = vmatprep.subr.mxu0 0.0
    %1066 = vmatpush1.msra.mxu0 0.0
    %1067 = vmatprep.subr.mxu0 0.0
    %1068 = vmatpush1.msra.mxu0 0.0
    %1069 = vmatprep.subr.mxu0 0.0
    %1070 = vmatpush1.msra.mxu0 0.0
    %1071 = vmatprep.subr.mxu0 0.0
    %1072 = vmatpush1.msra.mxu0 0.0
    %1073 = vmatprep.subr.mxu0 0.0
    %1074 = vmatpush1.msra.mxu0 0.0
    %1075 = vmatprep.subr.mxu0 0.0
    %1076 = vmatpush1.msra.mxu0 0.0
    %1077 = vmatprep.subr.mxu0 0.0
    %1078 = vmatpush1.msra.mxu0 0.0
    %1079 = vmatprep.subr.mxu0 0.0
    %1080 = vmatpush1.msra.mxu0 0.0
    %1081 = vmatprep.mubr.f32.mxu0 0.0
    %1082 = vmatmul.mubr.f32.gmra.mrb[0].mxu0 %v786
    %v1083 = vpop.f32.mrb[0].mxu0
    %v1084 = vadd.f32 0.0, %v1083
    %v1085 = vpop.f32.mrb[0].mxu0
    %1086 = vdwg.mxu0
    %v1087 = vadd.f32 %v1016, %v1084
    %v1088 = vxor.u32 %v1087, 2147483648
    %v1089 = vmul.f32 %v1088, 1.442695
    %v1090 = vpow.pop %v1089
    %v1091 = vadd.f32 %v1090, 1.0
    %v1092 = vrcp.pop %v1091
    %v1093 = vmul.f32 1.0, %v1092
    %v1094 = vmul.f32 %v942, %v779
    %v1095 = vmul.f32 %v864, %v1015
    %v1096 = vadd.f32 %v1094, %v1095
    %v1097 = vtanh.pop %v1096
    %v1098 = vmul.f32 %v1093, %v1097
    %1099 = vst.msk [vmem:[#allocation6 + $0x2] sm:$0x3] %vm782, %v1098
    %v1100 = vld [vmem:[#allocation2 + $0x4] sm:$0x3]
    %v1102 = vsel %vm181, %v1098, 0
    %1104 = vmatprep.subr.mxu0 0.0
    %1105 = vmatpush1.msra.mxu0 %v448
    %1106 = vmatprep.subr.mxu0 0.0
    %1107 = vmatpush1.msra.mxu0 %v449
    %1108 = vmatprep.subr.mxu0 0.0
    %1109 = vmatpush1.msra.mxu0 %v450
    %1110 = vmatprep.subr.mxu0 0.0
    %1111 = vmatpush1.msra.mxu0 %v451
    %1112 = vmatprep.subr.mxu0 0.0
    %1113 = vmatpush1.msra.mxu0 0.0
    %1114 = vmatprep.subr.mxu0 0.0
    %1115 = vmatpush1.msra.mxu0 0.0
    %1116 = vmatprep.subr.mxu0 0.0
    %1117 = vmatpush1.msra.mxu0 0.0
    %1118 = vmatprep.subr.mxu0 0.0
    %1119 = vmatpush1.msra.mxu0 0.0
    %1120 = vmatprep.subr.mxu0 0.0
    %1121 = vmatpush1.msra.mxu0 0.0
    %1122 = vmatprep.subr.mxu0 0.0
    %1123 = vmatpush1.msra.mxu0 0.0
    %1124 = vmatprep.subr.mxu0 0.0
    %1125 = vmatpush1.msra.mxu0 0.0
    %1126 = vmatprep.subr.mxu0 0.0
    %1127 = vmatpush1.msra.mxu0 0.0
    %1128 = vmatprep.subr.mxu0 0.0
    %1129 = vmatpush1.msra.mxu0 0.0
    %1130 = vmatprep.subr.mxu0 0.0
    %1131 = vmatpush1.msra.mxu0 0.0
    %1132 = vmatprep.subr.mxu0 0.0
    %1133 = vmatpush1.msra.mxu0 0.0
    %1134 = vmatprep.subr.mxu0 0.0
    %1135 = vmatpush1.msra.mxu0 0.0
    %1136 = vmatprep.subr.mxu0 0.0
    %1137 = vmatpush1.msra.mxu0 0.0
    %1138 = vmatprep.subr.mxu0 0.0
    %1139 = vmatpush1.msra.mxu0 0.0
    %1140 = vmatprep.subr.mxu0 0.0
    %1141 = vmatpush1.msra.mxu0 0.0
    %1142 = vmatprep.subr.mxu0 0.0
    %1143 = vmatpush1.msra.mxu0 0.0
    %1144 = vmatprep.subr.mxu0 0.0
    %1145 = vmatpush1.msra.mxu0 0.0
    %1146 = vmatprep.subr.mxu0 0.0
    %1147 = vmatpush1.msra.mxu0 0.0
    %1148 = vmatprep.subr.mxu0 0.0
    %1149 = vmatpush1.msra.mxu0 0.0
    %1150 = vmatprep.subr.mxu0 0.0
    %1151 = vmatpush1.msra.mxu0 0.0
    %1152 = vmatprep.subr.mxu0 0.0
    %1153 = vmatpush1.msra.mxu0 0.0
    %1154 = vmatprep.subr.mxu0 0.0
    %1155 = vmatpush1.msra.mxu0 0.0
    %1156 = vmatprep.subr.mxu0 0.0
    %1157 = vmatpush1.msra.mxu0 0.0
    %1158 = vmatprep.subr.mxu0 0.0
    %1159 = vmatpush1.msra.mxu0 0.0
    %1160 = vmatprep.subr.mxu0 0.0
    %1161 = vmatpush1.msra.mxu0 0.0
    %1162 = vmatprep.subr.mxu0 0.0
    %1163 = vmatpush1.msra.mxu0 0.0
    %1164 = vmatprep.subr.mxu0 0.0
    %1165 = vmatpush1.msra.mxu0 0.0
    %1166 = vmatprep.subr.mxu0 0.0
    %1167 = vmatpush1.msra.mxu0 0.0
    %1168 = vmatprep.mubr.f32.mxu0 0.0
    %1169 = vmatmul.mubr.f32.gmra.mrb[0].mxu0 %v1102
    %v1170 = vpop.f32.mrb[0].mxu0
    %v1171 = vadd.f32 0.0, %v1170
    %v1172 = vpop.f32.mrb[0].mxu0
    %1173 = vdwg.mxu0
    %v1174 = vadd.f32 %v1100, %v1171
    %v1175 = vxor.u32 %v1174, 2147483648
    %v1176 = vmul.f32 %v1175, 1.442695
    %v1177 = vpow.pop %v1176
    %v1178 = vadd.f32 %v1177, 1.0
    %v1179 = vrcp.pop %v1178
    %v1180 = vmul.f32 1.0, %v1179
    %v1181 = vld [vmem:[#allocation3 + $0x4] sm:$0x3]
    %1182 = vmatprep.subr.mxu0 0.0
    %1183 = vmatpush1.msra.mxu0 %v453
    %1184 = vmatprep.subr.mxu0 0.0
    %1185 = vmatpush1.msra.mxu0 %v454
    %1186 = vmatprep.subr.mxu0 0.0
    %1187 = vmatpush1.msra.mxu0 %v455
    %1188 = vmatprep.subr.mxu0 0.0
    %1189 = vmatpush1.msra.mxu0 %v456
    %1190 = vmatprep.subr.mxu0 0.0
    %1191 = vmatpush1.msra.mxu0 0.0
    %1192 = vmatprep.subr.mxu0 0.0
    %1193 = vmatpush1.msra.mxu0 0.0
    %1194 = vmatprep.subr.mxu0 0.0
    %1195 = vmatpush1.msra.mxu0 0.0
    %1196 = vmatprep.subr.mxu0 0.0
    %1197 = vmatpush1.msra.mxu0 0.0
    %1198 = vmatprep.subr.mxu0 0.0
    %1199 = vmatpush1.msra.mxu0 0.0
    %1200 = vmatprep.subr.mxu0 0.0
    %1201 = vmatpush1.msra.mxu0 0.0
    %1202 = vmatprep.subr.mxu0 0.0
    %1203 = vmatpush1.msra.mxu0 0.0
    %1204 = vmatprep.subr.mxu0 0.0
    %1205 = vmatpush1.msra.mxu0 0.0
    %1206 = vmatprep.subr.mxu0 0.0
    %1207 = vmatpush1.msra.mxu0 0.0
    %1208 = vmatprep.subr.mxu0 0.0
    %1209 = vmatpush1.msra.mxu0 0.0
    %1210 = vmatprep.subr.mxu0 0.0
    %1211 = vmatpush1.msra.mxu0 0.0
    %1212 = vmatprep.subr.mxu0 0.0
    %1213 = vmatpush1.msra.mxu0 0.0
    %1214 = vmatprep.subr.mxu0 0.0
    %1215 = vmatpush1.msra.mxu0 0.0
    %1216 = vmatprep.subr.mxu0 0.0
    %1217 = vmatpush1.msra.mxu0 0.0
    %1218 = vmatprep.subr.mxu0 0.0
    %1219 = vmatpush1.msra.mxu0 0.0
    %1220 = vmatprep.subr.mxu0 0.0
    %1221 = vmatpush1.msra.mxu0 0.0
    %1222 = vmatprep.subr.mxu0 0.0
    %1223 = vmatpush1.msra.mxu0 0.0
    %1224 = vmatprep.subr.mxu0 0.0
    %1225 = vmatpush1.msra.mxu0 0.0
    %1226 = vmatprep.subr.mxu0 0.0
    %1227 = vmatpush1.msra.mxu0 0.0
    %1228 = vmatprep.subr.mxu0 0.0
    %1229 = vmatpush1.msra.mxu0 0.0
    %1230 = vmatprep.subr.mxu0 0.0
    %1231 = vmatpush1.msra.mxu0 0.0
    %1232 = vmatprep.subr.mxu0 0.0
    %1233 = vmatpush1.msra.mxu0 0.0
    %1234 = vmatprep.subr.mxu0 0.0
    %1235 = vmatpush1.msra.mxu0 0.0
    %1236 = vmatprep.subr.mxu0 0.0
    %1237 = vmatpush1.msra.mxu0 0.0
    %1238 = vmatprep.subr.mxu0 0.0
    %1239 = vmatpush1.msra.mxu0 0.0
    %1240 = vmatprep.subr.mxu0 0.0
    %1241 = vmatpush1.msra.mxu0 0.0
    %1242 = vmatprep.subr.mxu0 0.0
    %1243 = vmatpush1.msra.mxu0 0.0
    %1244 = vmatprep.subr.mxu0 0.0
    %1245 = vmatpush1.msra.mxu0 0.0
    %1246 = vmatprep.mubr.f32.mxu0 0.0
    %1247 = vmatmul.mubr.f32.gmra.mrb[0].mxu0 %v1102
    %v1248 = vpop.f32.mrb[0].mxu0
    %v1249 = vadd.f32 0.0, %v1248
    %v1250 = vpop.f32.mrb[0].mxu0
    %1251 = vdwg.mxu0
    %v1252 = vadd.f32 %v1181, %v1249
    %v1253 = vxor.u32 %v1252, 2147483648
    %v1254 = vmul.f32 %v1253, 1.442695
    %v1255 = vpow.pop %v1254
    %v1256 = vadd.f32 %v1255, 1.0
    %v1257 = vrcp.pop %v1256
    %v1258 = vmul.f32 1.0, %v1257
    %v1259 = vld [vmem:[#allocation4 + $0x4] sm:$0x3]
    %1260 = vmatprep.subr.mxu0 0.0
    %1261 = vmatpush1.msra.mxu0 %v458
    %1262 = vmatprep.subr.mxu0 0.0
    %1263 = vmatpush1.msra.mxu0 %v459
    %1264 = vmatprep.subr.mxu0 0.0
    %1265 = vmatpush1.msra.mxu0 %v460
    %1266 = vmatprep.subr.mxu0 0.0
    %1267 = vmatpush1.msra.mxu0 %v461
    %1268 = vmatprep.subr.mxu0 0.0
    %1269 = vmatpush1.msra.mxu0 0.0
    %1270 = vmatprep.subr.mxu0 0.0
    %1271 = vmatpush1.msra.mxu0 0.0
    %1272 = vmatprep.subr.mxu0 0.0
    %1273 = vmatpush1.msra.mxu0 0.0
    %1274 = vmatprep.subr.mxu0 0.0
    %1275 = vmatpush1.msra.mxu0 0.0
    %1276 = vmatprep.subr.mxu0 0.0
    %1277 = vmatpush1.msra.mxu0 0.0
    %1278 = vmatprep.subr.mxu0 0.0
    %1279 = vmatpush1.msra.mxu0 0.0
    %1280 = vmatprep.subr.mxu0 0.0
    %1281 = vmatpush1.msra.mxu0 0.0
    %1282 = vmatprep.subr.mxu0 0.0
    %1283 = vmatpush1.msra.mxu0 0.0
    %1284 = vmatprep.subr.mxu0 0.0
    %1285 = vmatpush1.msra.mxu0 0.0
    %1286 = vmatprep.subr.mxu0 0.0
    %1287 = vmatpush1.msra.mxu0 0.0
    %1288 = vmatprep.subr.mxu0 0.0
    %1289 = vmatpush1.msra.mxu0 0.0
    %1290 = vmatprep.subr.mxu0 0.0
    %1291 = vmatpush1.msra.mxu0 0.0
    %1292 = vmatprep.subr.mxu0 0.0
    %1293 = vmatpush1.msra.mxu0 0.0
    %1294 = vmatprep.subr.mxu0 0.0
    %1295 = vmatpush1.msra.mxu0 0.0
    %1296 = vmatprep.subr.mxu0 0.0
    %1297 = vmatpush1.msra.mxu0 0.0
    %1298 = vmatprep.subr.mxu0 0.0
    %1299 = vmatpush1.msra.mxu0 0.0
    %1300 = vmatprep.subr.mxu0 0.0
    %1301 = vmatpush1.msra.mxu0 0.0
    %1302 = vmatprep.subr.mxu0 0.0
    %1303 = vmatpush1.msra.mxu0 0.0
    %1304 = vmatprep.subr.mxu0 0.0
    %1305 = vmatpush1.msra.mxu0 0.0
    %1306 = vmatprep.subr.mxu0 0.0
    %1307 = vmatpush1.msra.mxu0 0.0
    %1308 = vmatprep.subr.mxu0 0.0
    %1309 = vmatpush1.msra.mxu0 0.0
    %1310 = vmatprep.subr.mxu0 0.0
    %1311 = vmatpush1.msra.mxu0 0.0
    %1312 = vmatprep.subr.mxu0 0.0
    %1313 = vmatpush1.msra.mxu0 0.0
    %1314 = vmatprep.subr.mxu0 0.0
    %1315 = vmatpush1.msra.mxu0 0.0
    %1316 = vmatprep.subr.mxu0 0.0
    %1317 = vmatpush1.msra.mxu0 0.0
    %1318 = vmatprep.subr.mxu0 0.0
    %1319 = vmatpush1.msra.mxu0 0.0
    %1320 = vmatprep.subr.mxu0 0.0
    %1321 = vmatpush1.msra.mxu0 0.0
    %1322 = vmatprep.subr.mxu0 0.0
    %1323 = vmatpush1.msra.mxu0 0.0
    %1324 = vmatprep.mubr.f32.mxu0 0.0
    %1325 = vmatmul.mubr.f32.gmra.mrb[0].mxu0 %v1102
    %v1326 = vpop.f32.mrb[0].mxu0
    %v1327 = vadd.f32 0.0, %v1326
    %v1328 = vpop.f32.mrb[0].mxu0
    %1329 = vdwg.mxu0
    %v1330 = vadd.f32 %v1259, %v1327
    %v1331 = vtanh.pop %v1330
    %v1332 = vld [vmem:[#allocation5 + $0x4] sm:$0x3]
    %1333 = vmatprep.subr.mxu0 0.0
    %1334 = vmatpush1.msra.mxu0 %v463
    %1335 = vmatprep.subr.mxu0 0.0
    %1336 = vmatpush1.msra.mxu0 %v464
    %1337 = vmatprep.subr.mxu0 0.0
    %1338 = vmatpush1.msra.mxu0 %v465
    %1339 = vmatprep.subr.mxu0 0.0
    %1340 = vmatpush1.msra.mxu0 %v466
    %1341 = vmatprep.subr.mxu0 0.0
    %1342 = vmatpush1.msra.mxu0 0.0
    %1343 = vmatprep.subr.mxu0 0.0
    %1344 = vmatpush1.msra.mxu0 0.0
    %1345 = vmatprep.subr.mxu0 0.0
    %1346 = vmatpush1.msra.mxu0 0.0
    %1347 = vmatprep.subr.mxu0 0.0
    %1348 = vmatpush1.msra.mxu0 0.0
    %1349 = vmatprep.subr.mxu0 0.0
    %1350 = vmatpush1.msra.mxu0 0.0
    %1351 = vmatprep.subr.mxu0 0.0
    %1352 = vmatpush1.msra.mxu0 0.0
    %1353 = vmatprep.subr.mxu0 0.0
    %1354 = vmatpush1.msra.mxu0 0.0
    %1355 = vmatprep.subr.mxu0 0.0
    %1356 = vmatpush1.msra.mxu0 0.0
    %1357 = vmatprep.subr.mxu0 0.0
    %1358 = vmatpush1.msra.mxu0 0.0
    %1359 = vmatprep.subr.mxu0 0.0
    %1360 = vmatpush1.msra.mxu0 0.0
    %1361 = vmatprep.subr.mxu0 0.0
    %1362 = vmatpush1.msra.mxu0 0.0
    %1363 = vmatprep.subr.mxu0 0.0
    %1364 = vmatpush1.msra.mxu0 0.0
    %1365 = vmatprep.subr.mxu0 0.0
    %1366 = vmatpush1.msra.mxu0 0.0
    %1367 = vmatprep.subr.mxu0 0.0
    %1368 = vmatpush1.msra.mxu0 0.0
    %1369 = vmatprep.subr.mxu0 0.0
    %1370 = vmatpush1.msra.mxu0 0.0
    %1371 = vmatprep.subr.mxu0 0.0
    %1372 = vmatpush1.msra.mxu0 0.0
    %1373 = vmatprep.subr.mxu0 0.0
    %1374 = vmatpush1.msra.mxu0 0.0
    %1375 = vmatprep.subr.mxu0 0.0
    %1376 = vmatpush1.msra.mxu0 0.0
    %1377 = vmatprep.subr.mxu0 0.0
    %1378 = vmatpush1.msra.mxu0 0.0
    %1379 = vmatprep.subr.mxu0 0.0
    %1380 = vmatpush1.msra.mxu0 0.0
    %1381 = vmatprep.subr.mxu0 0.0
    %1382 = vmatpush1.msra.mxu0 0.0
    %1383 = vmatprep.subr.mxu0 0.0
    %1384 = vmatpush1.msra.mxu0 0.0
    %1385 = vmatprep.subr.mxu0 0.0
    %1386 = vmatpush1.msra.mxu0 0.0
    %1387 = vmatprep.subr.mxu0 0.0
    %1388 = vmatpush1.msra.mxu0 0.0
    %1389 = vmatprep.subr.mxu0 0.0
    %1390 = vmatpush1.msra.mxu0 0.0
    %1391 = vmatprep.subr.mxu0 0.0
    %1392 = vmatpush1.msra.mxu0 0.0
    %1393 = vmatprep.subr.mxu0 0.0
    %1394 = vmatpush1.msra.mxu0 0.0
    %1395 = vmatprep.subr.mxu0 0.0
    %1396 = vmatpush1.msra.mxu0 0.0
    %1397 = vmatprep.mubr.f32.mxu0 0.0
    %1398 = vmatmul.mubr.f32.gmra.mrb[0].mxu0 %v1102
    %v1399 = vpop.f32.mrb[0].mxu0
    %v1400 = vadd.f32 0.0, %v1399
    %v1401 = vpop.f32.mrb[0].mxu0
    %1402 = vdwg.mxu0
    %v1403 = vadd.f32 %v1332, %v1400
    %v1404 = vxor.u32 %v1403, 2147483648
    %v1405 = vmul.f32 %v1404, 1.442695
    %v1406 = vpow.pop %v1405
    %v1407 = vadd.f32 %v1406, 1.0
    %v1408 = vrcp.pop %v1407
    %v1409 = vmul.f32 1.0, %v1408
    %v1410 = vmul.f32 %v1258, %v1096
    %v1411 = vmul.f32 %v1180, %v1331
    %v1412 = vadd.f32 %v1410, %v1411
    %v1413 = vtanh.pop %v1412
    %v1414 = vmul.f32 %v1409, %v1413
    %1415 = vst.msk [vmem:[#allocation6 + $0x4] sm:$0x3] %vm782, %v1414
    %v1416 = vld [vmem:[#allocation2 + $0x6] sm:$0x3]
    %v1418 = vsel %vm181, %v1414, 0
    %1420 = vmatprep.subr.mxu0 0.0
    %1421 = vmatpush1.msra.mxu0 %v448
    %1422 = vmatprep.subr.mxu0 0.0
    %1423 = vmatpush1.msra.mxu0 %v449
    %1424 = vmatprep.subr.mxu0 0.0
    %1425 = vmatpush1.msra.mxu0 %v450
    %1426 = vmatprep.subr.mxu0 0.0
    %1427 = vmatpush1.msra.mxu0 %v451
    %1428 = vmatprep.subr.mxu0 0.0
    %1429 = vmatpush1.msra.mxu0 0.0
    %1430 = vmatprep.subr.mxu0 0.0
    %1431 = vmatpush1.msra.mxu0 0.0
    %1432 = vmatprep.subr.mxu0 0.0
    %1433 = vmatpush1.msra.mxu0 0.0
    %1434 = vmatprep.subr.mxu0 0.0
    %1435 = vmatpush1.msra.mxu0 0.0
    %1436 = vmatprep.subr.mxu0 0.0
    %1437 = vmatpush1.msra.mxu0 0.0
    %1438 = vmatprep.subr.mxu0 0.0
    %1439 = vmatpush1.msra.mxu0 0.0
    %1440 = vmatprep.subr.mxu0 0.0
    %1441 = vmatpush1.msra.mxu0 0.0
    %1442 = vmatprep.subr.mxu0 0.0
    %1443 = vmatpush1.msra.mxu0 0.0
    %1444 = vmatprep.subr.mxu0 0.0
    %1445 = vmatpush1.msra.mxu0 0.0
    %1446 = vmatprep.subr.mxu0 0.0
    %1447 = vmatpush1.msra.mxu0 0.0
    %1448 = vmatprep.subr.mxu0 0.0
    %1449 = vmatpush1.msra.mxu0 0.0
    %1450 = vmatprep.subr.mxu0 0.0
    %1451 = vmatpush1.msra.mxu0 0.0
    %1452 = vmatprep.subr.mxu0 0.0
    %1453 = vmatpush1.msra.mxu0 0.0
    %1454 = vmatprep.subr.mxu0 0.0
    %1455 = vmatpush1.msra.mxu0 0.0
    %1456 = vmatprep.subr.mxu0 0.0
    %1457 = vmatpush1.msra.mxu0 0.0
    %1458 = vmatprep.subr.mxu0 0.0
    %1459 = vmatpush1.msra.mxu0 0.0
    %1460 = vmatprep.subr.mxu0 0.0
    %1461 = vmatpush1.msra.mxu0 0.0
    %1462 = vmatprep.subr.mxu0 0.0
    %1463 = vmatpush1.msra.mxu0 0.0
    %1464 = vmatprep.subr.mxu0 0.0
    %1465 = vmatpush1.msra.mxu0 0.0
    %1466 = vmatprep.subr.mxu0 0.0
    %1467 = vmatpush1.msra.mxu0 0.0
    %1468 = vmatprep.subr.mxu0 0.0
    %1469 = vmatpush1.msra.mxu0 0.0
    %1470 = vmatprep.subr.mxu0 0.0
    %1471 = vmatpush1.msra.mxu0 0.0
    %1472 = vmatprep.subr.mxu0 0.0
    %1473 = vmatpush1.msra.mxu0 0.0
    %1474 = vmatprep.subr.mxu0 0.0
    %1475 = vmatpush1.msra.mxu0 0.0
    %1476 = vmatprep.subr.mxu0 0.0
    %1477 = vmatpush1.msra.mxu0 0.0
    %1478 = vmatprep.subr.mxu0 0.0
    %1479 = vmatpush1.msra.mxu0 0.0
    %1480 = vmatprep.subr.mxu0 0.0
    %1481 = vmatpush1.msra.mxu0 0.0
    %1482 = vmatprep.subr.mxu0 0.0
    %1483 = vmatpush1.msra.mxu0 0.0
    %1484 = vmatprep.mubr.f32.mxu0 0.0
    %1485 = vmatmul.mubr.f32.gmra.mrb[0].mxu0 %v1418
    %v1486 = vpop.f32.mrb[0].mxu0
    %v1487 = vadd.f32 0.0, %v1486
    %v1488 = vpop.f32.mrb[0].mxu0
    %1489 = vdwg.mxu0
    %v1490 = vadd.f32 %v1416, %v1487
    %v1491 = vxor.u32 %v1490, 2147483648
    %v1492 = vmul.f32 %v1491, 1.442695
    %v1493 = vpow.pop %v1492
    %v1494 = vadd.f32 %v1493, 1.0
    %v1495 = vrcp.pop %v1494
    %v1496 = vmul.f32 1.0, %v1495
    %v1497 = vld [vmem:[#allocation3 + $0x6] sm:$0x3]
    %1498 = vmatprep.subr.mxu0 0.0
    %1499 = vmatpush1.msra.mxu0 %v453
    %1500 = vmatprep.subr.mxu0 0.0
    %1501 = vmatpush1.msra.mxu0 %v454
    %1502 = vmatprep.subr.mxu0 0.0
    %1503 = vmatpush1.msra.mxu0 %v455
    %1504 = vmatprep.subr.mxu0 0.0
    %1505 = vmatpush1.msra.mxu0 %v456
    %1506 = vmatprep.subr.mxu0 0.0
    %1507 = vmatpush1.msra.mxu0 0.0
    %1508 = vmatprep.subr.mxu0 0.0
    %1509 = vmatpush1.msra.mxu0 0.0
    %1510 = vmatprep.subr.mxu0 0.0
    %1511 = vmatpush1.msra.mxu0 0.0
    %1512 = vmatprep.subr.mxu0 0.0
    %1513 = vmatpush1.msra.mxu0 0.0
    %1514 = vmatprep.subr.mxu0 0.0
    %1515 = vmatpush1.msra.mxu0 0.0
    %1516 = vmatprep.subr.mxu0 0.0
    %1517 = vmatpush1.msra.mxu0 0.0
    %1518 = vmatprep.subr.mxu0 0.0
    %1519 = vmatpush1.msra.mxu0 0.0
    %1520 = vmatprep.subr.mxu0 0.0
    %1521 = vmatpush1.msra.mxu0 0.0
    %1522 = vmatprep.subr.mxu0 0.0
    %1523 = vmatpush1.msra.mxu0 0.0
    %1524 = vmatprep.subr.mxu0 0.0
    %1525 = vmatpush1.msra.mxu0 0.0
    %1526 = vmatprep.subr.mxu0 0.0
    %1527 = vmatpush1.msra.mxu0 0.0
    %1528 = vmatprep.subr.mxu0 0.0
    %1529 = vmatpush1.msra.mxu0 0.0
    %1530 = vmatprep.subr.mxu0 0.0
    %1531 = vmatpush1.msra.mxu0 0.0
    %1532 = vmatprep.subr.mxu0 0.0
    %1533 = vmatpush1.msra.mxu0 0.0
    %1534 = vmatprep.subr.mxu0 0.0
    %1535 = vmatpush1.msra.mxu0 0.0
    %1536 = vmatprep.subr.mxu0 0.0
    %1537 = vmatpush1.msra.mxu0 0.0
    %1538 = vmatprep.subr.mxu0 0.0
    %1539 = vmatpush1.msra.mxu0 0.0
    %1540 = vmatprep.subr.mxu0 0.0
    %1541 = vmatpush1.msra.mxu0 0.0
    %1542 = vmatprep.subr.mxu0 0.0
    %1543 = vmatpush1.msra.mxu0 0.0
    %1544 = vmatprep.subr.mxu0 0.0
    %1545 = vmatpush1.msra.mxu0 0.0
    %1546 = vmatprep.subr.mxu0 0.0
    %1547 = vmatpush1.msra.mxu0 0.0
    %1548 = vmatprep.subr.mxu0 0.0
    %1549 = vmatpush1.msra.mxu0 0.0
    %1550 = vmatprep.subr.mxu0 0.0
    %1551 = vmatpush1.msra.mxu0 0.0
    %1552 = vmatprep.subr.mxu0 0.0
    %1553 = vmatpush1.msra.mxu0 0.0
    %1554 = vmatprep.subr.mxu0 0.0
    %1555 = vmatpush1.msra.mxu0 0.0
    %1556 = vmatprep.subr.mxu0 0.0
    %1557 = vmatpush1.msra.mxu0 0.0
    %1558 = vmatprep.subr.mxu0 0.0
    %1559 = vmatpush1.msra.mxu0 0.0
    %1560 = vmatprep.subr.mxu0 0.0
    %1561 = vmatpush1.msra.mxu0 0.0
    %1562 = vmatprep.mubr.f32.mxu0 0.0
    %1563 = vmatmul.mubr.f32.gmra.mrb[0].mxu0 %v1418
    %v1564 = vpop.f32.mrb[0].mxu0
    %v1565 = vadd.f32 0.0, %v1564
    %v1566 = vpop.f32.mrb[0].mxu0
    %1567 = vdwg.mxu0
    %v1568 = vadd.f32 %v1497, %v1565
    %v1569 = vxor.u32 %v1568, 2147483648
    %v1570 = vmul.f32 %v1569, 1.442695
    %v1571 = vpow.pop %v1570
    %v1572 = vadd.f32 %v1571, 1.0
    %v1573 = vrcp.pop %v1572
    %v1574 = vmul.f32 1.0, %v1573
    %v1575 = vld [vmem:[#allocation4 + $0x6] sm:$0x3]
    %1576 = vmatprep.subr.mxu0 0.0
    %1577 = vmatpush1.msra.mxu0 %v458
    %1578 = vmatprep.subr.mxu0 0.0
    %1579 = vmatpush1.msra.mxu0 %v459
    %1580 = vmatprep.subr.mxu0 0.0
    %1581 = vmatpush1.msra.mxu0 %v460
    %1582 = vmatprep.subr.mxu0 0.0
    %1583 = vmatpush1.msra.mxu0 %v461
    %1584 = vmatprep.subr.mxu0 0.0
    %1585 = vmatpush1.msra.mxu0 0.0
    %1586 = vmatprep.subr.mxu0 0.0
    %1587 = vmatpush1.msra.mxu0 0.0
    %1588 = vmatprep.subr.mxu0 0.0
    %1589 = vmatpush1.msra.mxu0 0.0
    %1590 = vmatprep.subr.mxu0 0.0
    %1591 = vmatpush1.msra.mxu0 0.0
    %1592 = vmatprep.subr.mxu0 0.0
    %1593 = vmatpush1.msra.mxu0 0.0
    %1594 = vmatprep.subr.mxu0 0.0
    %1595 = vmatpush1.msra.mxu0 0.0
    %1596 = vmatprep.subr.mxu0 0.0
    %1597 = vmatpush1.msra.mxu0 0.0
    %1598 = vmatprep.subr.mxu0 0.0
    %1599 = vmatpush1.msra.mxu0 0.0
    %1600 = vmatprep.subr.mxu0 0.0
    %1601 = vmatpush1.msra.mxu0 0.0
    %1602 = vmatprep.subr.mxu0 0.0
    %1603 = vmatpush1.msra.mxu0 0.0
    %1604 = vmatprep.subr.mxu0 0.0
    %1605 = vmatpush1.msra.mxu0 0.0
    %1606 = vmatprep.subr.mxu0 0.0
    %1607 = vmatpush1.msra.mxu0 0.0
    %1608 = vmatprep.subr.mxu0 0.0
    %1609 = vmatpush1.msra.mxu0 0.0
    %1610 = vmatprep.subr.mxu0 0.0
    %1611 = vmatpush1.msra.mxu0 0.0
    %1612 = vmatprep.subr.mxu0 0.0
    %1613 = vmatpush1.msra.mxu0 0.0
    %1614 = vmatprep.subr.mxu0 0.0
    %1615 = vmatpush1.msra.mxu0 0.0
    %1616 = vmatprep.subr.mxu0 0.0
    %1617 = vmatpush1.msra.mxu0 0.0
    %1618 = vmatprep.subr.mxu0 0.0
    %1619 = vmatpush1.msra.mxu0 0.0
    %1620 = vmatprep.subr.mxu0 0.0
    %1621 = vmatpush1.msra.mxu0 0.0
    %1622 = vmatprep.subr.mxu0 0.0
    %1623 = vmatpush1.msra.mxu0 0.0
    %1624 = vmatprep.subr.mxu0 0.0
    %1625 = vmatpush1.msra.mxu0 0.0
    %1626 = vmatprep.subr.mxu0 0.0
    %1627 = vmatpush1.msra.mxu0 0.0
    %1628 = vmatprep.subr.mxu0 0.0
    %1629 = vmatpush1.msra.mxu0 0.0
    %1630 = vmatprep.subr.mxu0 0.0
    %1631 = vmatpush1.msra.mxu0 0.0
    %1632 = vmatprep.subr.mxu0 0.0
    %1633 = vmatpush1.msra.mxu0 0.0
    %1634 = vmatprep.subr.mxu0 0.0
    %1635 = vmatpush1.msra.mxu0 0.0
    %1636 = vmatprep.subr.mxu0 0.0
    %1637 = vmatpush1.msra.mxu0 0.0
    %1638 = vmatprep.subr.mxu0 0.0
    %1639 = vmatpush1.msra.mxu0 0.0
    %1640 = vmatprep.mubr.f32.mxu0 0.0
    %1641 = vmatmul.mubr.f32.gmra.mrb[0].mxu0 %v1418
    %v1642 = vpop.f32.mrb[0].mxu0
    %v1643 = vadd.f32 0.0, %v1642
    %v1644 = vpop.f32.mrb[0].mxu0
    %1645 = vdwg.mxu0
    %v1646 = vadd.f32 %v1575, %v1643
    %v1647 = vtanh.pop %v1646
    %v1648 = vld [vmem:[#allocation5 + $0x6] sm:$0x3]
    %1649 = vmatprep.subr.mxu0 0.0
    %1650 = vmatpush1.msra.mxu0 %v463
    %1651 = vmatprep.subr.mxu0 0.0
    %1652 = vmatpush1.msra.mxu0 %v464
    %1653 = vmatprep.subr.mxu0 0.0
    %1654 = vmatpush1.msra.mxu0 %v465
    %1655 = vmatprep.subr.mxu0 0.0
    %1656 = vmatpush1.msra.mxu0 %v466
    %1657 = vmatprep.subr.mxu0 0.0
    %1658 = vmatpush1.msra.mxu0 0.0
    %1659 = vmatprep.subr.mxu0 0.0
    %1660 = vmatpush1.msra.mxu0 0.0
    %1661 = vmatprep.subr.mxu0 0.0
    %1662 = vmatpush1.msra.mxu0 0.0
    %1663 = vmatprep.subr.mxu0 0.0
    %1664 = vmatpush1.msra.mxu0 0.0
    %1665 = vmatprep.subr.mxu0 0.0
    %1666 = vmatpush1.msra.mxu0 0.0
    %1667 = vmatprep.subr.mxu0 0.0
    %1668 = vmatpush1.msra.mxu0 0.0
    %1669 = vmatprep.subr.mxu0 0.0
    %1670 = vmatpush1.msra.mxu0 0.0
    %1671 = vmatprep.subr.mxu0 0.0
    %1672 = vmatpush1.msra.mxu0 0.0
    %1673 = vmatprep.subr.mxu0 0.0
    %1674 = vmatpush1.msra.mxu0 0.0
    %1675 = vmatprep.subr.mxu0 0.0
    %1676 = vmatpush1.msra.mxu0 0.0
    %1677 = vmatprep.subr.mxu0 0.0
    %1678 = vmatpush1.msra.mxu0 0.0
    %1679 = vmatprep.subr.mxu0 0.0
    %1680 = vmatpush1.msra.mxu0 0.0
    %1681 = vmatprep.subr.mxu0 0.0
    %1682 = vmatpush1.msra.mxu0 0.0
    %1683 = vmatprep.subr.mxu0 0.0
    %1684 = vmatpush1.msra.mxu0 0.0
    %1685 = vmatprep.subr.mxu0 0.0
    %1686 = vmatpush1.msra.mxu0 0.0
    %1687 = vmatprep.subr.mxu0 0.0
    %1688 = vmatpush1.msra.mxu0 0.0
    %1689 = vmatprep.subr.mxu0 0.0
    %1690 = vmatpush1.msra.mxu0 0.0
    %1691 = vmatprep.subr.mxu0 0.0
    %1692 = vmatpush1.msra.mxu0 0.0
    %1693 = vmatprep.subr.mxu0 0.0
    %1694 = vmatpush1.msra.mxu0 0.0
    %1695 = vmatprep.subr.mxu0 0.0
    %1696 = vmatpush1.msra.mxu0 0.0
    %1697 = vmatprep.subr.mxu0 0.0
    %1698 = vmatpush1.msra.mxu0 0.0
    %1699 = vmatprep.subr.mxu0 0.0
    %1700 = vmatpush1.msra.mxu0 0.0
    %1701 = vmatprep.subr.mxu0 0.0
    %1702 = vmatpush1.msra.mxu0 0.0
    %1703 = vmatprep.subr.mxu0 0.0
    %1704 = vmatpush1.msra.mxu0 0.0
    %1705 = vmatprep.subr.mxu0 0.0
    %1706 = vmatpush1.msra.mxu0 0.0
    %1707 = vmatprep.subr.mxu0 0.0
    %1708 = vmatpush1.msra.mxu0 0.0
    %1709 = vmatprep.subr.mxu0 0.0
    %1710 = vmatpush1.msra.mxu0 0.0
    %1711 = vmatprep.subr.mxu0 0.0
    %1712 = vmatpush1.msra.mxu0 0.0
    %1713 = vmatprep.mubr.f32.mxu0 0.0
    %1714 = vmatmul.mubr.f32.gmra.mrb[0].mxu0 %v1418
    %v1715 = vpop.f32.mrb[0].mxu0
    %v1716 = vadd.f32 0.0, %v1715
    %v1717 = vpop.f32.mrb[0].mxu0
    %1718 = vdwg.mxu0
    %v1719 = vadd.f32 %v1648, %v1716
    %v1720 = vxor.u32 %v1719, 2147483648
    %v1721 = vmul.f32 %v1720, 1.442695
    %v1722 = vpow.pop %v1721
    %v1723 = vadd.f32 %v1722, 1.0
    %v1724 = vrcp.pop %v1723
    %v1725 = vmul.f32 1.0, %v1724
    %v1726 = vmul.f32 %v1574, %v1412
    %v1727 = vmul.f32 %v1496, %v1647
    %v1728 = vadd.f32 %v1726, %v1727
    %v1729 = vtanh.pop %v1728
    %v1730 = vmul.f32 %v1725, %v1729
    %1731 = vst.msk [vmem:[#allocation6 + $0x6] sm:$0x3] %vm782, %v1730
    %v1732 = vld [vmem:[#allocation2 + $0x8] sm:$0x3]
    %v1734 = vsel %vm181, %v1730, 0
    %1736 = vmatprep.subr.mxu0 0.0
    %1737 = vmatpush1.msra.mxu0 %v448
    %1738 = vmatprep.subr.mxu0 0.0
    %1739 = vmatpush1.msra.mxu0 %v449
    %1740 = vmatprep.subr.mxu0 0.0
    %1741 = vmatpush1.msra.mxu0 %v450
    %1742 = vmatprep.subr.mxu0 0.0
    %1743 = vmatpush1.msra.mxu0 %v451
    %1744 = vmatprep.subr.mxu0 0.0
    %1745 = vmatpush1.msra.mxu0 0.0
    %1746 = vmatprep.subr.mxu0 0.0
    %1747 = vmatpush1.msra.mxu0 0.0
    %1748 = vmatprep.subr.mxu0 0.0
    %1749 = vmatpush1.msra.mxu0 0.0
    %1750 = vmatprep.subr.mxu0 0.0
    %1751 = vmatpush1.msra.mxu0 0.0
    %1752 = vmatprep.subr.mxu0 0.0
    %1753 = vmatpush1.msra.mxu0 0.0
    %1754 = vmatprep.subr.mxu0 0.0
    %1755 = vmatpush1.msra.mxu0 0.0
    %1756 = vmatprep.subr.mxu0 0.0
    %1757 = vmatpush1.msra.mxu0 0.0
    %1758 = vmatprep.subr.mxu0 0.0
    %1759 = vmatpush1.msra.mxu0 0.0
    %1760 = vmatprep.subr.mxu0 0.0
    %1761 = vmatpush1.msra.mxu0 0.0
    %1762 = vmatprep.subr.mxu0 0.0
    %1763 = vmatpush1.msra.mxu0 0.0
    %1764 = vmatprep.subr.mxu0 0.0
    %1765 = vmatpush1.msra.mxu0 0.0
    %1766 = vmatprep.subr.mxu0 0.0
    %1767 = vmatpush1.msra.mxu0 0.0
    %1768 = vmatprep.subr.mxu0 0.0
    %1769 = vmatpush1.msra.mxu0 0.0
    %1770 = vmatprep.subr.mxu0 0.0
    %1771 = vmatpush1.msra.mxu0 0.0
    %1772 = vmatprep.subr.mxu0 0.0
    %1773 = vmatpush1.msra.mxu0 0.0
    %1774 = vmatprep.subr.mxu0 0.0
    %1775 = vmatpush1.msra.mxu0 0.0
    %1776 = vmatprep.subr.mxu0 0.0
    %1777 = vmatpush1.msra.mxu0 0.0
    %1778 = vmatprep.subr.mxu0 0.0
    %1779 = vmatpush1.msra.mxu0 0.0
    %1780 = vmatprep.subr.mxu0 0.0
    %1781 = vmatpush1.msra.mxu0 0.0
    %1782 = vmatprep.subr.mxu0 0.0
    %1783 = vmatpush1.msra.mxu0 0.0
    %1784 = vmatprep.subr.mxu0 0.0
    %1785 = vmatpush1.msra.mxu0 0.0
    %1786 = vmatprep.subr.mxu0 0.0
    %1787 = vmatpush1.msra.mxu0 0.0
    %1788 = vmatprep.subr.mxu0 0.0
    %1789 = vmatpush1.msra.mxu0 0.0
    %1790 = vmatprep.subr.mxu0 0.0
    %1791 = vmatpush1.msra.mxu0 0.0
    %1792 = vmatprep.subr.mxu0 0.0
    %1793 = vmatpush1.msra.mxu0 0.0
    %1794 = vmatprep.subr.mxu0 0.0
    %1795 = vmatpush1.msra.mxu0 0.0
    %1796 = vmatprep.subr.mxu0 0.0
    %1797 = vmatpush1.msra.mxu0 0.0
    %1798 = vmatprep.subr.mxu0 0.0
    %1799 = vmatpush1.msra.mxu0 0.0
    %1800 = vmatprep.mubr.f32.mxu0 0.0
    %1801 = vmatmul.mubr.f32.gmra.mrb[0].mxu0 %v1734
    %v1802 = vpop.f32.mrb[0].mxu0
    %v1803 = vadd.f32 0.0, %v1802
    %v1804 = vpop.f32.mrb[0].mxu0
    %1805 = vdwg.mxu0
    %v1806 = vadd.f32 %v1732, %v1803
    %v1807 = vxor.u32 %v1806, 2147483648
    %v1808 = vmul.f32 %v1807, 1.442695
    %v1809 = vpow.pop %v1808
    %v1810 = vadd.f32 %v1809, 1.0
    %v1811 = vrcp.pop %v1810
    %v1812 = vmul.f32 1.0, %v1811
    %v1813 = vld [vmem:[#allocation3 + $0x8] sm:$0x3]
    %1814 = vmatprep.subr.mxu0 0.0
    %1815 = vmatpush1.msra.mxu0 %v453
    %1816 = vmatprep.subr.mxu0 0.0
    %1817 = vmatpush1.msra.mxu0 %v454
    %1818 = vmatprep.subr.mxu0 0.0
    %1819 = vmatpush1.msra.mxu0 %v455
    %1820 = vmatprep.subr.mxu0 0.0
    %1821 = vmatpush1.msra.mxu0 %v456
    %1822 = vmatprep.subr.mxu0 0.0
    %1823 = vmatpush1.msra.mxu0 0.0
    %1824 = vmatprep.subr.mxu0 0.0
    %1825 = vmatpush1.msra.mxu0 0.0
    %1826 = vmatprep.subr.mxu0 0.0
    %1827 = vmatpush1.msra.mxu0 0.0
    %1828 = vmatprep.subr.mxu0 0.0
    %1829 = vmatpush1.msra.mxu0 0.0
    %1830 = vmatprep.subr.mxu0 0.0
    %1831 = vmatpush1.msra.mxu0 0.0
    %1832 = vmatprep.subr.mxu0 0.0
    %1833 = vmatpush1.msra.mxu0 0.0
    %1834 = vmatprep.subr.mxu0 0.0
    %1835 = vmatpush1.msra.mxu0 0.0
    %1836 = vmatprep.subr.mxu0 0.0
    %1837 = vmatpush1.msra.mxu0 0.0
    %1838 = vmatprep.subr.mxu0 0.0
    %1839 = vmatpush1.msra.mxu0 0.0
    %1840 = vmatprep.subr.mxu0 0.0
    %1841 = vmatpush1.msra.mxu0 0.0
    %1842 = vmatprep.subr.mxu0 0.0
    %1843 = vmatpush1.msra.mxu0 0.0
    %1844 = vmatprep.subr.mxu0 0.0
    %1845 = vmatpush1.msra.mxu0 0.0
    %1846 = vmatprep.subr.mxu0 0.0
    %1847 = vmatpush1.msra.mxu0 0.0
    %1848 = vmatprep.subr.mxu0 0.0
    %1849 = vmatpush1.msra.mxu0 0.0
    %1850 = vmatprep.subr.mxu0 0.0
    %1851 = vmatpush1.msra.mxu0 0.0
    %1852 = vmatprep.subr.mxu0 0.0
    %1853 = vmatpush1.msra.mxu0 0.0
    %1854 = vmatprep.subr.mxu0 0.0
    %1855 = vmatpush1.msra.mxu0 0.0
    %1856 = vmatprep.subr.mxu0 0.0
    %1857 = vmatpush1.msra.mxu0 0.0
    %1858 = vmatprep.subr.mxu0 0.0
    %1859 = vmatpush1.msra.mxu0 0.0
    %1860 = vmatprep.subr.mxu0 0.0
    %1861 = vmatpush1.msra.mxu0 0.0
    %1862 = vmatprep.subr.mxu0 0.0
    %1863 = vmatpush1.msra.mxu0 0.0
    %1864 = vmatprep.subr.mxu0 0.0
    %1865 = vmatpush1.msra.mxu0 0.0
    %1866 = vmatprep.subr.mxu0 0.0
    %1867 = vmatpush1.msra.mxu0 0.0
    %1868 = vmatprep.subr.mxu0 0.0
    %1869 = vmatpush1.msra.mxu0 0.0
    %1870 = vmatprep.subr.mxu0 0.0
    %1871 = vmatpush1.msra.mxu0 0.0
    %1872 = vmatprep.subr.mxu0 0.0
    %1873 = vmatpush1.msra.mxu0 0.0
    %1874 = vmatprep.subr.mxu0 0.0
    %1875 = vmatpush1.msra.mxu0 0.0
    %1876 = vmatprep.subr.mxu0 0.0
    %1877 = vmatpush1.msra.mxu0 0.0
    %1878 = vmatprep.mubr.f32.mxu0 0.0
    %1879 = vmatmul.mubr.f32.gmra.mrb[0].mxu0 %v1734
    %v1880 = vpop.f32.mrb[0].mxu0
    %v1881 = vadd.f32 0.0, %v1880
    %v1882 = vpop.f32.mrb[0].mxu0
    %1883 = vdwg.mxu0
    %v1884 = vadd.f32 %v1813, %v1881
    %v1885 = vxor.u32 %v1884, 2147483648
    %v1886 = vmul.f32 %v1885, 1.442695
    %v1887 = vpow.pop %v1886
    %v1888 = vadd.f32 %v1887, 1.0
    %v1889 = vrcp.pop %v1888
    %v1890 = vmul.f32 1.0, %v1889
    %v1891 = vld [vmem:[#allocation4 + $0x8] sm:$0x3]
    %1892 = vmatprep.subr.mxu0 0.0
    %1893 = vmatpush1.msra.mxu0 %v458
    %1894 = vmatprep.subr.mxu0 0.0
    %1895 = vmatpush1.msra.mxu0 %v459
    %1896 = vmatprep.subr.mxu0 0.0
    %1897 = vmatpush1.msra.mxu0 %v460
    %1898 = vmatprep.subr.mxu0 0.0
    %1899 = vmatpush1.msra.mxu0 %v461
    %1900 = vmatprep.subr.mxu0 0.0
    %1901 = vmatpush1.msra.mxu0 0.0
    %1902 = vmatprep.subr.mxu0 0.0
    %1903 = vmatpush1.msra.mxu0 0.0
    %1904 = vmatprep.subr.mxu0 0.0
    %1905 = vmatpush1.msra.mxu0 0.0
    %1906 = vmatprep.subr.mxu0 0.0
    %1907 = vmatpush1.msra.mxu0 0.0
    %1908 = vmatprep.subr.mxu0 0.0
    %1909 = vmatpush1.msra.mxu0 0.0
    %1910 = vmatprep.subr.mxu0 0.0
    %1911 = vmatpush1.msra.mxu0 0.0
    %1912 = vmatprep.subr.mxu0 0.0
    %1913 = vmatpush1.msra.mxu0 0.0
    %1914 = vmatprep.subr.mxu0 0.0
    %1915 = vmatpush1.msra.mxu0 0.0
    %1916 = vmatprep.subr.mxu0 0.0
    %1917 = vmatpush1.msra.mxu0 0.0
    %1918 = vmatprep.subr.mxu0 0.0
    %1919 = vmatpush1.msra.mxu0 0.0
    %1920 = vmatprep.subr.mxu0 0.0
    %1921 = vmatpush1.msra.mxu0 0.0
    %1922 = vmatprep.subr.mxu0 0.0
    %1923 = vmatpush1.msra.mxu0 0.0
    %1924 = vmatprep.subr.mxu0 0.0
    %1925 = vmatpush1.msra.mxu0 0.0
    %1926 = vmatprep.subr.mxu0 0.0
    %1927 = vmatpush1.msra.mxu0 0.0
    %1928 = vmatprep.subr.mxu0 0.0
    %1929 = vmatpush1.msra.mxu0 0.0
    %1930 = vmatprep.subr.mxu0 0.0
    %1931 = vmatpush1.msra.mxu0 0.0
    %1932 = vmatprep.subr.mxu0 0.0
    %1933 = vmatpush1.msra.mxu0 0.0
    %1934 = vmatprep.subr.mxu0 0.0
    %1935 = vmatpush1.msra.mxu0 0.0
    %1936 = vmatprep.subr.mxu0 0.0
    %1937 = vmatpush1.msra.mxu0 0.0
    %1938 = vmatprep.subr.mxu0 0.0
    %1939 = vmatpush1.msra.mxu0 0.0
    %1940 = vmatprep.subr.mxu0 0.0
    %1941 = vmatpush1.msra.mxu0 0.0
    %1942 = vmatprep.subr.mxu0 0.0
    %1943 = vmatpush1.msra.mxu0 0.0
    %1944 = vmatprep.subr.mxu0 0.0
    %1945 = vmatpush1.msra.mxu0 0.0
    %1946 = vmatprep.subr.mxu0 0.0
    %1947 = vmatpush1.msra.mxu0 0.0
    %1948 = vmatprep.subr.mxu0 0.0
    %1949 = vmatpush1.msra.mxu0 0.0
    %1950 = vmatprep.subr.mxu0 0.0
    %1951 = vmatpush1.msra.mxu0 0.0
    %1952 = vmatprep.subr.mxu0 0.0
    %1953 = vmatpush1.msra.mxu0 0.0
    %1954 = vmatprep.subr.mxu0 0.0
    %1955 = vmatpush1.msra.mxu0 0.0
    %1956 = vmatprep.mubr.f32.mxu0 0.0
    %1957 = vmatmul.mubr.f32.gmra.mrb[0].mxu0 %v1734
    %v1958 = vpop.f32.mrb[0].mxu0
    %v1959 = vadd.f32 0.0, %v1958
    %v1960 = vpop.f32.mrb[0].mxu0
    %1961 = vdwg.mxu0
    %v1962 = vadd.f32 %v1891, %v1959
    %v1963 = vtanh.pop %v1962
    %v1964 = vld [vmem:[#allocation5 + $0x8] sm:$0x3]
    %1965 = vmatprep.subr.mxu0 0.0
    %1966 = vmatpush1.msra.mxu0 %v463
    %1967 = vmatprep.subr.mxu0 0.0
    %1968 = vmatpush1.msra.mxu0 %v464
    %1969 = vmatprep.subr.mxu0 0.0
    %1970 = vmatpush1.msra.mxu0 %v465
    %1971 = vmatprep.subr.mxu0 0.0
    %1972 = vmatpush1.msra.mxu0 %v466
    %1973 = vmatprep.subr.mxu0 0.0
    %1974 = vmatpush1.msra.mxu0 0.0
    %1975 = vmatprep.subr.mxu0 0.0
    %1976 = vmatpush1.msra.mxu0 0.0
    %1977 = vmatprep.subr.mxu0 0.0
    %1978 = vmatpush1.msra.mxu0 0.0
    %1979 = vmatprep.subr.mxu0 0.0
    %1980 = vmatpush1.msra.mxu0 0.0
    %1981 = vmatprep.subr.mxu0 0.0
    %1982 = vmatpush1.msra.mxu0 0.0
    %1983 = vmatprep.subr.mxu0 0.0
    %1984 = vmatpush1.msra.mxu0 0.0
    %1985 = vmatprep.subr.mxu0 0.0
    %1986 = vmatpush1.msra.mxu0 0.0
    %1987 = vmatprep.subr.mxu0 0.0
    %1988 = vmatpush1.msra.mxu0 0.0
    %1989 = vmatprep.subr.mxu0 0.0
    %1990 = vmatpush1.msra.mxu0 0.0
    %1991 = vmatprep.subr.mxu0 0.0
    %1992 = vmatpush1.msra.mxu0 0.0
    %1993 = vmatprep.subr.mxu0 0.0
    %1994 = vmatpush1.msra.mxu0 0.0
    %1995 = vmatprep.subr.mxu0 0.0
    %1996 = vmatpush1.msra.mxu0 0.0
    %1997 = vmatprep.subr.mxu0 0.0
    %1998 = vmatpush1.msra.mxu0 0.0
    %1999 = vmatprep.subr.mxu0 0.0
    %2000 = vmatpush1.msra.mxu0 0.0
    %2001 = vmatprep.subr.mxu0 0.0
    %2002 = vmatpush1.msra.mxu0 0.0
    %2003 = vmatprep.subr.mxu0 0.0
    %2004 = vmatpush1.msra.mxu0 0.0
    %2005 = vmatprep.subr.mxu0 0.0
    %2006 = vmatpush1.msra.mxu0 0.0
    %2007 = vmatprep.subr.mxu0 0.0
    %2008 = vmatpush1.msra.mxu0 0.0
    %2009 = vmatprep.subr.mxu0 0.0
    %2010 = vmatpush1.msra.mxu0 0.0
    %2011 = vmatprep.subr.mxu0 0.0
    %2012 = vmatpush1.msra.mxu0 0.0
    %2013 = vmatprep.subr.mxu0 0.0
    %2014 = vmatpush1.msra.mxu0 0.0
    %2015 = vmatprep.subr.mxu0 0.0
    %2016 = vmatpush1.msra.mxu0 0.0
    %2017 = vmatprep.subr.mxu0 0.0
    %2018 = vmatpush1.msra.mxu0 0.0
    %2019 = vmatprep.subr.mxu0 0.0
    %2020 = vmatpush1.msra.mxu0 0.0
    %2021 = vmatprep.subr.mxu0 0.0
    %2022 = vmatpush1.msra.mxu0 0.0
    %2023 = vmatprep.subr.mxu0 0.0
    %2024 = vmatpush1.msra.mxu0 0.0
    %2025 = vmatprep.subr.mxu0 0.0
    %2026 = vmatpush1.msra.mxu0 0.0
    %2027 = vmatprep.subr.mxu0 0.0
    %2028 = vmatpush1.msra.mxu0 0.0
    %2029 = vmatprep.mubr.f32.mxu0 0.0
    %2030 = vmatmul.mubr.f32.gmra.mrb[0].mxu0 %v1734
    %v2031 = vpop.f32.mrb[0].mxu0
    %v2032 = vadd.f32 0.0, %v2031
    %v2033 = vpop.f32.mrb[0].mxu0
    %2034 = vdwg.mxu0
    %v2035 = vadd.f32 %v1964, %v2032
    %v2036 = vxor.u32 %v2035, 2147483648
    %v2037 = vmul.f32 %v2036, 1.442695
    %v2038 = vpow.pop %v2037
    %v2039 = vadd.f32 %v2038, 1.0
    %v2040 = vrcp.pop %v2039
    %v2041 = vmul.f32 1.0, %v2040
    %v2042 = vmul.f32 %v1890, %v1728
    %v2043 = vmul.f32 %v1812, %v1963
    %v2044 = vadd.f32 %v2042, %v2043
    %v2045 = vtanh.pop %v2044
    %v2046 = vmul.f32 %v2041, %v2045
    %2047 = vst.msk [vmem:[#allocation6 + $0x8] sm:$0x3] %vm782, %v2046
    %v2048 = vld [vmem:[#allocation2 + $0xa] sm:$0x3]
    %v2050 = vsel %vm181, %v2046, 0
    %2052 = vmatprep.subr.mxu0 0.0
    %2053 = vmatpush1.msra.mxu0 %v448
    %2054 = vmatprep.subr.mxu0 0.0
    %2055 = vmatpush1.msra.mxu0 %v449
    %2056 = vmatprep.subr.mxu0 0.0
    %2057 = vmatpush1.msra.mxu0 %v450
    %2058 = vmatprep.subr.mxu0 0.0
    %2059 = vmatpush1.msra.mxu0 %v451
    %2060 = vmatprep.subr.mxu0 0.0
    %2061 = vmatpush1.msra.mxu0 0.0
    %2062 = vmatprep.subr.mxu0 0.0
    %2063 = vmatpush1.msra.mxu0 0.0
    %2064 = vmatprep.subr.mxu0 0.0
    %2065 = vmatpush1.msra.mxu0 0.0
    %2066 = vmatprep.subr.mxu0 0.0
    %2067 = vmatpush1.msra.mxu0 0.0
    %2068 = vmatprep.subr.mxu0 0.0
    %2069 = vmatpush1.msra.mxu0 0.0
    %2070 = vmatprep.subr.mxu0 0.0
    %2071 = vmatpush1.msra.mxu0 0.0
    %2072 = vmatprep.subr.mxu0 0.0
    %2073 = vmatpush1.msra.mxu0 0.0
    %2074 = vmatprep.subr.mxu0 0.0
    %2075 = vmatpush1.msra.mxu0 0.0
    %2076 = vmatprep.subr.mxu0 0.0
    %2077 = vmatpush1.msra.mxu0 0.0
    %2078 = vmatprep.subr.mxu0 0.0
    %2079 = vmatpush1.msra.mxu0 0.0
    %2080 = vmatprep.subr.mxu0 0.0
    %2081 = vmatpush1.msra.mxu0 0.0
    %2082 = vmatprep.subr.mxu0 0.0
    %2083 = vmatpush1.msra.mxu0 0.0
    %2084 = vmatprep.subr.mxu0 0.0
    %2085 = vmatpush1.msra.mxu0 0.0
    %2086 = vmatprep.subr.mxu0 0.0
    %2087 = vmatpush1.msra.mxu0 0.0
    %2088 = vmatprep.subr.mxu0 0.0
    %2089 = vmatpush1.msra.mxu0 0.0
    %2090 = vmatprep.subr.mxu0 0.0
    %2091 = vmatpush1.msra.mxu0 0.0
    %2092 = vmatprep.subr.mxu0 0.0
    %2093 = vmatpush1.msra.mxu0 0.0
    %2094 = vmatprep.subr.mxu0 0.0
    %2095 = vmatpush1.msra.mxu0 0.0
    %2096 = vmatprep.subr.mxu0 0.0
    %2097 = vmatpush1.msra.mxu0 0.0
    %2098 = vmatprep.subr.mxu0 0.0
    %2099 = vmatpush1.msra.mxu0 0.0
    %2100 = vmatprep.subr.mxu0 0.0
    %2101 = vmatpush1.msra.mxu0 0.0
    %2102 = vmatprep.subr.mxu0 0.0
    %2103 = vmatpush1.msra.mxu0 0.0
    %2104 = vmatprep.subr.mxu0 0.0
    %2105 = vmatpush1.msra.mxu0 0.0
    %2106 = vmatprep.subr.mxu0 0.0
    %2107 = vmatpush1.msra.mxu0 0.0
    %2108 = vmatprep.subr.mxu0 0.0
    %2109 = vmatpush1.msra.mxu0 0.0
    %2110 = vmatprep.subr.mxu0 0.0
    %2111 = vmatpush1.msra.mxu0 0.0
    %2112 = vmatprep.subr.mxu0 0.0
    %2113 = vmatpush1.msra.mxu0 0.0
    %2114 = vmatprep.subr.mxu0 0.0
    %2115 = vmatpush1.msra.mxu0 0.0
    %2116 = vmatprep.mubr.f32.mxu0 0.0
    %2117 = vmatmul.mubr.f32.gmra.mrb[0].mxu0 %v2050
    %v2118 = vpop.f32.mrb[0].mxu0
    %v2119 = vadd.f32 0.0, %v2118
    %v2120 = vpop.f32.mrb[0].mxu0
    %2121 = vdwg.mxu0
    %v2122 = vadd.f32 %v2048, %v2119
    %v2123 = vxor.u32 %v2122, 2147483648
    %v2124 = vmul.f32 %v2123, 1.442695
    %v2125 = vpow.pop %v2124
    %v2126 = vadd.f32 %v2125, 1.0
    %v2127 = vrcp.pop %v2126
    %v2128 = vmul.f32 1.0, %v2127
    %v2129 = vld [vmem:[#allocation3 + $0xa] sm:$0x3]
    %2130 = vmatprep.subr.mxu0 0.0
    %2131 = vmatpush1.msra.mxu0 %v453
    %2132 = vmatprep.subr.mxu0 0.0
    %2133 = vmatpush1.msra.mxu0 %v454
    %2134 = vmatprep.subr.mxu0 0.0
    %2135 = vmatpush1.msra.mxu0 %v455
    %2136 = vmatprep.subr.mxu0 0.0
    %2137 = vmatpush1.msra.mxu0 %v456
    %2138 = vmatprep.subr.mxu0 0.0
    %2139 = vmatpush1.msra.mxu0 0.0
    %2140 = vmatprep.subr.mxu0 0.0
    %2141 = vmatpush1.msra.mxu0 0.0
    %2142 = vmatprep.subr.mxu0 0.0
    %2143 = vmatpush1.msra.mxu0 0.0
    %2144 = vmatprep.subr.mxu0 0.0
    %2145 = vmatpush1.msra.mxu0 0.0
    %2146 = vmatprep.subr.mxu0 0.0
    %2147 = vmatpush1.msra.mxu0 0.0
    %2148 = vmatprep.subr.mxu0 0.0
    %2149 = vmatpush1.msra.mxu0 0.0
    %2150 = vmatprep.subr.mxu0 0.0
    %2151 = vmatpush1.msra.mxu0 0.0
    %2152 = vmatprep.subr.mxu0 0.0
    %2153 = vmatpush1.msra.mxu0 0.0
    %2154 = vmatprep.subr.mxu0 0.0
    %2155 = vmatpush1.msra.mxu0 0.0
    %2156 = vmatprep.subr.mxu0 0.0
    %2157 = vmatpush1.msra.mxu0 0.0
    %2158 = vmatprep.subr.mxu0 0.0
    %2159 = vmatpush1.msra.mxu0 0.0
    %2160 = vmatprep.subr.mxu0 0.0
    %2161 = vmatpush1.msra.mxu0 0.0
    %2162 = vmatprep.subr.mxu0 0.0
    %2163 = vmatpush1.msra.mxu0 0.0
    %2164 = vmatprep.subr.mxu0 0.0
    %2165 = vmatpush1.msra.mxu0 0.0
    %2166 = vmatprep.subr.mxu0 0.0
    %2167 = vmatpush1.msra.mxu0 0.0
    %2168 = vmatprep.subr.mxu0 0.0
    %2169 = vmatpush1.msra.mxu0 0.0
    %2170 = vmatprep.subr.mxu0 0.0
    %2171 = vmatpush1.msra.mxu0 0.0
    %2172 = vmatprep.subr.mxu0 0.0
    %2173 = vmatpush1.msra.mxu0 0.0
    %2174 = vmatprep.subr.mxu0 0.0
    %2175 = vmatpush1.msra.mxu0 0.0
    %2176 = vmatprep.subr.mxu0 0.0
    %2177 = vmatpush1.msra.mxu0 0.0
    %2178 = vmatprep.subr.mxu0 0.0
    %2179 = vmatpush1.msra.mxu0 0.0
    %2180 = vmatprep.subr.mxu0 0.0
    %2181 = vmatpush1.msra.mxu0 0.0
    %2182 = vmatprep.subr.mxu0 0.0
    %2183 = vmatpush1.msra.mxu0 0.0
    %2184 = vmatprep.subr.mxu0 0.0
    %2185 = vmatpush1.msra.mxu0 0.0
    %2186 = vmatprep.subr.mxu0 0.0
    %2187 = vmatpush1.msra.mxu0 0.0
    %2188 = vmatprep.subr.mxu0 0.0
    %2189 = vmatpush1.msra.mxu0 0.0
    %2190 = vmatprep.subr.mxu0 0.0
    %2191 = vmatpush1.msra.mxu0 0.0
    %2192 = vmatprep.subr.mxu0 0.0
    %2193 = vmatpush1.msra.mxu0 0.0
    %2194 = vmatprep.mubr.f32.mxu0 0.0
    %2195 = vmatmul.mubr.f32.gmra.mrb[0].mxu0 %v2050
    %v2196 = vpop.f32.mrb[0].mxu0
    %v2197 = vadd.f32 0.0, %v2196
    %v2198 = vpop.f32.mrb[0].mxu0
    %2199 = vdwg.mxu0
    %v2200 = vadd.f32 %v2129, %v2197
    %v2201 = vxor.u32 %v2200, 2147483648
    %v2202 = vmul.f32 %v2201, 1.442695
    %v2203 = vpow.pop %v2202
    %v2204 = vadd.f32 %v2203, 1.0
    %v2205 = vrcp.pop %v2204
    %v2206 = vmul.f32 1.0, %v2205
    %v2207 = vld [vmem:[#allocation4 + $0xa] sm:$0x3]
    %2208 = vmatprep.subr.mxu0 0.0
    %2209 = vmatpush1.msra.mxu0 %v458
    %2210 = vmatprep.subr.mxu0 0.0
    %2211 = vmatpush1.msra.mxu0 %v459
    %2212 = vmatprep.subr.mxu0 0.0
    %2213 = vmatpush1.msra.mxu0 %v460
    %2214 = vmatprep.subr.mxu0 0.0
    %2215 = vmatpush1.msra.mxu0 %v461
    %2216 = vmatprep.subr.mxu0 0.0
    %2217 = vmatpush1.msra.mxu0 0.0
    %2218 = vmatprep.subr.mxu0 0.0
    %2219 = vmatpush1.msra.mxu0 0.0
    %2220 = vmatprep.subr.mxu0 0.0
    %2221 = vmatpush1.msra.mxu0 0.0
    %2222 = vmatprep.subr.mxu0 0.0
    %2223 = vmatpush1.msra.mxu0 0.0
    %2224 = vmatprep.subr.mxu0 0.0
    %2225 = vmatpush1.msra.mxu0 0.0
    %2226 = vmatprep.subr.mxu0 0.0
    %2227 = vmatpush1.msra.mxu0 0.0
    %2228 = vmatprep.subr.mxu0 0.0
    %2229 = vmatpush1.msra.mxu0 0.0
    %2230 = vmatprep.subr.mxu0 0.0
    %2231 = vmatpush1.msra.mxu0 0.0
    %2232 = vmatprep.subr.mxu0 0.0
    %2233 = vmatpush1.msra.mxu0 0.0
    %2234 = vmatprep.subr.mxu0 0.0
    %2235 = vmatpush1.msra.mxu0 0.0
    %2236 = vmatprep.subr.mxu0 0.0
    %2237 = vmatpush1.msra.mxu0 0.0
    %2238 = vmatprep.subr.mxu0 0.0
    %2239 = vmatpush1.msra.mxu0 0.0
    %2240 = vmatprep.subr.mxu0 0.0
    %2241 = vmatpush1.msra.mxu0 0.0
    %2242 = vmatprep.subr.mxu0 0.0
    %2243 = vmatpush1.msra.mxu0 0.0
    %2244 = vmatprep.subr.mxu0 0.0
    %2245 = vmatpush1.msra.mxu0 0.0
    %2246 = vmatprep.subr.mxu0 0.0
    %2247 = vmatpush1.msra.mxu0 0.0
    %2248 = vmatprep.subr.mxu0 0.0
    %2249 = vmatpush1.msra.mxu0 0.0
    %2250 = vmatprep.subr.mxu0 0.0
    %2251 = vmatpush1.msra.mxu0 0.0
    %2252 = vmatprep.subr.mxu0 0.0
    %2253 = vmatpush1.msra.mxu0 0.0
    %2254 = vmatprep.subr.mxu0 0.0
    %2255 = vmatpush1.msra.mxu0 0.0
    %2256 = vmatprep.subr.mxu0 0.0
    %2257 = vmatpush1.msra.mxu0 0.0
    %2258 = vmatprep.subr.mxu0 0.0
    %2259 = vmatpush1.msra.mxu0 0.0
    %2260 = vmatprep.subr.mxu0 0.0
    %2261 = vmatpush1.msra.mxu0 0.0
    %2262 = vmatprep.subr.mxu0 0.0
    %2263 = vmatpush1.msra.mxu0 0.0
    %2264 = vmatprep.subr.mxu0 0.0
    %2265 = vmatpush1.msra.mxu0 0.0
    %2266 = vmatprep.subr.mxu0 0.0
    %2267 = vmatpush1.msra.mxu0 0.0
    %2268 = vmatprep.subr.mxu0 0.0
    %2269 = vmatpush1.msra.mxu0 0.0
    %2270 = vmatprep.subr.mxu0 0.0
    %2271 = vmatpush1.msra.mxu0 0.0
    %2272 = vmatprep.mubr.f32.mxu0 0.0
    %2273 = vmatmul.mubr.f32.gmra.mrb[0].mxu0 %v2050
    %v2274 = vpop.f32.mrb[0].mxu0
    %v2275 = vadd.f32 0.0, %v2274
    %v2276 = vpop.f32.mrb[0].mxu0
    %2277 = vdwg.mxu0
    %v2278 = vadd.f32 %v2207, %v2275
    %v2279 = vtanh.pop %v2278
    %v2280 = vld [vmem:[#allocation5 + $0xa] sm:$0x3]
    %2281 = vmatprep.subr.mxu0 0.0
    %2282 = vmatpush1.msra.mxu0 %v463
    %2283 = vmatprep.subr.mxu0 0.0
    %2284 = vmatpush1.msra.mxu0 %v464
    %2285 = vmatprep.subr.mxu0 0.0
    %2286 = vmatpush1.msra.mxu0 %v465
    %2287 = vmatprep.subr.mxu0 0.0
    %2288 = vmatpush1.msra.mxu0 %v466
    %2289 = vmatprep.subr.mxu0 0.0
    %2290 = vmatpush1.msra.mxu0 0.0
    %2291 = vmatprep.subr.mxu0 0.0
    %2292 = vmatpush1.msra.mxu0 0.0
    %2293 = vmatprep.subr.mxu0 0.0
    %2294 = vmatpush1.msra.mxu0 0.0
    %2295 = vmatprep.subr.mxu0 0.0
    %2296 = vmatpush1.msra.mxu0 0.0
    %2297 = vmatprep.subr.mxu0 0.0
    %2298 = vmatpush1.msra.mxu0 0.0
    %2299 = vmatprep.subr.mxu0 0.0
    %2300 = vmatpush1.msra.mxu0 0.0
    %2301 = vmatprep.subr.mxu0 0.0
    %2302 = vmatpush1.msra.mxu0 0.0
    %2303 = vmatprep.subr.mxu0 0.0
    %2304 = vmatpush1.msra.mxu0 0.0
    %2305 = vmatprep.subr.mxu0 0.0
    %2306 = vmatpush1.msra.mxu0 0.0
    %2307 = vmatprep.subr.mxu0 0.0
    %2308 = vmatpush1.msra.mxu0 0.0
    %2309 = vmatprep.subr.mxu0 0.0
    %2310 = vmatpush1.msra.mxu0 0.0
    %2311 = vmatprep.subr.mxu0 0.0
    %2312 = vmatpush1.msra.mxu0 0.0
    %2313 = vmatprep.subr.mxu0 0.0
    %2314 = vmatpush1.msra.mxu0 0.0
    %2315 = vmatprep.subr.mxu0 0.0
    %2316 = vmatpush1.msra.mxu0 0.0
    %2317 = vmatprep.subr.mxu0 0.0
    %2318 = vmatpush1.msra.mxu0 0.0
    %2319 = vmatprep.subr.mxu0 0.0
    %2320 = vmatpush1.msra.mxu0 0.0
    %2321 = vmatprep.subr.mxu0 0.0
    %2322 = vmatpush1.msra.mxu0 0.0
    %2323 = vmatprep.subr.mxu0 0.0
    %2324 = vmatpush1.msra.mxu0 0.0
    %2325 = vmatprep.subr.mxu0 0.0
    %2326 = vmatpush1.msra.mxu0 0.0
    %2327 = vmatprep.subr.mxu0 0.0
    %2328 = vmatpush1.msra.mxu0 0.0
    %2329 = vmatprep.subr.mxu0 0.0
    %2330 = vmatpush1.msra.mxu0 0.0
    %2331 = vmatprep.subr.mxu0 0.0
    %2332 = vmatpush1.msra.mxu0 0.0
    %2333 = vmatprep.subr.mxu0 0.0
    %2334 = vmatpush1.msra.mxu0 0.0
    %2335 = vmatprep.subr.mxu0 0.0
    %2336 = vmatpush1.msra.mxu0 0.0
    %2337 = vmatprep.subr.mxu0 0.0
    %2338 = vmatpush1.msra.mxu0 0.0
    %2339 = vmatprep.subr.mxu0 0.0
    %2340 = vmatpush1.msra.mxu0 0.0
    %2341 = vmatprep.subr.mxu0 0.0
    %2342 = vmatpush1.msra.mxu0 0.0
    %2343 = vmatprep.subr.mxu0 0.0
    %2344 = vmatpush1.msra.mxu0 0.0
    %2345 = vmatprep.mubr.f32.mxu0 0.0
    %2346 = vmatmul.mubr.f32.gmra.mrb[0].mxu0 %v2050
    %v2347 = vpop.f32.mrb[0].mxu0
    %v2348 = vadd.f32 0.0, %v2347
    %v2349 = vpop.f32.mrb[0].mxu0
    %2350 = vdwg.mxu0
    %v2351 = vadd.f32 %v2280, %v2348
    %v2352 = vxor.u32 %v2351, 2147483648
    %v2353 = vmul.f32 %v2352, 1.442695
    %v2354 = vpow.pop %v2353
    %v2355 = vadd.f32 %v2354, 1.0
    %v2356 = vrcp.pop %v2355
    %v2357 = vmul.f32 1.0, %v2356
    %v2358 = vmul.f32 %v2206, %v2044
    %v2359 = vmul.f32 %v2128, %v2279
    %v2360 = vadd.f32 %v2358, %v2359
    %v2361 = vtanh.pop %v2360
    %v2362 = vmul.f32 %v2357, %v2361
    %2363 = vst.msk [vmem:[#allocation6 + $0xa] sm:$0x3] %vm782, %v2362
    %v2364 = vld [vmem:[#allocation2 + $0xc] sm:$0x3]
    %v2366 = vsel %vm181, %v2362, 0
    %2368 = vmatprep.subr.mxu0 0.0
    %2369 = vmatpush1.msra.mxu0 %v448
    %2370 = vmatprep.subr.mxu0 0.0
    %2371 = vmatpush1.msra.mxu0 %v449
    %2372 = vmatprep.subr.mxu0 0.0
    %2373 = vmatpush1.msra.mxu0 %v450
    %2374 = vmatprep.subr.mxu0 0.0
    %2375 = vmatpush1.msra.mxu0 %v451
    %2376 = vmatprep.subr.mxu0 0.0
    %2377 = vmatpush1.msra.mxu0 0.0
    %2378 = vmatprep.subr.mxu0 0.0
    %2379 = vmatpush1.msra.mxu0 0.0
    %2380 = vmatprep.subr.mxu0 0.0
    %2381 = vmatpush1.msra.mxu0 0.0
    %2382 = vmatprep.subr.mxu0 0.0
    %2383 = vmatpush1.msra.mxu0 0.0
    %2384 = vmatprep.subr.mxu0 0.0
    %2385 = vmatpush1.msra.mxu0 0.0
    %2386 = vmatprep.subr.mxu0 0.0
    %2387 = vmatpush1.msra.mxu0 0.0
    %2388 = vmatprep.subr.mxu0 0.0
    %2389 = vmatpush1.msra.mxu0 0.0
    %2390 = vmatprep.subr.mxu0 0.0
    %2391 = vmatpush1.msra.mxu0 0.0
    %2392 = vmatprep.subr.mxu0 0.0
    %2393 = vmatpush1.msra.mxu0 0.0
    %2394 = vmatprep.subr.mxu0 0.0
    %2395 = vmatpush1.msra.mxu0 0.0
    %2396 = vmatprep.subr.mxu0 0.0
    %2397 = vmatpush1.msra.mxu0 0.0
    %2398 = vmatprep.subr.mxu0 0.0
    %2399 = vmatpush1.msra.mxu0 0.0
    %2400 = vmatprep.subr.mxu0 0.0
    %2401 = vmatpush1.msra.mxu0 0.0
    %2402 = vmatprep.subr.mxu0 0.0
    %2403 = vmatpush1.msra.mxu0 0.0
    %2404 = vmatprep.subr.mxu0 0.0
    %2405 = vmatpush1.msra.mxu0 0.0
    %2406 = vmatprep.subr.mxu0 0.0
    %2407 = vmatpush1.msra.mxu0 0.0
    %2408 = vmatprep.subr.mxu0 0.0
    %2409 = vmatpush1.msra.mxu0 0.0
    %2410 = vmatprep.subr.mxu0 0.0
    %2411 = vmatpush1.msra.mxu0 0.0
    %2412 = vmatprep.subr.mxu0 0.0
    %2413 = vmatpush1.msra.mxu0 0.0
    %2414 = vmatprep.subr.mxu0 0.0
    %2415 = vmatpush1.msra.mxu0 0.0
    %2416 = vmatprep.subr.mxu0 0.0
    %2417 = vmatpush1.msra.mxu0 0.0
    %2418 = vmatprep.subr.mxu0 0.0
    %2419 = vmatpush1.msra.mxu0 0.0
    %2420 = vmatprep.subr.mxu0 0.0
    %2421 = vmatpush1.msra.mxu0 0.0
    %2422 = vmatprep.subr.mxu0 0.0
    %2423 = vmatpush1.msra.mxu0 0.0
    %2424 = vmatprep.subr.mxu0 0.0
    %2425 = vmatpush1.msra.mxu0 0.0
    %2426 = vmatprep.subr.mxu0 0.0
    %2427 = vmatpush1.msra.mxu0 0.0
    %2428 = vmatprep.subr.mxu0 0.0
    %2429 = vmatpush1.msra.mxu0 0.0
    %2430 = vmatprep.subr.mxu0 0.0
    %2431 = vmatpush1.msra.mxu0 0.0
    %2432 = vmatprep.mubr.f32.mxu0 0.0
    %2433 = vmatmul.mubr.f32.gmra.mrb[0].mxu0 %v2366
    %v2434 = vpop.f32.mrb[0].mxu0
    %v2435 = vadd.f32 0.0, %v2434
    %v2436 = vpop.f32.mrb[0].mxu0
    %2437 = vdwg.mxu0
    %v2438 = vadd.f32 %v2364, %v2435
    %v2439 = vxor.u32 %v2438, 2147483648
    %v2440 = vmul.f32 %v2439, 1.442695
    %v2441 = vpow.pop %v2440
    %v2442 = vadd.f32 %v2441, 1.0
    %v2443 = vrcp.pop %v2442
    %v2444 = vmul.f32 1.0, %v2443
    %v2445 = vld [vmem:[#allocation3 + $0xc] sm:$0x3]
    %2446 = vmatprep.subr.mxu0 0.0
    %2447 = vmatpush1.msra.mxu0 %v453
    %2448 = vmatprep.subr.mxu0 0.0
    %2449 = vmatpush1.msra.mxu0 %v454
    %2450 = vmatprep.subr.mxu0 0.0
    %2451 = vmatpush1.msra.mxu0 %v455
    %2452 = vmatprep.subr.mxu0 0.0
    %2453 = vmatpush1.msra.mxu0 %v456
    %2454 = vmatprep.subr.mxu0 0.0
    %2455 = vmatpush1.msra.mxu0 0.0
    %2456 = vmatprep.subr.mxu0 0.0
    %2457 = vmatpush1.msra.mxu0 0.0
    %2458 = vmatprep.subr.mxu0 0.0
    %2459 = vmatpush1.msra.mxu0 0.0
    %2460 = vmatprep.subr.mxu0 0.0
    %2461 = vmatpush1.msra.mxu0 0.0
    %2462 = vmatprep.subr.mxu0 0.0
    %2463 = vmatpush1.msra.mxu0 0.0
    %2464 = vmatprep.subr.mxu0 0.0
    %2465 = vmatpush1.msra.mxu0 0.0
    %2466 = vmatprep.subr.mxu0 0.0
    %2467 = vmatpush1.msra.mxu0 0.0
    %2468 = vmatprep.subr.mxu0 0.0
    %2469 = vmatpush1.msra.mxu0 0.0
    %2470 = vmatprep.subr.mxu0 0.0
    %2471 = vmatpush1.msra.mxu0 0.0
    %2472 = vmatprep.subr.mxu0 0.0
    %2473 = vmatpush1.msra.mxu0 0.0
    %2474 = vmatprep.subr.mxu0 0.0
    %2475 = vmatpush1.msra.mxu0 0.0
    %2476 = vmatprep.subr.mxu0 0.0
    %2477 = vmatpush1.msra.mxu0 0.0
    %2478 = vmatprep.subr.mxu0 0.0
    %2479 = vmatpush1.msra.mxu0 0.0
    %2480 = vmatprep.subr.mxu0 0.0
    %2481 = vmatpush1.msra.mxu0 0.0
    %2482 = vmatprep.subr.mxu0 0.0
    %2483 = vmatpush1.msra.mxu0 0.0
    %2484 = vmatprep.subr.mxu0 0.0
    %2485 = vmatpush1.msra.mxu0 0.0
    %2486 = vmatprep.subr.mxu0 0.0
    %2487 = vmatpush1.msra.mxu0 0.0
    %2488 = vmatprep.subr.mxu0 0.0
    %2489 = vmatpush1.msra.mxu0 0.0
    %2490 = vmatprep.subr.mxu0 0.0
    %2491 = vmatpush1.msra.mxu0 0.0
    %2492 = vmatprep.subr.mxu0 0.0
    %2493 = vmatpush1.msra.mxu0 0.0
    %2494 = vmatprep.subr.mxu0 0.0
    %2495 = vmatpush1.msra.mxu0 0.0
    %2496 = vmatprep.subr.mxu0 0.0
    %2497 = vmatpush1.msra.mxu0 0.0
    %2498 = vmatprep.subr.mxu0 0.0
    %2499 = vmatpush1.msra.mxu0 0.0
    %2500 = vmatprep.subr.mxu0 0.0
    %2501 = vmatpush1.msra.mxu0 0.0
    %2502 = vmatprep.subr.mxu0 0.0
    %2503 = vmatpush1.msra.mxu0 0.0
    %2504 = vmatprep.subr.mxu0 0.0
    %2505 = vmatpush1.msra.mxu0 0.0
    %2506 = vmatprep.subr.mxu0 0.0
    %2507 = vmatpush1.msra.mxu0 0.0
    %2508 = vmatprep.subr.mxu0 0.0
    %2509 = vmatpush1.msra.mxu0 0.0
    %2510 = vmatprep.mubr.f32.mxu0 0.0
    %2511 = vmatmul.mubr.f32.gmra.mrb[0].mxu0 %v2366
    %v2512 = vpop.f32.mrb[0].mxu0
    %v2513 = vadd.f32 0.0, %v2512
    %v2514 = vpop.f32.mrb[0].mxu0
    %2515 = vdwg.mxu0
    %v2516 = vadd.f32 %v2445, %v2513
    %v2517 = vxor.u32 %v2516, 2147483648
    %v2518 = vmul.f32 %v2517, 1.442695
    %v2519 = vpow.pop %v2518
    %v2520 = vadd.f32 %v2519, 1.0
    %v2521 = vrcp.pop %v2520
    %v2522 = vmul.f32 1.0, %v2521
    %v2523 = vld [vmem:[#allocation4 + $0xc] sm:$0x3]
    %2524 = vmatprep.subr.mxu0 0.0
    %2525 = vmatpush1.msra.mxu0 %v458
    %2526 = vmatprep.subr.mxu0 0.0
    %2527 = vmatpush1.msra.mxu0 %v459
    %2528 = vmatprep.subr.mxu0 0.0
    %2529 = vmatpush1.msra.mxu0 %v460
    %2530 = vmatprep.subr.mxu0 0.0
    %2531 = vmatpush1.msra.mxu0 %v461
    %2532 = vmatprep.subr.mxu0 0.0
    %2533 = vmatpush1.msra.mxu0 0.0
    %2534 = vmatprep.subr.mxu0 0.0
    %2535 = vmatpush1.msra.mxu0 0.0
    %2536 = vmatprep.subr.mxu0 0.0
    %2537 = vmatpush1.msra.mxu0 0.0
    %2538 = vmatprep.subr.mxu0 0.0
    %2539 = vmatpush1.msra.mxu0 0.0
    %2540 = vmatprep.subr.mxu0 0.0
    %2541 = vmatpush1.msra.mxu0 0.0
    %2542 = vmatprep.subr.mxu0 0.0
    %2543 = vmatpush1.msra.mxu0 0.0
    %2544 = vmatprep.subr.mxu0 0.0
    %2545 = vmatpush1.msra.mxu0 0.0
    %2546 = vmatprep.subr.mxu0 0.0
    %2547 = vmatpush1.msra.mxu0 0.0
    %2548 = vmatprep.subr.mxu0 0.0
    %2549 = vmatpush1.msra.mxu0 0.0
    %2550 = vmatprep.subr.mxu0 0.0
    %2551 = vmatpush1.msra.mxu0 0.0
    %2552 = vmatprep.subr.mxu0 0.0
    %2553 = vmatpush1.msra.mxu0 0.0
    %2554 = vmatprep.subr.mxu0 0.0
    %2555 = vmatpush1.msra.mxu0 0.0
    %2556 = vmatprep.subr.mxu0 0.0
    %2557 = vmatpush1.msra.mxu0 0.0
    %2558 = vmatprep.subr.mxu0 0.0
    %2559 = vmatpush1.msra.mxu0 0.0
    %2560 = vmatprep.subr.mxu0 0.0
    %2561 = vmatpush1.msra.mxu0 0.0
    %2562 = vmatprep.subr.mxu0 0.0
    %2563 = vmatpush1.msra.mxu0 0.0
    %2564 = vmatprep.subr.mxu0 0.0
    %2565 = vmatpush1.msra.mxu0 0.0
    %2566 = vmatprep.subr.mxu0 0.0
    %2567 = vmatpush1.msra.mxu0 0.0
    %2568 = vmatprep.subr.mxu0 0.0
    %2569 = vmatpush1.msra.mxu0 0.0
    %2570 = vmatprep.subr.mxu0 0.0
    %2571 = vmatpush1.msra.mxu0 0.0
    %2572 = vmatprep.subr.mxu0 0.0
    %2573 = vmatpush1.msra.mxu0 0.0
    %2574 = vmatprep.subr.mxu0 0.0
    %2575 = vmatpush1.msra.mxu0 0.0
    %2576 = vmatprep.subr.mxu0 0.0
    %2577 = vmatpush1.msra.mxu0 0.0
    %2578 = vmatprep.subr.mxu0 0.0
    %2579 = vmatpush1.msra.mxu0 0.0
    %2580 = vmatprep.subr.mxu0 0.0
    %2581 = vmatpush1.msra.mxu0 0.0
    %2582 = vmatprep.subr.mxu0 0.0
    %2583 = vmatpush1.msra.mxu0 0.0
    %2584 = vmatprep.subr.mxu0 0.0
    %2585 = vmatpush1.msra.mxu0 0.0
    %2586 = vmatprep.subr.mxu0 0.0
    %2587 = vmatpush1.msra.mxu0 0.0
    %2588 = vmatprep.mubr.f32.mxu0 0.0
    %2589 = vmatmul.mubr.f32.gmra.mrb[0].mxu0 %v2366
    %v2590 = vpop.f32.mrb[0].mxu0
    %v2591 = vadd.f32 0.0, %v2590
    %v2592 = vpop.f32.mrb[0].mxu0
    %2593 = vdwg.mxu0
    %v2594 = vadd.f32 %v2523, %v2591
    %v2595 = vtanh.pop %v2594
    %v2596 = vld [vmem:[#allocation5 + $0xc] sm:$0x3]
    %2597 = vmatprep.subr.mxu0 0.0
    %2598 = vmatpush1.msra.mxu0 %v463
    %2599 = vmatprep.subr.mxu0 0.0
    %2600 = vmatpush1.msra.mxu0 %v464
    %2601 = vmatprep.subr.mxu0 0.0
    %2602 = vmatpush1.msra.mxu0 %v465
    %2603 = vmatprep.subr.mxu0 0.0
    %2604 = vmatpush1.msra.mxu0 %v466
    %2605 = vmatprep.subr.mxu0 0.0
    %2606 = vmatpush1.msra.mxu0 0.0
    %2607 = vmatprep.subr.mxu0 0.0
    %2608 = vmatpush1.msra.mxu0 0.0
    %2609 = vmatprep.subr.mxu0 0.0
    %2610 = vmatpush1.msra.mxu0 0.0
    %2611 = vmatprep.subr.mxu0 0.0
    %2612 = vmatpush1.msra.mxu0 0.0
    %2613 = vmatprep.subr.mxu0 0.0
    %2614 = vmatpush1.msra.mxu0 0.0
    %2615 = vmatprep.subr.mxu0 0.0
    %2616 = vmatpush1.msra.mxu0 0.0
    %2617 = vmatprep.subr.mxu0 0.0
    %2618 = vmatpush1.msra.mxu0 0.0
    %2619 = vmatprep.subr.mxu0 0.0
    %2620 = vmatpush1.msra.mxu0 0.0
    %2621 = vmatprep.subr.mxu0 0.0
    %2622 = vmatpush1.msra.mxu0 0.0
    %2623 = vmatprep.subr.mxu0 0.0
    %2624 = vmatpush1.msra.mxu0 0.0
    %2625 = vmatprep.subr.mxu0 0.0
    %2626 = vmatpush1.msra.mxu0 0.0
    %2627 = vmatprep.subr.mxu0 0.0
    %2628 = vmatpush1.msra.mxu0 0.0
    %2629 = vmatprep.subr.mxu0 0.0
    %2630 = vmatpush1.msra.mxu0 0.0
    %2631 = vmatprep.subr.mxu0 0.0
    %2632 = vmatpush1.msra.mxu0 0.0
    %2633 = vmatprep.subr.mxu0 0.0
    %2634 = vmatpush1.msra.mxu0 0.0
    %2635 = vmatprep.subr.mxu0 0.0
    %2636 = vmatpush1.msra.mxu0 0.0
    %2637 = vmatprep.subr.mxu0 0.0
    %2638 = vmatpush1.msra.mxu0 0.0
    %2639 = vmatprep.subr.mxu0 0.0
    %2640 = vmatpush1.msra.mxu0 0.0
    %2641 = vmatprep.subr.mxu0 0.0
    %2642 = vmatpush1.msra.mxu0 0.0
    %2643 = vmatprep.subr.mxu0 0.0
    %2644 = vmatpush1.msra.mxu0 0.0
    %2645 = vmatprep.subr.mxu0 0.0
    %2646 = vmatpush1.msra.mxu0 0.0
    %2647 = vmatprep.subr.mxu0 0.0
    %2648 = vmatpush1.msra.mxu0 0.0
    %2649 = vmatprep.subr.mxu0 0.0
    %2650 = vmatpush1.msra.mxu0 0.0
    %2651 = vmatprep.subr.mxu0 0.0
    %2652 = vmatpush1.msra.mxu0 0.0
    %2653 = vmatprep.subr.mxu0 0.0
    %2654 = vmatpush1.msra.mxu0 0.0
    %2655 = vmatprep.subr.mxu0 0.0
    %2656 = vmatpush1.msra.mxu0 0.0
    %2657 = vmatprep.subr.mxu0 0.0
    %2658 = vmatpush1.msra.mxu0 0.0
    %2659 = vmatprep.subr.mxu0 0.0
    %2660 = vmatpush1.msra.mxu0 0.0
    %2661 = vmatprep.mubr.f32.mxu0 0.0
    %2662 = vmatmul.mubr.f32.gmra.mrb[0].mxu0 %v2366
    %v2663 = vpop.f32.mrb[0].mxu0
    %v2664 = vadd.f32 0.0, %v2663
    %v2665 = vpop.f32.mrb[0].mxu0
    %2666 = vdwg.mxu0
    %v2667 = vadd.f32 %v2596, %v2664
    %v2668 = vxor.u32 %v2667, 2147483648
    %v2669 = vmul.f32 %v2668, 1.442695
    %v2670 = vpow.pop %v2669
    %v2671 = vadd.f32 %v2670, 1.0
    %v2672 = vrcp.pop %v2671
    %v2673 = vmul.f32 1.0, %v2672
    %v2674 = vmul.f32 %v2522, %v2360
    %v2675 = vmul.f32 %v2444, %v2595
    %v2676 = vadd.f32 %v2674, %v2675
    %v2677 = vtanh.pop %v2676
    %v2678 = vmul.f32 %v2673, %v2677
    %2679 = vst.msk [vmem:[#allocation6 + $0xc] sm:$0x3] %vm782, %v2678
    %v2680 = vld [vmem:[#allocation2 + $0xe] sm:$0x3]
    %v2682 = vsel %vm181, %v2678, 0
    %2684 = vmatprep.subr.mxu0 0.0
    %2685 = vmatpush1.msra.mxu0 %v448
    %2686 = vmatprep.subr.mxu0 0.0
    %2687 = vmatpush1.msra.mxu0 %v449
    %2688 = vmatprep.subr.mxu0 0.0
    %2689 = vmatpush1.msra.mxu0 %v450
    %2690 = vmatprep.subr.mxu0 0.0
    %2691 = vmatpush1.msra.mxu0 %v451
    %2692 = vmatprep.subr.mxu0 0.0
    %2693 = vmatpush1.msra.mxu0 0.0
    %2694 = vmatprep.subr.mxu0 0.0
    %2695 = vmatpush1.msra.mxu0 0.0
    %2696 = vmatprep.subr.mxu0 0.0
    %2697 = vmatpush1.msra.mxu0 0.0
    %2698 = vmatprep.subr.mxu0 0.0
    %2699 = vmatpush1.msra.mxu0 0.0
    %2700 = vmatprep.subr.mxu0 0.0
    %2701 = vmatpush1.msra.mxu0 0.0
    %2702 = vmatprep.subr.mxu0 0.0
    %2703 = vmatpush1.msra.mxu0 0.0
    %2704 = vmatprep.subr.mxu0 0.0
    %2705 = vmatpush1.msra.mxu0 0.0
    %2706 = vmatprep.subr.mxu0 0.0
    %2707 = vmatpush1.msra.mxu0 0.0
    %2708 = vmatprep.subr.mxu0 0.0
    %2709 = vmatpush1.msra.mxu0 0.0
    %2710 = vmatprep.subr.mxu0 0.0
    %2711 = vmatpush1.msra.mxu0 0.0
    %2712 = vmatprep.subr.mxu0 0.0
    %2713 = vmatpush1.msra.mxu0 0.0
    %2714 = vmatprep.subr.mxu0 0.0
    %2715 = vmatpush1.msra.mxu0 0.0
    %2716 = vmatprep.subr.mxu0 0.0
    %2717 = vmatpush1.msra.mxu0 0.0
    %2718 = vmatprep.subr.mxu0 0.0
    %2719 = vmatpush1.msra.mxu0 0.0
    %2720 = vmatprep.subr.mxu0 0.0
    %2721 = vmatpush1.msra.mxu0 0.0
    %2722 = vmatprep.subr.mxu0 0.0
    %2723 = vmatpush1.msra.mxu0 0.0
    %2724 = vmatprep.subr.mxu0 0.0
    %2725 = vmatpush1.msra.mxu0 0.0
    %2726 = vmatprep.subr.mxu0 0.0
    %2727 = vmatpush1.msra.mxu0 0.0
    %2728 = vmatprep.subr.mxu0 0.0
    %2729 = vmatpush1.msra.mxu0 0.0
    %2730 = vmatprep.subr.mxu0 0.0
    %2731 = vmatpush1.msra.mxu0 0.0
    %2732 = vmatprep.subr.mxu0 0.0
    %2733 = vmatpush1.msra.mxu0 0.0
    %2734 = vmatprep.subr.mxu0 0.0
    %2735 = vmatpush1.msra.mxu0 0.0
    %2736 = vmatprep.subr.mxu0 0.0
    %2737 = vmatpush1.msra.mxu0 0.0
    %2738 = vmatprep.subr.mxu0 0.0
    %2739 = vmatpush1.msra.mxu0 0.0
    %2740 = vmatprep.subr.mxu0 0.0
    %2741 = vmatpush1.msra.mxu0 0.0
    %2742 = vmatprep.subr.mxu0 0.0
    %2743 = vmatpush1.msra.mxu0 0.0
    %2744 = vmatprep.subr.mxu0 0.0
    %2745 = vmatpush1.msra.mxu0 0.0
    %2746 = vmatprep.subr.mxu0 0.0
    %2747 = vmatpush1.msra.mxu0 0.0
    %2748 = vmatprep.mubr.f32.mxu0 0.0
    %2749 = vmatmul.mubr.f32.gmra.mrb[0].mxu0 %v2682
    %v2750 = vpop.f32.mrb[0].mxu0
    %v2751 = vadd.f32 0.0, %v2750
    %v2752 = vpop.f32.mrb[0].mxu0
    %2753 = vdwg.mxu0
    %v2754 = vadd.f32 %v2680, %v2751
    %v2755 = vxor.u32 %v2754, 2147483648
    %v2756 = vmul.f32 %v2755, 1.442695
    %v2757 = vpow.pop %v2756
    %v2758 = vadd.f32 %v2757, 1.0
    %v2759 = vrcp.pop %v2758
    %v2760 = vmul.f32 1.0, %v2759
    %v2761 = vld [vmem:[#allocation3 + $0xe] sm:$0x3]
    %2762 = vmatprep.subr.mxu0 0.0
    %2763 = vmatpush1.msra.mxu0 %v453
    %2764 = vmatprep.subr.mxu0 0.0
    %2765 = vmatpush1.msra.mxu0 %v454
    %2766 = vmatprep.subr.mxu0 0.0
    %2767 = vmatpush1.msra.mxu0 %v455
    %2768 = vmatprep.subr.mxu0 0.0
    %2769 = vmatpush1.msra.mxu0 %v456
    %2770 = vmatprep.subr.mxu0 0.0
    %2771 = vmatpush1.msra.mxu0 0.0
    %2772 = vmatprep.subr.mxu0 0.0
    %2773 = vmatpush1.msra.mxu0 0.0
    %2774 = vmatprep.subr.mxu0 0.0
    %2775 = vmatpush1.msra.mxu0 0.0
    %2776 = vmatprep.subr.mxu0 0.0
    %2777 = vmatpush1.msra.mxu0 0.0
    %2778 = vmatprep.subr.mxu0 0.0
    %2779 = vmatpush1.msra.mxu0 0.0
    %2780 = vmatprep.subr.mxu0 0.0
    %2781 = vmatpush1.msra.mxu0 0.0
    %2782 = vmatprep.subr.mxu0 0.0
    %2783 = vmatpush1.msra.mxu0 0.0
    %2784 = vmatprep.subr.mxu0 0.0
    %2785 = vmatpush1.msra.mxu0 0.0
    %2786 = vmatprep.subr.mxu0 0.0
    %2787 = vmatpush1.msra.mxu0 0.0
    %2788 = vmatprep.subr.mxu0 0.0
    %2789 = vmatpush1.msra.mxu0 0.0
    %2790 = vmatprep.subr.mxu0 0.0
    %2791 = vmatpush1.msra.mxu0 0.0
    %2792 = vmatprep.subr.mxu0 0.0
    %2793 = vmatpush1.msra.mxu0 0.0
    %2794 = vmatprep.subr.mxu0 0.0
    %2795 = vmatpush1.msra.mxu0 0.0
    %2796 = vmatprep.subr.mxu0 0.0
    %2797 = vmatpush1.msra.mxu0 0.0
    %2798 = vmatprep.subr.mxu0 0.0
    %2799 = vmatpush1.msra.mxu0 0.0
    %2800 = vmatprep.subr.mxu0 0.0
    %2801 = vmatpush1.msra.mxu0 0.0
    %2802 = vmatprep.subr.mxu0 0.0
    %2803 = vmatpush1.msra.mxu0 0.0
    %2804 = vmatprep.subr.mxu0 0.0
    %2805 = vmatpush1.msra.mxu0 0.0
    %2806 = vmatprep.subr.mxu0 0.0
    %2807 = vmatpush1.msra.mxu0 0.0
    %2808 = vmatprep.subr.mxu0 0.0
    %2809 = vmatpush1.msra.mxu0 0.0
    %2810 = vmatprep.subr.mxu0 0.0
    %2811 = vmatpush1.msra.mxu0 0.0
    %2812 = vmatprep.subr.mxu0 0.0
    %2813 = vmatpush1.msra.mxu0 0.0
    %2814 = vmatprep.subr.mxu0 0.0
    %2815 = vmatpush1.msra.mxu0 0.0
    %2816 = vmatprep.subr.mxu0 0.0
    %2817 = vmatpush1.msra.mxu0 0.0
    %2818 = vmatprep.subr.mxu0 0.0
    %2819 = vmatpush1.msra.mxu0 0.0
    %2820 = vmatprep.subr.mxu0 0.0
    %2821 = vmatpush1.msra.mxu0 0.0
    %2822 = vmatprep.subr.mxu0 0.0
    %2823 = vmatpush1.msra.mxu0 0.0
    %2824 = vmatprep.subr.mxu0 0.0
    %2825 = vmatpush1.msra.mxu0 0.0
    %2826 = vmatprep.mubr.f32.mxu0 0.0
    %2827 = vmatmul.mubr.f32.gmra.mrb[0].mxu0 %v2682
    %v2828 = vpop.f32.mrb[0].mxu0
    %v2829 = vadd.f32 0.0, %v2828
    %v2830 = vpop.f32.mrb[0].mxu0
    %2831 = vdwg.mxu0
    %v2832 = vadd.f32 %v2761, %v2829
    %v2833 = vxor.u32 %v2832, 2147483648
    %v2834 = vmul.f32 %v2833, 1.442695
    %v2835 = vpow.pop %v2834
    %v2836 = vadd.f32 %v2835, 1.0
    %v2837 = vrcp.pop %v2836
    %v2838 = vmul.f32 1.0, %v2837
    %v2839 = vld [vmem:[#allocation4 + $0xe] sm:$0x3]
    %2840 = vmatprep.subr.mxu0 0.0
    %2841 = vmatpush1.msra.mxu0 %v458
    %2842 = vmatprep.subr.mxu0 0.0
    %2843 = vmatpush1.msra.mxu0 %v459
    %2844 = vmatprep.subr.mxu0 0.0
    %2845 = vmatpush1.msra.mxu0 %v460
    %2846 = vmatprep.subr.mxu0 0.0
    %2847 = vmatpush1.msra.mxu0 %v461
    %2848 = vmatprep.subr.mxu0 0.0
    %2849 = vmatpush1.msra.mxu0 0.0
    %2850 = vmatprep.subr.mxu0 0.0
    %2851 = vmatpush1.msra.mxu0 0.0
    %2852 = vmatprep.subr.mxu0 0.0
    %2853 = vmatpush1.msra.mxu0 0.0
    %2854 = vmatprep.subr.mxu0 0.0
    %2855 = vmatpush1.msra.mxu0 0.0
    %2856 = vmatprep.subr.mxu0 0.0
    %2857 = vmatpush1.msra.mxu0 0.0
    %2858 = vmatprep.subr.mxu0 0.0
    %2859 = vmatpush1.msra.mxu0 0.0
    %2860 = vmatprep.subr.mxu0 0.0
    %2861 = vmatpush1.msra.mxu0 0.0
    %2862 = vmatprep.subr.mxu0 0.0
    %2863 = vmatpush1.msra.mxu0 0.0
    %2864 = vmatprep.subr.mxu0 0.0
    %2865 = vmatpush1.msra.mxu0 0.0
    %2866 = vmatprep.subr.mxu0 0.0
    %2867 = vmatpush1.msra.mxu0 0.0
    %2868 = vmatprep.subr.mxu0 0.0
    %2869 = vmatpush1.msra.mxu0 0.0
    %2870 = vmatprep.subr.mxu0 0.0
    %2871 = vmatpush1.msra.mxu0 0.0
    %2872 = vmatprep.subr.mxu0 0.0
    %2873 = vmatpush1.msra.mxu0 0.0
    %2874 = vmatprep.subr.mxu0 0.0
    %2875 = vmatpush1.msra.mxu0 0.0
    %2876 = vmatprep.subr.mxu0 0.0
    %2877 = vmatpush1.msra.mxu0 0.0
    %2878 = vmatprep.subr.mxu0 0.0
    %2879 = vmatpush1.msra.mxu0 0.0
    %2880 = vmatprep.subr.mxu0 0.0
    %2881 = vmatpush1.msra.mxu0 0.0
    %2882 = vmatprep.subr.mxu0 0.0
    %2883 = vmatpush1.msra.mxu0 0.0
    %2884 = vmatprep.subr.mxu0 0.0
    %2885 = vmatpush1.msra.mxu0 0.0
    %2886 = vmatprep.subr.mxu0 0.0
    %2887 = vmatpush1.msra.mxu0 0.0
    %2888 = vmatprep.subr.mxu0 0.0
    %2889 = vmatpush1.msra.mxu0 0.0
    %2890 = vmatprep.subr.mxu0 0.0
    %2891 = vmatpush1.msra.mxu0 0.0
    %2892 = vmatprep.subr.mxu0 0.0
    %2893 = vmatpush1.msra.mxu0 0.0
    %2894 = vmatprep.subr.mxu0 0.0
    %2895 = vmatpush1.msra.mxu0 0.0
    %2896 = vmatprep.subr.mxu0 0.0
    %2897 = vmatpush1.msra.mxu0 0.0
    %2898 = vmatprep.subr.mxu0 0.0
    %2899 = vmatpush1.msra.mxu0 0.0
    %2900 = vmatprep.subr.mxu0 0.0
    %2901 = vmatpush1.msra.mxu0 0.0
    %2902 = vmatprep.subr.mxu0 0.0
    %2903 = vmatpush1.msra.mxu0 0.0
    %2904 = vmatprep.mubr.f32.mxu0 0.0
    %2905 = vmatmul.mubr.f32.gmra.mrb[0].mxu0 %v2682
    %v2906 = vpop.f32.mrb[0].mxu0
    %v2907 = vadd.f32 0.0, %v2906
    %v2908 = vpop.f32.mrb[0].mxu0
    %2909 = vdwg.mxu0
    %v2910 = vadd.f32 %v2839, %v2907
    %v2911 = vtanh.pop %v2910
    %v2912 = vld [vmem:[#allocation5 + $0xe] sm:$0x3]
    %2913 = vmatprep.subr.mxu0 0.0
    %2914 = vmatpush1.msra.mxu0 %v463
    %2915 = vmatprep.subr.mxu0 0.0
    %2916 = vmatpush1.msra.mxu0 %v464
    %2917 = vmatprep.subr.mxu0 0.0
    %2918 = vmatpush1.msra.mxu0 %v465
    %2919 = vmatprep.subr.mxu0 0.0
    %2920 = vmatpush1.msra.mxu0 %v466
    %2921 = vmatprep.subr.mxu0 0.0
    %2922 = vmatpush1.msra.mxu0 0.0
    %2923 = vmatprep.subr.mxu0 0.0
    %2924 = vmatpush1.msra.mxu0 0.0
    %2925 = vmatprep.subr.mxu0 0.0
    %2926 = vmatpush1.msra.mxu0 0.0
    %2927 = vmatprep.subr.mxu0 0.0
    %2928 = vmatpush1.msra.mxu0 0.0
    %2929 = vmatprep.subr.mxu0 0.0
    %2930 = vmatpush1.msra.mxu0 0.0
    %2931 = vmatprep.subr.mxu0 0.0
    %2932 = vmatpush1.msra.mxu0 0.0
    %2933 = vmatprep.subr.mxu0 0.0
    %2934 = vmatpush1.msra.mxu0 0.0
    %2935 = vmatprep.subr.mxu0 0.0
    %2936 = vmatpush1.msra.mxu0 0.0
    %2937 = vmatprep.subr.mxu0 0.0
    %2938 = vmatpush1.msra.mxu0 0.0
    %2939 = vmatprep.subr.mxu0 0.0
    %2940 = vmatpush1.msra.mxu0 0.0
    %2941 = vmatprep.subr.mxu0 0.0
    %2942 = vmatpush1.msra.mxu0 0.0
    %2943 = vmatprep.subr.mxu0 0.0
    %2944 = vmatpush1.msra.mxu0 0.0
    %2945 = vmatprep.subr.mxu0 0.0
    %2946 = vmatpush1.msra.mxu0 0.0
    %2947 = vmatprep.subr.mxu0 0.0
    %2948 = vmatpush1.msra.mxu0 0.0
    %2949 = vmatprep.subr.mxu0 0.0
    %2950 = vmatpush1.msra.mxu0 0.0
    %2951 = vmatprep.subr.mxu0 0.0
    %2952 = vmatpush1.msra.mxu0 0.0
    %2953 = vmatprep.subr.mxu0 0.0
    %2954 = vmatpush1.msra.mxu0 0.0
    %2955 = vmatprep.subr.mxu0 0.0
    %2956 = vmatpush1.msra.mxu0 0.0
    %2957 = vmatprep.subr.mxu0 0.0
    %2958 = vmatpush1.msra.mxu0 0.0
    %2959 = vmatprep.subr.mxu0 0.0
    %2960 = vmatpush1.msra.mxu0 0.0
    %2961 = vmatprep.subr.mxu0 0.0
    %2962 = vmatpush1.msra.mxu0 0.0
    %2963 = vmatprep.subr.mxu0 0.0
    %2964 = vmatpush1.msra.mxu0 0.0
    %2965 = vmatprep.subr.mxu0 0.0
    %2966 = vmatpush1.msra.mxu0 0.0
    %2967 = vmatprep.subr.mxu0 0.0
    %2968 = vmatpush1.msra.mxu0 0.0
    %2969 = vmatprep.subr.mxu0 0.0
    %2970 = vmatpush1.msra.mxu0 0.0
    %2971 = vmatprep.subr.mxu0 0.0
    %2972 = vmatpush1.msra.mxu0 0.0
    %2973 = vmatprep.subr.mxu0 0.0
    %2974 = vmatpush1.msra.mxu0 0.0
    %2975 = vmatprep.subr.mxu0 0.0
    %2976 = vmatpush1.msra.mxu0 0.0
    %2977 = vmatprep.mubr.f32.mxu0 0.0
    %2978 = vmatmul.mubr.f32.gmra.mrb[0].mxu0 %v2682
    %v2979 = vpop.f32.mrb[0].mxu0
    %v2980 = vadd.f32 0.0, %v2979
    %v2981 = vpop.f32.mrb[0].mxu0
    %2982 = vdwg.mxu0
    %v2983 = vadd.f32 %v2912, %v2980
    %v2984 = vxor.u32 %v2983, 2147483648
    %v2985 = vmul.f32 %v2984, 1.442695
    %v2986 = vpow.pop %v2985
    %v2987 = vadd.f32 %v2986, 1.0
    %v2988 = vrcp.pop %v2987
    %v2989 = vmul.f32 1.0, %v2988
    %v2990 = vmul.f32 %v2838, %v2676
    %v2991 = vmul.f32 %v2760, %v2911
    %v2992 = vadd.f32 %v2990, %v2991
    %v2993 = vtanh.pop %v2992
    %v2994 = vmul.f32 %v2989, %v2993
    %2995 = vst.msk [vmem:[#allocation6 + $0xe] sm:$0x3] %vm782, %v2994
    %v2996 = vld [vmem:[#allocation6] sm:$0xff]
    %v2997 = vld [vmem:[#allocation6 + $0x8] sm:$0xff]
    %v2998 = vld [vmem:[#allocation12] sm:$0xff]
    %v2999 = vld [vmem:[#allocation12 + $0x8] sm:$0xff]
    %v3000 = vld [vmem:[#allocation12 + $0x10] sm:$0xff]
    %v3001 = vld [vmem:[#allocation12 + $0x18] sm:$0xff]
    %v3002 = vld [vmem:[%s6] sm:$0x1]
    %v3004 = vlaneseq
    %v3005 = vshrl.u32 %v3004, 7
    %v3006 = vsub.s32 0, %v3005
    %v3007 = vrot.slane %v3002, %v3006
    %v3010 = vsel %vm181, %v2996, 0
    %v3013 = vsel %vm181, %v2997, 0
    %3015 = vmatprep.subr.mxu0 0.0
    %3016 = vmatpush1.msra.mxu0 %v2998
    %3017 = vmatprep.subr.mxu0 0.0
    %3018 = vmatpush1.msra.mxu0 %v2999
    %3019 = vmatprep.subr.mxu0 0.0
    %3020 = vmatpush1.msra.mxu0 %v3000
    %3021 = vmatprep.subr.mxu0 0.0
    %3022 = vmatpush1.msra.mxu0 %v3001
    %3023 = vmatprep.subr.mxu0 0.0
    %3024 = vmatpush1.msra.mxu0 0.0
    %3025 = vmatprep.subr.mxu0 0.0
    %3026 = vmatpush1.msra.mxu0 0.0
    %3027 = vmatprep.subr.mxu0 0.0
    %3028 = vmatpush1.msra.mxu0 0.0
    %3029 = vmatprep.subr.mxu0 0.0
    %3030 = vmatpush1.msra.mxu0 0.0
    %3031 = vmatprep.subr.mxu0 0.0
    %3032 = vmatpush1.msra.mxu0 0.0
    %3033 = vmatprep.subr.mxu0 0.0
    %3034 = vmatpush1.msra.mxu0 0.0
    %3035 = vmatprep.subr.mxu0 0.0
    %3036 = vmatpush1.msra.mxu0 0.0
    %3037 = vmatprep.subr.mxu0 0.0
    %3038 = vmatpush1.msra.mxu0 0.0
    %3039 = vmatprep.subr.mxu0 0.0
    %3040 = vmatpush1.msra.mxu0 0.0
    %3041 = vmatprep.subr.mxu0 0.0
    %3042 = vmatpush1.msra.mxu0 0.0
    %3043 = vmatprep.subr.mxu0 0.0
    %3044 = vmatpush1.msra.mxu0 0.0
    %3045 = vmatprep.subr.mxu0 0.0
    %3046 = vmatpush1.msra.mxu0 0.0
    %3047 = vmatprep.subr.mxu0 0.0
    %3048 = vmatpush1.msra.mxu0 0.0
    %3049 = vmatprep.subr.mxu0 0.0
    %3050 = vmatpush1.msra.mxu0 0.0
    %3051 = vmatprep.subr.mxu0 0.0
    %3052 = vmatpush1.msra.mxu0 0.0
    %3053 = vmatprep.subr.mxu0 0.0
    %3054 = vmatpush1.msra.mxu0 0.0
    %3055 = vmatprep.subr.mxu0 0.0
    %3056 = vmatpush1.msra.mxu0 0.0
    %3057 = vmatprep.subr.mxu0 0.0
    %3058 = vmatpush1.msra.mxu0 0.0
    %3059 = vmatprep.subr.mxu0 0.0
    %3060 = vmatpush1.msra.mxu0 0.0
    %3061 = vmatprep.subr.mxu0 0.0
    %3062 = vmatpush1.msra.mxu0 0.0
    %3063 = vmatprep.subr.mxu0 0.0
    %3064 = vmatpush1.msra.mxu0 0.0
    %3065 = vmatprep.subr.mxu0 0.0
    %3066 = vmatpush1.msra.mxu0 0.0
    %3067 = vmatprep.subr.mxu0 0.0
    %3068 = vmatpush1.msra.mxu0 0.0
    %3069 = vmatprep.subr.mxu0 0.0
    %3070 = vmatpush1.msra.mxu0 0.0
    %3071 = vmatprep.subr.mxu0 0.0
    %3072 = vmatpush1.msra.mxu0 0.0
    %3073 = vmatprep.subr.mxu0 0.0
    %3074 = vmatpush1.msra.mxu0 0.0
    %3075 = vmatprep.subr.mxu0 0.0
    %3076 = vmatpush1.msra.mxu0 0.0
    %3077 = vmatprep.subr.mxu0 0.0
    %3078 = vmatpush1.msra.mxu0 0.0
    %3079 = vmatprep.mubr.f32.mxu0 0.0
    %3080 = vmatmul.mubr.f32.gmra.mrb[0].mxu0 %v3010
    %v3081 = vpop.f32.mrb[0].mxu0
    %v3082 = vadd.f32 %v3007, %v3081
    %v3083 = vpop.f32.mrb[0].mxu0
    %3084 = vmatprep.mubr.f32.mxu0 0.0
    %3085 = vmatmul.mubr.f32.gmra.mrb[0].mxu0 %v3013
    %v3086 = vpop.f32.mrb[0].mxu0
    %v3087 = vadd.f32 %v3007, %v3086
    %v3088 = vpop.f32.mrb[0].mxu0
    %3089 = vdwg.mxu0
    %3090 = vst.msk [vmem:[#allocation2] sm:$0xff] %vm181, %v3082
    %3091 = vst.msk [vmem:[#allocation2 + $0x8] sm:$0xff] %vm181, %v3087
    %s3092 = scalar_lea.vmem [#allocation12], 32
    %v3093 = vld [vmem:[%s3092] sm:$0xff]
    %v3094 = vld [vmem:[%s3092 + $0x8] sm:$0xff]
    %v3095 = vld [vmem:[%s3092 + $0x10] sm:$0xff]
    %v3096 = vld [vmem:[%s3092 + $0x18] sm:$0xff]
    %s3097 = scalar_lea.vmem %s6, 1
    %v3098 = vld [vmem:[%s3097] sm:$0x1]
    %v3100 = vlaneseq
    %v3101 = vshrl.u32 %v3100, 7
    %v3102 = vsub.s32 0, %v3101
    %v3103 = vrot.slane %v3098, %v3102
    %3105 = vmatprep.subr.mxu0 0.0
    %3106 = vmatpush1.msra.mxu0 %v3093
    %3107 = vmatprep.subr.mxu0 0.0
    %3108 = vmatpush1.msra.mxu0 %v3094
    %3109 = vmatprep.subr.mxu0 0.0
    %3110 = vmatpush1.msra.mxu0 %v3095
    %3111 = vmatprep.subr.mxu0 0.0
    %3112 = vmatpush1.msra.mxu0 %v3096
    %3113 = vmatprep.subr.mxu0 0.0
    %3114 = vmatpush1.msra.mxu0 0.0
    %3115 = vmatprep.subr.mxu0 0.0
    %3116 = vmatpush1.msra.mxu0 0.0
    %3117 = vmatprep.subr.mxu0 0.0
    %3118 = vmatpush1.msra.mxu0 0.0
    %3119 = vmatprep.subr.mxu0 0.0
    %3120 = vmatpush1.msra.mxu0 0.0
    %3121 = vmatprep.subr.mxu0 0.0
    %3122 = vmatpush1.msra.mxu0 0.0
    %3123 = vmatprep.subr.mxu0 0.0
    %3124 = vmatpush1.msra.mxu0 0.0
    %3125 = vmatprep.subr.mxu0 0.0
    %3126 = vmatpush1.msra.mxu0 0.0
    %3127 = vmatprep.subr.mxu0 0.0
    %3128 = vmatpush1.msra.mxu0 0.0
    %3129 = vmatprep.subr.mxu0 0.0
    %3130 = vmatpush1.msra.mxu0 0.0
    %3131 = vmatprep.subr.mxu0 0.0
    %3132 = vmatpush1.msra.mxu0 0.0
    %3133 = vmatprep.subr.mxu0 0.0
    %3134 = vmatpush1.msra.mxu0 0.0
    %3135 = vmatprep.subr.mxu0 0.0
    %3136 = vmatpush1.msra.mxu0 0.0
    %3137 = vmatprep.subr.mxu0 0.0
    %3138 = vmatpush1.msra.mxu0 0.0
    %3139 = vmatprep.subr.mxu0 0.0
    %3140 = vmatpush1.msra.mxu0 0.0
    %3141 = vmatprep.subr.mxu0 0.0
    %3142 = vmatpush1.msra.mxu0 0.0
    %3143 = vmatprep.subr.mxu0 0.0
    %3144 = vmatpush1.msra.mxu0 0.0
    %3145 = vmatprep.subr.mxu0 0.0
    %3146 = vmatpush1.msra.mxu0 0.0
    %3147 = vmatprep.subr.mxu0 0.0
    %3148 = vmatpush1.msra.mxu0 0.0
    %3149 = vmatprep.subr.mxu0 0.0
    %3150 = vmatpush1.msra.mxu0 0.0
    %3151 = vmatprep.subr.mxu0 0.0
    %3152 = vmatpush1.msra.mxu0 0.0
    %3153 = vmatprep.subr.mxu0 0.0
    %3154 = vmatpush1.msra.mxu0 0.0
    %3155 = vmatprep.subr.mxu0 0.0
    %3156 = vmatpush1.msra.mxu0 0.0
    %3157 = vmatprep.subr.mxu0 0.0
    %3158 = vmatpush1.msra.mxu0 0.0
    %3159 = vmatprep.subr.mxu0 0.0
    %3160 = vmatpush1.msra.mxu0 0.0
    %3161 = vmatprep.subr.mxu0 0.0
    %3162 = vmatpush1.msra.mxu0 0.0
    %3163 = vmatprep.subr.mxu0 0.0
    %3164 = vmatpush1.msra.mxu0 0.0
    %3165 = vmatprep.subr.mxu0 0.0
    %3166 = vmatpush1.msra.mxu0 0.0
    %3167 = vmatprep.subr.mxu0 0.0
    %3168 = vmatpush1.msra.mxu0 0.0
    %3169 = vmatprep.mubr.f32.mxu0 0.0
    %3170 = vmatmul.mubr.f32.gmra.mrb[0].mxu0 %v3010
    %v3171 = vpop.f32.mrb[0].mxu0
    %v3172 = vadd.f32 %v3103, %v3171
    %v3173 = vpop.f32.mrb[0].mxu0
    %3174 = vmatprep.mubr.f32.mxu0 0.0
    %3175 = vmatmul.mubr.f32.gmra.mrb[0].mxu0 %v3013
    %v3176 = vpop.f32.mrb[0].mxu0
    %v3177 = vadd.f32 %v3103, %v3176
    %v3178 = vpop.f32.mrb[0].mxu0
    %3179 = vdwg.mxu0
    %3180 = vst.msk [vmem:[#allocation3] sm:$0xff] %vm181, %v3172
    %3181 = vst.msk [vmem:[#allocation3 + $0x8] sm:$0xff] %vm181, %v3177
    %s3182 = scalar_lea.vmem [#allocation12], 64
    %v3183 = vld [vmem:[%s3182] sm:$0xff]
    %v3184 = vld [vmem:[%s3182 + $0x8] sm:$0xff]
    %v3185 = vld [vmem:[%s3182 + $0x10] sm:$0xff]
    %v3186 = vld [vmem:[%s3182 + $0x18] sm:$0xff]
    %s3187 = scalar_lea.vmem %s6, 2
    %v3188 = vld [vmem:[%s3187] sm:$0x1]
    %v3190 = vlaneseq
    %v3191 = vshrl.u32 %v3190, 7
    %v3192 = vsub.s32 0, %v3191
    %v3193 = vrot.slane %v3188, %v3192
    %3195 = vmatprep.subr.mxu0 0.0
    %3196 = vmatpush1.msra.mxu0 %v3183
    %3197 = vmatprep.subr.mxu0 0.0
    %3198 = vmatpush1.msra.mxu0 %v3184
    %3199 = vmatprep.subr.mxu0 0.0
    %3200 = vmatpush1.msra.mxu0 %v3185
    %3201 = vmatprep.subr.mxu0 0.0
    %3202 = vmatpush1.msra.mxu0 %v3186
    %3203 = vmatprep.subr.mxu0 0.0
    %3204 = vmatpush1.msra.mxu0 0.0
    %3205 = vmatprep.subr.mxu0 0.0
    %3206 = vmatpush1.msra.mxu0 0.0
    %3207 = vmatprep.subr.mxu0 0.0
    %3208 = vmatpush1.msra.mxu0 0.0
    %3209 = vmatprep.subr.mxu0 0.0
    %3210 = vmatpush1.msra.mxu0 0.0
    %3211 = vmatprep.subr.mxu0 0.0
    %3212 = vmatpush1.msra.mxu0 0.0
    %3213 = vmatprep.subr.mxu0 0.0
    %3214 = vmatpush1.msra.mxu0 0.0
    %3215 = vmatprep.subr.mxu0 0.0
    %3216 = vmatpush1.msra.mxu0 0.0
    %3217 = vmatprep.subr.mxu0 0.0
    %3218 = vmatpush1.msra.mxu0 0.0
    %3219 = vmatprep.subr.mxu0 0.0
    %3220 = vmatpush1.msra.mxu0 0.0
    %3221 = vmatprep.subr.mxu0 0.0
    %3222 = vmatpush1.msra.mxu0 0.0
    %3223 = vmatprep.subr.mxu0 0.0
    %3224 = vmatpush1.msra.mxu0 0.0
    %3225 = vmatprep.subr.mxu0 0.0
    %3226 = vmatpush1.msra.mxu0 0.0
    %3227 = vmatprep.subr.mxu0 0.0
    %3228 = vmatpush1.msra.mxu0 0.0
    %3229 = vmatprep.subr.mxu0 0.0
    %3230 = vmatpush1.msra.mxu0 0.0
    %3231 = vmatprep.subr.mxu0 0.0
    %3232 = vmatpush1.msra.mxu0 0.0
    %3233 = vmatprep.subr.mxu0 0.0
    %3234 = vmatpush1.msra.mxu0 0.0
    %3235 = vmatprep.subr.mxu0 0.0
    %3236 = vmatpush1.msra.mxu0 0.0
    %3237 = vmatprep.subr.mxu0 0.0
    %3238 = vmatpush1.msra.mxu0 0.0
    %3239 = vmatprep.subr.mxu0 0.0
    %3240 = vmatpush1.msra.mxu0 0.0
    %3241 = vmatprep.subr.mxu0 0.0
    %3242 = vmatpush1.msra.mxu0 0.0
    %3243 = vmatprep.subr.mxu0 0.0
    %3244 = vmatpush1.msra.mxu0 0.0
    %3245 = vmatprep.subr.mxu0 0.0
    %3246 = vmatpush1.msra.mxu0 0.0
    %3247 = vmatprep.subr.mxu0 0.0
    %3248 = vmatpush1.msra.mxu0 0.0
    %3249 = vmatprep.subr.mxu0 0.0
    %3250 = vmatpush1.msra.mxu0 0.0
    %3251 = vmatprep.subr.mxu0 0.0
    %3252 = vmatpush1.msra.mxu0 0.0
    %3253 = vmatprep.subr.mxu0 0.0
    %3254 = vmatpush1.msra.mxu0 0.0
    %3255 = vmatprep.subr.mxu0 0.0
    %3256 = vmatpush1.msra.mxu0 0.0
    %3257 = vmatprep.subr.mxu0 0.0
    %3258 = vmatpush1.msra.mxu0 0.0
    %3259 = vmatprep.mubr.f32.mxu0 0.0
    %3260 = vmatmul.mubr.f32.gmra.mrb[0].mxu0 %v3010
    %v3261 = vpop.f32.mrb[0].mxu0
    %v3262 = vadd.f32 %v3193, %v3261
    %v3263 = vpop.f32.mrb[0].mxu0
    %3264 = vmatprep.mubr.f32.mxu0 0.0
    %3265 = vmatmul.mubr.f32.gmra.mrb[0].mxu0 %v3013
    %v3266 = vpop.f32.mrb[0].mxu0
    %v3267 = vadd.f32 %v3193, %v3266
    %v3268 = vpop.f32.mrb[0].mxu0
    %3269 = vdwg.mxu0
    %3270 = vst.msk [vmem:[#allocation4] sm:$0xff] %vm181, %v3262
    %3271 = vst.msk [vmem:[#allocation4 + $0x8] sm:$0xff] %vm181, %v3267
    %s3272 = scalar_lea.vmem [#allocation12], 96
    %v3273 = vld [vmem:[%s3272] sm:$0xff]
    %v3274 = vld [vmem:[%s3272 + $0x8] sm:$0xff]
    %v3275 = vld [vmem:[%s3272 + $0x10] sm:$0xff]
    %v3276 = vld [vmem:[%s3272 + $0x18] sm:$0xff]
    %s3277 = scalar_lea.vmem %s6, 3
    %v3278 = vld [vmem:[%s3277] sm:$0x1]
    %v3280 = vlaneseq
    %v3281 = vshrl.u32 %v3280, 7
    %v3282 = vsub.s32 0, %v3281
    %v3283 = vrot.slane %v3278, %v3282
    %3285 = vmatprep.subr.mxu0 0.0
    %3286 = vmatpush1.msra.mxu0 %v3273
    %3287 = vmatprep.subr.mxu0 0.0
    %3288 = vmatpush1.msra.mxu0 %v3274
    %3289 = vmatprep.subr.mxu0 0.0
    %3290 = vmatpush1.msra.mxu0 %v3275
    %3291 = vmatprep.subr.mxu0 0.0
    %3292 = vmatpush1.msra.mxu0 %v3276
    %3293 = vmatprep.subr.mxu0 0.0
    %3294 = vmatpush1.msra.mxu0 0.0
    %3295 = vmatprep.subr.mxu0 0.0
    %3296 = vmatpush1.msra.mxu0 0.0
    %3297 = vmatprep.subr.mxu0 0.0
    %3298 = vmatpush1.msra.mxu0 0.0
    %3299 = vmatprep.subr.mxu0 0.0
    %3300 = vmatpush1.msra.mxu0 0.0
    %3301 = vmatprep.subr.mxu0 0.0
    %3302 = vmatpush1.msra.mxu0 0.0
    %3303 = vmatprep.subr.mxu0 0.0
    %3304 = vmatpush1.msra.mxu0 0.0
    %3305 = vmatprep.subr.mxu0 0.0
    %3306 = vmatpush1.msra.mxu0 0.0
    %3307 = vmatprep.subr.mxu0 0.0
    %3308 = vmatpush1.msra.mxu0 0.0
    %3309 = vmatprep.subr.mxu0 0.0
    %3310 = vmatpush1.msra.mxu0 0.0
    %3311 = vmatprep.subr.mxu0 0.0
    %3312 = vmatpush1.msra.mxu0 0.0
    %3313 = vmatprep.subr.mxu0 0.0
    %3314 = vmatpush1.msra.mxu0 0.0
    %3315 = vmatprep.subr.mxu0 0.0
    %3316 = vmatpush1.msra.mxu0 0.0
    %3317 = vmatprep.subr.mxu0 0.0
    %3318 = vmatpush1.msra.mxu0 0.0
    %3319 = vmatprep.subr.mxu0 0.0
    %3320 = vmatpush1.msra.mxu0 0.0
    %3321 = vmatprep.subr.mxu0 0.0
    %3322 = vmatpush1.msra.mxu0 0.0
    %3323 = vmatprep.subr.mxu0 0.0
    %3324 = vmatpush1.msra.mxu0 0.0
    %3325 = vmatprep.subr.mxu0 0.0
    %3326 = vmatpush1.msra.mxu0 0.0
    %3327 = vmatprep.subr.mxu0 0.0
    %3328 = vmatpush1.msra.mxu0 0.0
    %3329 = vmatprep.subr.mxu0 0.0
    %3330 = vmatpush1.msra.mxu0 0.0
    %3331 = vmatprep.subr.mxu0 0.0
    %3332 = vmatpush1.msra.mxu0 0.0
    %3333 = vmatprep.subr.mxu0 0.0
    %3334 = vmatpush1.msra.mxu0 0.0
    %3335 = vmatprep.subr.mxu0 0.0
    %3336 = vmatpush1.msra.mxu0 0.0
    %3337 = vmatprep.subr.mxu0 0.0
    %3338 = vmatpush1.msra.mxu0 0.0
    %3339 = vmatprep.subr.mxu0 0.0
    %3340 = vmatpush1.msra.mxu0 0.0
    %3341 = vmatprep.subr.mxu0 0.0
    %3342 = vmatpush1.msra.mxu0 0.0
    %3343 = vmatprep.subr.mxu0 0.0
    %3344 = vmatpush1.msra.mxu0 0.0
    %3345 = vmatprep.subr.mxu0 0.0
    %3346 = vmatpush1.msra.mxu0 0.0
    %3347 = vmatprep.subr.mxu0 0.0
    %3348 = vmatpush1.msra.mxu0 0.0
    %3349 = vmatprep.mubr.f32.mxu0 0.0
    %3350 = vmatmul.mubr.f32.gmra.mrb[0].mxu0 %v3010
    %v3351 = vpop.f32.mrb[0].mxu0
    %v3352 = vadd.f32 %v3283, %v3351
    %v3353 = vpop.f32.mrb[0].mxu0
    %3354 = vmatprep.mubr.f32.mxu0 0.0
    %3355 = vmatmul.mubr.f32.gmra.mrb[0].mxu0 %v3013
    %v3356 = vpop.f32.mrb[0].mxu0
    %v3357 = vadd.f32 %v3283, %v3356
    %v3358 = vpop.f32.mrb[0].mxu0
    %3359 = vdwg.mxu0
    %3360 = vst.msk [vmem:[#allocation5] sm:$0xff] %vm181, %v3352
    %3361 = vst.msk [vmem:[#allocation5 + $0x8] sm:$0xff] %vm181, %v3357
    %v3362 = vld [vmem:[#allocation13] sm:$0xff]
    %v3363 = vld [vmem:[#allocation13 + $0x8] sm:$0xff]
    %v3364 = vld [vmem:[#allocation13 + $0x10] sm:$0xff]
    %v3365 = vld [vmem:[#allocation13 + $0x18] sm:$0xff]
    %s3366 = scalar_lea.vmem [#allocation13], 32
    %v3367 = vld [vmem:[%s3366] sm:$0xff]
    %v3368 = vld [vmem:[%s3366 + $0x8] sm:$0xff]
    %v3369 = vld [vmem:[%s3366 + $0x10] sm:$0xff]
    %v3370 = vld [vmem:[%s3366 + $0x18] sm:$0xff]
    %s3371 = scalar_lea.vmem [#allocation13], 64
    %v3372 = vld [vmem:[%s3371] sm:$0xff]
    %v3373 = vld [vmem:[%s3371 + $0x8] sm:$0xff]
    %v3374 = vld [vmem:[%s3371 + $0x10] sm:$0xff]
    %v3375 = vld [vmem:[%s3371 + $0x18] sm:$0xff]
    %s3376 = scalar_lea.vmem [#allocation13], 96
    %v3377 = vld [vmem:[%s3376] sm:$0xff]
    %v3378 = vld [vmem:[%s3376 + $0x8] sm:$0xff]
    %v3379 = vld [vmem:[%s3376 + $0x10] sm:$0xff]
    %v3380 = vld [vmem:[%s3376 + $0x18] sm:$0xff]
    %v3381 = vld [vmem:[#allocation2] sm:$0x3]
    %3382 = vmatprep.subr.mxu0 0.0
    %3383 = vmatpush1.msra.mxu0 %v3362
    %3384 = vmatprep.subr.mxu0 0.0
    %3385 = vmatpush1.msra.mxu0 %v3363
    %3386 = vmatprep.subr.mxu0 0.0
    %3387 = vmatpush1.msra.mxu0 %v3364
    %3388 = vmatprep.subr.mxu0 0.0
    %3389 = vmatpush1.msra.mxu0 %v3365
    %3390 = vmatprep.subr.mxu0 0.0
    %3391 = vmatpush1.msra.mxu0 0.0
    %3392 = vmatprep.subr.mxu0 0.0
    %3393 = vmatpush1.msra.mxu0 0.0
    %3394 = vmatprep.subr.mxu0 0.0
    %3395 = vmatpush1.msra.mxu0 0.0
    %3396 = vmatprep.subr.mxu0 0.0
    %3397 = vmatpush1.msra.mxu0 0.0
    %3398 = vmatprep.subr.mxu0 0.0
    %3399 = vmatpush1.msra.mxu0 0.0
    %3400 = vmatprep.subr.mxu0 0.0
    %3401 = vmatpush1.msra.mxu0 0.0
    %3402 = vmatprep.subr.mxu0 0.0
    %3403 = vmatpush1.msra.mxu0 0.0
    %3404 = vmatprep.subr.mxu0 0.0
    %3405 = vmatpush1.msra.mxu0 0.0
    %3406 = vmatprep.subr.mxu0 0.0
    %3407 = vmatpush1.msra.mxu0 0.0
    %3408 = vmatprep.subr.mxu0 0.0
    %3409 = vmatpush1.msra.mxu0 0.0
    %3410 = vmatprep.subr.mxu0 0.0
    %3411 = vmatpush1.msra.mxu0 0.0
    %3412 = vmatprep.subr.mxu0 0.0
    %3413 = vmatpush1.msra.mxu0 0.0
    %3414 = vmatprep.subr.mxu0 0.0
    %3415 = vmatpush1.msra.mxu0 0.0
    %3416 = vmatprep.subr.mxu0 0.0
    %3417 = vmatpush1.msra.mxu0 0.0
    %3418 = vmatprep.subr.mxu0 0.0
    %3419 = vmatpush1.msra.mxu0 0.0
    %3420 = vmatprep.subr.mxu0 0.0
    %3421 = vmatpush1.msra.mxu0 0.0
    %3422 = vmatprep.subr.mxu0 0.0
    %3423 = vmatpush1.msra.mxu0 0.0
    %3424 = vmatprep.subr.mxu0 0.0
    %3425 = vmatpush1.msra.mxu0 0.0
    %3426 = vmatprep.subr.mxu0 0.0
    %3427 = vmatpush1.msra.mxu0 0.0
    %3428 = vmatprep.subr.mxu0 0.0
    %3429 = vmatpush1.msra.mxu0 0.0
    %3430 = vmatprep.subr.mxu0 0.0
    %3431 = vmatpush1.msra.mxu0 0.0
    %3432 = vmatprep.subr.mxu0 0.0
    %3433 = vmatpush1.msra.mxu0 0.0
    %3434 = vmatprep.subr.mxu0 0.0
    %3435 = vmatpush1.msra.mxu0 0.0
    %3436 = vmatprep.subr.mxu0 0.0
    %3437 = vmatpush1.msra.mxu0 0.0
    %3438 = vmatprep.subr.mxu0 0.0
    %3439 = vmatpush1.msra.mxu0 0.0
    %3440 = vmatprep.subr.mxu0 0.0
    %3441 = vmatpush1.msra.mxu0 0.0
    %3442 = vmatprep.subr.mxu0 0.0
    %3443 = vmatpush1.msra.mxu0 0.0
    %3444 = vmatprep.subr.mxu0 0.0
    %3445 = vmatpush1.msra.mxu0 0.0
    %3446 = vmatprep.mubr.f32.mxu0 0.0
    %3447 = vmatmul.mubr.f32.gmra.mrb[0].mxu0 %v469
    %v3448 = vpop.f32.mrb[0].mxu0
    %v3449 = vadd.f32 0.0, %v3448
    %v3450 = vpop.f32.mrb[0].mxu0
    %3451 = vdwg.mxu0
    %v3452 = vadd.f32 %v3381, %v3449
    %v3453 = vxor.u32 %v3452, 2147483648
    %v3454 = vmul.f32 %v3453, 1.442695
    %v3455 = vpow.pop %v3454
    %v3456 = vadd.f32 %v3455, 1.0
    %v3457 = vrcp.pop %v3456
    %v3458 = vmul.f32 1.0, %v3457
    %v3459 = vld [vmem:[#allocation3] sm:$0x3]
    %3460 = vmatprep.subr.mxu0 0.0
    %3461 = vmatpush1.msra.mxu0 %v3367
    %3462 = vmatprep.subr.mxu0 0.0
    %3463 = vmatpush1.msra.mxu0 %v3368
    %3464 = vmatprep.subr.mxu0 0.0
    %3465 = vmatpush1.msra.mxu0 %v3369
    %3466 = vmatprep.subr.mxu0 0.0
    %3467 = vmatpush1.msra.mxu0 %v3370
    %3468 = vmatprep.subr.mxu0 0.0
    %3469 = vmatpush1.msra.mxu0 0.0
    %3470 = vmatprep.subr.mxu0 0.0
    %3471 = vmatpush1.msra.mxu0 0.0
    %3472 = vmatprep.subr.mxu0 0.0
    %3473 = vmatpush1.msra.mxu0 0.0
    %3474 = vmatprep.subr.mxu0 0.0
    %3475 = vmatpush1.msra.mxu0 0.0
    %3476 = vmatprep.subr.mxu0 0.0
    %3477 = vmatpush1.msra.mxu0 0.0
    %3478 = vmatprep.subr.mxu0 0.0
    %3479 = vmatpush1.msra.mxu0 0.0
    %3480 = vmatprep.subr.mxu0 0.0
    %3481 = vmatpush1.msra.mxu0 0.0
    %3482 = vmatprep.subr.mxu0 0.0
    %3483 = vmatpush1.msra.mxu0 0.0
    %3484 = vmatprep.subr.mxu0 0.0
    %3485 = vmatpush1.msra.mxu0 0.0
    %3486 = vmatprep.subr.mxu0 0.0
    %3487 = vmatpush1.msra.mxu0 0.0
    %3488 = vmatprep.subr.mxu0 0.0
    %3489 = vmatpush1.msra.mxu0 0.0
    %3490 = vmatprep.subr.mxu0 0.0
    %3491 = vmatpush1.msra.mxu0 0.0
    %3492 = vmatprep.subr.mxu0 0.0
    %3493 = vmatpush1.msra.mxu0 0.0
    %3494 = vmatprep.subr.mxu0 0.0
    %3495 = vmatpush1.msra.mxu0 0.0
    %3496 = vmatprep.subr.mxu0 0.0
    %3497 = vmatpush1.msra.mxu0 0.0
    %3498 = vmatprep.subr.mxu0 0.0
    %3499 = vmatpush1.msra.mxu0 0.0
    %3500 = vmatprep.subr.mxu0 0.0
    %3501 = vmatpush1.msra.mxu0 0.0
    %3502 = vmatprep.subr.mxu0 0.0
    %3503 = vmatpush1.msra.mxu0 0.0
    %3504 = vmatprep.subr.mxu0 0.0
    %3505 = vmatpush1.msra.mxu0 0.0
    %3506 = vmatprep.subr.mxu0 0.0
    %3507 = vmatpush1.msra.mxu0 0.0
    %3508 = vmatprep.subr.mxu0 0.0
    %3509 = vmatpush1.msra.mxu0 0.0
    %3510 = vmatprep.subr.mxu0 0.0
    %3511 = vmatpush1.msra.mxu0 0.0
    %3512 = vmatprep.subr.mxu0 0.0
    %3513 = vmatpush1.msra.mxu0 0.0
    %3514 = vmatprep.subr.mxu0 0.0
    %3515 = vmatpush1.msra.mxu0 0.0
    %3516 = vmatprep.subr.mxu0 0.0
    %3517 = vmatpush1.msra.mxu0 0.0
    %3518 = vmatprep.subr.mxu0 0.0
    %3519 = vmatpush1.msra.mxu0 0.0
    %3520 = vmatprep.subr.mxu0 0.0
    %3521 = vmatpush1.msra.mxu0 0.0
    %3522 = vmatprep.subr.mxu0 0.0
    %3523 = vmatpush1.msra.mxu0 0.0
    %3524 = vmatprep.mubr.f32.mxu0 0.0
    %3525 = vmatmul.mubr.f32.gmra.mrb[0].mxu0 %v469
    %v3526 = vpop.f32.mrb[0].mxu0
    %v3527 = vadd.f32 0.0, %v3526
    %v3528 = vpop.f32.mrb[0].mxu0
    %3529 = vdwg.mxu0
    %v3530 = vadd.f32 %v3459, %v3527
    %v3531 = vxor.u32 %v3530, 2147483648
    %v3532 = vmul.f32 %v3531, 1.442695
    %v3533 = vpow.pop %v3532
    %v3534 = vadd.f32 %v3533, 1.0
    %v3535 = vrcp.pop %v3534
    %v3536 = vmul.f32 1.0, %v3535
    %v3537 = vld [vmem:[#allocation4] sm:$0x3]
    %3538 = vmatprep.subr.mxu0 0.0
    %3539 = vmatpush1.msra.mxu0 %v3372
    %3540 = vmatprep.subr.mxu0 0.0
    %3541 = vmatpush1.msra.mxu0 %v3373
    %3542 = vmatprep.subr.mxu0 0.0
    %3543 = vmatpush1.msra.mxu0 %v3374
    %3544 = vmatprep.subr.mxu0 0.0
    %3545 = vmatpush1.msra.mxu0 %v3375
    %3546 = vmatprep.subr.mxu0 0.0
    %3547 = vmatpush1.msra.mxu0 0.0
    %3548 = vmatprep.subr.mxu0 0.0
    %3549 = vmatpush1.msra.mxu0 0.0
    %3550 = vmatprep.subr.mxu0 0.0
    %3551 = vmatpush1.msra.mxu0 0.0
    %3552 = vmatprep.subr.mxu0 0.0
    %3553 = vmatpush1.msra.mxu0 0.0
    %3554 = vmatprep.subr.mxu0 0.0
    %3555 = vmatpush1.msra.mxu0 0.0
    %3556 = vmatprep.subr.mxu0 0.0
    %3557 = vmatpush1.msra.mxu0 0.0
    %3558 = vmatprep.subr.mxu0 0.0
    %3559 = vmatpush1.msra.mxu0 0.0
    %3560 = vmatprep.subr.mxu0 0.0
    %3561 = vmatpush1.msra.mxu0 0.0
    %3562 = vmatprep.subr.mxu0 0.0
    %3563 = vmatpush1.msra.mxu0 0.0
    %3564 = vmatprep.subr.mxu0 0.0
    %3565 = vmatpush1.msra.mxu0 0.0
    %3566 = vmatprep.subr.mxu0 0.0
    %3567 = vmatpush1.msra.mxu0 0.0
    %3568 = vmatprep.subr.mxu0 0.0
    %3569 = vmatpush1.msra.mxu0 0.0
    %3570 = vmatprep.subr.mxu0 0.0
    %3571 = vmatpush1.msra.mxu0 0.0
    %3572 = vmatprep.subr.mxu0 0.0
    %3573 = vmatpush1.msra.mxu0 0.0
    %3574 = vmatprep.subr.mxu0 0.0
    %3575 = vmatpush1.msra.mxu0 0.0
    %3576 = vmatprep.subr.mxu0 0.0
    %3577 = vmatpush1.msra.mxu0 0.0
    %3578 = vmatprep.subr.mxu0 0.0
    %3579 = vmatpush1.msra.mxu0 0.0
    %3580 = vmatprep.subr.mxu0 0.0
    %3581 = vmatpush1.msra.mxu0 0.0
    %3582 = vmatprep.subr.mxu0 0.0
    %3583 = vmatpush1.msra.mxu0 0.0
    %3584 = vmatprep.subr.mxu0 0.0
    %3585 = vmatpush1.msra.mxu0 0.0
    %3586 = vmatprep.subr.mxu0 0.0
    %3587 = vmatpush1.msra.mxu0 0.0
    %3588 = vmatprep.subr.mxu0 0.0
    %3589 = vmatpush1.msra.mxu0 0.0
    %3590 = vmatprep.subr.mxu0 0.0
    %3591 = vmatpush1.msra.mxu0 0.0
    %3592 = vmatprep.subr.mxu0 0.0
    %3593 = vmatpush1.msra.mxu0 0.0
    %3594 = vmatprep.subr.mxu0 0.0
    %3595 = vmatpush1.msra.mxu0 0.0
    %3596 = vmatprep.subr.mxu0 0.0
    %3597 = vmatpush1.msra.mxu0 0.0
    %3598 = vmatprep.subr.mxu0 0.0
    %3599 = vmatpush1.msra.mxu0 0.0
    %3600 = vmatprep.subr.mxu0 0.0
    %3601 = vmatpush1.msra.mxu0 0.0
    %3602 = vmatprep.mubr.f32.mxu0 0.0
    %3603 = vmatmul.mubr.f32.gmra.mrb[0].mxu0 %v469
    %v3604 = vpop.f32.mrb[0].mxu0
    %v3605 = vadd.f32 0.0, %v3604
    %v3606 = vpop.f32.mrb[0].mxu0
    %3607 = vdwg.mxu0
    %v3608 = vadd.f32 %v3537, %v3605
    %v3609 = vtanh.pop %v3608
    %v3610 = vld [vmem:[#allocation5] sm:$0x3]
    %3611 = vmatprep.subr.mxu0 0.0
    %3612 = vmatpush1.msra.mxu0 %v3377
    %3613 = vmatprep.subr.mxu0 0.0
    %3614 = vmatpush1.msra.mxu0 %v3378
    %3615 = vmatprep.subr.mxu0 0.0
    %3616 = vmatpush1.msra.mxu0 %v3379
    %3617 = vmatprep.subr.mxu0 0.0
    %3618 = vmatpush1.msra.mxu0 %v3380
    %3619 = vmatprep.subr.mxu0 0.0
    %3620 = vmatpush1.msra.mxu0 0.0
    %3621 = vmatprep.subr.mxu0 0.0
    %3622 = vmatpush1.msra.mxu0 0.0
    %3623 = vmatprep.subr.mxu0 0.0
    %3624 = vmatpush1.msra.mxu0 0.0
    %3625 = vmatprep.subr.mxu0 0.0
    %3626 = vmatpush1.msra.mxu0 0.0
    %3627 = vmatprep.subr.mxu0 0.0
    %3628 = vmatpush1.msra.mxu0 0.0
    %3629 = vmatprep.subr.mxu0 0.0
    %3630 = vmatpush1.msra.mxu0 0.0
    %3631 = vmatprep.subr.mxu0 0.0
    %3632 = vmatpush1.msra.mxu0 0.0
    %3633 = vmatprep.subr.mxu0 0.0
    %3634 = vmatpush1.msra.mxu0 0.0
    %3635 = vmatprep.subr.mxu0 0.0
    %3636 = vmatpush1.msra.mxu0 0.0
    %3637 = vmatprep.subr.mxu0 0.0
    %3638 = vmatpush1.msra.mxu0 0.0
    %3639 = vmatprep.subr.mxu0 0.0
    %3640 = vmatpush1.msra.mxu0 0.0
    %3641 = vmatprep.subr.mxu0 0.0
    %3642 = vmatpush1.msra.mxu0 0.0
    %3643 = vmatprep.subr.mxu0 0.0
    %3644 = vmatpush1.msra.mxu0 0.0
    %3645 = vmatprep.subr.mxu0 0.0
    %3646 = vmatpush1.msra.mxu0 0.0
    %3647 = vmatprep.subr.mxu0 0.0
    %3648 = vmatpush1.msra.mxu0 0.0
    %3649 = vmatprep.subr.mxu0 0.0
    %3650 = vmatpush1.msra.mxu0 0.0
    %3651 = vmatprep.subr.mxu0 0.0
    %3652 = vmatpush1.msra.mxu0 0.0
    %3653 = vmatprep.subr.mxu0 0.0
    %3654 = vmatpush1.msra.mxu0 0.0
    %3655 = vmatprep.subr.mxu0 0.0
    %3656 = vmatpush1.msra.mxu0 0.0
    %3657 = vmatprep.subr.mxu0 0.0
    %3658 = vmatpush1.msra.mxu0 0.0
    %3659 = vmatprep.subr.mxu0 0.0
    %3660 = vmatpush1.msra.mxu0 0.0
    %3661 = vmatprep.subr.mxu0 0.0
    %3662 = vmatpush1.msra.mxu0 0.0
    %3663 = vmatprep.subr.mxu0 0.0
    %3664 = vmatpush1.msra.mxu0 0.0
    %3665 = vmatprep.subr.mxu0 0.0
    %3666 = vmatpush1.msra.mxu0 0.0
    %3667 = vmatprep.subr.mxu0 0.0
    %3668 = vmatpush1.msra.mxu0 0.0
    %3669 = vmatprep.subr.mxu0 0.0
    %3670 = vmatpush1.msra.mxu0 0.0
    %3671 = vmatprep.subr.mxu0 0.0
    %3672 = vmatpush1.msra.mxu0 0.0
    %3673 = vmatprep.subr.mxu0 0.0
    %3674 = vmatpush1.msra.mxu0 0.0
    %3675 = vmatprep.mubr.f32.mxu0 0.0
    %3676 = vmatmul.mubr.f32.gmra.mrb[0].mxu0 %v469
    %v3677 = vpop.f32.mrb[0].mxu0
    %v3678 = vadd.f32 0.0, %v3677
    %v3679 = vpop.f32.mrb[0].mxu0
    %3680 = vdwg.mxu0
    %v3681 = vadd.f32 %v3610, %v3678
    %v3682 = vxor.u32 %v3681, 2147483648
    %v3683 = vmul.f32 %v3682, 1.442695
    %v3684 = vpow.pop %v3683
    %v3685 = vadd.f32 %v3684, 1.0
    %v3686 = vrcp.pop %v3685
    %v3687 = vmul.f32 1.0, %v3686
    %v3688 = vmul.f32 %v3536, 0.0
    %v3689 = vmul.f32 %v3458, %v3609
    %v3690 = vadd.f32 %v3688, %v3689
    %v3691 = vtanh.pop %v3690
    %v3692 = vmul.f32 %v3687, %v3691
    %v3693 = vld [vmem:[#allocation2 + $0x2] sm:$0x3]
    %v3695 = vsel %vm181, %v3692, 0
    %3697 = vmatprep.subr.mxu0 0.0
    %3698 = vmatpush1.msra.mxu0 %v3362
    %3699 = vmatprep.subr.mxu0 0.0
    %3700 = vmatpush1.msra.mxu0 %v3363
    %3701 = vmatprep.subr.mxu0 0.0
    %3702 = vmatpush1.msra.mxu0 %v3364
    %3703 = vmatprep.subr.mxu0 0.0
    %3704 = vmatpush1.msra.mxu0 %v3365
    %3705 = vmatprep.subr.mxu0 0.0
    %3706 = vmatpush1.msra.mxu0 0.0
    %3707 = vmatprep.subr.mxu0 0.0
    %3708 = vmatpush1.msra.mxu0 0.0
    %3709 = vmatprep.subr.mxu0 0.0
    %3710 = vmatpush1.msra.mxu0 0.0
    %3711 = vmatprep.subr.mxu0 0.0
    %3712 = vmatpush1.msra.mxu0 0.0
    %3713 = vmatprep.subr.mxu0 0.0
    %3714 = vmatpush1.msra.mxu0 0.0
    %3715 = vmatprep.subr.mxu0 0.0
    %3716 = vmatpush1.msra.mxu0 0.0
    %3717 = vmatprep.subr.mxu0 0.0
    %3718 = vmatpush1.msra.mxu0 0.0
    %3719 = vmatprep.subr.mxu0 0.0
    %3720 = vmatpush1.msra.mxu0 0.0
    %3721 = vmatprep.subr.mxu0 0.0
    %3722 = vmatpush1.msra.mxu0 0.0
    %3723 = vmatprep.subr.mxu0 0.0
    %3724 = vmatpush1.msra.mxu0 0.0
    %3725 = vmatprep.subr.mxu0 0.0
    %3726 = vmatpush1.msra.mxu0 0.0
    %3727 = vmatprep.subr.mxu0 0.0
    %3728 = vmatpush1.msra.mxu0 0.0
    %3729 = vmatprep.subr.mxu0 0.0
    %3730 = vmatpush1.msra.mxu0 0.0
    %3731 = vmatprep.subr.mxu0 0.0
    %3732 = vmatpush1.msra.mxu0 0.0
    %3733 = vmatprep.subr.mxu0 0.0
    %3734 = vmatpush1.msra.mxu0 0.0
    %3735 = vmatprep.subr.mxu0 0.0
    %3736 = vmatpush1.msra.mxu0 0.0
    %3737 = vmatprep.subr.mxu0 0.0
    %3738 = vmatpush1.msra.mxu0 0.0
    %3739 = vmatprep.subr.mxu0 0.0
    %3740 = vmatpush1.msra.mxu0 0.0
    %3741 = vmatprep.subr.mxu0 0.0
    %3742 = vmatpush1.msra.mxu0 0.0
    %3743 = vmatprep.subr.mxu0 0.0
    %3744 = vmatpush1.msra.mxu0 0.0
    %3745 = vmatprep.subr.mxu0 0.0
    %3746 = vmatpush1.msra.mxu0 0.0
    %3747 = vmatprep.subr.mxu0 0.0
    %3748 = vmatpush1.msra.mxu0 0.0
    %3749 = vmatprep.subr.mxu0 0.0
    %3750 = vmatpush1.msra.mxu0 0.0
    %3751 = vmatprep.subr.mxu0 0.0
    %3752 = vmatpush1.msra.mxu0 0.0
    %3753 = vmatprep.subr.mxu0 0.0
    %3754 = vmatpush1.msra.mxu0 0.0
    %3755 = vmatprep.subr.mxu0 0.0
    %3756 = vmatpush1.msra.mxu0 0.0
    %3757 = vmatprep.subr.mxu0 0.0
    %3758 = vmatpush1.msra.mxu0 0.0
    %3759 = vmatprep.subr.mxu0 0.0
    %3760 = vmatpush1.msra.mxu0 0.0
    %3761 = vmatprep.mubr.f32.mxu0 0.0
    %3762 = vmatmul.mubr.f32.gmra.mrb[0].mxu0 %v3695
    %v3763 = vpop.f32.mrb[0].mxu0
    %v3764 = vadd.f32 0.0, %v3763
    %v3765 = vpop.f32.mrb[0].mxu0
    %3766 = vdwg.mxu0
    %v3767 = vadd.f32 %v3693, %v3764
    %v3768 = vxor.u32 %v3767, 2147483648
    %v3769 = vmul.f32 %v3768, 1.442695
    %v3770 = vpow.pop %v3769
    %v3771 = vadd.f32 %v3770, 1.0
    %v3772 = vrcp.pop %v3771
    %v3773 = vmul.f32 1.0, %v3772
    %v3774 = vld [vmem:[#allocation3 + $0x2] sm:$0x3]
    %3775 = vmatprep.subr.mxu0 0.0
    %3776 = vmatpush1.msra.mxu0 %v3367
    %3777 = vmatprep.subr.mxu0 0.0
    %3778 = vmatpush1.msra.mxu0 %v3368
    %3779 = vmatprep.subr.mxu0 0.0
    %3780 = vmatpush1.msra.mxu0 %v3369
    %3781 = vmatprep.subr.mxu0 0.0
    %3782 = vmatpush1.msra.mxu0 %v3370
    %3783 = vmatprep.subr.mxu0 0.0
    %3784 = vmatpush1.msra.mxu0 0.0
    %3785 = vmatprep.subr.mxu0 0.0
    %3786 = vmatpush1.msra.mxu0 0.0
    %3787 = vmatprep.subr.mxu0 0.0
    %3788 = vmatpush1.msra.mxu0 0.0
    %3789 = vmatprep.subr.mxu0 0.0
    %3790 = vmatpush1.msra.mxu0 0.0
    %3791 = vmatprep.subr.mxu0 0.0
    %3792 = vmatpush1.msra.mxu0 0.0
    %3793 = vmatprep.subr.mxu0 0.0
    %3794 = vmatpush1.msra.mxu0 0.0
    %3795 = vmatprep.subr.mxu0 0.0
    %3796 = vmatpush1.msra.mxu0 0.0
    %3797 = vmatprep.subr.mxu0 0.0
    %3798 = vmatpush1.msra.mxu0 0.0
    %3799 = vmatprep.subr.mxu0 0.0
    %3800 = vmatpush1.msra.mxu0 0.0
    %3801 = vmatprep.subr.mxu0 0.0
    %3802 = vmatpush1.msra.mxu0 0.0
    %3803 = vmatprep.subr.mxu0 0.0
    %3804 = vmatpush1.msra.mxu0 0.0
    %3805 = vmatprep.subr.mxu0 0.0
    %3806 = vmatpush1.msra.mxu0 0.0
    %3807 = vmatprep.subr.mxu0 0.0
    %3808 = vmatpush1.msra.mxu0 0.0
    %3809 = vmatprep.subr.mxu0 0.0
    %3810 = vmatpush1.msra.mxu0 0.0
    %3811 = vmatprep.subr.mxu0 0.0
    %3812 = vmatpush1.msra.mxu0 0.0
    %3813 = vmatprep.subr.mxu0 0.0
    %3814 = vmatpush1.msra.mxu0 0.0
    %3815 = vmatprep.subr.mxu0 0.0
    %3816 = vmatpush1.msra.mxu0 0.0
    %3817 = vmatprep.subr.mxu0 0.0
    %3818 = vmatpush1.msra.mxu0 0.0
    %3819 = vmatprep.subr.mxu0 0.0
    %3820 = vmatpush1.msra.mxu0 0.0
    %3821 = vmatprep.subr.mxu0 0.0
    %3822 = vmatpush1.msra.mxu0 0.0
    %3823 = vmatprep.subr.mxu0 0.0
    %3824 = vmatpush1.msra.mxu0 0.0
    %3825 = vmatprep.subr.mxu0 0.0
    %3826 = vmatpush1.msra.mxu0 0.0
    %3827 = vmatprep.subr.mxu0 0.0
    %3828 = vmatpush1.msra.mxu0 0.0
    %3829 = vmatprep.subr.mxu0 0.0
    %3830 = vmatpush1.msra.mxu0 0.0
    %3831 = vmatprep.subr.mxu0 0.0
    %3832 = vmatpush1.msra.mxu0 0.0
    %3833 = vmatprep.subr.mxu0 0.0
    %3834 = vmatpush1.msra.mxu0 0.0
    %3835 = vmatprep.subr.mxu0 0.0
    %3836 = vmatpush1.msra.mxu0 0.0
    %3837 = vmatprep.subr.mxu0 0.0
    %3838 = vmatpush1.msra.mxu0 0.0
    %3839 = vmatprep.mubr.f32.mxu0 0.0
    %3840 = vmatmul.mubr.f32.gmra.mrb[0].mxu0 %v3695
    %v3841 = vpop.f32.mrb[0].mxu0
    %v3842 = vadd.f32 0.0, %v3841
    %v3843 = vpop.f32.mrb[0].mxu0
    %3844 = vdwg.mxu0
    %v3845 = vadd.f32 %v3774, %v3842
    %v3846 = vxor.u32 %v3845, 2147483648
    %v3847 = vmul.f32 %v3846, 1.442695
    %v3848 = vpow.pop %v3847
    %v3849 = vadd.f32 %v3848, 1.0
    %v3850 = vrcp.pop %v3849
    %v3851 = vmul.f32 1.0, %v3850
    %v3852 = vld [vmem:[#allocation4 + $0x2] sm:$0x3]
    %3853 = vmatprep.subr.mxu0 0.0
    %3854 = vmatpush1.msra.mxu0 %v3372
    %3855 = vmatprep.subr.mxu0 0.0
    %3856 = vmatpush1.msra.mxu0 %v3373
    %3857 = vmatprep.subr.mxu0 0.0
    %3858 = vmatpush1.msra.mxu0 %v3374
    %3859 = vmatprep.subr.mxu0 0.0
    %3860 = vmatpush1.msra.mxu0 %v3375
    %3861 = vmatprep.subr.mxu0 0.0
    %3862 = vmatpush1.msra.mxu0 0.0
    %3863 = vmatprep.subr.mxu0 0.0
    %3864 = vmatpush1.msra.mxu0 0.0
    %3865 = vmatprep.subr.mxu0 0.0
    %3866 = vmatpush1.msra.mxu0 0.0
    %3867 = vmatprep.subr.mxu0 0.0
    %3868 = vmatpush1.msra.mxu0 0.0
    %3869 = vmatprep.subr.mxu0 0.0
    %3870 = vmatpush1.msra.mxu0 0.0
    %3871 = vmatprep.subr.mxu0 0.0
    %3872 = vmatpush1.msra.mxu0 0.0
    %3873 = vmatprep.subr.mxu0 0.0
    %3874 = vmatpush1.msra.mxu0 0.0
    %3875 = vmatprep.subr.mxu0 0.0
    %3876 = vmatpush1.msra.mxu0 0.0
    %3877 = vmatprep.subr.mxu0 0.0
    %3878 = vmatpush1.msra.mxu0 0.0
    %3879 = vmatprep.subr.mxu0 0.0
    %3880 = vmatpush1.msra.mxu0 0.0
    %3881 = vmatprep.subr.mxu0 0.0
    %3882 = vmatpush1.msra.mxu0 0.0
    %3883 = vmatprep.subr.mxu0 0.0
    %3884 = vmatpush1.msra.mxu0 0.0
    %3885 = vmatprep.subr.mxu0 0.0
    %3886 = vmatpush1.msra.mxu0 0.0
    %3887 = vmatprep.subr.mxu0 0.0
    %3888 = vmatpush1.msra.mxu0 0.0
    %3889 = vmatprep.subr.mxu0 0.0
    %3890 = vmatpush1.msra.mxu0 0.0
    %3891 = vmatprep.subr.mxu0 0.0
    %3892 = vmatpush1.msra.mxu0 0.0
    %3893 = vmatprep.subr.mxu0 0.0
    %3894 = vmatpush1.msra.mxu0 0.0
    %3895 = vmatprep.subr.mxu0 0.0
    %3896 = vmatpush1.msra.mxu0 0.0
    %3897 = vmatprep.subr.mxu0 0.0
    %3898 = vmatpush1.msra.mxu0 0.0
    %3899 = vmatprep.subr.mxu0 0.0
    %3900 = vmatpush1.msra.mxu0 0.0
    %3901 = vmatprep.subr.mxu0 0.0
    %3902 = vmatpush1.msra.mxu0 0.0
    %3903 = vmatprep.subr.mxu0 0.0
    %3904 = vmatpush1.msra.mxu0 0.0
    %3905 = vmatprep.subr.mxu0 0.0
    %3906 = vmatpush1.msra.mxu0 0.0
    %3907 = vmatprep.subr.mxu0 0.0
    %3908 = vmatpush1.msra.mxu0 0.0
    %3909 = vmatprep.subr.mxu0 0.0
    %3910 = vmatpush1.msra.mxu0 0.0
    %3911 = vmatprep.subr.mxu0 0.0
    %3912 = vmatpush1.msra.mxu0 0.0
    %3913 = vmatprep.subr.mxu0 0.0
    %3914 = vmatpush1.msra.mxu0 0.0
    %3915 = vmatprep.subr.mxu0 0.0
    %3916 = vmatpush1.msra.mxu0 0.0
    %3917 = vmatprep.mubr.f32.mxu0 0.0
    %3918 = vmatmul.mubr.f32.gmra.mrb[0].mxu0 %v3695
    %v3919 = vpop.f32.mrb[0].mxu0
    %v3920 = vadd.f32 0.0, %v3919
    %v3921 = vpop.f32.mrb[0].mxu0
    %3922 = vdwg.mxu0
    %v3923 = vadd.f32 %v3852, %v3920
    %v3924 = vtanh.pop %v3923
    %v3925 = vld [vmem:[#allocation5 + $0x2] sm:$0x3]
    %3926 = vmatprep.subr.mxu0 0.0
    %3927 = vmatpush1.msra.mxu0 %v3377
    %3928 = vmatprep.subr.mxu0 0.0
    %3929 = vmatpush1.msra.mxu0 %v3378
    %3930 = vmatprep.subr.mxu0 0.0
    %3931 = vmatpush1.msra.mxu0 %v3379
    %3932 = vmatprep.subr.mxu0 0.0
    %3933 = vmatpush1.msra.mxu0 %v3380
    %3934 = vmatprep.subr.mxu0 0.0
    %3935 = vmatpush1.msra.mxu0 0.0
    %3936 = vmatprep.subr.mxu0 0.0
    %3937 = vmatpush1.msra.mxu0 0.0
    %3938 = vmatprep.subr.mxu0 0.0
    %3939 = vmatpush1.msra.mxu0 0.0
    %3940 = vmatprep.subr.mxu0 0.0
    %3941 = vmatpush1.msra.mxu0 0.0
    %3942 = vmatprep.subr.mxu0 0.0
    %3943 = vmatpush1.msra.mxu0 0.0
    %3944 = vmatprep.subr.mxu0 0.0
    %3945 = vmatpush1.msra.mxu0 0.0
    %3946 = vmatprep.subr.mxu0 0.0
    %3947 = vmatpush1.msra.mxu0 0.0
    %3948 = vmatprep.subr.mxu0 0.0
    %3949 = vmatpush1.msra.mxu0 0.0
    %3950 = vmatprep.subr.mxu0 0.0
    %3951 = vmatpush1.msra.mxu0 0.0
    %3952 = vmatprep.subr.mxu0 0.0
    %3953 = vmatpush1.msra.mxu0 0.0
    %3954 = vmatprep.subr.mxu0 0.0
    %3955 = vmatpush1.msra.mxu0 0.0
    %3956 = vmatprep.subr.mxu0 0.0
    %3957 = vmatpush1.msra.mxu0 0.0
    %3958 = vmatprep.subr.mxu0 0.0
    %3959 = vmatpush1.msra.mxu0 0.0
    %3960 = vmatprep.subr.mxu0 0.0
    %3961 = vmatpush1.msra.mxu0 0.0
    %3962 = vmatprep.subr.mxu0 0.0
    %3963 = vmatpush1.msra.mxu0 0.0
    %3964 = vmatprep.subr.mxu0 0.0
    %3965 = vmatpush1.msra.mxu0 0.0
    %3966 = vmatprep.subr.mxu0 0.0
    %3967 = vmatpush1.msra.mxu0 0.0
    %3968 = vmatprep.subr.mxu0 0.0
    %3969 = vmatpush1.msra.mxu0 0.0
    %3970 = vmatprep.subr.mxu0 0.0
    %3971 = vmatpush1.msra.mxu0 0.0
    %3972 = vmatprep.subr.mxu0 0.0
    %3973 = vmatpush1.msra.mxu0 0.0
    %3974 = vmatprep.subr.mxu0 0.0
    %3975 = vmatpush1.msra.mxu0 0.0
    %3976 = vmatprep.subr.mxu0 0.0
    %3977 = vmatpush1.msra.mxu0 0.0
    %3978 = vmatprep.subr.mxu0 0.0
    %3979 = vmatpush1.msra.mxu0 0.0
    %3980 = vmatprep.subr.mxu0 0.0
    %3981 = vmatpush1.msra.mxu0 0.0
    %3982 = vmatprep.subr.mxu0 0.0
    %3983 = vmatpush1.msra.mxu0 0.0
    %3984 = vmatprep.subr.mxu0 0.0
    %3985 = vmatpush1.msra.mxu0 0.0
    %3986 = vmatprep.subr.mxu0 0.0
    %3987 = vmatpush1.msra.mxu0 0.0
    %3988 = vmatprep.subr.mxu0 0.0
    %3989 = vmatpush1.msra.mxu0 0.0
    %3990 = vmatprep.mubr.f32.mxu0 0.0
    %3991 = vmatmul.mubr.f32.gmra.mrb[0].mxu0 %v3695
    %v3992 = vpop.f32.mrb[0].mxu0
    %v3993 = vadd.f32 0.0, %v3992
    %v3994 = vpop.f32.mrb[0].mxu0
    %3995 = vdwg.mxu0
    %v3996 = vadd.f32 %v3925, %v3993
    %v3997 = vxor.u32 %v3996, 2147483648
    %v3998 = vmul.f32 %v3997, 1.442695
    %v3999 = vpow.pop %v3998
    %v4000 = vadd.f32 %v3999, 1.0
    %v4001 = vrcp.pop %v4000
    %v4002 = vmul.f32 1.0, %v4001
    %v4003 = vmul.f32 %v3851, %v3690
    %v4004 = vmul.f32 %v3773, %v3924
    %v4005 = vadd.f32 %v4003, %v4004
    %v4006 = vtanh.pop %v4005
    %v4007 = vmul.f32 %v4002, %v4006
    %v4008 = vld [vmem:[#allocation2 + $0x4] sm:$0x3]
    %v4010 = vsel %vm181, %v4007, 0
    %4012 = vmatprep.subr.mxu0 0.0
    %4013 = vmatpush1.msra.mxu0 %v3362
    %4014 = vmatprep.subr.mxu0 0.0
    %4015 = vmatpush1.msra.mxu0 %v3363
    %4016 = vmatprep.subr.mxu0 0.0
    %4017 = vmatpush1.msra.mxu0 %v3364
    %4018 = vmatprep.subr.mxu0 0.0
    %4019 = vmatpush1.msra.mxu0 %v3365
    %4020 = vmatprep.subr.mxu0 0.0
    %4021 = vmatpush1.msra.mxu0 0.0
    %4022 = vmatprep.subr.mxu0 0.0
    %4023 = vmatpush1.msra.mxu0 0.0
    %4024 = vmatprep.subr.mxu0 0.0
    %4025 = vmatpush1.msra.mxu0 0.0
    %4026 = vmatprep.subr.mxu0 0.0
    %4027 = vmatpush1.msra.mxu0 0.0
    %4028 = vmatprep.subr.mxu0 0.0
    %4029 = vmatpush1.msra.mxu0 0.0
    %4030 = vmatprep.subr.mxu0 0.0
    %4031 = vmatpush1.msra.mxu0 0.0
    %4032 = vmatprep.subr.mxu0 0.0
    %4033 = vmatpush1.msra.mxu0 0.0
    %4034 = vmatprep.subr.mxu0 0.0
    %4035 = vmatpush1.msra.mxu0 0.0
    %4036 = vmatprep.subr.mxu0 0.0
    %4037 = vmatpush1.msra.mxu0 0.0
    %4038 = vmatprep.subr.mxu0 0.0
    %4039 = vmatpush1.msra.mxu0 0.0
    %4040 = vmatprep.subr.mxu0 0.0
    %4041 = vmatpush1.msra.mxu0 0.0
    %4042 = vmatprep.subr.mxu0 0.0
    %4043 = vmatpush1.msra.mxu0 0.0
    %4044 = vmatprep.subr.mxu0 0.0
    %4045 = vmatpush1.msra.mxu0 0.0
    %4046 = vmatprep.subr.mxu0 0.0
    %4047 = vmatpush1.msra.mxu0 0.0
    %4048 = vmatprep.subr.mxu0 0.0
    %4049 = vmatpush1.msra.mxu0 0.0
    %4050 = vmatprep.subr.mxu0 0.0
    %4051 = vmatpush1.msra.mxu0 0.0
    %4052 = vmatprep.subr.mxu0 0.0
    %4053 = vmatpush1.msra.mxu0 0.0
    %4054 = vmatprep.subr.mxu0 0.0
    %4055 = vmatpush1.msra.mxu0 0.0
    %4056 = vmatprep.subr.mxu0 0.0
    %4057 = vmatpush1.msra.mxu0 0.0
    %4058 = vmatprep.subr.mxu0 0.0
    %4059 = vmatpush1.msra.mxu0 0.0
    %4060 = vmatprep.subr.mxu0 0.0
    %4061 = vmatpush1.msra.mxu0 0.0
    %4062 = vmatprep.subr.mxu0 0.0
    %4063 = vmatpush1.msra.mxu0 0.0
    %4064 = vmatprep.subr.mxu0 0.0
    %4065 = vmatpush1.msra.mxu0 0.0
    %4066 = vmatprep.subr.mxu0 0.0
    %4067 = vmatpush1.msra.mxu0 0.0
    %4068 = vmatprep.subr.mxu0 0.0
    %4069 = vmatpush1.msra.mxu0 0.0
    %4070 = vmatprep.subr.mxu0 0.0
    %4071 = vmatpush1.msra.mxu0 0.0
    %4072 = vmatprep.subr.mxu0 0.0
    %4073 = vmatpush1.msra.mxu0 0.0
    %4074 = vmatprep.subr.mxu0 0.0
    %4075 = vmatpush1.msra.mxu0 0.0
    %4076 = vmatprep.mubr.f32.mxu0 0.0
    %4077 = vmatmul.mubr.f32.gmra.mrb[0].mxu0 %v4010
    %v4078 = vpop.f32.mrb[0].mxu0
    %v4079 = vadd.f32 0.0, %v4078
    %v4080 = vpop.f32.mrb[0].mxu0
    %4081 = vdwg.mxu0
    %v4082 = vadd.f32 %v4008, %v4079
    %v4083 = vxor.u32 %v4082, 2147483648
    %v4084 = vmul.f32 %v4083, 1.442695
    %v4085 = vpow.pop %v4084
    %v4086 = vadd.f32 %v4085, 1.0
    %v4087 = vrcp.pop %v4086
    %v4088 = vmul.f32 1.0, %v4087
    %v4089 = vld [vmem:[#allocation3 + $0x4] sm:$0x3]
    %4090 = vmatprep.subr.mxu0 0.0
    %4091 = vmatpush1.msra.mxu0 %v3367
    %4092 = vmatprep.subr.mxu0 0.0
    %4093 = vmatpush1.msra.mxu0 %v3368
    %4094 = vmatprep.subr.mxu0 0.0
    %4095 = vmatpush1.msra.mxu0 %v3369
    %4096 = vmatprep.subr.mxu0 0.0
    %4097 = vmatpush1.msra.mxu0 %v3370
    %4098 = vmatprep.subr.mxu0 0.0
    %4099 = vmatpush1.msra.mxu0 0.0
    %4100 = vmatprep.subr.mxu0 0.0
    %4101 = vmatpush1.msra.mxu0 0.0
    %4102 = vmatprep.subr.mxu0 0.0
    %4103 = vmatpush1.msra.mxu0 0.0
    %4104 = vmatprep.subr.mxu0 0.0
    %4105 = vmatpush1.msra.mxu0 0.0
    %4106 = vmatprep.subr.mxu0 0.0
    %4107 = vmatpush1.msra.mxu0 0.0
    %4108 = vmatprep.subr.mxu0 0.0
    %4109 = vmatpush1.msra.mxu0 0.0
    %4110 = vmatprep.subr.mxu0 0.0
    %4111 = vmatpush1.msra.mxu0 0.0
    %4112 = vmatprep.subr.mxu0 0.0
    %4113 = vmatpush1.msra.mxu0 0.0
    %4114 = vmatprep.subr.mxu0 0.0
    %4115 = vmatpush1.msra.mxu0 0.0
    %4116 = vmatprep.subr.mxu0 0.0
    %4117 = vmatpush1.msra.mxu0 0.0
    %4118 = vmatprep.subr.mxu0 0.0
    %4119 = vmatpush1.msra.mxu0 0.0
    %4120 = vmatprep.subr.mxu0 0.0
    %4121 = vmatpush1.msra.mxu0 0.0
    %4122 = vmatprep.subr.mxu0 0.0
    %4123 = vmatpush1.msra.mxu0 0.0
    %4124 = vmatprep.subr.mxu0 0.0
    %4125 = vmatpush1.msra.mxu0 0.0
    %4126 = vmatprep.subr.mxu0 0.0
    %4127 = vmatpush1.msra.mxu0 0.0
    %4128 = vmatprep.subr.mxu0 0.0
    %4129 = vmatpush1.msra.mxu0 0.0
    %4130 = vmatprep.subr.mxu0 0.0
    %4131 = vmatpush1.msra.mxu0 0.0
    %4132 = vmatprep.subr.mxu0 0.0
    %4133 = vmatpush1.msra.mxu0 0.0
    %4134 = vmatprep.subr.mxu0 0.0
    %4135 = vmatpush1.msra.mxu0 0.0
    %4136 = vmatprep.subr.mxu0 0.0
    %4137 = vmatpush1.msra.mxu0 0.0
    %4138 = vmatprep.subr.mxu0 0.0
    %4139 = vmatpush1.msra.mxu0 0.0
    %4140 = vmatprep.subr.mxu0 0.0
    %4141 = vmatpush1.msra.mxu0 0.0
    %4142 = vmatprep.subr.mxu0 0.0
    %4143 = vmatpush1.msra.mxu0 0.0
    %4144 = vmatprep.subr.mxu0 0.0
    %4145 = vmatpush1.msra.mxu0 0.0
    %4146 = vmatprep.subr.mxu0 0.0
    %4147 = vmatpush1.msra.mxu0 0.0
    %4148 = vmatprep.subr.mxu0 0.0
    %4149 = vmatpush1.msra.mxu0 0.0
    %4150 = vmatprep.subr.mxu0 0.0
    %4151 = vmatpush1.msra.mxu0 0.0
    %4152 = vmatprep.subr.mxu0 0.0
    %4153 = vmatpush1.msra.mxu0 0.0
    %4154 = vmatprep.mubr.f32.mxu0 0.0
    %4155 = vmatmul.mubr.f32.gmra.mrb[0].mxu0 %v4010
    %v4156 = vpop.f32.mrb[0].mxu0
    %v4157 = vadd.f32 0.0, %v4156
    %v4158 = vpop.f32.mrb[0].mxu0
    %4159 = vdwg.mxu0
    %v4160 = vadd.f32 %v4089, %v4157
    %v4161 = vxor.u32 %v4160, 2147483648
    %v4162 = vmul.f32 %v4161, 1.442695
    %v4163 = vpow.pop %v4162
    %v4164 = vadd.f32 %v4163, 1.0
    %v4165 = vrcp.pop %v4164
    %v4166 = vmul.f32 1.0, %v4165
    %v4167 = vld [vmem:[#allocation4 + $0x4] sm:$0x3]
    %4168 = vmatprep.subr.mxu0 0.0
    %4169 = vmatpush1.msra.mxu0 %v3372
    %4170 = vmatprep.subr.mxu0 0.0
    %4171 = vmatpush1.msra.mxu0 %v3373
    %4172 = vmatprep.subr.mxu0 0.0
    %4173 = vmatpush1.msra.mxu0 %v3374
    %4174 = vmatprep.subr.mxu0 0.0
    %4175 = vmatpush1.msra.mxu0 %v3375
    %4176 = vmatprep.subr.mxu0 0.0
    %4177 = vmatpush1.msra.mxu0 0.0
    %4178 = vmatprep.subr.mxu0 0.0
    %4179 = vmatpush1.msra.mxu0 0.0
    %4180 = vmatprep.subr.mxu0 0.0
    %4181 = vmatpush1.msra.mxu0 0.0
    %4182 = vmatprep.subr.mxu0 0.0
    %4183 = vmatpush1.msra.mxu0 0.0
    %4184 = vmatprep.subr.mxu0 0.0
    %4185 = vmatpush1.msra.mxu0 0.0
    %4186 = vmatprep.subr.mxu0 0.0
    %4187 = vmatpush1.msra.mxu0 0.0
    %4188 = vmatprep.subr.mxu0 0.0
    %4189 = vmatpush1.msra.mxu0 0.0
    %4190 = vmatprep.subr.mxu0 0.0
    %4191 = vmatpush1.msra.mxu0 0.0
    %4192 = vmatprep.subr.mxu0 0.0
    %4193 = vmatpush1.msra.mxu0 0.0
    %4194 = vmatprep.subr.mxu0 0.0
    %4195 = vmatpush1.msra.mxu0 0.0
    %4196 = vmatprep.subr.mxu0 0.0
    %4197 = vmatpush1.msra.mxu0 0.0
    %4198 = vmatprep.subr.mxu0 0.0
    %4199 = vmatpush1.msra.mxu0 0.0
    %4200 = vmatprep.subr.mxu0 0.0
    %4201 = vmatpush1.msra.mxu0 0.0
    %4202 = vmatprep.subr.mxu0 0.0
    %4203 = vmatpush1.msra.mxu0 0.0
    %4204 = vmatprep.subr.mxu0 0.0
    %4205 = vmatpush1.msra.mxu0 0.0
    %4206 = vmatprep.subr.mxu0 0.0
    %4207 = vmatpush1.msra.mxu0 0.0
    %4208 = vmatprep.subr.mxu0 0.0
    %4209 = vmatpush1.msra.mxu0 0.0
    %4210 = vmatprep.subr.mxu0 0.0
    %4211 = vmatpush1.msra.mxu0 0.0
    %4212 = vmatprep.subr.mxu0 0.0
    %4213 = vmatpush1.msra.mxu0 0.0
    %4214 = vmatprep.subr.mxu0 0.0
    %4215 = vmatpush1.msra.mxu0 0.0
    %4216 = vmatprep.subr.mxu0 0.0
    %4217 = vmatpush1.msra.mxu0 0.0
    %4218 = vmatprep.subr.mxu0 0.0
    %4219 = vmatpush1.msra.mxu0 0.0
    %4220 = vmatprep.subr.mxu0 0.0
    %4221 = vmatpush1.msra.mxu0 0.0
    %4222 = vmatprep.subr.mxu0 0.0
    %4223 = vmatpush1.msra.mxu0 0.0
    %4224 = vmatprep.subr.mxu0 0.0
    %4225 = vmatpush1.msra.mxu0 0.0
    %4226 = vmatprep.subr.mxu0 0.0
    %4227 = vmatpush1.msra.mxu0 0.0
    %4228 = vmatprep.subr.mxu0 0.0
    %4229 = vmatpush1.msra.mxu0 0.0
    %4230 = vmatprep.subr.mxu0 0.0
    %4231 = vmatpush1.msra.mxu0 0.0
    %4232 = vmatprep.mubr.f32.mxu0 0.0
    %4233 = vmatmul.mubr.f32.gmra.mrb[0].mxu0 %v4010
    %v4234 = vpop.f32.mrb[0].mxu0
    %v4235 = vadd.f32 0.0, %v4234
    %v4236 = vpop.f32.mrb[0].mxu0
    %4237 = vdwg.mxu0
    %v4238 = vadd.f32 %v4167, %v4235
    %v4239 = vtanh.pop %v4238
    %v4240 = vld [vmem:[#allocation5 + $0x4] sm:$0x3]
    %4241 = vmatprep.subr.mxu0 0.0
    %4242 = vmatpush1.msra.mxu0 %v3377
    %4243 = vmatprep.subr.mxu0 0.0
    %4244 = vmatpush1.msra.mxu0 %v3378
    %4245 = vmatprep.subr.mxu0 0.0
    %4246 = vmatpush1.msra.mxu0 %v3379
    %4247 = vmatprep.subr.mxu0 0.0
    %4248 = vmatpush1.msra.mxu0 %v3380
    %4249 = vmatprep.subr.mxu0 0.0
    %4250 = vmatpush1.msra.mxu0 0.0
    %4251 = vmatprep.subr.mxu0 0.0
    %4252 = vmatpush1.msra.mxu0 0.0
    %4253 = vmatprep.subr.mxu0 0.0
    %4254 = vmatpush1.msra.mxu0 0.0
    %4255 = vmatprep.subr.mxu0 0.0
    %4256 = vmatpush1.msra.mxu0 0.0
    %4257 = vmatprep.subr.mxu0 0.0
    %4258 = vmatpush1.msra.mxu0 0.0
    %4259 = vmatprep.subr.mxu0 0.0
    %4260 = vmatpush1.msra.mxu0 0.0
    %4261 = vmatprep.subr.mxu0 0.0
    %4262 = vmatpush1.msra.mxu0 0.0
    %4263 = vmatprep.subr.mxu0 0.0
    %4264 = vmatpush1.msra.mxu0 0.0
    %4265 = vmatprep.subr.mxu0 0.0
    %4266 = vmatpush1.msra.mxu0 0.0
    %4267 = vmatprep.subr.mxu0 0.0
    %4268 = vmatpush1.msra.mxu0 0.0
    %4269 = vmatprep.subr.mxu0 0.0
    %4270 = vmatpush1.msra.mxu0 0.0
    %4271 = vmatprep.subr.mxu0 0.0
    %4272 = vmatpush1.msra.mxu0 0.0
    %4273 = vmatprep.subr.mxu0 0.0
    %4274 = vmatpush1.msra.mxu0 0.0
    %4275 = vmatprep.subr.mxu0 0.0
    %4276 = vmatpush1.msra.mxu0 0.0
    %4277 = vmatprep.subr.mxu0 0.0
    %4278 = vmatpush1.msra.mxu0 0.0
    %4279 = vmatprep.subr.mxu0 0.0
    %4280 = vmatpush1.msra.mxu0 0.0
    %4281 = vmatprep.subr.mxu0 0.0
    %4282 = vmatpush1.msra.mxu0 0.0
    %4283 = vmatprep.subr.mxu0 0.0
    %4284 = vmatpush1.msra.mxu0 0.0
    %4285 = vmatprep.subr.mxu0 0.0
    %4286 = vmatpush1.msra.mxu0 0.0
    %4287 = vmatprep.subr.mxu0 0.0
    %4288 = vmatpush1.msra.mxu0 0.0
    %4289 = vmatprep.subr.mxu0 0.0
    %4290 = vmatpush1.msra.mxu0 0.0
    %4291 = vmatprep.subr.mxu0 0.0
    %4292 = vmatpush1.msra.mxu0 0.0
    %4293 = vmatprep.subr.mxu0 0.0
    %4294 = vmatpush1.msra.mxu0 0.0
    %4295 = vmatprep.subr.mxu0 0.0
    %4296 = vmatpush1.msra.mxu0 0.0
    %4297 = vmatprep.subr.mxu0 0.0
    %4298 = vmatpush1.msra.mxu0 0.0
    %4299 = vmatprep.subr.mxu0 0.0
    %4300 = vmatpush1.msra.mxu0 0.0
    %4301 = vmatprep.subr.mxu0 0.0
    %4302 = vmatpush1.msra.mxu0 0.0
    %4303 = vmatprep.subr.mxu0 0.0
    %4304 = vmatpush1.msra.mxu0 0.0
    %4305 = vmatprep.mubr.f32.mxu0 0.0
    %4306 = vmatmul.mubr.f32.gmra.mrb[0].mxu0 %v4010
    %v4307 = vpop.f32.mrb[0].mxu0
    %v4308 = vadd.f32 0.0, %v4307
    %v4309 = vpop.f32.mrb[0].mxu0
    %4310 = vdwg.mxu0
    %v4311 = vadd.f32 %v4240, %v4308
    %v4312 = vxor.u32 %v4311, 2147483648
    %v4313 = vmul.f32 %v4312, 1.442695
    %v4314 = vpow.pop %v4313
    %v4315 = vadd.f32 %v4314, 1.0
    %v4316 = vrcp.pop %v4315
    %v4317 = vmul.f32 1.0, %v4316
    %v4318 = vmul.f32 %v4166, %v4005
    %v4319 = vmul.f32 %v4088, %v4239
    %v4320 = vadd.f32 %v4318, %v4319
    %v4321 = vtanh.pop %v4320
    %v4322 = vmul.f32 %v4317, %v4321
    %v4323 = vld [vmem:[#allocation2 + $0x6] sm:$0x3]
    %v4325 = vsel %vm181, %v4322, 0
    %4327 = vmatprep.subr.mxu0 0.0
    %4328 = vmatpush1.msra.mxu0 %v3362
    %4329 = vmatprep.subr.mxu0 0.0
    %4330 = vmatpush1.msra.mxu0 %v3363
    %4331 = vmatprep.subr.mxu0 0.0
    %4332 = vmatpush1.msra.mxu0 %v3364
    %4333 = vmatprep.subr.mxu0 0.0
    %4334 = vmatpush1.msra.mxu0 %v3365
    %4335 = vmatprep.subr.mxu0 0.0
    %4336 = vmatpush1.msra.mxu0 0.0
    %4337 = vmatprep.subr.mxu0 0.0
    %4338 = vmatpush1.msra.mxu0 0.0
    %4339 = vmatprep.subr.mxu0 0.0
    %4340 = vmatpush1.msra.mxu0 0.0
    %4341 = vmatprep.subr.mxu0 0.0
    %4342 = vmatpush1.msra.mxu0 0.0
    %4343 = vmatprep.subr.mxu0 0.0
    %4344 = vmatpush1.msra.mxu0 0.0
    %4345 = vmatprep.subr.mxu0 0.0
    %4346 = vmatpush1.msra.mxu0 0.0
    %4347 = vmatprep.subr.mxu0 0.0
    %4348 = vmatpush1.msra.mxu0 0.0
    %4349 = vmatprep.subr.mxu0 0.0
    %4350 = vmatpush1.msra.mxu0 0.0
    %4351 = vmatprep.subr.mxu0 0.0
    %4352 = vmatpush1.msra.mxu0 0.0
    %4353 = vmatprep.subr.mxu0 0.0
    %4354 = vmatpush1.msra.mxu0 0.0
    %4355 = vmatprep.subr.mxu0 0.0
    %4356 = vmatpush1.msra.mxu0 0.0
    %4357 = vmatprep.subr.mxu0 0.0
    %4358 = vmatpush1.msra.mxu0 0.0
    %4359 = vmatprep.subr.mxu0 0.0
    %4360 = vmatpush1.msra.mxu0 0.0
    %4361 = vmatprep.subr.mxu0 0.0
    %4362 = vmatpush1.msra.mxu0 0.0
    %4363 = vmatprep.subr.mxu0 0.0
    %4364 = vmatpush1.msra.mxu0 0.0
    %4365 = vmatprep.subr.mxu0 0.0
    %4366 = vmatpush1.msra.mxu0 0.0
    %4367 = vmatprep.subr.mxu0 0.0
    %4368 = vmatpush1.msra.mxu0 0.0
    %4369 = vmatprep.subr.mxu0 0.0
    %4370 = vmatpush1.msra.mxu0 0.0
    %4371 = vmatprep.subr.mxu0 0.0
    %4372 = vmatpush1.msra.mxu0 0.0
    %4373 = vmatprep.subr.mxu0 0.0
    %4374 = vmatpush1.msra.mxu0 0.0
    %4375 = vmatprep.subr.mxu0 0.0
    %4376 = vmatpush1.msra.mxu0 0.0
    %4377 = vmatprep.subr.mxu0 0.0
    %4378 = vmatpush1.msra.mxu0 0.0
    %4379 = vmatprep.subr.mxu0 0.0
    %4380 = vmatpush1.msra.mxu0 0.0
    %4381 = vmatprep.subr.mxu0 0.0
    %4382 = vmatpush1.msra.mxu0 0.0
    %4383 = vmatprep.subr.mxu0 0.0
    %4384 = vmatpush1.msra.mxu0 0.0
    %4385 = vmatprep.subr.mxu0 0.0
    %4386 = vmatpush1.msra.mxu0 0.0
    %4387 = vmatprep.subr.mxu0 0.0
    %4388 = vmatpush1.msra.mxu0 0.0
    %4389 = vmatprep.subr.mxu0 0.0
    %4390 = vmatpush1.msra.mxu0 0.0
    %4391 = vmatprep.mubr.f32.mxu0 0.0
    %4392 = vmatmul.mubr.f32.gmra.mrb[0].mxu0 %v4325
    %v4393 = vpop.f32.mrb[0].mxu0
    %v4394 = vadd.f32 0.0, %v4393
    %v4395 = vpop.f32.mrb[0].mxu0
    %4396 = vdwg.mxu0
    %v4397 = vadd.f32 %v4323, %v4394
    %v4398 = vxor.u32 %v4397, 2147483648
    %v4399 = vmul.f32 %v4398, 1.442695
    %v4400 = vpow.pop %v4399
    %v4401 = vadd.f32 %v4400, 1.0
    %v4402 = vrcp.pop %v4401
    %v4403 = vmul.f32 1.0, %v4402
    %v4404 = vld [vmem:[#allocation3 + $0x6] sm:$0x3]
    %4405 = vmatprep.subr.mxu0 0.0
    %4406 = vmatpush1.msra.mxu0 %v3367
    %4407 = vmatprep.subr.mxu0 0.0
    %4408 = vmatpush1.msra.mxu0 %v3368
    %4409 = vmatprep.subr.mxu0 0.0
    %4410 = vmatpush1.msra.mxu0 %v3369
    %4411 = vmatprep.subr.mxu0 0.0
    %4412 = vmatpush1.msra.mxu0 %v3370
    %4413 = vmatprep.subr.mxu0 0.0
    %4414 = vmatpush1.msra.mxu0 0.0
    %4415 = vmatprep.subr.mxu0 0.0
    %4416 = vmatpush1.msra.mxu0 0.0
    %4417 = vmatprep.subr.mxu0 0.0
    %4418 = vmatpush1.msra.mxu0 0.0
    %4419 = vmatprep.subr.mxu0 0.0
    %4420 = vmatpush1.msra.mxu0 0.0
    %4421 = vmatprep.subr.mxu0 0.0
    %4422 = vmatpush1.msra.mxu0 0.0
    %4423 = vmatprep.subr.mxu0 0.0
    %4424 = vmatpush1.msra.mxu0 0.0
    %4425 = vmatprep.subr.mxu0 0.0
    %4426 = vmatpush1.msra.mxu0 0.0
    %4427 = vmatprep.subr.mxu0 0.0
    %4428 = vmatpush1.msra.mxu0 0.0
    %4429 = vmatprep.subr.mxu0 0.0
    %4430 = vmatpush1.msra.mxu0 0.0
    %4431 = vmatprep.subr.mxu0 0.0
    %4432 = vmatpush1.msra.mxu0 0.0
    %4433 = vmatprep.subr.mxu0 0.0
    %4434 = vmatpush1.msra.mxu0 0.0
    %4435 = vmatprep.subr.mxu0 0.0
    %4436 = vmatpush1.msra.mxu0 0.0
    %4437 = vmatprep.subr.mxu0 0.0
    %4438 = vmatpush1.msra.mxu0 0.0
    %4439 = vmatprep.subr.mxu0 0.0
    %4440 = vmatpush1.msra.mxu0 0.0
    %4441 = vmatprep.subr.mxu0 0.0
    %4442 = vmatpush1.msra.mxu0 0.0
    %4443 = vmatprep.subr.mxu0 0.0
    %4444 = vmatpush1.msra.mxu0 0.0
    %4445 = vmatprep.subr.mxu0 0.0
    %4446 = vmatpush1.msra.mxu0 0.0
    %4447 = vmatprep.subr.mxu0 0.0
    %4448 = vmatpush1.msra.mxu0 0.0
    %4449 = vmatprep.subr.mxu0 0.0
    %4450 = vmatpush1.msra.mxu0 0.0
    %4451 = vmatprep.subr.mxu0 0.0
    %4452 = vmatpush1.msra.mxu0 0.0
    %4453 = vmatprep.subr.mxu0 0.0
    %4454 = vmatpush1.msra.mxu0 0.0
    %4455 = vmatprep.subr.mxu0 0.0
    %4456 = vmatpush1.msra.mxu0 0.0
    %4457 = vmatprep.subr.mxu0 0.0
    %4458 = vmatpush1.msra.mxu0 0.0
    %4459 = vmatprep.subr.mxu0 0.0
    %4460 = vmatpush1.msra.mxu0 0.0
    %4461 = vmatprep.subr.mxu0 0.0
    %4462 = vmatpush1.msra.mxu0 0.0
    %4463 = vmatprep.subr.mxu0 0.0
    %4464 = vmatpush1.msra.mxu0 0.0
    %4465 = vmatprep.subr.mxu0 0.0
    %4466 = vmatpush1.msra.mxu0 0.0
    %4467 = vmatprep.subr.mxu0 0.0
    %4468 = vmatpush1.msra.mxu0 0.0
    %4469 = vmatprep.mubr.f32.mxu0 0.0
    %4470 = vmatmul.mubr.f32.gmra.mrb[0].mxu0 %v4325
    %v4471 = vpop.f32.mrb[0].mxu0
    %v4472 = vadd.f32 0.0, %v4471
    %v4473 = vpop.f32.mrb[0].mxu0
    %4474 = vdwg.mxu0
    %v4475 = vadd.f32 %v4404, %v4472
    %v4476 = vxor.u32 %v4475, 2147483648
    %v4477 = vmul.f32 %v4476, 1.442695
    %v4478 = vpow.pop %v4477
    %v4479 = vadd.f32 %v4478, 1.0
    %v4480 = vrcp.pop %v4479
    %v4481 = vmul.f32 1.0, %v4480
    %v4482 = vld [vmem:[#allocation4 + $0x6] sm:$0x3]
    %4483 = vmatprep.subr.mxu0 0.0
    %4484 = vmatpush1.msra.mxu0 %v3372
    %4485 = vmatprep.subr.mxu0 0.0
    %4486 = vmatpush1.msra.mxu0 %v3373
    %4487 = vmatprep.subr.mxu0 0.0
    %4488 = vmatpush1.msra.mxu0 %v3374
    %4489 = vmatprep.subr.mxu0 0.0
    %4490 = vmatpush1.msra.mxu0 %v3375
    %4491 = vmatprep.subr.mxu0 0.0
    %4492 = vmatpush1.msra.mxu0 0.0
    %4493 = vmatprep.subr.mxu0 0.0
    %4494 = vmatpush1.msra.mxu0 0.0
    %4495 = vmatprep.subr.mxu0 0.0
    %4496 = vmatpush1.msra.mxu0 0.0
    %4497 = vmatprep.subr.mxu0 0.0
    %4498 = vmatpush1.msra.mxu0 0.0
    %4499 = vmatprep.subr.mxu0 0.0
    %4500 = vmatpush1.msra.mxu0 0.0
    %4501 = vmatprep.subr.mxu0 0.0
    %4502 = vmatpush1.msra.mxu0 0.0
    %4503 = vmatprep.subr.mxu0 0.0
    %4504 = vmatpush1.msra.mxu0 0.0
    %4505 = vmatprep.subr.mxu0 0.0
    %4506 = vmatpush1.msra.mxu0 0.0
    %4507 = vmatprep.subr.mxu0 0.0
    %4508 = vmatpush1.msra.mxu0 0.0
    %4509 = vmatprep.subr.mxu0 0.0
    %4510 = vmatpush1.msra.mxu0 0.0
    %4511 = vmatprep.subr.mxu0 0.0
    %4512 = vmatpush1.msra.mxu0 0.0
    %4513 = vmatprep.subr.mxu0 0.0
    %4514 = vmatpush1.msra.mxu0 0.0
    %4515 = vmatprep.subr.mxu0 0.0
    %4516 = vmatpush1.msra.mxu0 0.0
    %4517 = vmatprep.subr.mxu0 0.0
    %4518 = vmatpush1.msra.mxu0 0.0
    %4519 = vmatprep.subr.mxu0 0.0
    %4520 = vmatpush1.msra.mxu0 0.0
    %4521 = vmatprep.subr.mxu0 0.0
    %4522 = vmatpush1.msra.mxu0 0.0
    %4523 = vmatprep.subr.mxu0 0.0
    %4524 = vmatpush1.msra.mxu0 0.0
    %4525 = vmatprep.subr.mxu0 0.0
    %4526 = vmatpush1.msra.mxu0 0.0
    %4527 = vmatprep.subr.mxu0 0.0
    %4528 = vmatpush1.msra.mxu0 0.0
    %4529 = vmatprep.subr.mxu0 0.0
    %4530 = vmatpush1.msra.mxu0 0.0
    %4531 = vmatprep.subr.mxu0 0.0
    %4532 = vmatpush1.msra.mxu0 0.0
    %4533 = vmatprep.subr.mxu0 0.0
    %4534 = vmatpush1.msra.mxu0 0.0
    %4535 = vmatprep.subr.mxu0 0.0
    %4536 = vmatpush1.msra.mxu0 0.0
    %4537 = vmatprep.subr.mxu0 0.0
    %4538 = vmatpush1.msra.mxu0 0.0
    %4539 = vmatprep.subr.mxu0 0.0
    %4540 = vmatpush1.msra.mxu0 0.0
    %4541 = vmatprep.subr.mxu0 0.0
    %4542 = vmatpush1.msra.mxu0 0.0
    %4543 = vmatprep.subr.mxu0 0.0
    %4544 = vmatpush1.msra.mxu0 0.0
    %4545 = vmatprep.subr.mxu0 0.0
    %4546 = vmatpush1.msra.mxu0 0.0
    %4547 = vmatprep.mubr.f32.mxu0 0.0
    %4548 = vmatmul.mubr.f32.gmra.mrb[0].mxu0 %v4325
    %v4549 = vpop.f32.mrb[0].mxu0
    %v4550 = vadd.f32 0.0, %v4549
    %v4551 = vpop.f32.mrb[0].mxu0
    %4552 = vdwg.mxu0
    %v4553 = vadd.f32 %v4482, %v4550
    %v4554 = vtanh.pop %v4553
    %v4555 = vld [vmem:[#allocation5 + $0x6] sm:$0x3]
    %4556 = vmatprep.subr.mxu0 0.0
    %4557 = vmatpush1.msra.mxu0 %v3377
    %4558 = vmatprep.subr.mxu0 0.0
    %4559 = vmatpush1.msra.mxu0 %v3378
    %4560 = vmatprep.subr.mxu0 0.0
    %4561 = vmatpush1.msra.mxu0 %v3379
    %4562 = vmatprep.subr.mxu0 0.0
    %4563 = vmatpush1.msra.mxu0 %v3380
    %4564 = vmatprep.subr.mxu0 0.0
    %4565 = vmatpush1.msra.mxu0 0.0
    %4566 = vmatprep.subr.mxu0 0.0
    %4567 = vmatpush1.msra.mxu0 0.0
    %4568 = vmatprep.subr.mxu0 0.0
    %4569 = vmatpush1.msra.mxu0 0.0
    %4570 = vmatprep.subr.mxu0 0.0
    %4571 = vmatpush1.msra.mxu0 0.0
    %4572 = vmatprep.subr.mxu0 0.0
    %4573 = vmatpush1.msra.mxu0 0.0
    %4574 = vmatprep.subr.mxu0 0.0
    %4575 = vmatpush1.msra.mxu0 0.0
    %4576 = vmatprep.subr.mxu0 0.0
    %4577 = vmatpush1.msra.mxu0 0.0
    %4578 = vmatprep.subr.mxu0 0.0
    %4579 = vmatpush1.msra.mxu0 0.0
    %4580 = vmatprep.subr.mxu0 0.0
    %4581 = vmatpush1.msra.mxu0 0.0
    %4582 = vmatprep.subr.mxu0 0.0
    %4583 = vmatpush1.msra.mxu0 0.0
    %4584 = vmatprep.subr.mxu0 0.0
    %4585 = vmatpush1.msra.mxu0 0.0
    %4586 = vmatprep.subr.mxu0 0.0
    %4587 = vmatpush1.msra.mxu0 0.0
    %4588 = vmatprep.subr.mxu0 0.0
    %4589 = vmatpush1.msra.mxu0 0.0
    %4590 = vmatprep.subr.mxu0 0.0
    %4591 = vmatpush1.msra.mxu0 0.0
    %4592 = vmatprep.subr.mxu0 0.0
    %4593 = vmatpush1.msra.mxu0 0.0
    %4594 = vmatprep.subr.mxu0 0.0
    %4595 = vmatpush1.msra.mxu0 0.0
    %4596 = vmatprep.subr.mxu0 0.0
    %4597 = vmatpush1.msra.mxu0 0.0
    %4598 = vmatprep.subr.mxu0 0.0
    %4599 = vmatpush1.msra.mxu0 0.0
    %4600 = vmatprep.subr.mxu0 0.0
    %4601 = vmatpush1.msra.mxu0 0.0
    %4602 = vmatprep.subr.mxu0 0.0
    %4603 = vmatpush1.msra.mxu0 0.0
    %4604 = vmatprep.subr.mxu0 0.0
    %4605 = vmatpush1.msra.mxu0 0.0
    %4606 = vmatprep.subr.mxu0 0.0
    %4607 = vmatpush1.msra.mxu0 0.0
    %4608 = vmatprep.subr.mxu0 0.0
    %4609 = vmatpush1.msra.mxu0 0.0
    %4610 = vmatprep.subr.mxu0 0.0
    %4611 = vmatpush1.msra.mxu0 0.0
    %4612 = vmatprep.subr.mxu0 0.0
    %4613 = vmatpush1.msra.mxu0 0.0
    %4614 = vmatprep.subr.mxu0 0.0
    %4615 = vmatpush1.msra.mxu0 0.0
    %4616 = vmatprep.subr.mxu0 0.0
    %4617 = vmatpush1.msra.mxu0 0.0
    %4618 = vmatprep.subr.mxu0 0.0
    %4619 = vmatpush1.msra.mxu0 0.0
    %4620 = vmatprep.mubr.f32.mxu0 0.0
    %4621 = vmatmul.mubr.f32.gmra.mrb[0].mxu0 %v4325
    %v4622 = vpop.f32.mrb[0].mxu0
    %v4623 = vadd.f32 0.0, %v4622
    %v4624 = vpop.f32.mrb[0].mxu0
    %4625 = vdwg.mxu0
    %v4626 = vadd.f32 %v4555, %v4623
    %v4627 = vxor.u32 %v4626, 2147483648
    %v4628 = vmul.f32 %v4627, 1.442695
    %v4629 = vpow.pop %v4628
    %v4630 = vadd.f32 %v4629, 1.0
    %v4631 = vrcp.pop %v4630
    %v4632 = vmul.f32 1.0, %v4631
    %v4633 = vmul.f32 %v4481, %v4320
    %v4634 = vmul.f32 %v4403, %v4554
    %v4635 = vadd.f32 %v4633, %v4634
    %v4636 = vtanh.pop %v4635
    %v4637 = vmul.f32 %v4632, %v4636
    %v4638 = vld [vmem:[#allocation2 + $0x8] sm:$0x3]
    %v4640 = vsel %vm181, %v4637, 0
    %4642 = vmatprep.subr.mxu0 0.0
    %4643 = vmatpush1.msra.mxu0 %v3362
    %4644 = vmatprep.subr.mxu0 0.0
    %4645 = vmatpush1.msra.mxu0 %v3363
    %4646 = vmatprep.subr.mxu0 0.0
    %4647 = vmatpush1.msra.mxu0 %v3364
    %4648 = vmatprep.subr.mxu0 0.0
    %4649 = vmatpush1.msra.mxu0 %v3365
    %4650 = vmatprep.subr.mxu0 0.0
    %4651 = vmatpush1.msra.mxu0 0.0
    %4652 = vmatprep.subr.mxu0 0.0
    %4653 = vmatpush1.msra.mxu0 0.0
    %4654 = vmatprep.subr.mxu0 0.0
    %4655 = vmatpush1.msra.mxu0 0.0
    %4656 = vmatprep.subr.mxu0 0.0
    %4657 = vmatpush1.msra.mxu0 0.0
    %4658 = vmatprep.subr.mxu0 0.0
    %4659 = vmatpush1.msra.mxu0 0.0
    %4660 = vmatprep.subr.mxu0 0.0
    %4661 = vmatpush1.msra.mxu0 0.0
    %4662 = vmatprep.subr.mxu0 0.0
    %4663 = vmatpush1.msra.mxu0 0.0
    %4664 = vmatprep.subr.mxu0 0.0
    %4665 = vmatpush1.msra.mxu0 0.0
    %4666 = vmatprep.subr.mxu0 0.0
    %4667 = vmatpush1.msra.mxu0 0.0
    %4668 = vmatprep.subr.mxu0 0.0
    %4669 = vmatpush1.msra.mxu0 0.0
    %4670 = vmatprep.subr.mxu0 0.0
    %4671 = vmatpush1.msra.mxu0 0.0
    %4672 = vmatprep.subr.mxu0 0.0
    %4673 = vmatpush1.msra.mxu0 0.0
    %4674 = vmatprep.subr.mxu0 0.0
    %4675 = vmatpush1.msra.mxu0 0.0
    %4676 = vmatprep.subr.mxu0 0.0
    %4677 = vmatpush1.msra.mxu0 0.0
    %4678 = vmatprep.subr.mxu0 0.0
    %4679 = vmatpush1.msra.mxu0 0.0
    %4680 = vmatprep.subr.mxu0 0.0
    %4681 = vmatpush1.msra.mxu0 0.0
    %4682 = vmatprep.subr.mxu0 0.0
    %4683 = vmatpush1.msra.mxu0 0.0
    %4684 = vmatprep.subr.mxu0 0.0
    %4685 = vmatpush1.msra.mxu0 0.0
    %4686 = vmatprep.subr.mxu0 0.0
    %4687 = vmatpush1.msra.mxu0 0.0
    %4688 = vmatprep.subr.mxu0 0.0
    %4689 = vmatpush1.msra.mxu0 0.0
    %4690 = vmatprep.subr.mxu0 0.0
    %4691 = vmatpush1.msra.mxu0 0.0
    %4692 = vmatprep.subr.mxu0 0.0
    %4693 = vmatpush1.msra.mxu0 0.0
    %4694 = vmatprep.subr.mxu0 0.0
    %4695 = vmatpush1.msra.mxu0 0.0
    %4696 = vmatprep.subr.mxu0 0.0
    %4697 = vmatpush1.msra.mxu0 0.0
    %4698 = vmatprep.subr.mxu0 0.0
    %4699 = vmatpush1.msra.mxu0 0.0
    %4700 = vmatprep.subr.mxu0 0.0
    %4701 = vmatpush1.msra.mxu0 0.0
    %4702 = vmatprep.subr.mxu0 0.0
    %4703 = vmatpush1.msra.mxu0 0.0
    %4704 = vmatprep.subr.mxu0 0.0
    %4705 = vmatpush1.msra.mxu0 0.0
    %4706 = vmatprep.mubr.f32.mxu0 0.0
    %4707 = vmatmul.mubr.f32.gmra.mrb[0].mxu0 %v4640
    %v4708 = vpop.f32.mrb[0].mxu0
    %v4709 = vadd.f32 0.0, %v4708
    %v4710 = vpop.f32.mrb[0].mxu0
    %4711 = vdwg.mxu0
    %v4712 = vadd.f32 %v4638, %v4709
    %v4713 = vxor.u32 %v4712, 2147483648
    %v4714 = vmul.f32 %v4713, 1.442695
    %v4715 = vpow.pop %v4714
    %v4716 = vadd.f32 %v4715, 1.0
    %v4717 = vrcp.pop %v4716
    %v4718 = vmul.f32 1.0, %v4717
    %v4719 = vld [vmem:[#allocation3 + $0x8] sm:$0x3]
    %4720 = vmatprep.subr.mxu0 0.0
    %4721 = vmatpush1.msra.mxu0 %v3367
    %4722 = vmatprep.subr.mxu0 0.0
    %4723 = vmatpush1.msra.mxu0 %v3368
    %4724 = vmatprep.subr.mxu0 0.0
    %4725 = vmatpush1.msra.mxu0 %v3369
    %4726 = vmatprep.subr.mxu0 0.0
    %4727 = vmatpush1.msra.mxu0 %v3370
    %4728 = vmatprep.subr.mxu0 0.0
    %4729 = vmatpush1.msra.mxu0 0.0
    %4730 = vmatprep.subr.mxu0 0.0
    %4731 = vmatpush1.msra.mxu0 0.0
    %4732 = vmatprep.subr.mxu0 0.0
    %4733 = vmatpush1.msra.mxu0 0.0
    %4734 = vmatprep.subr.mxu0 0.0
    %4735 = vmatpush1.msra.mxu0 0.0
    %4736 = vmatprep.subr.mxu0 0.0
    %4737 = vmatpush1.msra.mxu0 0.0
    %4738 = vmatprep.subr.mxu0 0.0
    %4739 = vmatpush1.msra.mxu0 0.0
    %4740 = vmatprep.subr.mxu0 0.0
    %4741 = vmatpush1.msra.mxu0 0.0
    %4742 = vmatprep.subr.mxu0 0.0
    %4743 = vmatpush1.msra.mxu0 0.0
    %4744 = vmatprep.subr.mxu0 0.0
    %4745 = vmatpush1.msra.mxu0 0.0
    %4746 = vmatprep.subr.mxu0 0.0
    %4747 = vmatpush1.msra.mxu0 0.0
    %4748 = vmatprep.subr.mxu0 0.0
    %4749 = vmatpush1.msra.mxu0 0.0
    %4750 = vmatprep.subr.mxu0 0.0
    %4751 = vmatpush1.msra.mxu0 0.0
    %4752 = vmatprep.subr.mxu0 0.0
    %4753 = vmatpush1.msra.mxu0 0.0
    %4754 = vmatprep.subr.mxu0 0.0
    %4755 = vmatpush1.msra.mxu0 0.0
    %4756 = vmatprep.subr.mxu0 0.0
    %4757 = vmatpush1.msra.mxu0 0.0
    %4758 = vmatprep.subr.mxu0 0.0
    %4759 = vmatpush1.msra.mxu0 0.0
    %4760 = vmatprep.subr.mxu0 0.0
    %4761 = vmatpush1.msra.mxu0 0.0
    %4762 = vmatprep.subr.mxu0 0.0
    %4763 = vmatpush1.msra.mxu0 0.0
    %4764 = vmatprep.subr.mxu0 0.0
    %4765 = vmatpush1.msra.mxu0 0.0
    %4766 = vmatprep.subr.mxu0 0.0
    %4767 = vmatpush1.msra.mxu0 0.0
    %4768 = vmatprep.subr.mxu0 0.0
    %4769 = vmatpush1.msra.mxu0 0.0
    %4770 = vmatprep.subr.mxu0 0.0
    %4771 = vmatpush1.msra.mxu0 0.0
    %4772 = vmatprep.subr.mxu0 0.0
    %4773 = vmatpush1.msra.mxu0 0.0
    %4774 = vmatprep.subr.mxu0 0.0
    %4775 = vmatpush1.msra.mxu0 0.0
    %4776 = vmatprep.subr.mxu0 0.0
    %4777 = vmatpush1.msra.mxu0 0.0
    %4778 = vmatprep.subr.mxu0 0.0
    %4779 = vmatpush1.msra.mxu0 0.0
    %4780 = vmatprep.subr.mxu0 0.0
    %4781 = vmatpush1.msra.mxu0 0.0
    %4782 = vmatprep.subr.mxu0 0.0
    %4783 = vmatpush1.msra.mxu0 0.0
    %4784 = vmatprep.mubr.f32.mxu0 0.0
    %4785 = vmatmul.mubr.f32.gmra.mrb[0].mxu0 %v4640
    %v4786 = vpop.f32.mrb[0].mxu0
    %v4787 = vadd.f32 0.0, %v4786
    %v4788 = vpop.f32.mrb[0].mxu0
    %4789 = vdwg.mxu0
    %v4790 = vadd.f32 %v4719, %v4787
    %v4791 = vxor.u32 %v4790, 2147483648
    %v4792 = vmul.f32 %v4791, 1.442695
    %v4793 = vpow.pop %v4792
    %v4794 = vadd.f32 %v4793, 1.0
    %v4795 = vrcp.pop %v4794
    %v4796 = vmul.f32 1.0, %v4795
    %v4797 = vld [vmem:[#allocation4 + $0x8] sm:$0x3]
    %4798 = vmatprep.subr.mxu0 0.0
    %4799 = vmatpush1.msra.mxu0 %v3372
    %4800 = vmatprep.subr.mxu0 0.0
    %4801 = vmatpush1.msra.mxu0 %v3373
    %4802 = vmatprep.subr.mxu0 0.0
    %4803 = vmatpush1.msra.mxu0 %v3374
    %4804 = vmatprep.subr.mxu0 0.0
    %4805 = vmatpush1.msra.mxu0 %v3375
    %4806 = vmatprep.subr.mxu0 0.0
    %4807 = vmatpush1.msra.mxu0 0.0
    %4808 = vmatprep.subr.mxu0 0.0
    %4809 = vmatpush1.msra.mxu0 0.0
    %4810 = vmatprep.subr.mxu0 0.0
    %4811 = vmatpush1.msra.mxu0 0.0
    %4812 = vmatprep.subr.mxu0 0.0
    %4813 = vmatpush1.msra.mxu0 0.0
    %4814 = vmatprep.subr.mxu0 0.0
    %4815 = vmatpush1.msra.mxu0 0.0
    %4816 = vmatprep.subr.mxu0 0.0
    %4817 = vmatpush1.msra.mxu0 0.0
    %4818 = vmatprep.subr.mxu0 0.0
    %4819 = vmatpush1.msra.mxu0 0.0
    %4820 = vmatprep.subr.mxu0 0.0
    %4821 = vmatpush1.msra.mxu0 0.0
    %4822 = vmatprep.subr.mxu0 0.0
    %4823 = vmatpush1.msra.mxu0 0.0
    %4824 = vmatprep.subr.mxu0 0.0
    %4825 = vmatpush1.msra.mxu0 0.0
    %4826 = vmatprep.subr.mxu0 0.0
    %4827 = vmatpush1.msra.mxu0 0.0
    %4828 = vmatprep.subr.mxu0 0.0
    %4829 = vmatpush1.msra.mxu0 0.0
    %4830 = vmatprep.subr.mxu0 0.0
    %4831 = vmatpush1.msra.mxu0 0.0
    %4832 = vmatprep.subr.mxu0 0.0
    %4833 = vmatpush1.msra.mxu0 0.0
    %4834 = vmatprep.subr.mxu0 0.0
    %4835 = vmatpush1.msra.mxu0 0.0
    %4836 = vmatprep.subr.mxu0 0.0
    %4837 = vmatpush1.msra.mxu0 0.0
    %4838 = vmatprep.subr.mxu0 0.0
    %4839 = vmatpush1.msra.mxu0 0.0
    %4840 = vmatprep.subr.mxu0 0.0
    %4841 = vmatpush1.msra.mxu0 0.0
    %4842 = vmatprep.subr.mxu0 0.0
    %4843 = vmatpush1.msra.mxu0 0.0
    %4844 = vmatprep.subr.mxu0 0.0
    %4845 = vmatpush1.msra.mxu0 0.0
    %4846 = vmatprep.subr.mxu0 0.0
    %4847 = vmatpush1.msra.mxu0 0.0
    %4848 = vmatprep.subr.mxu0 0.0
    %4849 = vmatpush1.msra.mxu0 0.0
    %4850 = vmatprep.subr.mxu0 0.0
    %4851 = vmatpush1.msra.mxu0 0.0
    %4852 = vmatprep.subr.mxu0 0.0
    %4853 = vmatpush1.msra.mxu0 0.0
    %4854 = vmatprep.subr.mxu0 0.0
    %4855 = vmatpush1.msra.mxu0 0.0
    %4856 = vmatprep.subr.mxu0 0.0
    %4857 = vmatpush1.msra.mxu0 0.0
    %4858 = vmatprep.subr.mxu0 0.0
    %4859 = vmatpush1.msra.mxu0 0.0
    %4860 = vmatprep.subr.mxu0 0.0
    %4861 = vmatpush1.msra.mxu0 0.0
    %4862 = vmatprep.mubr.f32.mxu0 0.0
    %4863 = vmatmul.mubr.f32.gmra.mrb[0].mxu0 %v4640
    %v4864 = vpop.f32.mrb[0].mxu0
    %v4865 = vadd.f32 0.0, %v4864
    %v4866 = vpop.f32.mrb[0].mxu0
    %4867 = vdwg.mxu0
    %v4868 = vadd.f32 %v4797, %v4865
    %v4869 = vtanh.pop %v4868
    %v4870 = vld [vmem:[#allocation5 + $0x8] sm:$0x3]
    %4871 = vmatprep.subr.mxu0 0.0
    %4872 = vmatpush1.msra.mxu0 %v3377
    %4873 = vmatprep.subr.mxu0 0.0
    %4874 = vmatpush1.msra.mxu0 %v3378
    %4875 = vmatprep.subr.mxu0 0.0
    %4876 = vmatpush1.msra.mxu0 %v3379
    %4877 = vmatprep.subr.mxu0 0.0
    %4878 = vmatpush1.msra.mxu0 %v3380
    %4879 = vmatprep.subr.mxu0 0.0
    %4880 = vmatpush1.msra.mxu0 0.0
    %4881 = vmatprep.subr.mxu0 0.0
    %4882 = vmatpush1.msra.mxu0 0.0
    %4883 = vmatprep.subr.mxu0 0.0
    %4884 = vmatpush1.msra.mxu0 0.0
    %4885 = vmatprep.subr.mxu0 0.0
    %4886 = vmatpush1.msra.mxu0 0.0
    %4887 = vmatprep.subr.mxu0 0.0
    %4888 = vmatpush1.msra.mxu0 0.0
    %4889 = vmatprep.subr.mxu0 0.0
    %4890 = vmatpush1.msra.mxu0 0.0
    %4891 = vmatprep.subr.mxu0 0.0
    %4892 = vmatpush1.msra.mxu0 0.0
    %4893 = vmatprep.subr.mxu0 0.0
    %4894 = vmatpush1.msra.mxu0 0.0
    %4895 = vmatprep.subr.mxu0 0.0
    %4896 = vmatpush1.msra.mxu0 0.0
    %4897 = vmatprep.subr.mxu0 0.0
    %4898 = vmatpush1.msra.mxu0 0.0
    %4899 = vmatprep.subr.mxu0 0.0
    %4900 = vmatpush1.msra.mxu0 0.0
    %4901 = vmatprep.subr.mxu0 0.0
    %4902 = vmatpush1.msra.mxu0 0.0
    %4903 = vmatprep.subr.mxu0 0.0
    %4904 = vmatpush1.msra.mxu0 0.0
    %4905 = vmatprep.subr.mxu0 0.0
    %4906 = vmatpush1.msra.mxu0 0.0
    %4907 = vmatprep.subr.mxu0 0.0
    %4908 = vmatpush1.msra.mxu0 0.0
    %4909 = vmatprep.subr.mxu0 0.0
    %4910 = vmatpush1.msra.mxu0 0.0
    %4911 = vmatprep.subr.mxu0 0.0
    %4912 = vmatpush1.msra.mxu0 0.0
    %4913 = vmatprep.subr.mxu0 0.0
    %4914 = vmatpush1.msra.mxu0 0.0
    %4915 = vmatprep.subr.mxu0 0.0
    %4916 = vmatpush1.msra.mxu0 0.0
    %4917 = vmatprep.subr.mxu0 0.0
    %4918 = vmatpush1.msra.mxu0 0.0
    %4919 = vmatprep.subr.mxu0 0.0
    %4920 = vmatpush1.msra.mxu0 0.0
    %4921 = vmatprep.subr.mxu0 0.0
    %4922 = vmatpush1.msra.mxu0 0.0
    %4923 = vmatprep.subr.mxu0 0.0
    %4924 = vmatpush1.msra.mxu0 0.0
    %4925 = vmatprep.subr.mxu0 0.0
    %4926 = vmatpush1.msra.mxu0 0.0
    %4927 = vmatprep.subr.mxu0 0.0
    %4928 = vmatpush1.msra.mxu0 0.0
    %4929 = vmatprep.subr.mxu0 0.0
    %4930 = vmatpush1.msra.mxu0 0.0
    %4931 = vmatprep.subr.mxu0 0.0
    %4932 = vmatpush1.msra.mxu0 0.0
    %4933 = vmatprep.subr.mxu0 0.0
    %4934 = vmatpush1.msra.mxu0 0.0
    %4935 = vmatprep.mubr.f32.mxu0 0.0
    %4936 = vmatmul.mubr.f32.gmra.mrb[0].mxu0 %v4640
    %v4937 = vpop.f32.mrb[0].mxu0
    %v4938 = vadd.f32 0.0, %v4937
    %v4939 = vpop.f32.mrb[0].mxu0
    %4940 = vdwg.mxu0
    %v4941 = vadd.f32 %v4870, %v4938
    %v4942 = vxor.u32 %v4941, 2147483648
    %v4943 = vmul.f32 %v4942, 1.442695
    %v4944 = vpow.pop %v4943
    %v4945 = vadd.f32 %v4944, 1.0
    %v4946 = vrcp.pop %v4945
    %v4947 = vmul.f32 1.0, %v4946
    %v4948 = vmul.f32 %v4796, %v4635
    %v4949 = vmul.f32 %v4718, %v4869
    %v4950 = vadd.f32 %v4948, %v4949
    %v4951 = vtanh.pop %v4950
    %v4952 = vmul.f32 %v4947, %v4951
    %v4953 = vld [vmem:[#allocation2 + $0xa] sm:$0x3]
    %v4955 = vsel %vm181, %v4952, 0
    %4957 = vmatprep.subr.mxu0 0.0
    %4958 = vmatpush1.msra.mxu0 %v3362
    %4959 = vmatprep.subr.mxu0 0.0
    %4960 = vmatpush1.msra.mxu0 %v3363
    %4961 = vmatprep.subr.mxu0 0.0
    %4962 = vmatpush1.msra.mxu0 %v3364
    %4963 = vmatprep.subr.mxu0 0.0
    %4964 = vmatpush1.msra.mxu0 %v3365
    %4965 = vmatprep.subr.mxu0 0.0
    %4966 = vmatpush1.msra.mxu0 0.0
    %4967 = vmatprep.subr.mxu0 0.0
    %4968 = vmatpush1.msra.mxu0 0.0
    %4969 = vmatprep.subr.mxu0 0.0
    %4970 = vmatpush1.msra.mxu0 0.0
    %4971 = vmatprep.subr.mxu0 0.0
    %4972 = vmatpush1.msra.mxu0 0.0
    %4973 = vmatprep.subr.mxu0 0.0
    %4974 = vmatpush1.msra.mxu0 0.0
    %4975 = vmatprep.subr.mxu0 0.0
    %4976 = vmatpush1.msra.mxu0 0.0
    %4977 = vmatprep.subr.mxu0 0.0
    %4978 = vmatpush1.msra.mxu0 0.0
    %4979 = vmatprep.subr.mxu0 0.0
    %4980 = vmatpush1.msra.mxu0 0.0
    %4981 = vmatprep.subr.mxu0 0.0
    %4982 = vmatpush1.msra.mxu0 0.0
    %4983 = vmatprep.subr.mxu0 0.0
    %4984 = vmatpush1.msra.mxu0 0.0
    %4985 = vmatprep.subr.mxu0 0.0
    %4986 = vmatpush1.msra.mxu0 0.0
    %4987 = vmatprep.subr.mxu0 0.0
    %4988 = vmatpush1.msra.mxu0 0.0
    %4989 = vmatprep.subr.mxu0 0.0
    %4990 = vmatpush1.msra.mxu0 0.0
    %4991 = vmatprep.subr.mxu0 0.0
    %4992 = vmatpush1.msra.mxu0 0.0
    %4993 = vmatprep.subr.mxu0 0.0
    %4994 = vmatpush1.msra.mxu0 0.0
    %4995 = vmatprep.subr.mxu0 0.0
    %4996 = vmatpush1.msra.mxu0 0.0
    %4997 = vmatprep.subr.mxu0 0.0
    %4998 = vmatpush1.msra.mxu0 0.0
    %4999 = vmatprep.subr.mxu0 0.0
    %5000 = vmatpush1.msra.mxu0 0.0
    %5001 = vmatprep.subr.mxu0 0.0
    %5002 = vmatpush1.msra.mxu0 0.0
    %5003 = vmatprep.subr.mxu0 0.0
    %5004 = vmatpush1.msra.mxu0 0.0
    %5005 = vmatprep.subr.mxu0 0.0
    %5006 = vmatpush1.msra.mxu0 0.0
    %5007 = vmatprep.subr.mxu0 0.0
    %5008 = vmatpush1.msra.mxu0 0.0
    %5009 = vmatprep.subr.mxu0 0.0
    %5010 = vmatpush1.msra.mxu0 0.0
    %5011 = vmatprep.subr.mxu0 0.0
    %5012 = vmatpush1.msra.mxu0 0.0
    %5013 = vmatprep.subr.mxu0 0.0
    %5014 = vmatpush1.msra.mxu0 0.0
    %5015 = vmatprep.subr.mxu0 0.0
    %5016 = vmatpush1.msra.mxu0 0.0
    %5017 = vmatprep.subr.mxu0 0.0
    %5018 = vmatpush1.msra.mxu0 0.0
    %5019 = vmatprep.subr.mxu0 0.0
    %5020 = vmatpush1.msra.mxu0 0.0
    %5021 = vmatprep.mubr.f32.mxu0 0.0
    %5022 = vmatmul.mubr.f32.gmra.mrb[0].mxu0 %v4955
    %v5023 = vpop.f32.mrb[0].mxu0
    %v5024 = vadd.f32 0.0, %v5023
    %v5025 = vpop.f32.mrb[0].mxu0
    %5026 = vdwg.mxu0
    %v5027 = vadd.f32 %v4953, %v5024
    %v5028 = vxor.u32 %v5027, 2147483648
    %v5029 = vmul.f32 %v5028, 1.442695
    %v5030 = vpow.pop %v5029
    %v5031 = vadd.f32 %v5030, 1.0
    %v5032 = vrcp.pop %v5031
    %v5033 = vmul.f32 1.0, %v5032
    %v5034 = vld [vmem:[#allocation3 + $0xa] sm:$0x3]
    %5035 = vmatprep.subr.mxu0 0.0
    %5036 = vmatpush1.msra.mxu0 %v3367
    %5037 = vmatprep.subr.mxu0 0.0
    %5038 = vmatpush1.msra.mxu0 %v3368
    %5039 = vmatprep.subr.mxu0 0.0
    %5040 = vmatpush1.msra.mxu0 %v3369
    %5041 = vmatprep.subr.mxu0 0.0
    %5042 = vmatpush1.msra.mxu0 %v3370
    %5043 = vmatprep.subr.mxu0 0.0
    %5044 = vmatpush1.msra.mxu0 0.0
    %5045 = vmatprep.subr.mxu0 0.0
    %5046 = vmatpush1.msra.mxu0 0.0
    %5047 = vmatprep.subr.mxu0 0.0
    %5048 = vmatpush1.msra.mxu0 0.0
    %5049 = vmatprep.subr.mxu0 0.0
    %5050 = vmatpush1.msra.mxu0 0.0
    %5051 = vmatprep.subr.mxu0 0.0
    %5052 = vmatpush1.msra.mxu0 0.0
    %5053 = vmatprep.subr.mxu0 0.0
    %5054 = vmatpush1.msra.mxu0 0.0
    %5055 = vmatprep.subr.mxu0 0.0
    %5056 = vmatpush1.msra.mxu0 0.0
    %5057 = vmatprep.subr.mxu0 0.0
    %5058 = vmatpush1.msra.mxu0 0.0
    %5059 = vmatprep.subr.mxu0 0.0
    %5060 = vmatpush1.msra.mxu0 0.0
    %5061 = vmatprep.subr.mxu0 0.0
    %5062 = vmatpush1.msra.mxu0 0.0
    %5063 = vmatprep.subr.mxu0 0.0
    %5064 = vmatpush1.msra.mxu0 0.0
    %5065 = vmatprep.subr.mxu0 0.0
    %5066 = vmatpush1.msra.mxu0 0.0
    %5067 = vmatprep.subr.mxu0 0.0
    %5068 = vmatpush1.msra.mxu0 0.0
    %5069 = vmatprep.subr.mxu0 0.0
    %5070 = vmatpush1.msra.mxu0 0.0
    %5071 = vmatprep.subr.mxu0 0.0
    %5072 = vmatpush1.msra.mxu0 0.0
    %5073 = vmatprep.subr.mxu0 0.0
    %5074 = vmatpush1.msra.mxu0 0.0
    %5075 = vmatprep.subr.mxu0 0.0
    %5076 = vmatpush1.msra.mxu0 0.0
    %5077 = vmatprep.subr.mxu0 0.0
    %5078 = vmatpush1.msra.mxu0 0.0
    %5079 = vmatprep.subr.mxu0 0.0
    %5080 = vmatpush1.msra.mxu0 0.0
    %5081 = vmatprep.subr.mxu0 0.0
    %5082 = vmatpush1.msra.mxu0 0.0
    %5083 = vmatprep.subr.mxu0 0.0
    %5084 = vmatpush1.msra.mxu0 0.0
    %5085 = vmatprep.subr.mxu0 0.0
    %5086 = vmatpush1.msra.mxu0 0.0
    %5087 = vmatprep.subr.mxu0 0.0
    %5088 = vmatpush1.msra.mxu0 0.0
    %5089 = vmatprep.subr.mxu0 0.0
    %5090 = vmatpush1.msra.mxu0 0.0
    %5091 = vmatprep.subr.mxu0 0.0
    %5092 = vmatpush1.msra.mxu0 0.0
    %5093 = vmatprep.subr.mxu0 0.0
    %5094 = vmatpush1.msra.mxu0 0.0
    %5095 = vmatprep.subr.mxu0 0.0
    %5096 = vmatpush1.msra.mxu0 0.0
    %5097 = vmatprep.subr.mxu0 0.0
    %5098 = vmatpush1.msra.mxu0 0.0
    %5099 = vmatprep.mubr.f32.mxu0 0.0
    %5100 = vmatmul.mubr.f32.gmra.mrb[0].mxu0 %v4955
    %v5101 = vpop.f32.mrb[0].mxu0
    %v5102 = vadd.f32 0.0, %v5101
    %v5103 = vpop.f32.mrb[0].mxu0
    %5104 = vdwg.mxu0
    %v5105 = vadd.f32 %v5034, %v5102
    %v5106 = vxor.u32 %v5105, 2147483648
    %v5107 = vmul.f32 %v5106, 1.442695
    %v5108 = vpow.pop %v5107
    %v5109 = vadd.f32 %v5108, 1.0
    %v5110 = vrcp.pop %v5109
    %v5111 = vmul.f32 1.0, %v5110
    %v5112 = vld [vmem:[#allocation4 + $0xa] sm:$0x3]
    %5113 = vmatprep.subr.mxu0 0.0
    %5114 = vmatpush1.msra.mxu0 %v3372
    %5115 = vmatprep.subr.mxu0 0.0
    %5116 = vmatpush1.msra.mxu0 %v3373
    %5117 = vmatprep.subr.mxu0 0.0
    %5118 = vmatpush1.msra.mxu0 %v3374
    %5119 = vmatprep.subr.mxu0 0.0
    %5120 = vmatpush1.msra.mxu0 %v3375
    %5121 = vmatprep.subr.mxu0 0.0
    %5122 = vmatpush1.msra.mxu0 0.0
    %5123 = vmatprep.subr.mxu0 0.0
    %5124 = vmatpush1.msra.mxu0 0.0
    %5125 = vmatprep.subr.mxu0 0.0
    %5126 = vmatpush1.msra.mxu0 0.0
    %5127 = vmatprep.subr.mxu0 0.0
    %5128 = vmatpush1.msra.mxu0 0.0
    %5129 = vmatprep.subr.mxu0 0.0
    %5130 = vmatpush1.msra.mxu0 0.0
    %5131 = vmatprep.subr.mxu0 0.0
    %5132 = vmatpush1.msra.mxu0 0.0
    %5133 = vmatprep.subr.mxu0 0.0
    %5134 = vmatpush1.msra.mxu0 0.0
    %5135 = vmatprep.subr.mxu0 0.0
    %5136 = vmatpush1.msra.mxu0 0.0
    %5137 = vmatprep.subr.mxu0 0.0
    %5138 = vmatpush1.msra.mxu0 0.0
    %5139 = vmatprep.subr.mxu0 0.0
    %5140 = vmatpush1.msra.mxu0 0.0
    %5141 = vmatprep.subr.mxu0 0.0
    %5142 = vmatpush1.msra.mxu0 0.0
    %5143 = vmatprep.subr.mxu0 0.0
    %5144 = vmatpush1.msra.mxu0 0.0
    %5145 = vmatprep.subr.mxu0 0.0
    %5146 = vmatpush1.msra.mxu0 0.0
    %5147 = vmatprep.subr.mxu0 0.0
    %5148 = vmatpush1.msra.mxu0 0.0
    %5149 = vmatprep.subr.mxu0 0.0
    %5150 = vmatpush1.msra.mxu0 0.0
    %5151 = vmatprep.subr.mxu0 0.0
    %5152 = vmatpush1.msra.mxu0 0.0
    %5153 = vmatprep.subr.mxu0 0.0
    %5154 = vmatpush1.msra.mxu0 0.0
    %5155 = vmatprep.subr.mxu0 0.0
    %5156 = vmatpush1.msra.mxu0 0.0
    %5157 = vmatprep.subr.mxu0 0.0
    %5158 = vmatpush1.msra.mxu0 0.0
    %5159 = vmatprep.subr.mxu0 0.0
    %5160 = vmatpush1.msra.mxu0 0.0
    %5161 = vmatprep.subr.mxu0 0.0
    %5162 = vmatpush1.msra.mxu0 0.0
    %5163 = vmatprep.subr.mxu0 0.0
    %5164 = vmatpush1.msra.mxu0 0.0
    %5165 = vmatprep.subr.mxu0 0.0
    %5166 = vmatpush1.msra.mxu0 0.0
    %5167 = vmatprep.subr.mxu0 0.0
    %5168 = vmatpush1.msra.mxu0 0.0
    %5169 = vmatprep.subr.mxu0 0.0
    %5170 = vmatpush1.msra.mxu0 0.0
    %5171 = vmatprep.subr.mxu0 0.0
    %5172 = vmatpush1.msra.mxu0 0.0
    %5173 = vmatprep.subr.mxu0 0.0
    %5174 = vmatpush1.msra.mxu0 0.0
    %5175 = vmatprep.subr.mxu0 0.0
    %5176 = vmatpush1.msra.mxu0 0.0
    %5177 = vmatprep.mubr.f32.mxu0 0.0
    %5178 = vmatmul.mubr.f32.gmra.mrb[0].mxu0 %v4955
    %v5179 = vpop.f32.mrb[0].mxu0
    %v5180 = vadd.f32 0.0, %v5179
    %v5181 = vpop.f32.mrb[0].mxu0
    %5182 = vdwg.mxu0
    %v5183 = vadd.f32 %v5112, %v5180
    %v5184 = vtanh.pop %v5183
    %v5185 = vld [vmem:[#allocation5 + $0xa] sm:$0x3]
    %5186 = vmatprep.subr.mxu0 0.0
    %5187 = vmatpush1.msra.mxu0 %v3377
    %5188 = vmatprep.subr.mxu0 0.0
    %5189 = vmatpush1.msra.mxu0 %v3378
    %5190 = vmatprep.subr.mxu0 0.0
    %5191 = vmatpush1.msra.mxu0 %v3379
    %5192 = vmatprep.subr.mxu0 0.0
    %5193 = vmatpush1.msra.mxu0 %v3380
    %5194 = vmatprep.subr.mxu0 0.0
    %5195 = vmatpush1.msra.mxu0 0.0
    %5196 = vmatprep.subr.mxu0 0.0
    %5197 = vmatpush1.msra.mxu0 0.0
    %5198 = vmatprep.subr.mxu0 0.0
    %5199 = vmatpush1.msra.mxu0 0.0
    %5200 = vmatprep.subr.mxu0 0.0
    %5201 = vmatpush1.msra.mxu0 0.0
    %5202 = vmatprep.subr.mxu0 0.0
    %5203 = vmatpush1.msra.mxu0 0.0
    %5204 = vmatprep.subr.mxu0 0.0
    %5205 = vmatpush1.msra.mxu0 0.0
    %5206 = vmatprep.subr.mxu0 0.0
    %5207 = vmatpush1.msra.mxu0 0.0
    %5208 = vmatprep.subr.mxu0 0.0
    %5209 = vmatpush1.msra.mxu0 0.0
    %5210 = vmatprep.subr.mxu0 0.0
    %5211 = vmatpush1.msra.mxu0 0.0
    %5212 = vmatprep.subr.mxu0 0.0
    %5213 = vmatpush1.msra.mxu0 0.0
    %5214 = vmatprep.subr.mxu0 0.0
    %5215 = vmatpush1.msra.mxu0 0.0
    %5216 = vmatprep.subr.mxu0 0.0
    %5217 = vmatpush1.msra.mxu0 0.0
    %5218 = vmatprep.subr.mxu0 0.0
    %5219 = vmatpush1.msra.mxu0 0.0
    %5220 = vmatprep.subr.mxu0 0.0
    %5221 = vmatpush1.msra.mxu0 0.0
    %5222 = vmatprep.subr.mxu0 0.0
    %5223 = vmatpush1.msra.mxu0 0.0
    %5224 = vmatprep.subr.mxu0 0.0
    %5225 = vmatpush1.msra.mxu0 0.0
    %5226 = vmatprep.subr.mxu0 0.0
    %5227 = vmatpush1.msra.mxu0 0.0
    %5228 = vmatprep.subr.mxu0 0.0
    %5229 = vmatpush1.msra.mxu0 0.0
    %5230 = vmatprep.subr.mxu0 0.0
    %5231 = vmatpush1.msra.mxu0 0.0
    %5232 = vmatprep.subr.mxu0 0.0
    %5233 = vmatpush1.msra.mxu0 0.0
    %5234 = vmatprep.subr.mxu0 0.0
    %5235 = vmatpush1.msra.mxu0 0.0
    %5236 = vmatprep.subr.mxu0 0.0
    %5237 = vmatpush1.msra.mxu0 0.0
    %5238 = vmatprep.subr.mxu0 0.0
    %5239 = vmatpush1.msra.mxu0 0.0
    %5240 = vmatprep.subr.mxu0 0.0
    %5241 = vmatpush1.msra.mxu0 0.0
    %5242 = vmatprep.subr.mxu0 0.0
    %5243 = vmatpush1.msra.mxu0 0.0
    %5244 = vmatprep.subr.mxu0 0.0
    %5245 = vmatpush1.msra.mxu0 0.0
    %5246 = vmatprep.subr.mxu0 0.0
    %5247 = vmatpush1.msra.mxu0 0.0
    %5248 = vmatprep.subr.mxu0 0.0
    %5249 = vmatpush1.msra.mxu0 0.0
    %5250 = vmatprep.mubr.f32.mxu0 0.0
    %5251 = vmatmul.mubr.f32.gmra.mrb[0].mxu0 %v4955
    %v5252 = vpop.f32.mrb[0].mxu0
    %v5253 = vadd.f32 0.0, %v5252
    %v5254 = vpop.f32.mrb[0].mxu0
    %5255 = vdwg.mxu0
    %v5256 = vadd.f32 %v5185, %v5253
    %v5257 = vxor.u32 %v5256, 2147483648
    %v5258 = vmul.f32 %v5257, 1.442695
    %v5259 = vpow.pop %v5258
    %v5260 = vadd.f32 %v5259, 1.0
    %v5261 = vrcp.pop %v5260
    %v5262 = vmul.f32 1.0, %v5261
    %v5263 = vmul.f32 %v5111, %v4950
    %v5264 = vmul.f32 %v5033, %v5184
    %v5265 = vadd.f32 %v5263, %v5264
    %v5266 = vtanh.pop %v5265
    %v5267 = vmul.f32 %v5262, %v5266
    %v5268 = vld [vmem:[#allocation2 + $0xc] sm:$0x3]
    %v5270 = vsel %vm181, %v5267, 0
    %5272 = vmatprep.subr.mxu0 0.0
    %5273 = vmatpush1.msra.mxu0 %v3362
    %5274 = vmatprep.subr.mxu0 0.0
    %5275 = vmatpush1.msra.mxu0 %v3363
    %5276 = vmatprep.subr.mxu0 0.0
    %5277 = vmatpush1.msra.mxu0 %v3364
    %5278 = vmatprep.subr.mxu0 0.0
    %5279 = vmatpush1.msra.mxu0 %v3365
    %5280 = vmatprep.subr.mxu0 0.0
    %5281 = vmatpush1.msra.mxu0 0.0
    %5282 = vmatprep.subr.mxu0 0.0
    %5283 = vmatpush1.msra.mxu0 0.0
    %5284 = vmatprep.subr.mxu0 0.0
    %5285 = vmatpush1.msra.mxu0 0.0
    %5286 = vmatprep.subr.mxu0 0.0
    %5287 = vmatpush1.msra.mxu0 0.0
    %5288 = vmatprep.subr.mxu0 0.0
    %5289 = vmatpush1.msra.mxu0 0.0
    %5290 = vmatprep.subr.mxu0 0.0
    %5291 = vmatpush1.msra.mxu0 0.0
    %5292 = vmatprep.subr.mxu0 0.0
    %5293 = vmatpush1.msra.mxu0 0.0
    %5294 = vmatprep.subr.mxu0 0.0
    %5295 = vmatpush1.msra.mxu0 0.0
    %5296 = vmatprep.subr.mxu0 0.0
    %5297 = vmatpush1.msra.mxu0 0.0
    %5298 = vmatprep.subr.mxu0 0.0
    %5299 = vmatpush1.msra.mxu0 0.0
    %5300 = vmatprep.subr.mxu0 0.0
    %5301 = vmatpush1.msra.mxu0 0.0
    %5302 = vmatprep.subr.mxu0 0.0
    %5303 = vmatpush1.msra.mxu0 0.0
    %5304 = vmatprep.subr.mxu0 0.0
    %5305 = vmatpush1.msra.mxu0 0.0
    %5306 = vmatprep.subr.mxu0 0.0
    %5307 = vmatpush1.msra.mxu0 0.0
    %5308 = vmatprep.subr.mxu0 0.0
    %5309 = vmatpush1.msra.mxu0 0.0
    %5310 = vmatprep.subr.mxu0 0.0
    %5311 = vmatpush1.msra.mxu0 0.0
    %5312 = vmatprep.subr.mxu0 0.0
    %5313 = vmatpush1.msra.mxu0 0.0
    %5314 = vmatprep.subr.mxu0 0.0
    %5315 = vmatpush1.msra.mxu0 0.0
    %5316 = vmatprep.subr.mxu0 0.0
    %5317 = vmatpush1.msra.mxu0 0.0
    %5318 = vmatprep.subr.mxu0 0.0
    %5319 = vmatpush1.msra.mxu0 0.0
    %5320 = vmatprep.subr.mxu0 0.0
    %5321 = vmatpush1.msra.mxu0 0.0
    %5322 = vmatprep.subr.mxu0 0.0
    %5323 = vmatpush1.msra.mxu0 0.0
    %5324 = vmatprep.subr.mxu0 0.0
    %5325 = vmatpush1.msra.mxu0 0.0
    %5326 = vmatprep.subr.mxu0 0.0
    %5327 = vmatpush1.msra.mxu0 0.0
    %5328 = vmatprep.subr.mxu0 0.0
    %5329 = vmatpush1.msra.mxu0 0.0
    %5330 = vmatprep.subr.mxu0 0.0
    %5331 = vmatpush1.msra.mxu0 0.0
    %5332 = vmatprep.subr.mxu0 0.0
    %5333 = vmatpush1.msra.mxu0 0.0
    %5334 = vmatprep.subr.mxu0 0.0
    %5335 = vmatpush1.msra.mxu0 0.0
    %5336 = vmatprep.mubr.f32.mxu0 0.0
    %5337 = vmatmul.mubr.f32.gmra.mrb[0].mxu0 %v5270
    %v5338 = vpop.f32.mrb[0].mxu0
    %v5339 = vadd.f32 0.0, %v5338
    %v5340 = vpop.f32.mrb[0].mxu0
    %5341 = vdwg.mxu0
    %v5342 = vadd.f32 %v5268, %v5339
    %v5343 = vxor.u32 %v5342, 2147483648
    %v5344 = vmul.f32 %v5343, 1.442695
    %v5345 = vpow.pop %v5344
    %v5346 = vadd.f32 %v5345, 1.0
    %v5347 = vrcp.pop %v5346
    %v5348 = vmul.f32 1.0, %v5347
    %v5349 = vld [vmem:[#allocation3 + $0xc] sm:$0x3]
    %5350 = vmatprep.subr.mxu0 0.0
    %5351 = vmatpush1.msra.mxu0 %v3367
    %5352 = vmatprep.subr.mxu0 0.0
    %5353 = vmatpush1.msra.mxu0 %v3368
    %5354 = vmatprep.subr.mxu0 0.0
    %5355 = vmatpush1.msra.mxu0 %v3369
    %5356 = vmatprep.subr.mxu0 0.0
    %5357 = vmatpush1.msra.mxu0 %v3370
    %5358 = vmatprep.subr.mxu0 0.0
    %5359 = vmatpush1.msra.mxu0 0.0
    %5360 = vmatprep.subr.mxu0 0.0
    %5361 = vmatpush1.msra.mxu0 0.0
    %5362 = vmatprep.subr.mxu0 0.0
    %5363 = vmatpush1.msra.mxu0 0.0
    %5364 = vmatprep.subr.mxu0 0.0
    %5365 = vmatpush1.msra.mxu0 0.0
    %5366 = vmatprep.subr.mxu0 0.0
    %5367 = vmatpush1.msra.mxu0 0.0
    %5368 = vmatprep.subr.mxu0 0.0
    %5369 = vmatpush1.msra.mxu0 0.0
    %5370 = vmatprep.subr.mxu0 0.0
    %5371 = vmatpush1.msra.mxu0 0.0
    %5372 = vmatprep.subr.mxu0 0.0
    %5373 = vmatpush1.msra.mxu0 0.0
    %5374 = vmatprep.subr.mxu0 0.0
    %5375 = vmatpush1.msra.mxu0 0.0
    %5376 = vmatprep.subr.mxu0 0.0
    %5377 = vmatpush1.msra.mxu0 0.0
    %5378 = vmatprep.subr.mxu0 0.0
    %5379 = vmatpush1.msra.mxu0 0.0
    %5380 = vmatprep.subr.mxu0 0.0
    %5381 = vmatpush1.msra.mxu0 0.0
    %5382 = vmatprep.subr.mxu0 0.0
    %5383 = vmatpush1.msra.mxu0 0.0
    %5384 = vmatprep.subr.mxu0 0.0
    %5385 = vmatpush1.msra.mxu0 0.0
    %5386 = vmatprep.subr.mxu0 0.0
    %5387 = vmatpush1.msra.mxu0 0.0
    %5388 = vmatprep.subr.mxu0 0.0
    %5389 = vmatpush1.msra.mxu0 0.0
    %5390 = vmatprep.subr.mxu0 0.0
    %5391 = vmatpush1.msra.mxu0 0.0
    %5392 = vmatprep.subr.mxu0 0.0
    %5393 = vmatpush1.msra.mxu0 0.0
    %5394 = vmatprep.subr.mxu0 0.0
    %5395 = vmatpush1.msra.mxu0 0.0
    %5396 = vmatprep.subr.mxu0 0.0
    %5397 = vmatpush1.msra.mxu0 0.0
    %5398 = vmatprep.subr.mxu0 0.0
    %5399 = vmatpush1.msra.mxu0 0.0
    %5400 = vmatprep.subr.mxu0 0.0
    %5401 = vmatpush1.msra.mxu0 0.0
    %5402 = vmatprep.subr.mxu0 0.0
    %5403 = vmatpush1.msra.mxu0 0.0
    %5404 = vmatprep.subr.mxu0 0.0
    %5405 = vmatpush1.msra.mxu0 0.0
    %5406 = vmatprep.subr.mxu0 0.0
    %5407 = vmatpush1.msra.mxu0 0.0
    %5408 = vmatprep.subr.mxu0 0.0
    %5409 = vmatpush1.msra.mxu0 0.0
    %5410 = vmatprep.subr.mxu0 0.0
    %5411 = vmatpush1.msra.mxu0 0.0
    %5412 = vmatprep.subr.mxu0 0.0
    %5413 = vmatpush1.msra.mxu0 0.0
    %5414 = vmatprep.mubr.f32.mxu0 0.0
    %5415 = vmatmul.mubr.f32.gmra.mrb[0].mxu0 %v5270
    %v5416 = vpop.f32.mrb[0].mxu0
    %v5417 = vadd.f32 0.0, %v5416
    %v5418 = vpop.f32.mrb[0].mxu0
    %5419 = vdwg.mxu0
    %v5420 = vadd.f32 %v5349, %v5417
    %v5421 = vxor.u32 %v5420, 2147483648
    %v5422 = vmul.f32 %v5421, 1.442695
    %v5423 = vpow.pop %v5422
    %v5424 = vadd.f32 %v5423, 1.0
    %v5425 = vrcp.pop %v5424
    %v5426 = vmul.f32 1.0, %v5425
    %v5427 = vld [vmem:[#allocation4 + $0xc] sm:$0x3]
    %5428 = vmatprep.subr.mxu0 0.0
    %5429 = vmatpush1.msra.mxu0 %v3372
    %5430 = vmatprep.subr.mxu0 0.0
    %5431 = vmatpush1.msra.mxu0 %v3373
    %5432 = vmatprep.subr.mxu0 0.0
    %5433 = vmatpush1.msra.mxu0 %v3374
    %5434 = vmatprep.subr.mxu0 0.0
    %5435 = vmatpush1.msra.mxu0 %v3375
    %5436 = vmatprep.subr.mxu0 0.0
    %5437 = vmatpush1.msra.mxu0 0.0
    %5438 = vmatprep.subr.mxu0 0.0
    %5439 = vmatpush1.msra.mxu0 0.0
    %5440 = vmatprep.subr.mxu0 0.0
    %5441 = vmatpush1.msra.mxu0 0.0
    %5442 = vmatprep.subr.mxu0 0.0
    %5443 = vmatpush1.msra.mxu0 0.0
    %5444 = vmatprep.subr.mxu0 0.0
    %5445 = vmatpush1.msra.mxu0 0.0
    %5446 = vmatprep.subr.mxu0 0.0
    %5447 = vmatpush1.msra.mxu0 0.0
    %5448 = vmatprep.subr.mxu0 0.0
    %5449 = vmatpush1.msra.mxu0 0.0
    %5450 = vmatprep.subr.mxu0 0.0
    %5451 = vmatpush1.msra.mxu0 0.0
    %5452 = vmatprep.subr.mxu0 0.0
    %5453 = vmatpush1.msra.mxu0 0.0
    %5454 = vmatprep.subr.mxu0 0.0
    %5455 = vmatpush1.msra.mxu0 0.0
    %5456 = vmatprep.subr.mxu0 0.0
    %5457 = vmatpush1.msra.mxu0 0.0
    %5458 = vmatprep.subr.mxu0 0.0
    %5459 = vmatpush1.msra.mxu0 0.0
    %5460 = vmatprep.subr.mxu0 0.0
    %5461 = vmatpush1.msra.mxu0 0.0
    %5462 = vmatprep.subr.mxu0 0.0
    %5463 = vmatpush1.msra.mxu0 0.0
    %5464 = vmatprep.subr.mxu0 0.0
    %5465 = vmatpush1.msra.mxu0 0.0
    %5466 = vmatprep.subr.mxu0 0.0
    %5467 = vmatpush1.msra.mxu0 0.0
    %5468 = vmatprep.subr.mxu0 0.0
    %5469 = vmatpush1.msra.mxu0 0.0
    %5470 = vmatprep.subr.mxu0 0.0
    %5471 = vmatpush1.msra.mxu0 0.0
    %5472 = vmatprep.subr.mxu0 0.0
    %5473 = vmatpush1.msra.mxu0 0.0
    %5474 = vmatprep.subr.mxu0 0.0
    %5475 = vmatpush1.msra.mxu0 0.0
    %5476 = vmatprep.subr.mxu0 0.0
    %5477 = vmatpush1.msra.mxu0 0.0
    %5478 = vmatprep.subr.mxu0 0.0
    %5479 = vmatpush1.msra.mxu0 0.0
    %5480 = vmatprep.subr.mxu0 0.0
    %5481 = vmatpush1.msra.mxu0 0.0
    %5482 = vmatprep.subr.mxu0 0.0
    %5483 = vmatpush1.msra.mxu0 0.0
    %5484 = vmatprep.subr.mxu0 0.0
    %5485 = vmatpush1.msra.mxu0 0.0
    %5486 = vmatprep.subr.mxu0 0.0
    %5487 = vmatpush1.msra.mxu0 0.0
    %5488 = vmatprep.subr.mxu0 0.0
    %5489 = vmatpush1.msra.mxu0 0.0
    %5490 = vmatprep.subr.mxu0 0.0
    %5491 = vmatpush1.msra.mxu0 0.0
    %5492 = vmatprep.mubr.f32.mxu0 0.0
    %5493 = vmatmul.mubr.f32.gmra.mrb[0].mxu0 %v5270
    %v5494 = vpop.f32.mrb[0].mxu0
    %v5495 = vadd.f32 0.0, %v5494
    %v5496 = vpop.f32.mrb[0].mxu0
    %5497 = vdwg.mxu0
    %v5498 = vadd.f32 %v5427, %v5495
    %v5499 = vtanh.pop %v5498
    %v5500 = vld [vmem:[#allocation5 + $0xc] sm:$0x3]
    %5501 = vmatprep.subr.mxu0 0.0
    %5502 = vmatpush1.msra.mxu0 %v3377
    %5503 = vmatprep.subr.mxu0 0.0
    %5504 = vmatpush1.msra.mxu0 %v3378
    %5505 = vmatprep.subr.mxu0 0.0
    %5506 = vmatpush1.msra.mxu0 %v3379
    %5507 = vmatprep.subr.mxu0 0.0
    %5508 = vmatpush1.msra.mxu0 %v3380
    %5509 = vmatprep.subr.mxu0 0.0
    %5510 = vmatpush1.msra.mxu0 0.0
    %5511 = vmatprep.subr.mxu0 0.0
    %5512 = vmatpush1.msra.mxu0 0.0
    %5513 = vmatprep.subr.mxu0 0.0
    %5514 = vmatpush1.msra.mxu0 0.0
    %5515 = vmatprep.subr.mxu0 0.0
    %5516 = vmatpush1.msra.mxu0 0.0
    %5517 = vmatprep.subr.mxu0 0.0
    %5518 = vmatpush1.msra.mxu0 0.0
    %5519 = vmatprep.subr.mxu0 0.0
    %5520 = vmatpush1.msra.mxu0 0.0
    %5521 = vmatprep.subr.mxu0 0.0
    %5522 = vmatpush1.msra.mxu0 0.0
    %5523 = vmatprep.subr.mxu0 0.0
    %5524 = vmatpush1.msra.mxu0 0.0
    %5525 = vmatprep.subr.mxu0 0.0
    %5526 = vmatpush1.msra.mxu0 0.0
    %5527 = vmatprep.subr.mxu0 0.0
    %5528 = vmatpush1.msra.mxu0 0.0
    %5529 = vmatprep.subr.mxu0 0.0
    %5530 = vmatpush1.msra.mxu0 0.0
    %5531 = vmatprep.subr.mxu0 0.0
    %5532 = vmatpush1.msra.mxu0 0.0
    %5533 = vmatprep.subr.mxu0 0.0
    %5534 = vmatpush1.msra.mxu0 0.0
    %5535 = vmatprep.subr.mxu0 0.0
    %5536 = vmatpush1.msra.mxu0 0.0
    %5537 = vmatprep.subr.mxu0 0.0
    %5538 = vmatpush1.msra.mxu0 0.0
    %5539 = vmatprep.subr.mxu0 0.0
    %5540 = vmatpush1.msra.mxu0 0.0
    %5541 = vmatprep.subr.mxu0 0.0
    %5542 = vmatpush1.msra.mxu0 0.0
    %5543 = vmatprep.subr.mxu0 0.0
    %5544 = vmatpush1.msra.mxu0 0.0
    %5545 = vmatprep.subr.mxu0 0.0
    %5546 = vmatpush1.msra.mxu0 0.0
    %5547 = vmatprep.subr.mxu0 0.0
    %5548 = vmatpush1.msra.mxu0 0.0
    %5549 = vmatprep.subr.mxu0 0.0
    %5550 = vmatpush1.msra.mxu0 0.0
    %5551 = vmatprep.subr.mxu0 0.0
    %5552 = vmatpush1.msra.mxu0 0.0
    %5553 = vmatprep.subr.mxu0 0.0
    %5554 = vmatpush1.msra.mxu0 0.0
    %5555 = vmatprep.subr.mxu0 0.0
    %5556 = vmatpush1.msra.mxu0 0.0
    %5557 = vmatprep.subr.mxu0 0.0
    %5558 = vmatpush1.msra.mxu0 0.0
    %5559 = vmatprep.subr.mxu0 0.0
    %5560 = vmatpush1.msra.mxu0 0.0
    %5561 = vmatprep.subr.mxu0 0.0
    %5562 = vmatpush1.msra.mxu0 0.0
    %5563 = vmatprep.subr.mxu0 0.0
    %5564 = vmatpush1.msra.mxu0 0.0
    %5565 = vmatprep.mubr.f32.mxu0 0.0
    %5566 = vmatmul.mubr.f32.gmra.mrb[0].mxu0 %v5270
    %v5567 = vpop.f32.mrb[0].mxu0
    %v5568 = vadd.f32 0.0, %v5567
    %v5569 = vpop.f32.mrb[0].mxu0
    %5570 = vdwg.mxu0
    %v5571 = vadd.f32 %v5500, %v5568
    %v5572 = vxor.u32 %v5571, 2147483648
    %v5573 = vmul.f32 %v5572, 1.442695
    %v5574 = vpow.pop %v5573
    %v5575 = vadd.f32 %v5574, 1.0
    %v5576 = vrcp.pop %v5575
    %v5577 = vmul.f32 1.0, %v5576
    %v5578 = vmul.f32 %v5426, %v5265
    %v5579 = vmul.f32 %v5348, %v5499
    %v5580 = vadd.f32 %v5578, %v5579
    %v5581 = vtanh.pop %v5580
    %v5582 = vmul.f32 %v5577, %v5581
    %v5583 = vld [vmem:[#allocation2 + $0xe] sm:$0x3]
    %v5585 = vsel %vm181, %v5582, 0
    %5587 = vmatprep.subr.mxu0 0.0
    %5588 = vmatpush1.msra.mxu0 %v3362
    %5589 = vmatprep.subr.mxu0 0.0
    %5590 = vmatpush1.msra.mxu0 %v3363
    %5591 = vmatprep.subr.mxu0 0.0
    %5592 = vmatpush1.msra.mxu0 %v3364
    %5593 = vmatprep.subr.mxu0 0.0
    %5594 = vmatpush1.msra.mxu0 %v3365
    %5595 = vmatprep.subr.mxu0 0.0
    %5596 = vmatpush1.msra.mxu0 0.0
    %5597 = vmatprep.subr.mxu0 0.0
    %5598 = vmatpush1.msra.mxu0 0.0
    %5599 = vmatprep.subr.mxu0 0.0
    %5600 = vmatpush1.msra.mxu0 0.0
    %5601 = vmatprep.subr.mxu0 0.0
    %5602 = vmatpush1.msra.mxu0 0.0
    %5603 = vmatprep.subr.mxu0 0.0
    %5604 = vmatpush1.msra.mxu0 0.0
    %5605 = vmatprep.subr.mxu0 0.0
    %5606 = vmatpush1.msra.mxu0 0.0
    %5607 = vmatprep.subr.mxu0 0.0
    %5608 = vmatpush1.msra.mxu0 0.0
    %5609 = vmatprep.subr.mxu0 0.0
    %5610 = vmatpush1.msra.mxu0 0.0
    %5611 = vmatprep.subr.mxu0 0.0
    %5612 = vmatpush1.msra.mxu0 0.0
    %5613 = vmatprep.subr.mxu0 0.0
    %5614 = vmatpush1.msra.mxu0 0.0
    %5615 = vmatprep.subr.mxu0 0.0
    %5616 = vmatpush1.msra.mxu0 0.0
    %5617 = vmatprep.subr.mxu0 0.0
    %5618 = vmatpush1.msra.mxu0 0.0
    %5619 = vmatprep.subr.mxu0 0.0
    %5620 = vmatpush1.msra.mxu0 0.0
    %5621 = vmatprep.subr.mxu0 0.0
    %5622 = vmatpush1.msra.mxu0 0.0
    %5623 = vmatprep.subr.mxu0 0.0
    %5624 = vmatpush1.msra.mxu0 0.0
    %5625 = vmatprep.subr.mxu0 0.0
    %5626 = vmatpush1.msra.mxu0 0.0
    %5627 = vmatprep.subr.mxu0 0.0
    %5628 = vmatpush1.msra.mxu0 0.0
    %5629 = vmatprep.subr.mxu0 0.0
    %5630 = vmatpush1.msra.mxu0 0.0
    %5631 = vmatprep.subr.mxu0 0.0
    %5632 = vmatpush1.msra.mxu0 0.0
    %5633 = vmatprep.subr.mxu0 0.0
    %5634 = vmatpush1.msra.mxu0 0.0
    %5635 = vmatprep.subr.mxu0 0.0
    %5636 = vmatpush1.msra.mxu0 0.0
    %5637 = vmatprep.subr.mxu0 0.0
    %5638 = vmatpush1.msra.mxu0 0.0
    %5639 = vmatprep.subr.mxu0 0.0
    %5640 = vmatpush1.msra.mxu0 0.0
    %5641 = vmatprep.subr.mxu0 0.0
    %5642 = vmatpush1.msra.mxu0 0.0
    %5643 = vmatprep.subr.mxu0 0.0
    %5644 = vmatpush1.msra.mxu0 0.0
    %5645 = vmatprep.subr.mxu0 0.0
    %5646 = vmatpush1.msra.mxu0 0.0
    %5647 = vmatprep.subr.mxu0 0.0
    %5648 = vmatpush1.msra.mxu0 0.0
    %5649 = vmatprep.subr.mxu0 0.0
    %5650 = vmatpush1.msra.mxu0 0.0
    %5651 = vmatprep.mubr.f32.mxu0 0.0
    %5652 = vmatmul.mubr.f32.gmra.mrb[0].mxu0 %v5585
    %v5653 = vpop.f32.mrb[0].mxu0
    %v5654 = vadd.f32 0.0, %v5653
    %v5655 = vpop.f32.mrb[0].mxu0
    %5656 = vdwg.mxu0
    %v5657 = vadd.f32 %v5583, %v5654
    %v5658 = vxor.u32 %v5657, 2147483648
    %v5659 = vmul.f32 %v5658, 1.442695
    %v5660 = vpow.pop %v5659
    %v5661 = vadd.f32 %v5660, 1.0
    %v5662 = vrcp.pop %v5661
    %v5663 = vmul.f32 1.0, %v5662
    %v5664 = vld [vmem:[#allocation3 + $0xe] sm:$0x3]
    %5665 = vmatprep.subr.mxu0 0.0
    %5666 = vmatpush1.msra.mxu0 %v3367
    %5667 = vmatprep.subr.mxu0 0.0
    %5668 = vmatpush1.msra.mxu0 %v3368
    %5669 = vmatprep.subr.mxu0 0.0
    %5670 = vmatpush1.msra.mxu0 %v3369
    %5671 = vmatprep.subr.mxu0 0.0
    %5672 = vmatpush1.msra.mxu0 %v3370
    %5673 = vmatprep.subr.mxu0 0.0
    %5674 = vmatpush1.msra.mxu0 0.0
    %5675 = vmatprep.subr.mxu0 0.0
    %5676 = vmatpush1.msra.mxu0 0.0
    %5677 = vmatprep.subr.mxu0 0.0
    %5678 = vmatpush1.msra.mxu0 0.0
    %5679 = vmatprep.subr.mxu0 0.0
    %5680 = vmatpush1.msra.mxu0 0.0
    %5681 = vmatprep.subr.mxu0 0.0
    %5682 = vmatpush1.msra.mxu0 0.0
    %5683 = vmatprep.subr.mxu0 0.0
    %5684 = vmatpush1.msra.mxu0 0.0
    %5685 = vmatprep.subr.mxu0 0.0
    %5686 = vmatpush1.msra.mxu0 0.0
    %5687 = vmatprep.subr.mxu0 0.0
    %5688 = vmatpush1.msra.mxu0 0.0
    %5689 = vmatprep.subr.mxu0 0.0
    %5690 = vmatpush1.msra.mxu0 0.0
    %5691 = vmatprep.subr.mxu0 0.0
    %5692 = vmatpush1.msra.mxu0 0.0
    %5693 = vmatprep.subr.mxu0 0.0
    %5694 = vmatpush1.msra.mxu0 0.0
    %5695 = vmatprep.subr.mxu0 0.0
    %5696 = vmatpush1.msra.mxu0 0.0
    %5697 = vmatprep.subr.mxu0 0.0
    %5698 = vmatpush1.msra.mxu0 0.0
    %5699 = vmatprep.subr.mxu0 0.0
    %5700 = vmatpush1.msra.mxu0 0.0
    %5701 = vmatprep.subr.mxu0 0.0
    %5702 = vmatpush1.msra.mxu0 0.0
    %5703 = vmatprep.subr.mxu0 0.0
    %5704 = vmatpush1.msra.mxu0 0.0
    %5705 = vmatprep.subr.mxu0 0.0
    %5706 = vmatpush1.msra.mxu0 0.0
    %5707 = vmatprep.subr.mxu0 0.0
    %5708 = vmatpush1.msra.mxu0 0.0
    %5709 = vmatprep.subr.mxu0 0.0
    %5710 = vmatpush1.msra.mxu0 0.0
    %5711 = vmatprep.subr.mxu0 0.0
    %5712 = vmatpush1.msra.mxu0 0.0
    %5713 = vmatprep.subr.mxu0 0.0
    %5714 = vmatpush1.msra.mxu0 0.0
    %5715 = vmatprep.subr.mxu0 0.0
    %5716 = vmatpush1.msra.mxu0 0.0
    %5717 = vmatprep.subr.mxu0 0.0
    %5718 = vmatpush1.msra.mxu0 0.0
    %5719 = vmatprep.subr.mxu0 0.0
    %5720 = vmatpush1.msra.mxu0 0.0
    %5721 = vmatprep.subr.mxu0 0.0
    %5722 = vmatpush1.msra.mxu0 0.0
    %5723 = vmatprep.subr.mxu0 0.0
    %5724 = vmatpush1.msra.mxu0 0.0
    %5725 = vmatprep.subr.mxu0 0.0
    %5726 = vmatpush1.msra.mxu0 0.0
    %5727 = vmatprep.subr.mxu0 0.0
    %5728 = vmatpush1.msra.mxu0 0.0
    %5729 = vmatprep.mubr.f32.mxu0 0.0
    %5730 = vmatmul.mubr.f32.gmra.mrb[0].mxu0 %v5585
    %v5731 = vpop.f32.mrb[0].mxu0
    %v5732 = vadd.f32 0.0, %v5731
    %v5733 = vpop.f32.mrb[0].mxu0
    %5734 = vdwg.mxu0
    %v5735 = vadd.f32 %v5664, %v5732
    %v5736 = vxor.u32 %v5735, 2147483648
    %v5737 = vmul.f32 %v5736, 1.442695
    %v5738 = vpow.pop %v5737
    %v5739 = vadd.f32 %v5738, 1.0
    %v5740 = vrcp.pop %v5739
    %v5741 = vmul.f32 1.0, %v5740
    %v5742 = vld [vmem:[#allocation4 + $0xe] sm:$0x3]
    %5743 = vmatprep.subr.mxu0 0.0
    %5744 = vmatpush1.msra.mxu0 %v3372
    %5745 = vmatprep.subr.mxu0 0.0
    %5746 = vmatpush1.msra.mxu0 %v3373
    %5747 = vmatprep.subr.mxu0 0.0
    %5748 = vmatpush1.msra.mxu0 %v3374
    %5749 = vmatprep.subr.mxu0 0.0
    %5750 = vmatpush1.msra.mxu0 %v3375
    %5751 = vmatprep.subr.mxu0 0.0
    %5752 = vmatpush1.msra.mxu0 0.0
    %5753 = vmatprep.subr.mxu0 0.0
    %5754 = vmatpush1.msra.mxu0 0.0
    %5755 = vmatprep.subr.mxu0 0.0
    %5756 = vmatpush1.msra.mxu0 0.0
    %5757 = vmatprep.subr.mxu0 0.0
    %5758 = vmatpush1.msra.mxu0 0.0
    %5759 = vmatprep.subr.mxu0 0.0
    %5760 = vmatpush1.msra.mxu0 0.0
    %5761 = vmatprep.subr.mxu0 0.0
    %5762 = vmatpush1.msra.mxu0 0.0
    %5763 = vmatprep.subr.mxu0 0.0
    %5764 = vmatpush1.msra.mxu0 0.0
    %5765 = vmatprep.subr.mxu0 0.0
    %5766 = vmatpush1.msra.mxu0 0.0
    %5767 = vmatprep.subr.mxu0 0.0
    %5768 = vmatpush1.msra.mxu0 0.0
    %5769 = vmatprep.subr.mxu0 0.0
    %5770 = vmatpush1.msra.mxu0 0.0
    %5771 = vmatprep.subr.mxu0 0.0
    %5772 = vmatpush1.msra.mxu0 0.0
    %5773 = vmatprep.subr.mxu0 0.0
    %5774 = vmatpush1.msra.mxu0 0.0
    %5775 = vmatprep.subr.mxu0 0.0
    %5776 = vmatpush1.msra.mxu0 0.0
    %5777 = vmatprep.subr.mxu0 0.0
    %5778 = vmatpush1.msra.mxu0 0.0
    %5779 = vmatprep.subr.mxu0 0.0
    %5780 = vmatpush1.msra.mxu0 0.0
    %5781 = vmatprep.subr.mxu0 0.0
    %5782 = vmatpush1.msra.mxu0 0.0
    %5783 = vmatprep.subr.mxu0 0.0
    %5784 = vmatpush1.msra.mxu0 0.0
    %5785 = vmatprep.subr.mxu0 0.0
    %5786 = vmatpush1.msra.mxu0 0.0
    %5787 = vmatprep.subr.mxu0 0.0
    %5788 = vmatpush1.msra.mxu0 0.0
    %5789 = vmatprep.subr.mxu0 0.0
    %5790 = vmatpush1.msra.mxu0 0.0
    %5791 = vmatprep.subr.mxu0 0.0
    %5792 = vmatpush1.msra.mxu0 0.0
    %5793 = vmatprep.subr.mxu0 0.0
    %5794 = vmatpush1.msra.mxu0 0.0
    %5795 = vmatprep.subr.mxu0 0.0
    %5796 = vmatpush1.msra.mxu0 0.0
    %5797 = vmatprep.subr.mxu0 0.0
    %5798 = vmatpush1.msra.mxu0 0.0
    %5799 = vmatprep.subr.mxu0 0.0
    %5800 = vmatpush1.msra.mxu0 0.0
    %5801 = vmatprep.subr.mxu0 0.0
    %5802 = vmatpush1.msra.mxu0 0.0
    %5803 = vmatprep.subr.mxu0 0.0
    %5804 = vmatpush1.msra.mxu0 0.0
    %5805 = vmatprep.subr.mxu0 0.0
    %5806 = vmatpush1.msra.mxu0 0.0
    %5807 = vmatprep.mubr.f32.mxu0 0.0
    %5808 = vmatmul.mubr.f32.gmra.mrb[0].mxu0 %v5585
    %v5809 = vpop.f32.mrb[0].mxu0
    %v5810 = vadd.f32 0.0, %v5809
    %v5811 = vpop.f32.mrb[0].mxu0
    %5812 = vdwg.mxu0
    %v5813 = vadd.f32 %v5742, %v5810
    %v5814 = vtanh.pop %v5813
    %v5815 = vld [vmem:[#allocation5 + $0xe] sm:$0x3]
    %5816 = vmatprep.subr.mxu0 0.0
    %5817 = vmatpush1.msra.mxu0 %v3377
    %5818 = vmatprep.subr.mxu0 0.0
    %5819 = vmatpush1.msra.mxu0 %v3378
    %5820 = vmatprep.subr.mxu0 0.0
    %5821 = vmatpush1.msra.mxu0 %v3379
    %5822 = vmatprep.subr.mxu0 0.0
    %5823 = vmatpush1.msra.mxu0 %v3380
    %5824 = vmatprep.subr.mxu0 0.0
    %5825 = vmatpush1.msra.mxu0 0.0
    %5826 = vmatprep.subr.mxu0 0.0
    %5827 = vmatpush1.msra.mxu0 0.0
    %5828 = vmatprep.subr.mxu0 0.0
    %5829 = vmatpush1.msra.mxu0 0.0
    %5830 = vmatprep.subr.mxu0 0.0
    %5831 = vmatpush1.msra.mxu0 0.0
    %5832 = vmatprep.subr.mxu0 0.0
    %5833 = vmatpush1.msra.mxu0 0.0
    %5834 = vmatprep.subr.mxu0 0.0
    %5835 = vmatpush1.msra.mxu0 0.0
    %5836 = vmatprep.subr.mxu0 0.0
    %5837 = vmatpush1.msra.mxu0 0.0
    %5838 = vmatprep.subr.mxu0 0.0
    %5839 = vmatpush1.msra.mxu0 0.0
    %5840 = vmatprep.subr.mxu0 0.0
    %5841 = vmatpush1.msra.mxu0 0.0
    %5842 = vmatprep.subr.mxu0 0.0
    %5843 = vmatpush1.msra.mxu0 0.0
    %5844 = vmatprep.subr.mxu0 0.0
    %5845 = vmatpush1.msra.mxu0 0.0
    %5846 = vmatprep.subr.mxu0 0.0
    %5847 = vmatpush1.msra.mxu0 0.0
    %5848 = vmatprep.subr.mxu0 0.0
    %5849 = vmatpush1.msra.mxu0 0.0
    %5850 = vmatprep.subr.mxu0 0.0
    %5851 = vmatpush1.msra.mxu0 0.0
    %5852 = vmatprep.subr.mxu0 0.0
    %5853 = vmatpush1.msra.mxu0 0.0
    %5854 = vmatprep.subr.mxu0 0.0
    %5855 = vmatpush1.msra.mxu0 0.0
    %5856 = vmatprep.subr.mxu0 0.0
    %5857 = vmatpush1.msra.mxu0 0.0
    %5858 = vmatprep.subr.mxu0 0.0
    %5859 = vmatpush1.msra.mxu0 0.0
    %5860 = vmatprep.subr.mxu0 0.0
    %5861 = vmatpush1.msra.mxu0 0.0
    %5862 = vmatprep.subr.mxu0 0.0
    %5863 = vmatpush1.msra.mxu0 0.0
    %5864 = vmatprep.subr.mxu0 0.0
    %5865 = vmatpush1.msra.mxu0 0.0
    %5866 = vmatprep.subr.mxu0 0.0
    %5867 = vmatpush1.msra.mxu0 0.0
    %5868 = vmatprep.subr.mxu0 0.0
    %5869 = vmatpush1.msra.mxu0 0.0
    %5870 = vmatprep.subr.mxu0 0.0
    %5871 = vmatpush1.msra.mxu0 0.0
    %5872 = vmatprep.subr.mxu0 0.0
    %5873 = vmatpush1.msra.mxu0 0.0
    %5874 = vmatprep.subr.mxu0 0.0
    %5875 = vmatpush1.msra.mxu0 0.0
    %5876 = vmatprep.subr.mxu0 0.0
    %5877 = vmatpush1.msra.mxu0 0.0
    %5878 = vmatprep.subr.mxu0 0.0
    %5879 = vmatpush1.msra.mxu0 0.0
    %5880 = vmatprep.mubr.f32.mxu0 0.0
    %5881 = vmatmul.mubr.f32.gmra.mrb[0].mxu0 %v5585
    %v5882 = vpop.f32.mrb[0].mxu0
    %v5883 = vadd.f32 0.0, %v5882
    %v5884 = vpop.f32.mrb[0].mxu0
    %5885 = vdwg.mxu0
    %v5886 = vadd.f32 %v5815, %v5883
    %v5887 = vxor.u32 %v5886, 2147483648
    %v5888 = vmul.f32 %v5887, 1.442695
    %v5889 = vpow.pop %v5888
    %v5890 = vadd.f32 %v5889, 1.0
    %v5891 = vrcp.pop %v5890
    %v5892 = vmul.f32 1.0, %v5891
    %v5893 = vmul.f32 %v5741, %v5580
    %v5894 = vmul.f32 %v5663, %v5814
    %v5895 = vadd.f32 %v5893, %v5894
    %v5896 = vtanh.pop %v5895
    %v5897 = vmul.f32 %v5892, %v5896
    %v5898 = vld [vmem:[%s7] sm:$0xff]
    %v5899 = vld [vmem:[%s7 + $0x8] sm:$0xff]
    %v5900 = vld [vmem:[%s7 + $0x10] sm:$0xff]
    %v5901 = vld [vmem:[%s7 + $0x18] sm:$0xff]
    %v5902 = vld [vmem:[%s8] sm:$0x1]
    %v5904 = vlaneseq
    %v5905 = vshrl.u32 %v5904, 7
    %v5906 = vsub.s32 0, %v5905
    %v5907 = vrot.slane %v5902, %v5906
    %v5910 = vsel %vm181, %v5897, 0
    %5912 = vmatprep.subr.mxu0 0.0
    %5913 = vmatpush1.msra.mxu0 %v5898
    %5914 = vmatprep.subr.mxu0 0.0
    %5915 = vmatpush1.msra.mxu0 %v5899
    %5916 = vmatprep.subr.mxu0 0.0
    %5917 = vmatpush1.msra.mxu0 %v5900
    %5918 = vmatprep.subr.mxu0 0.0
    %5919 = vmatpush1.msra.mxu0 %v5901
    %5920 = vmatprep.subr.mxu0 0.0
    %5921 = vmatpush1.msra.mxu0 0.0
    %5922 = vmatprep.subr.mxu0 0.0
    %5923 = vmatpush1.msra.mxu0 0.0
    %5924 = vmatprep.subr.mxu0 0.0
    %5925 = vmatpush1.msra.mxu0 0.0
    %5926 = vmatprep.subr.mxu0 0.0
    %5927 = vmatpush1.msra.mxu0 0.0
    %5928 = vmatprep.subr.mxu0 0.0
    %5929 = vmatpush1.msra.mxu0 0.0
    %5930 = vmatprep.subr.mxu0 0.0
    %5931 = vmatpush1.msra.mxu0 0.0
    %5932 = vmatprep.subr.mxu0 0.0
    %5933 = vmatpush1.msra.mxu0 0.0
    %5934 = vmatprep.subr.mxu0 0.0
    %5935 = vmatpush1.msra.mxu0 0.0
    %5936 = vmatprep.subr.mxu0 0.0
    %5937 = vmatpush1.msra.mxu0 0.0
    %5938 = vmatprep.subr.mxu0 0.0
    %5939 = vmatpush1.msra.mxu0 0.0
    %5940 = vmatprep.subr.mxu0 0.0
    %5941 = vmatpush1.msra.mxu0 0.0
    %5942 = vmatprep.subr.mxu0 0.0
    %5943 = vmatpush1.msra.mxu0 0.0
    %5944 = vmatprep.subr.mxu0 0.0
    %5945 = vmatpush1.msra.mxu0 0.0
    %5946 = vmatprep.subr.mxu0 0.0
    %5947 = vmatpush1.msra.mxu0 0.0
    %5948 = vmatprep.subr.mxu0 0.0
    %5949 = vmatpush1.msra.mxu0 0.0
    %5950 = vmatprep.subr.mxu0 0.0
    %5951 = vmatpush1.msra.mxu0 0.0
    %5952 = vmatprep.subr.mxu0 0.0
    %5953 = vmatpush1.msra.mxu0 0.0
    %5954 = vmatprep.subr.mxu0 0.0
    %5955 = vmatpush1.msra.mxu0 0.0
    %5956 = vmatprep.subr.mxu0 0.0
    %5957 = vmatpush1.msra.mxu0 0.0
    %5958 = vmatprep.subr.mxu0 0.0
    %5959 = vmatpush1.msra.mxu0 0.0
    %5960 = vmatprep.subr.mxu0 0.0
    %5961 = vmatpush1.msra.mxu0 0.0
    %5962 = vmatprep.subr.mxu0 0.0
    %5963 = vmatpush1.msra.mxu0 0.0
    %5964 = vmatprep.subr.mxu0 0.0
    %5965 = vmatpush1.msra.mxu0 0.0
    %5966 = vmatprep.subr.mxu0 0.0
    %5967 = vmatpush1.msra.mxu0 0.0
    %5968 = vmatprep.subr.mxu0 0.0
    %5969 = vmatpush1.msra.mxu0 0.0
    %5970 = vmatprep.subr.mxu0 0.0
    %5971 = vmatpush1.msra.mxu0 0.0
    %5972 = vmatprep.subr.mxu0 0.0
    %5973 = vmatpush1.msra.mxu0 0.0
    %5974 = vmatprep.subr.mxu0 0.0
    %5975 = vmatpush1.msra.mxu0 0.0
    %5976 = vmatprep.mubr.f32.mxu0 0.0
    %5977 = vmatmul.mubr.f32.gmra.mrb[0].mxu0 %v5910
    %v5978 = vpop.f32.mrb[0].mxu0
    %v5979 = vadd.f32 %v5907, %v5978
    %v5980 = vpop.f32.mrb[0].mxu0
    %5981 = vdwg.mxu0
    %vm5982 = vcmask 25600
    %5983 = vst.msk [vmem:[#allocation15] sm:$0x3] %vm5982, %v5979
    // Predicated region
    $region54: #{tpu_custom_call.1} parent=1 // pred_check
      _
    $region55: #{tpu_custom_call.1} parent=1 // pred_check_branch
      %5985 = sbr.rel (0) target = $region57
    $region56: #{tpu_custom_call.1} parent=1 // pred_region
      %s5987 = ssub.s32 32, 32
      %5988 = vsyncadd [#allocation9], %s5987
      %s5990 = sshll.u32 [#allocation15], 4
      %s5991 = int_to_ptr.vmem [resolvable:$true] %s5990
      %5993 = dma.vmem_to_hbm [thread:$0]  %s5991, 32, %s9, [#allocation9]
    $region57: #{tpu_custom_call.1} parent=1 // pred_fallthru
      _
    // Predicated region
    $region58: #{tpu_custom_call.1} parent=1 // pred_check
      _
    $region59: #{tpu_custom_call.1} parent=1 // pred_check_branch
      %5995 = sbr.rel (0) target = $region61
    $region60: #{tpu_custom_call.1} parent=1 // pred_region
      %5996 = dma.done [#allocation9], 32
    $region61: #{tpu_custom_call.1} parent=1 // pred_fallthru
      _
    %5997 = vsyncpa [#allocation8], 1
    %5998 = vsyncpa [#allocation11], 1
    %5999 = vsyncpa [#allocation14], 1
    %6000 = vsyncpa [#allocation9], 1

</llo_original>
